<compile_context>
chip_gen: v7x
topology: tpu7x:2x2x1
jax: 0.10.0
libtpu: 0.0.40
codegen_flags: <defaults>
</compile_context>

<pallas_src>
import functools

import jax
import jax.numpy as jnp
from jax.experimental import pallas as pl
from jax.experimental.pallas import tpu as pltpu


# ----------------------------------------------------------------------------- helpers
def _vmem_limit_bytes():
    """Scoped-VMEM ask derived from the part's capacity (fallback: known-safe 32 MiB)."""
    cap = None
    try:
        cap = getattr(pltpu.get_tpu_info(), "vmem_capacity_bytes", None)
    except Exception:
        cap = None
    if not cap:
        return 32 * 1024 * 1024
    return max(32 * 1024 * 1024, min(int(cap) * 7 // 10, 96 * 1024 * 1024))


# ------------------------------------------------------------------------ fused kernel
def _heads_kernel(x_ref, w1_ref, b1_ref, w2k_ref, b2k_ref, w2o_ref, b2o_ref,
                  rw1_ref, rb1_ref, rw2_ref, rb2_ref,
                  heat_ref, offs_ref, coords_ref, *, H, W, M):
    # x_ref : ((H+2)*(W+2)+2, C) zero-padded, row-flattened NHWC feature map (one image)
    # w1_ref: (9, C, 2M) concatenated 3x3 weights (keypoint | offset), b1_ref: (1, 2M) f32
    # w2k_ref: (M, Kk), w2o_ref: (M, 2)  1x1 conv weights; biases f32
    # rw1_ref: (C, F) first Linear weight pre-scaled by 1/(H*W); rw2_ref: (F, Kr)
    Wp = W + 2
    HWp = H * Wp

    # ---- fused keypoint+offset 3x3 conv: 9 shifted-window MXU matmuls, f32 accumulation
    h = None
    for dy in range(3):
        for dx in range(3):
            start = dy * Wp + dx
            xw = x_ref[start:start + HWp, :]                      # (HWp, C) contiguous slice
            c = jnp.dot(xw, w1_ref[3 * dy + dx],
                        preferred_element_type=jnp.float32)       # (HWp, 2M)
            h = c if h is None else h + c
    h = jnp.maximum(h + b1_ref[...], 0.0)                         # bias + ReLU in f32

    # ---- keypoint head: 1x1 conv + sigmoid
    heat = jnp.dot(h[:, :M].astype(w2k_ref.dtype), w2k_ref[...],
                   preferred_element_type=jnp.float32) + b2k_ref[...]
    heat_ref[...] = (1.0 / (1.0 + jnp.exp(-heat))).astype(heat_ref.dtype)

    # ---- offset head: 1x1 conv
    offs = jnp.dot(h[:, M:].astype(w2o_ref.dtype), w2o_ref[...],
                   preferred_element_type=jnp.float32) + b2o_ref[...]
    offs_ref[...] = offs.astype(offs_ref.dtype)

    # ---- regression head: global average pool (padding rows are zero; 1/HW folded into rw1)
    pooled = jnp.sum(x_ref[...], axis=0, dtype=jnp.float32, keepdims=True)   # (1, C)
    z = jnp.dot(pooled.astype(rw1_ref.dtype), rw1_ref[...],
                preferred_element_type=jnp.float32) + rb1_ref[...]
    z = jnp.maximum(z, 0.0)
    coords = jnp.dot(z.astype(rw2_ref.dtype), rw2_ref[...],
                     preferred_element_type=jnp.float32) + rb2_ref[...]
    coords_ref[...] = coords.astype(coords_ref.dtype)


def _fused_heads(x_nhwc, params):
    """All three heads in one pallas_call; the feature map is read from HBM once per image."""
    B, H, W, C = x_nhwc.shape
    Wp = W + 2
    HWp = H * Wp
    L = (H + 2) * Wp + 2          # flat padded length + 2 guard pixels for the (dy=2,dx=2) tap

    kw1, kb1, kw2, kb2 = params["keypoint"]
    ow1, ob1, ow2, ob2 = params["offset"]
    rw1, rb1, rw2, rb2 = params["regression"]
    M = kw1.shape[-1]             # 256
    M2 = 2 * M
    Kk = kw2.shape[-1]
    Ko = ow2.shape[-1]
    F = rw1.shape[-1]             # 128
    Kr = rw2.shape[-1]
    cdt = x_nhwc.dtype            # compute dtype (bf16-ready; no f32 up-cast of MXU operands)

    # Zero-padded + row-flattened feature map (one cheap HBM pass; no 9x im2col blowup).
    xp = jnp.pad(x_nhwc, ((0, 0), (1, 1), (1, 1), (0, 0))).reshape(B, (H + 2) * Wp, C)
    xp = jnp.pad(xp, ((0, 0), (0, 2), (0, 0)))

    # Fuse the two conv-head first layers into one weight; cast all weights to the feature dtype.
    w1c = jnp.concatenate([kw1, ow1], axis=-1).reshape(9, C, M2).astype(cdt)
    b1c = jnp.concatenate([kb1, ob1]).reshape(1, M2).astype(jnp.float32)
    w2k = kw2.reshape(M, Kk).astype(cdt)
    b2k = kb2.reshape(1, Kk).astype(jnp.float32)
    w2o = ow2.reshape(M, Ko).astype(cdt)
    b2o = ob2.reshape(1, Ko).astype(jnp.float32)
    rw1s = (rw1.astype(jnp.float32) * (1.0 / float(H * W))).astype(cdt)   # fold mean's 1/HW
    rb1r = rb1.reshape(1, F).astype(jnp.float32)
    rw2r = rw2.astype(cdt)
    rb2r = rb2.reshape(1, Kr).astype(jnp.float32)

    kernel = functools.partial(_heads_kernel, H=H, W=W, M=M)
    heat, offs, coords = pl.pallas_call(
        kernel,
        out_shape=(
            jax.ShapeDtypeStruct((B, HWp, Kk), cdt),
            jax.ShapeDtypeStruct((B, HWp, Ko), cdt),
            jax.ShapeDtypeStruct((B, 1, Kr), jnp.float32),
        ),
        grid=(B,),
        in_specs=[
            pl.BlockSpec((None, L, C), lambda b: (b, 0, 0)),
            pl.BlockSpec((9, C, M2), lambda b: (0, 0, 0)),
            pl.BlockSpec((1, M2), lambda b: (0, 0)),
            pl.BlockSpec((M, Kk), lambda b: (0, 0)),
            pl.BlockSpec((1, Kk), lambda b: (0, 0)),
            pl.BlockSpec((M, Ko), lambda b: (0, 0)),
            pl.BlockSpec((1, Ko), lambda b: (0, 0)),
            pl.BlockSpec((C, F), lambda b: (0, 0)),
            pl.BlockSpec((1, F), lambda b: (0, 0)),
            pl.BlockSpec((F, Kr), lambda b: (0, 0)),
            pl.BlockSpec((1, Kr), lambda b: (0, 0)),
        ],
        out_specs=(
            pl.BlockSpec((None, HWp, Kk), lambda b: (b, 0, 0)),
            pl.BlockSpec((None, HWp, Ko), lambda b: (b, 0, 0)),
            pl.BlockSpec((None, 1, Kr), lambda b: (b, 0, 0)),
        ),
        compiler_params=pltpu.CompilerParams(
            dimension_semantics=("parallel",),
            vmem_limit_bytes=_vmem_limit_bytes(),
        ),
    )(xp, w1c, b1c, w2k, b2k, w2o, b2o, rw1s, rb1r, rw2r, rb2r)

    # Drop the two padded-width garbage columns per row (tiny output slice, done by XLA).
    heat = heat.reshape(B, H, Wp, Kk)[:, :, :W, :]
    offs = offs.reshape(B, H, Wp, Ko)[:, :, :W, :]
    return heat, offs, coords.reshape(B, Kr)


# ---------------------------------------------------------------------- model forward
def custom_mobilenet_v2_forward(feat_nchw, params):
    """Forward of CustomMobileNetV2's three heads (PyTorch NCHW in/out convention).
    feat_nchw is the backbone's output feature map (B, C_last, H, W)."""
    feat = jnp.transpose(feat_nchw, (0, 2, 3, 1))     # NHWC: channels lane-dense
    heat, offs, coords = _fused_heads(feat, params)
    return {
        "heatmap_pred": jnp.transpose(heat, (0, 3, 1, 2)),
        "offsets_pred": jnp.transpose(offs, (0, 3, 1, 2)),
        "coords_pred": coords,
    }


# --------------------------------------------------------------------------- init & ref
def init_params(key, in_channels, num_classes=1, num_keypoints=2,
                conv_hidden=256, fc_hidden=128):
    """Deterministic init (PyTorch-like scales). Conv weights HWIO, Linear as (in, out)."""
    ks = jax.random.split(key, 8)
    C = in_channels

    def normal(k, shape, std):
        return std * jax.random.normal(k, shape, jnp.float32)

    def uniform(k, shape, lim):
        return jax.random.uniform(k, shape, jnp.float32, -lim, lim)

    lim1 = 1.0 / (C ** 0.5)
    lim2 = 1.0 / (fc_hidden ** 0.5)
    return {
        "keypoint": (
            normal(ks[0], (3, 3, C, conv_hidden), 0.05),
            jnp.zeros((conv_hidden,), jnp.float32),
            normal(ks[1], (1, 1, conv_hidden, num_classes), 0.03),
            jnp.zeros((num_classes,), jnp.float32),
        ),
        "offset": (
            normal(ks[2], (3, 3, C, conv_hidden), 0.05),
            jnp.zeros((conv_hidden,), jnp.float32),
            normal(ks[3], (1, 1, conv_hidden, 2), 0.03),
            jnp.zeros((2,), jnp.float32),
        ),
        "regression": (
            uniform(ks[4], (C, fc_hidden), lim1),
            uniform(ks[5], (fc_hidden,), lim1),
            uniform(ks[6], (fc_hidden, num_keypoints), lim2),
            uniform(ks[7], (num_keypoints,), lim2),
        ),
    }


def _reference_forward(feat_nchw, params):
    feat = jnp.transpose(feat_nchw, (0, 2, 3, 1)).astype(jnp.float32)

    def conv(x, w, b):
        y = jax.lax.conv_general_dilated(
            x, w, window_strides=(1, 1), padding="SAME",
            dimension_numbers=("NHWC", "HWIO", "NHWC"))
        return y + b.reshape(1, 1, 1, -1)

    kw1, kb1, kw2, kb2 = params["keypoint"]
    h = jnp.maximum(conv(feat, kw1, kb1), 0.0)
    heat = jax.nn.sigmoid(conv(h, kw2, kb2))

    ow1, ob1, ow2, ob2 = params["offset"]
    h = jnp.maximum(conv(feat, ow1, ob1), 0.0)
    offs = conv(h, ow2, ob2)

    rw1, rb1, rw2, rb2 = params["regression"]
    pooled = jnp.mean(feat, axis=(1, 2))
    hh = jnp.maximum(pooled @ rw1 + rb1, 0.0)
    coords = hh @ rw2 + rb2

    return {
        "heatmap_pred": jnp.transpose(heat, (0, 3, 1, 2)),
        "offsets_pred": jnp.transpose(offs, (0, 3, 1, 2)),
        "coords_pred": coords,
    }


# --------------------------------------------------------------------------------- main
if __name__ == "__main__":
    key = jax.random.PRNGKey(0)
    kx, kp = jax.random.split(key)

    # Small stand-in for the backbone's output feature map (real MobileNetV2: C=1280).
    B, C, H, W = 2, 32, 16, 16
    num_classes = 1

    feat = jax.random.normal(kx, (B, C, H, W), dtype=jnp.float32)
    params = init_params(kp, C, num_classes=num_classes)

    out = custom_mobilenet_v2_forward(feat, params)
    out = jax.block_until_ready(out)

    ref = _reference_forward(feat, params)

    assert out["heatmap_pred"].shape == (B, num_classes, H, W)
    assert out["offsets_pred"].shape == (B, 2, H, W)
    assert out["coords_pred"].shape == (B, 2)
    assert jnp.allclose(out["coords_pred"], ref["coords_pred"], atol=1e-4, rtol=1e-4)
    assert jnp.allclose(out["heatmap_pred"], ref["heatmap_pred"], atol=1e-2, rtol=1e-2)
    assert jnp.allclose(out["offsets_pred"], ref["offsets_pred"], atol=1e-2, rtol=1e-2)

    print("KERNEL_OK")
</pallas_src>

<mosaic_0001>
module attributes {stable_mosaic.version = 11 : i64} {
  func.func @_heads_kernel(%arg0: i32, %arg1: memref<1x326x32xf32, #tpu.memory_space<vmem>>, %arg2: memref<9x32x512xf32, #tpu.memory_space<vmem>>, %arg3: memref<1x512xf32, #tpu.memory_space<vmem>>, %arg4: memref<256x1xf32, #tpu.memory_space<vmem>>, %arg5: memref<1x1xf32, #tpu.memory_space<vmem>>, %arg6: memref<256x2xf32, #tpu.memory_space<vmem>>, %arg7: memref<1x2xf32, #tpu.memory_space<vmem>>, %arg8: memref<32x128xf32, #tpu.memory_space<vmem>>, %arg9: memref<1x128xf32, #tpu.memory_space<vmem>>, %arg10: memref<128x2xf32, #tpu.memory_space<vmem>>, %arg11: memref<1x2xf32, #tpu.memory_space<vmem>>, %arg12: memref<1x288x1xf32, #tpu.memory_space<vmem>>, %arg13: memref<1x288x2xf32, #tpu.memory_space<vmem>>, %arg14: memref<1x1x2xf32, #tpu.memory_space<vmem>>) attributes {dimension_semantics = [#tpu.dimension_semantics<parallel>], iteration_bounds = array<i64: 2>, scalar_prefetch = 0 : i64, scratch_operands = 0 : i64, tpu.core_type = #tpu.core_type<tc>, window_params = [{transform_indices = @transform_0, window_bounds = array<i64: 1, 326, 32>}, {pipeline_mode = #tpu.pipeline_mode<synchronous>, transform_indices = @transform_1, window_bounds = array<i64: 9, 32, 512>}, {pipeline_mode = #tpu.pipeline_mode<synchronous>, transform_indices = @transform_2, window_bounds = array<i64: 1, 512>}, {pipeline_mode = #tpu.pipeline_mode<synchronous>, transform_indices = @transform_3, window_bounds = array<i64: 256, 1>}, {pipeline_mode = #tpu.pipeline_mode<synchronous>, transform_indices = @transform_4, window_bounds = array<i64: 1, 1>}, {pipeline_mode = #tpu.pipeline_mode<synchronous>, transform_indices = @transform_5, window_bounds = array<i64: 256, 2>}, {pipeline_mode = #tpu.pipeline_mode<synchronous>, transform_indices = @transform_6, window_bounds = array<i64: 1, 2>}, {pipeline_mode = #tpu.pipeline_mode<synchronous>, transform_indices = @transform_7, window_bounds = array<i64: 32, 128>}, {pipeline_mode = #tpu.pipeline_mode<synchronous>, transform_indices = @transform_8, window_bounds = array<i64: 1, 128>}, {pipeline_mode = #tpu.pipeline_mode<synchronous>, transform_indices = @transform_9, window_bounds = array<i64: 128, 2>}, {pipeline_mode = #tpu.pipeline_mode<synchronous>, transform_indices = @transform_10, window_bounds = array<i64: 1, 2>}, {transform_indices = @transform_11, window_bounds = array<i64: 1, 288, 1>}, {transform_indices = @transform_12, window_bounds = array<i64: 1, 288, 2>}, {transform_indices = @transform_13, window_bounds = array<i64: 1, 1, 2>}]} {
    %c0 = arith.constant 0 : index
    %c0_0 = arith.constant 0 : index
    %c0_1 = arith.constant 0 : index
    %0 = vector.load %arg1[%c0, %c0_0, %c0_1] : memref<1x326x32xf32, #tpu.memory_space<vmem>>, vector<1x288x32xf32>
    %1 = vector.shape_cast %0 : vector<1x288x32xf32> to vector<288x32xf32>
    %c0_2 = arith.constant 0 : index
    %c0_3 = arith.constant 0 : index
    %c0_4 = arith.constant 0 : index
    %2 = vector.load %arg2[%c0_2, %c0_3, %c0_4] : memref<9x32x512xf32, #tpu.memory_space<vmem>>, vector<1x32x512xf32>
    %3 = vector.shape_cast %2 : vector<1x32x512xf32> to vector<32x512xf32>
    %cst = arith.constant dense<0.000000e+00> : vector<288x512xf32>
    %4 = tpu.matmul %1, %3, %cst {dimension_numbers = #tpu.dot_dimension_numbers<[1], [0], [0], [1], [0, 0, 1, 1], [], []>} : vector<288x32xf32>, vector<32x512xf32>, vector<288x512xf32> -> vector<288x512xf32>
    %c0_5 = arith.constant 0 : index
    %c1 = arith.constant 1 : index
    %c0_6 = arith.constant 0 : index
    %5 = vector.load %arg1[%c0_5, %c1, %c0_6] : memref<1x326x32xf32, #tpu.memory_space<vmem>>, vector<1x288x32xf32>
    %6 = vector.shape_cast %5 : vector<1x288x32xf32> to vector<288x32xf32>
    %c1_7 = arith.constant 1 : index
    %c0_8 = arith.constant 0 : index
    %c0_9 = arith.constant 0 : index
    %7 = vector.load %arg2[%c1_7, %c0_8, %c0_9] : memref<9x32x512xf32, #tpu.memory_space<vmem>>, vector<1x32x512xf32>
    %8 = vector.shape_cast %7 : vector<1x32x512xf32> to vector<32x512xf32>
    %cst_10 = arith.constant dense<0.000000e+00> : vector<288x512xf32>
    %9 = tpu.matmul %6, %8, %cst_10 {dimension_numbers = #tpu.dot_dimension_numbers<[1], [0], [0], [1], [0, 0, 1, 1], [], []>} : vector<288x32xf32>, vector<32x512xf32>, vector<288x512xf32> -> vector<288x512xf32>
    %10 = arith.addf %4, %9 : vector<288x512xf32>
    %c0_11 = arith.constant 0 : index
    %c2 = arith.constant 2 : index
    %c0_12 = arith.constant 0 : index
    %11 = vector.load %arg1[%c0_11, %c2, %c0_12] : memref<1x326x32xf32, #tpu.memory_space<vmem>>, vector<1x288x32xf32>
    %12 = vector.shape_cast %11 : vector<1x288x32xf32> to vector<288x32xf32>
    %c2_13 = arith.constant 2 : index
    %c0_14 = arith.constant 0 : index
    %c0_15 = arith.constant 0 : index
    %13 = vector.load %arg2[%c2_13, %c0_14, %c0_15] : memref<9x32x512xf32, #tpu.memory_space<vmem>>, vector<1x32x512xf32>
    %14 = vector.shape_cast %13 : vector<1x32x512xf32> to vector<32x512xf32>
    %cst_16 = arith.constant dense<0.000000e+00> : vector<288x512xf32>
    %15 = tpu.matmul %12, %14, %cst_16 {dimension_numbers = #tpu.dot_dimension_numbers<[1], [0], [0], [1], [0, 0, 1, 1], [], []>} : vector<288x32xf32>, vector<32x512xf32>, vector<288x512xf32> -> vector<288x512xf32>
    %16 = arith.addf %10, %15 : vector<288x512xf32>
    %c0_17 = arith.constant 0 : index
    %c18 = arith.constant 18 : index
    %c0_18 = arith.constant 0 : index
    %17 = vector.load %arg1[%c0_17, %c18, %c0_18] : memref<1x326x32xf32, #tpu.memory_space<vmem>>, vector<1x288x32xf32>
    %18 = vector.shape_cast %17 : vector<1x288x32xf32> to vector<288x32xf32>
    %c3 = arith.constant 3 : index
    %c0_19 = arith.constant 0 : index
    %c0_20 = arith.constant 0 : index
    %19 = vector.load %arg2[%c3, %c0_19, %c0_20] : memref<9x32x512xf32, #tpu.memory_space<vmem>>, vector<1x32x512xf32>
    %20 = vector.shape_cast %19 : vector<1x32x512xf32> to vector<32x512xf32>
    %cst_21 = arith.constant dense<0.000000e+00> : vector<288x512xf32>
    %21 = tpu.matmul %18, %20, %cst_21 {dimension_numbers = #tpu.dot_dimension_numbers<[1], [0], [0], [1], [0, 0, 1, 1], [], []>} : vector<288x32xf32>, vector<32x512xf32>, vector<288x512xf32> -> vector<288x512xf32>
    %22 = arith.addf %16, %21 : vector<288x512xf32>
    %c0_22 = arith.constant 0 : index
    %c19 = arith.constant 19 : index
    %c0_23 = arith.constant 0 : index
    %23 = vector.load %arg1[%c0_22, %c19, %c0_23] : memref<1x326x32xf32, #tpu.memory_space<vmem>>, vector<1x288x32xf32>
    %24 = vector.shape_cast %23 : vector<1x288x32xf32> to vector<288x32xf32>
    %c4 = arith.constant 4 : index
    %c0_24 = arith.constant 0 : index
    %c0_25 = arith.constant 0 : index
    %25 = vector.load %arg2[%c4, %c0_24, %c0_25] : memref<9x32x512xf32, #tpu.memory_space<vmem>>, vector<1x32x512xf32>
    %26 = vector.shape_cast %25 : vector<1x32x512xf32> to vector<32x512xf32>
    %cst_26 = arith.constant dense<0.000000e+00> : vector<288x512xf32>
    %27 = tpu.matmul %24, %26, %cst_26 {dimension_numbers = #tpu.dot_dimension_numbers<[1], [0], [0], [1], [0, 0, 1, 1], [], []>} : vector<288x32xf32>, vector<32x512xf32>, vector<288x512xf32> -> vector<288x512xf32>
    %28 = arith.addf %22, %27 : vector<288x512xf32>
    %c0_27 = arith.constant 0 : index
    %c20 = arith.constant 20 : index
    %c0_28 = arith.constant 0 : index
    %29 = vector.load %arg1[%c0_27, %c20, %c0_28] : memref<1x326x32xf32, #tpu.memory_space<vmem>>, vector<1x288x32xf32>
    %30 = vector.shape_cast %29 : vector<1x288x32xf32> to vector<288x32xf32>
    %c5 = arith.constant 5 : index
    %c0_29 = arith.constant 0 : index
    %c0_30 = arith.constant 0 : index
    %31 = vector.load %arg2[%c5, %c0_29, %c0_30] : memref<9x32x512xf32, #tpu.memory_space<vmem>>, vector<1x32x512xf32>
    %32 = vector.shape_cast %31 : vector<1x32x512xf32> to vector<32x512xf32>
    %cst_31 = arith.constant dense<0.000000e+00> : vector<288x512xf32>
    %33 = tpu.matmul %30, %32, %cst_31 {dimension_numbers = #tpu.dot_dimension_numbers<[1], [0], [0], [1], [0, 0, 1, 1], [], []>} : vector<288x32xf32>, vector<32x512xf32>, vector<288x512xf32> -> vector<288x512xf32>
    %34 = arith.addf %28, %33 : vector<288x512xf32>
    %c0_32 = arith.constant 0 : index
    %c36 = arith.constant 36 : index
    %c0_33 = arith.constant 0 : index
    %35 = vector.load %arg1[%c0_32, %c36, %c0_33] : memref<1x326x32xf32, #tpu.memory_space<vmem>>, vector<1x288x32xf32>
    %36 = vector.shape_cast %35 : vector<1x288x32xf32> to vector<288x32xf32>
    %c6 = arith.constant 6 : index
    %c0_34 = arith.constant 0 : index
    %c0_35 = arith.constant 0 : index
    %37 = vector.load %arg2[%c6, %c0_34, %c0_35] : memref<9x32x512xf32, #tpu.memory_space<vmem>>, vector<1x32x512xf32>
    %38 = vector.shape_cast %37 : vector<1x32x512xf32> to vector<32x512xf32>
    %cst_36 = arith.constant dense<0.000000e+00> : vector<288x512xf32>
    %39 = tpu.matmul %36, %38, %cst_36 {dimension_numbers = #tpu.dot_dimension_numbers<[1], [0], [0], [1], [0, 0, 1, 1], [], []>} : vector<288x32xf32>, vector<32x512xf32>, vector<288x512xf32> -> vector<288x512xf32>
    %40 = arith.addf %34, %39 : vector<288x512xf32>
    %c0_37 = arith.constant 0 : index
    %c37 = arith.constant 37 : index
    %c0_38 = arith.constant 0 : index
    %41 = vector.load %arg1[%c0_37, %c37, %c0_38] : memref<1x326x32xf32, #tpu.memory_space<vmem>>, vector<1x288x32xf32>
    %42 = vector.shape_cast %41 : vector<1x288x32xf32> to vector<288x32xf32>
    %c7 = arith.constant 7 : index
    %c0_39 = arith.constant 0 : index
    %c0_40 = arith.constant 0 : index
    %43 = vector.load %arg2[%c7, %c0_39, %c0_40] : memref<9x32x512xf32, #tpu.memory_space<vmem>>, vector<1x32x512xf32>
    %44 = vector.shape_cast %43 : vector<1x32x512xf32> to vector<32x512xf32>
    %cst_41 = arith.constant dense<0.000000e+00> : vector<288x512xf32>
    %45 = tpu.matmul %42, %44, %cst_41 {dimension_numbers = #tpu.dot_dimension_numbers<[1], [0], [0], [1], [0, 0, 1, 1], [], []>} : vector<288x32xf32>, vector<32x512xf32>, vector<288x512xf32> -> vector<288x512xf32>
    %46 = arith.addf %40, %45 : vector<288x512xf32>
    %c0_42 = arith.constant 0 : index
    %c38 = arith.constant 38 : index
    %c0_43 = arith.constant 0 : index
    %47 = vector.load %arg1[%c0_42, %c38, %c0_43] : memref<1x326x32xf32, #tpu.memory_space<vmem>>, vector<1x288x32xf32>
    %48 = vector.shape_cast %47 : vector<1x288x32xf32> to vector<288x32xf32>
    %c8 = arith.constant 8 : index
    %c0_44 = arith.constant 0 : index
    %c0_45 = arith.constant 0 : index
    %49 = vector.load %arg2[%c8, %c0_44, %c0_45] : memref<9x32x512xf32, #tpu.memory_space<vmem>>, vector<1x32x512xf32>
    %50 = vector.shape_cast %49 : vector<1x32x512xf32> to vector<32x512xf32>
    %cst_46 = arith.constant dense<0.000000e+00> : vector<288x512xf32>
    %51 = tpu.matmul %48, %50, %cst_46 {dimension_numbers = #tpu.dot_dimension_numbers<[1], [0], [0], [1], [0, 0, 1, 1], [], []>} : vector<288x32xf32>, vector<32x512xf32>, vector<288x512xf32> -> vector<288x512xf32>
    %52 = arith.addf %46, %51 : vector<288x512xf32>
    %c0_47 = arith.constant 0 : index
    %c0_48 = arith.constant 0 : index
    %53 = vector.load %arg3[%c0_47, %c0_48] : memref<1x512xf32, #tpu.memory_space<vmem>>, vector<1x512xf32>
    %54 = vector.broadcast %53 : vector<1x512xf32> to vector<288x512xf32>
    %55 = arith.addf %52, %54 : vector<288x512xf32>
    %cst_49 = arith.constant 0.000000e+00 : f32
    %56 = vector.broadcast %cst_49 : f32 to vector<288x512xf32>
    %57 = arith.maximumf %55, %56 : vector<288x512xf32>
    %58 = vector.extract_strided_slice %57 {offsets = [0, 0], sizes = [288, 256], strides = [1, 1]} : vector<288x512xf32> to vector<288x256xf32>
    %c0_50 = arith.constant 0 : index
    %c0_51 = arith.constant 0 : index
    %59 = vector.load %arg4[%c0_50, %c0_51] : memref<256x1xf32, #tpu.memory_space<vmem>>, vector<256x1xf32>
    %cst_52 = arith.constant dense<0.000000e+00> : vector<288x1xf32>
    %60 = tpu.matmul %58, %59, %cst_52 {dimension_numbers = #tpu.dot_dimension_numbers<[1], [0], [0], [1], [0, 0, 1, 1], [], []>} : vector<288x256xf32>, vector<256x1xf32>, vector<288x1xf32> -> vector<288x1xf32>
    %c0_53 = arith.constant 0 : index
    %c0_54 = arith.constant 0 : index
    %61 = vector.load %arg5[%c0_53, %c0_54] : memref<1x1xf32, #tpu.memory_space<vmem>>, vector<1x1xf32>
    %62 = vector.broadcast %61 : vector<1x1xf32> to vector<288x1xf32>
    %63 = arith.addf %60, %62 : vector<288x1xf32>
    %cst_55 = arith.constant 0.000000e+00 : f32
    %64 = vector.broadcast %cst_55 : f32 to vector<288x1xf32>
    %65 = arith.subf %64, %63 : vector<288x1xf32>
    %66 = math.exp %65 : vector<288x1xf32>
    %cst_56 = arith.constant 1.000000e+00 : f32
    %67 = vector.broadcast %cst_56 : f32 to vector<288x1xf32>
    %68 = arith.addf %67, %66 : vector<288x1xf32>
    %cst_57 = arith.constant 1.000000e+00 : f32
    %69 = vector.broadcast %cst_57 : f32 to vector<288x1xf32>
    %70 = arith.divf %69, %68 : vector<288x1xf32>
    %c0_58 = arith.constant 0 : index
    %c0_59 = arith.constant 0 : index
    %c0_60 = arith.constant 0 : index
    %71 = vector.load %arg12[%c0_58, %c0_59, %c0_60] : memref<1x288x1xf32, #tpu.memory_space<vmem>>, vector<1x288x1xf32>
    %72 = vector.shape_cast %71 : vector<1x288x1xf32> to vector<288x1xf32>
    %73 = vector.shape_cast %70 : vector<288x1xf32> to vector<1x288x1xf32>
    tpu.vector_store %arg12[%c0_58, %c0_59, %c0_60], %73 {strides = array<i32>} : memref<1x288x1xf32, #tpu.memory_space<vmem>>, vector<1x288x1xf32>,
    %74 = vector.extract_strided_slice %57 {offsets = [0, 256], sizes = [288, 256], strides = [1, 1]} : vector<288x512xf32> to vector<288x256xf32>
    %c0_61 = arith.constant 0 : index
    %c0_62 = arith.constant 0 : index
    %75 = vector.load %arg6[%c0_61, %c0_62] : memref<256x2xf32, #tpu.memory_space<vmem>>, vector<256x2xf32>
    %cst_63 = arith.constant dense<0.000000e+00> : vector<288x2xf32>
    %76 = tpu.matmul %74, %75, %cst_63 {dimension_numbers = #tpu.dot_dimension_numbers<[1], [0], [0], [1], [0, 0, 1, 1], [], []>} : vector<288x256xf32>, vector<256x2xf32>, vector<288x2xf32> -> vector<288x2xf32>
    %c0_64 = arith.constant 0 : index
    %c0_65 = arith.constant 0 : index
    %77 = vector.load %arg7[%c0_64, %c0_65] : memref<1x2xf32, #tpu.memory_space<vmem>>, vector<1x2xf32>
    %78 = vector.broadcast %77 : vector<1x2xf32> to vector<288x2xf32>
    %79 = arith.addf %76, %78 : vector<288x2xf32>
    %c0_66 = arith.constant 0 : index
    %c0_67 = arith.constant 0 : index
    %c0_68 = arith.constant 0 : index
    %80 = vector.load %arg13[%c0_66, %c0_67, %c0_68] : memref<1x288x2xf32, #tpu.memory_space<vmem>>, vector<1x288x2xf32>
    %81 = vector.shape_cast %80 : vector<1x288x2xf32> to vector<288x2xf32>
    %82 = vector.shape_cast %79 : vector<288x2xf32> to vector<1x288x2xf32>
    tpu.vector_store %arg13[%c0_66, %c0_67, %c0_68], %82 {strides = array<i32>} : memref<1x288x2xf32, #tpu.memory_space<vmem>>, vector<1x288x2xf32>,
    %c0_69 = arith.constant 0 : index
    %c0_70 = arith.constant 0 : index
    %c0_71 = arith.constant 0 : index
    %83 = vector.load %arg1[%c0_69, %c0_70, %c0_71] : memref<1x326x32xf32, #tpu.memory_space<vmem>>, vector<1x326x32xf32>
    %84 = vector.shape_cast %83 : vector<1x326x32xf32> to vector<326x32xf32>
    %cst_72 = arith.constant dense<0.000000e+00> : vector<32xf32>
    %85 = vector.multi_reduction <add>, %84, %cst_72 [0] : vector<326x32xf32> to vector<32xf32>
    %86 = vector.shape_cast %85 : vector<32xf32> to vector<1x32xf32>
    %c0_73 = arith.constant 0 : index
    %c0_74 = arith.constant 0 : index
    %87 = vector.load %arg8[%c0_73, %c0_74] : memref<32x128xf32, #tpu.memory_space<vmem>>, vector<32x128xf32>
    %cst_75 = arith.constant dense<0.000000e+00> : vector<1x128xf32>
    %88 = tpu.matmul %86, %87, %cst_75 {dimension_numbers = #tpu.dot_dimension_numbers<[1], [0], [0], [1], [0, 0, 1, 1], [], []>} : vector<1x32xf32>, vector<32x128xf32>, vector<1x128xf32> -> vector<1x128xf32>
    %c0_76 = arith.constant 0 : index
    %c0_77 = arith.constant 0 : index
    %89 = vector.load %arg9[%c0_76, %c0_77] : memref<1x128xf32, #tpu.memory_space<vmem>>, vector<1x128xf32>
    %90 = arith.addf %88, %89 : vector<1x128xf32>
    %cst_78 = arith.constant 0.000000e+00 : f32
    %91 = vector.broadcast %cst_78 : f32 to vector<1x128xf32>
    %92 = arith.maximumf %90, %91 : vector<1x128xf32>
    %c0_79 = arith.constant 0 : index
    %c0_80 = arith.constant 0 : index
    %93 = vector.load %arg10[%c0_79, %c0_80] : memref<128x2xf32, #tpu.memory_space<vmem>>, vector<128x2xf32>
    %cst_81 = arith.constant dense<0.000000e+00> : vector<1x2xf32>
    %94 = tpu.matmul %92, %93, %cst_81 {dimension_numbers = #tpu.dot_dimension_numbers<[1], [0], [0], [1], [0, 0, 1, 1], [], []>} : vector<1x128xf32>, vector<128x2xf32>, vector<1x2xf32> -> vector<1x2xf32>
    %c0_82 = arith.constant 0 : index
    %c0_83 = arith.constant 0 : index
    %95 = vector.load %arg11[%c0_82, %c0_83] : memref<1x2xf32, #tpu.memory_space<vmem>>, vector<1x2xf32>
    %96 = arith.addf %94, %95 : vector<1x2xf32>
    %c0_84 = arith.constant 0 : index
    %c0_85 = arith.constant 0 : index
    %c0_86 = arith.constant 0 : index
    %97 = vector.load %arg14[%c0_84, %c0_85, %c0_86] : memref<1x1x2xf32, #tpu.memory_space<vmem>>, vector<1x1x2xf32>
    %98 = vector.shape_cast %97 : vector<1x1x2xf32> to vector<1x2xf32>
    %99 = vector.shape_cast %96 : vector<1x2xf32> to vector<1x1x2xf32>
    tpu.vector_store %arg14[%c0_84, %c0_85, %c0_86], %99 {strides = array<i32>} : memref<1x1x2xf32, #tpu.memory_space<vmem>>, vector<1x1x2xf32>,
    return
  }
  func.func @transform_0(%arg0: i32) -> (i32, i32, i32) {
    %c0_i32 = arith.constant 0 : i32
    %c0_i32_0 = arith.constant 0 : i32
    %c0_i32_1 = arith.constant 0 : i32
    return %arg0, %c0_i32, %c0_i32_0 : i32, i32, i32
  }
  func.func @transform_1(%arg0: i32) -> (i32, i32, i32) {
    %c0_i32 = arith.constant 0 : i32
    %c0_i32_0 = arith.constant 0 : i32
    %c0_i32_1 = arith.constant 0 : i32
    %c0_i32_2 = arith.constant 0 : i32
    return %c0_i32, %c0_i32_0, %c0_i32_1 : i32, i32, i32
  }
  func.func @transform_2(%arg0: i32) -> (i32, i32) {
    %c0_i32 = arith.constant 0 : i32
    %c0_i32_0 = arith.constant 0 : i32
    %c0_i32_1 = arith.constant 0 : i32
    return %c0_i32, %c0_i32_0 : i32, i32
  }
  func.func @transform_3(%arg0: i32) -> (i32, i32) {
    %c0_i32 = arith.constant 0 : i32
    %c0_i32_0 = arith.constant 0 : i32
    %c0_i32_1 = arith.constant 0 : i32
    return %c0_i32, %c0_i32_0 : i32, i32
  }
  func.func @transform_4(%arg0: i32) -> (i32, i32) {
    %c0_i32 = arith.constant 0 : i32
    %c0_i32_0 = arith.constant 0 : i32
    %c0_i32_1 = arith.constant 0 : i32
    return %c0_i32, %c0_i32_0 : i32, i32
  }
  func.func @transform_5(%arg0: i32) -> (i32, i32) {
    %c0_i32 = arith.constant 0 : i32
    %c0_i32_0 = arith.constant 0 : i32
    %c0_i32_1 = arith.constant 0 : i32
    return %c0_i32, %c0_i32_0 : i32, i32
  }
  func.func @transform_6(%arg0: i32) -> (i32, i32) {
    %c0_i32 = arith.constant 0 : i32
    %c0_i32_0 = arith.constant 0 : i32
    %c0_i32_1 = arith.constant 0 : i32
    return %c0_i32, %c0_i32_0 : i32, i32
  }
  func.func @transform_7(%arg0: i32) -> (i32, i32) {
    %c0_i32 = arith.constant 0 : i32
    %c0_i32_0 = arith.constant 0 : i32
    %c0_i32_1 = arith.constant 0 : i32
    return %c0_i32, %c0_i32_0 : i32, i32
  }
  func.func @transform_8(%arg0: i32) -> (i32, i32) {
    %c0_i32 = arith.constant 0 : i32
    %c0_i32_0 = arith.constant 0 : i32
    %c0_i32_1 = arith.constant 0 : i32
    return %c0_i32, %c0_i32_0 : i32, i32
  }
  func.func @transform_9(%arg0: i32) -> (i32, i32) {
    %c0_i32 = arith.constant 0 : i32
    %c0_i32_0 = arith.constant 0 : i32
    %c0_i32_1 = arith.constant 0 : i32
    return %c0_i32, %c0_i32_0 : i32, i32
  }
  func.func @transform_10(%arg0: i32) -> (i32, i32) {
    %c0_i32 = arith.constant 0 : i32
    %c0_i32_0 = arith.constant 0 : i32
    %c0_i32_1 = arith.constant 0 : i32
    return %c0_i32, %c0_i32_0 : i32, i32
  }
  func.func @transform_11(%arg0: i32) -> (i32, i32, i32) {
    %c0_i32 = arith.constant 0 : i32
    %c0_i32_0 = arith.constant 0 : i32
    %c0_i32_1 = arith.constant 0 : i32
    return %arg0, %c0_i32, %c0_i32_0 : i32, i32, i32
  }
  func.func @transform_12(%arg0: i32) -> (i32, i32, i32) {
    %c0_i32 = arith.constant 0 : i32
    %c0_i32_0 = arith.constant 0 : i32
    %c0_i32_1 = arith.constant 0 : i32
    return %arg0, %c0_i32, %c0_i32_0 : i32, i32, i32
  }
  func.func @transform_13(%arg0: i32) -> (i32, i32, i32) {
    %c0_i32 = arith.constant 0 : i32
    %c0_i32_0 = arith.constant 0 : i32
    %c0_i32_1 = arith.constant 0 : i32
    return %arg0, %c0_i32, %c0_i32_0 : i32, i32, i32
  }
}

</mosaic_0001>

<llo_original>
// kernel: tpu_custom_call.1
$region0: #{tpu_custom_call.1}
  #allocation0 [shape = 'u32[]', space=smem, size = 0x4, offset = 0x4, fixed_abs, tag = 'smem constant byte address 0x4 - core index']
  #allocation1 [shape = 'u32[144,128]{1,0:T(1,128)}', space=vmem, size = 0x12000, scoped, tag = 'internal scratch']
  #allocation2 [shape = 'f32[1,1]{1,0:T(1,128)S(1)}', space=vmem, size = 0x200, scoped, tag = 'scoped memory for tpu_custom_call.1']
  %s0 = inlined_call_operand.vmem [shape: f32[2,326,32], index: 0, kind: input, shape index: {}]
  %s1 = inlined_call_operand.vmem [shape: f32[9,32,512], index: 1, kind: input, shape index: {}]
  %s2 = inlined_call_operand.vmem [shape: f32[1,512], index: 2, kind: input, shape index: {}]
  %s3 = inlined_call_operand.vmem [shape: f32[256,1], index: 3, kind: input, shape index: {}]
  %s4 = inlined_call_operand.<no memory space> [shape: f32[1,1], index: 4, kind: input, shape index: {}]
  %s5 = inlined_call_operand.vmem [shape: f32[256,2], index: 5, kind: input, shape index: {}]
  %s6 = inlined_call_operand.vmem [shape: f32[1,2], index: 6, kind: input, shape index: {}]
  %s7 = inlined_call_operand.vmem [shape: f32[32,128], index: 7, kind: input, shape index: {}]
  %s8 = inlined_call_operand.vmem [shape: f32[1,128], index: 8, kind: input, shape index: {}]
  %s9 = inlined_call_operand.vmem [shape: f32[128,2], index: 9, kind: input, shape index: {}]
  %s10 = inlined_call_operand.vmem [shape: f32[1,2], index: 10, kind: input, shape index: {}]
  %s11 = inlined_call_operand.vmem [shape: f32[2,288,1], index: 11, kind: output, shape index: {0}]
  %s12 = inlined_call_operand.vmem [shape: f32[2,288,2], index: 12, kind: output, shape index: {1}]
  %s13 = inlined_call_operand.hbm [shape: f32[2,1,2], index: 13, kind: output, shape index: {2}]
  %14 = xla_tuple %s11, %s12, %s13
  %s15 = sld [smem:[#allocation0]]
  $region93: #{tpu_custom_call.1} parent=0
    _
  %s17 = ssub.s32 1, %s15
  %s18 = scalar_select 0, %s17, %s15
  %v19 = vstv %s4
  %20 = vst [vmem:[#allocation2] sm:$0x1] %v19
  $region1: #{tpu_custom_call.1} parent=0
    #allocation3 [shape = 'u8[1024]{0}', space=vmem, size = 0x400, scoped, tag = 'output window, operand 2']
    #allocation4 [shape = 's32[2]{0}', space=sflag, size = 0x8, scoped, tag = 'scoped memory for tpu_custom_call.1']
    %21 = vsyncpa [#allocation4], 0
    %s22 = scalar_lea.sflag [#allocation4], 1
    %23 = vsyncpa %s22, 0
    loop: start=0, step=1, limit=4
    $region2: #{tpu_custom_call.1} parent=1 // loop_pre_header
      _
    $region3: #{tpu_custom_call.1} parent=1 // loop_header
      %s25 = sphi 0, %s29
      %p26 = scmp.ge.s32.totalorder %s25, 4
      %s35 = sphi 0, %s37
      %s38 = sphi 0, %s35
      %s39 = sphi 0, %s38
      %s55 = sphi 0, %s39
      %s59 = sphi 0, %s59
      %s61 = sphi 0, %s59
      %s62 = sphi 0, %s61
      %s76 = sphi 0, %s62
      %s80 = sphi 0, %s80
      %s82 = sphi 0, %s80
      %s83 = sphi 0, %s82
      %s97 = sphi 0, %s83
      %s101 = sphi 0, %s101
      %s103 = sphi 0, %s101
      %s104 = sphi 0, %s103
      %s118 = sphi 0, %s104
      %s122 = sphi 0, %s122
      %s124 = sphi 0, %s122
      %s125 = sphi 0, %s124
      %s139 = sphi 0, %s125
      %s143 = sphi 0, %s143
      %s145 = sphi 0, %s143
      %s146 = sphi 0, %s145
      %s160 = sphi 0, %s146
      %s164 = sphi 0, %s164
      %s166 = sphi 0, %s164
      %s167 = sphi 0, %s166
      %s181 = sphi 0, %s167
      %s185 = sphi 0, %s185
      %s187 = sphi 0, %s185
      %s188 = sphi 0, %s187
      %s202 = sphi 0, %s188
      %s206 = sphi 0, %s206
      %s208 = sphi 0, %s206
      %s209 = sphi 0, %s208
      %s223 = sphi 0, %s209
      %s227 = sphi 0, %s227
      %s229 = sphi 0, %s227
      %s230 = sphi 0, %s229
      %s244 = sphi 0, %s230
      %s248 = sphi 0, %s248
      %s250 = sphi 0, %s248
      %s251 = sphi 0, %s250
      %s265 = sphi 0, %s251
      %s271 = sphi 0, %s273
      %s274 = sphi 0, %s271
      %s275 = sphi 0, %s274
      %s291 = sphi 0, %s275
      %s297 = sphi 0, %s299
      %s300 = sphi 0, %s297
      %s301 = sphi 0, %s300
      %s317 = sphi 0, %s301
      %s323 = sphi 0, %s325
      %s326 = sphi 0, %s323
      %s327 = sphi 0, %s326
      %s343 = sphi 0, %s327
    $region4: #{tpu_custom_call.1} parent=1 // loop_header_branch
      %28 = sbr.rel (%p26) target = $region8
    $region5: #{tpu_custom_call.1} parent=1 // loop_body
      %s30 = ssub.s32 %s25, 1
      %s31 = ssub.s32 %s25, 2
      %s32 = sadd.s32 %s25, 1
      %s33 = ssub.s32 %s25, %s32
      %p34 = scmp.eq.s32.totalorder %s33, 0
      %s36 = sadd.s32 %s35, 1
      %s37 = scalar_select %p34, %s35, %s36
      %p40 = pneg %p34
      %p41 = scmp.eq.s32.totalorder %s25, 1
      %p42 = por %p40, %p41
      %p43 = scmp.ne.s32.totalorder %s35, %s38
      %p44 = scmp.eq.s32.totalorder %s25, 0
      %p45 = por %p43, %p44
      %p46 = scmp.ne.s32.totalorder %s35, %s38
      %p47 = scmp.eq.s32.totalorder %s30, 1
      %p48 = por %p46, %p47
      %p49 = scmp.ne.s32.totalorder %s38, %s39
      %p50 = scmp.eq.s32.totalorder %s30, 0
      %p51 = por %p49, %p50
      %p52 = scmp.ne.s32.totalorder %s38, %s39
      %p53 = scmp.eq.s32.totalorder %s31, 1
      %p54 = por %p52, %p53
      %p56 = scmp.ne.s32.totalorder %s39, %s55
      %p57 = scmp.eq.s32.totalorder %s31, 0
      %p58 = por %p56, %p57
      %s60 = sadd.s32 %s59, 1
      %p63 = scmp.eq.s32.totalorder %s25, 1
      %p64 = scmp.ne.s32.totalorder %s59, %s61
      %p65 = scmp.eq.s32.totalorder %s25, 0
      %p66 = por %p64, %p65
      %p67 = scmp.ne.s32.totalorder %s59, %s61
      %p68 = scmp.eq.s32.totalorder %s30, 1
      %p69 = por %p67, %p68
      %p70 = scmp.ne.s32.totalorder %s61, %s62
      %p71 = scmp.eq.s32.totalorder %s30, 0
      %p72 = por %p70, %p71
      %p73 = scmp.ne.s32.totalorder %s61, %s62
      %p74 = scmp.eq.s32.totalorder %s31, 1
      %p75 = por %p73, %p74
      %p77 = scmp.ne.s32.totalorder %s62, %s76
      %p78 = scmp.eq.s32.totalorder %s31, 0
      %p79 = por %p77, %p78
      %s81 = sadd.s32 %s80, 1
      %p84 = scmp.eq.s32.totalorder %s25, 1
      %p85 = scmp.ne.s32.totalorder %s80, %s82
      %p86 = scmp.eq.s32.totalorder %s25, 0
      %p87 = por %p85, %p86
      %p88 = scmp.ne.s32.totalorder %s80, %s82
      %p89 = scmp.eq.s32.totalorder %s30, 1
      %p90 = por %p88, %p89
      %p91 = scmp.ne.s32.totalorder %s82, %s83
      %p92 = scmp.eq.s32.totalorder %s30, 0
      %p93 = por %p91, %p92
      %p94 = scmp.ne.s32.totalorder %s82, %s83
      %p95 = scmp.eq.s32.totalorder %s31, 1
      %p96 = por %p94, %p95
      %p98 = scmp.ne.s32.totalorder %s83, %s97
      %p99 = scmp.eq.s32.totalorder %s31, 0
      %p100 = por %p98, %p99
      %s102 = sadd.s32 %s101, 1
      %p105 = scmp.eq.s32.totalorder %s25, 1
      %p106 = scmp.ne.s32.totalorder %s101, %s103
      %p107 = scmp.eq.s32.totalorder %s25, 0
      %p108 = por %p106, %p107
      %p109 = scmp.ne.s32.totalorder %s101, %s103
      %p110 = scmp.eq.s32.totalorder %s30, 1
      %p111 = por %p109, %p110
      %p112 = scmp.ne.s32.totalorder %s103, %s104
      %p113 = scmp.eq.s32.totalorder %s30, 0
      %p114 = por %p112, %p113
      %p115 = scmp.ne.s32.totalorder %s103, %s104
      %p116 = scmp.eq.s32.totalorder %s31, 1
      %p117 = por %p115, %p116
      %p119 = scmp.ne.s32.totalorder %s104, %s118
      %p120 = scmp.eq.s32.totalorder %s31, 0
      %p121 = por %p119, %p120
      %s123 = sadd.s32 %s122, 1
      %p126 = scmp.eq.s32.totalorder %s25, 1
      %p127 = scmp.ne.s32.totalorder %s122, %s124
      %p128 = scmp.eq.s32.totalorder %s25, 0
      %p129 = por %p127, %p128
      %p130 = scmp.ne.s32.totalorder %s122, %s124
      %p131 = scmp.eq.s32.totalorder %s30, 1
      %p132 = por %p130, %p131
      %p133 = scmp.ne.s32.totalorder %s124, %s125
      %p134 = scmp.eq.s32.totalorder %s30, 0
      %p135 = por %p133, %p134
      %p136 = scmp.ne.s32.totalorder %s124, %s125
      %p137 = scmp.eq.s32.totalorder %s31, 1
      %p138 = por %p136, %p137
      %p140 = scmp.ne.s32.totalorder %s125, %s139
      %p141 = scmp.eq.s32.totalorder %s31, 0
      %p142 = por %p140, %p141
      %s144 = sadd.s32 %s143, 1
      %p147 = scmp.eq.s32.totalorder %s25, 1
      %p148 = scmp.ne.s32.totalorder %s143, %s145
      %p149 = scmp.eq.s32.totalorder %s25, 0
      %p150 = por %p148, %p149
      %p151 = scmp.ne.s32.totalorder %s143, %s145
      %p152 = scmp.eq.s32.totalorder %s30, 1
      %p153 = por %p151, %p152
      %p154 = scmp.ne.s32.totalorder %s145, %s146
      %p155 = scmp.eq.s32.totalorder %s30, 0
      %p156 = por %p154, %p155
      %p157 = scmp.ne.s32.totalorder %s145, %s146
      %p158 = scmp.eq.s32.totalorder %s31, 1
      %p159 = por %p157, %p158
      %p161 = scmp.ne.s32.totalorder %s146, %s160
      %p162 = scmp.eq.s32.totalorder %s31, 0
      %p163 = por %p161, %p162
      %s165 = sadd.s32 %s164, 1
      %p168 = scmp.eq.s32.totalorder %s25, 1
      %p169 = scmp.ne.s32.totalorder %s164, %s166
      %p170 = scmp.eq.s32.totalorder %s25, 0
      %p171 = por %p169, %p170
      %p172 = scmp.ne.s32.totalorder %s164, %s166
      %p173 = scmp.eq.s32.totalorder %s30, 1
      %p174 = por %p172, %p173
      %p175 = scmp.ne.s32.totalorder %s166, %s167
      %p176 = scmp.eq.s32.totalorder %s30, 0
      %p177 = por %p175, %p176
      %p178 = scmp.ne.s32.totalorder %s166, %s167
      %p179 = scmp.eq.s32.totalorder %s31, 1
      %p180 = por %p178, %p179
      %p182 = scmp.ne.s32.totalorder %s167, %s181
      %p183 = scmp.eq.s32.totalorder %s31, 0
      %p184 = por %p182, %p183
      %s186 = sadd.s32 %s185, 1
      %p189 = scmp.eq.s32.totalorder %s25, 1
      %p190 = scmp.ne.s32.totalorder %s185, %s187
      %p191 = scmp.eq.s32.totalorder %s25, 0
      %p192 = por %p190, %p191
      %p193 = scmp.ne.s32.totalorder %s185, %s187
      %p194 = scmp.eq.s32.totalorder %s30, 1
      %p195 = por %p193, %p194
      %p196 = scmp.ne.s32.totalorder %s187, %s188
      %p197 = scmp.eq.s32.totalorder %s30, 0
      %p198 = por %p196, %p197
      %p199 = scmp.ne.s32.totalorder %s187, %s188
      %p200 = scmp.eq.s32.totalorder %s31, 1
      %p201 = por %p199, %p200
      %p203 = scmp.ne.s32.totalorder %s188, %s202
      %p204 = scmp.eq.s32.totalorder %s31, 0
      %p205 = por %p203, %p204
      %s207 = sadd.s32 %s206, 1
      %p210 = scmp.eq.s32.totalorder %s25, 1
      %p211 = scmp.ne.s32.totalorder %s206, %s208
      %p212 = scmp.eq.s32.totalorder %s25, 0
      %p213 = por %p211, %p212
      %p214 = scmp.ne.s32.totalorder %s206, %s208
      %p215 = scmp.eq.s32.totalorder %s30, 1
      %p216 = por %p214, %p215
      %p217 = scmp.ne.s32.totalorder %s208, %s209
      %p218 = scmp.eq.s32.totalorder %s30, 0
      %p219 = por %p217, %p218
      %p220 = scmp.ne.s32.totalorder %s208, %s209
      %p221 = scmp.eq.s32.totalorder %s31, 1
      %p222 = por %p220, %p221
      %p224 = scmp.ne.s32.totalorder %s209, %s223
      %p225 = scmp.eq.s32.totalorder %s31, 0
      %p226 = por %p224, %p225
      %s228 = sadd.s32 %s227, 1
      %p231 = scmp.eq.s32.totalorder %s25, 1
      %p232 = scmp.ne.s32.totalorder %s227, %s229
      %p233 = scmp.eq.s32.totalorder %s25, 0
      %p234 = por %p232, %p233
      %p235 = scmp.ne.s32.totalorder %s227, %s229
      %p236 = scmp.eq.s32.totalorder %s30, 1
      %p237 = por %p235, %p236
      %p238 = scmp.ne.s32.totalorder %s229, %s230
      %p239 = scmp.eq.s32.totalorder %s30, 0
      %p240 = por %p238, %p239
      %p241 = scmp.ne.s32.totalorder %s229, %s230
      %p242 = scmp.eq.s32.totalorder %s31, 1
      %p243 = por %p241, %p242
      %p245 = scmp.ne.s32.totalorder %s230, %s244
      %p246 = scmp.eq.s32.totalorder %s31, 0
      %p247 = por %p245, %p246
      %s249 = sadd.s32 %s248, 1
      %p252 = scmp.eq.s32.totalorder %s25, 1
      %p253 = scmp.ne.s32.totalorder %s248, %s250
      %p254 = scmp.eq.s32.totalorder %s25, 0
      %p255 = por %p253, %p254
      %p256 = scmp.ne.s32.totalorder %s248, %s250
      %p257 = scmp.eq.s32.totalorder %s30, 1
      %p258 = por %p256, %p257
      %p259 = scmp.ne.s32.totalorder %s250, %s251
      %p260 = scmp.eq.s32.totalorder %s30, 0
      %p261 = por %p259, %p260
      %p262 = scmp.ne.s32.totalorder %s250, %s251
      %p263 = scmp.eq.s32.totalorder %s31, 1
      %p264 = por %p262, %p263
      %p266 = scmp.ne.s32.totalorder %s251, %s265
      %p267 = scmp.eq.s32.totalorder %s31, 0
      %p268 = por %p266, %p267
      %s269 = ssub.s32 %s25, %s32
      %p270 = scmp.eq.s32.totalorder %s269, 0
      %s272 = sadd.s32 %s271, 1
      %s273 = scalar_select %p270, %s271, %s272
      %p276 = pneg %p270
      %p277 = scmp.eq.s32.totalorder %s25, 1
      %p278 = por %p276, %p277
      %p279 = scmp.ne.s32.totalorder %s271, %s274
      %p280 = scmp.eq.s32.totalorder %s25, 0
      %p281 = por %p279, %p280
      %p282 = scmp.ne.s32.totalorder %s271, %s274
      %p283 = scmp.eq.s32.totalorder %s30, 1
      %p284 = por %p282, %p283
      %p285 = scmp.ne.s32.totalorder %s274, %s275
      %p286 = scmp.eq.s32.totalorder %s30, 0
      %p287 = por %p285, %p286
      %p288 = scmp.ne.s32.totalorder %s274, %s275
      %p289 = scmp.eq.s32.totalorder %s31, 1
      %p290 = por %p288, %p289
      %p292 = scmp.ne.s32.totalorder %s275, %s291
      %p293 = scmp.eq.s32.totalorder %s31, 0
      %p294 = por %p292, %p293
      %s295 = ssub.s32 %s25, %s32
      %p296 = scmp.eq.s32.totalorder %s295, 0
      %s298 = sadd.s32 %s297, 1
      %s299 = scalar_select %p296, %s297, %s298
      %p302 = pneg %p296
      %p303 = scmp.eq.s32.totalorder %s25, 1
      %p304 = por %p302, %p303
      %p305 = scmp.ne.s32.totalorder %s297, %s300
      %p306 = scmp.eq.s32.totalorder %s25, 0
      %p307 = por %p305, %p306
      %p308 = scmp.ne.s32.totalorder %s297, %s300
      %p309 = scmp.eq.s32.totalorder %s30, 1
      %p310 = por %p308, %p309
      %p311 = scmp.ne.s32.totalorder %s300, %s301
      %p312 = scmp.eq.s32.totalorder %s30, 0
      %p313 = por %p311, %p312
      %p314 = scmp.ne.s32.totalorder %s300, %s301
      %p315 = scmp.eq.s32.totalorder %s31, 1
      %p316 = por %p314, %p315
      %p318 = scmp.ne.s32.totalorder %s301, %s317
      %p319 = scmp.eq.s32.totalorder %s31, 0
      %p320 = por %p318, %p319
      %s321 = ssub.s32 %s25, %s32
      %p322 = scmp.eq.s32.totalorder %s321, 0
      %s324 = sadd.s32 %s323, 1
      %s325 = scalar_select %p322, %s323, %s324
      %p328 = pneg %p322
      %p329 = scmp.eq.s32.totalorder %s25, 1
      %p330 = por %p328, %p329
      %p331 = scmp.ne.s32.totalorder %s323, %s326
      %p332 = scmp.eq.s32.totalorder %s25, 0
      %p333 = por %p331, %p332
      %p334 = scmp.ne.s32.totalorder %s323, %s326
      %p335 = scmp.eq.s32.totalorder %s30, 1
      %p336 = por %p334, %p335
      %p337 = scmp.ne.s32.totalorder %s326, %s327
      %p338 = scmp.eq.s32.totalorder %s30, 0
      %p339 = por %p337, %p338
      %p340 = scmp.ne.s32.totalorder %s326, %s327
      %p341 = scmp.eq.s32.totalorder %s31, 1
      %p342 = por %p340, %p341
      %p344 = scmp.ne.s32.totalorder %s327, %s343
      %p345 = scmp.eq.s32.totalorder %s31, 0
      %p346 = por %p344, %p345
      %p347 = scmp.le.s32.totalorder 1, %s25
      %p348 = scmp.lt.s32.totalorder %s25, 3
      %p349 = pnand %p347, %p348
      %p350 = pneg %p349
      // Predicated region
      $region9: #{tpu_custom_call.1} parent=5 // pred_check
        _
      $region10: #{tpu_custom_call.1} parent=5 // pred_check_branch
        %352 = sbr.rel (%p349) target = $region12
      $region11: #{tpu_custom_call.1} parent=5 // pred_region
        %s353 = ssub.s32 %s25, 1
        // Predicated region
        $region13: #{tpu_custom_call.1} parent=11 // pred_check
          %p354 = pneg %p72
        $region14: #{tpu_custom_call.1} parent=11 // pred_check_branch
          %356 = sbr.rel (%p354) target = $region16
        $region15: #{tpu_custom_call.1} parent=11 // pred_region
          _
        $region16: #{tpu_custom_call.1} parent=11 // pred_fallthru
          _
        // Predicated region
        $region17: #{tpu_custom_call.1} parent=11 // pred_check
          %p357 = pneg %p93
        $region18: #{tpu_custom_call.1} parent=11 // pred_check_branch
          %359 = sbr.rel (%p357) target = $region20
        $region19: #{tpu_custom_call.1} parent=11 // pred_region
          _
        $region20: #{tpu_custom_call.1} parent=11 // pred_fallthru
          _
        // Predicated region
        $region21: #{tpu_custom_call.1} parent=11 // pred_check
          %p360 = pneg %p114
        $region22: #{tpu_custom_call.1} parent=11 // pred_check_branch
          %362 = sbr.rel (%p360) target = $region24
        $region23: #{tpu_custom_call.1} parent=11 // pred_region
          _
        $region24: #{tpu_custom_call.1} parent=11 // pred_fallthru
          _
        // Predicated region
        $region25: #{tpu_custom_call.1} parent=11 // pred_check
          %p363 = pneg %p135
        $region26: #{tpu_custom_call.1} parent=11 // pred_check_branch
          %365 = sbr.rel (%p363) target = $region28
        $region27: #{tpu_custom_call.1} parent=11 // pred_region
          _
        $region28: #{tpu_custom_call.1} parent=11 // pred_fallthru
          _
        // Predicated region
        $region29: #{tpu_custom_call.1} parent=11 // pred_check
          %p366 = pneg %p156
        $region30: #{tpu_custom_call.1} parent=11 // pred_check_branch
          %368 = sbr.rel (%p366) target = $region32
        $region31: #{tpu_custom_call.1} parent=11 // pred_region
          _
        $region32: #{tpu_custom_call.1} parent=11 // pred_fallthru
          _
        // Predicated region
        $region33: #{tpu_custom_call.1} parent=11 // pred_check
          %p369 = pneg %p177
        $region34: #{tpu_custom_call.1} parent=11 // pred_check_branch
          %371 = sbr.rel (%p369) target = $region36
        $region35: #{tpu_custom_call.1} parent=11 // pred_region
          _
        $region36: #{tpu_custom_call.1} parent=11 // pred_fallthru
          _
        // Predicated region
        $region37: #{tpu_custom_call.1} parent=11 // pred_check
          %p372 = pneg %p198
        $region38: #{tpu_custom_call.1} parent=11 // pred_check_branch
          %374 = sbr.rel (%p372) target = $region40
        $region39: #{tpu_custom_call.1} parent=11 // pred_region
          _
        $region40: #{tpu_custom_call.1} parent=11 // pred_fallthru
          _
        // Predicated region
        $region41: #{tpu_custom_call.1} parent=11 // pred_check
          %p375 = pneg %p219
        $region42: #{tpu_custom_call.1} parent=11 // pred_check_branch
          %377 = sbr.rel (%p375) target = $region44
        $region43: #{tpu_custom_call.1} parent=11 // pred_region
          _
        $region44: #{tpu_custom_call.1} parent=11 // pred_fallthru
          _
        // Predicated region
        $region45: #{tpu_custom_call.1} parent=11 // pred_check
          %p378 = pneg %p240
        $region46: #{tpu_custom_call.1} parent=11 // pred_check_branch
          %380 = sbr.rel (%p378) target = $region48
        $region47: #{tpu_custom_call.1} parent=11 // pred_region
          _
        $region48: #{tpu_custom_call.1} parent=11 // pred_fallthru
          _
        // Predicated region
        $region49: #{tpu_custom_call.1} parent=11 // pred_check
          %p381 = pneg %p261
        $region50: #{tpu_custom_call.1} parent=11 // pred_check_branch
          %383 = sbr.rel (%p381) target = $region52
        $region51: #{tpu_custom_call.1} parent=11 // pred_region
          _
        $region52: #{tpu_custom_call.1} parent=11 // pred_fallthru
          _
      $region12: #{tpu_custom_call.1} parent=5 // pred_fallthru
        _
      %p384 = scmp.lt.s32.totalorder %s25, 2
      // Predicated region
      $region53: #{tpu_custom_call.1} parent=5 // pred_check
        %p385 = pneg %p384
      $region54: #{tpu_custom_call.1} parent=5 // pred_check_branch
        %387 = sbr.rel (%p385) target = $region56
      $region55: #{tpu_custom_call.1} parent=5 // pred_region
        // Predicated region
        $region57: #{tpu_custom_call.1} parent=55 // pred_check
          %p388 = pneg %p45
        $region58: #{tpu_custom_call.1} parent=55 // pred_check_branch
          %390 = sbr.rel (%p388) target = $region60
        $region59: #{tpu_custom_call.1} parent=55 // pred_region
          %p391 = scmp.lt.s32.totalorder %s25, 1
          %s392 = scalar_select %p391, %s25, 1
          %s393 = smul.addr %s392, 41
          %s394 = smul.addr %s393, 8
          %s395 = scalar_lea.vmem %s0, %s394
        $region60: #{tpu_custom_call.1} parent=55 // pred_fallthru
          _
      $region56: #{tpu_custom_call.1} parent=5 // pred_fallthru
        _
      %p396 = scmp.le.s32.totalorder 1, %s25
      %p397 = scmp.lt.s32.totalorder %s25, 3
      %p398 = pnand %p396, %p397
      %p399 = pneg %p398
      // Predicated region
      $region61: #{tpu_custom_call.1} parent=5 // pred_check
        _
      $region62: #{tpu_custom_call.1} parent=5 // pred_check_branch
        %401 = sbr.rel (%p398) target = $region64
      $region63: #{tpu_custom_call.1} parent=5 // pred_region
        %s402 = ssub.s32 %s25, 1
        %p403 = scmp.lt.s32.totalorder %s30, 1
        %s404 = scalar_select %p403, %s30, 1
        %s405 = smul.addr %s404, 41
        %s406 = smul.addr %s405, 8
        %s407 = scalar_lea.vmem %s0, %s406
        %p408 = pneg %p51
        %p409 = pneg %p48
        %p410 = pneg %p72
        %p411 = pneg %p69
        %p412 = pneg %p93
        %p413 = pneg %p90
        %p414 = pneg %p114
        %p415 = pneg %p111
        %p416 = pneg %p135
        %p417 = pneg %p132
        %p418 = pneg %p156
        %p419 = pneg %p153
        %p420 = pneg %p177
        %p421 = pneg %p174
        %p422 = pneg %p198
        %p423 = pneg %p195
        %p424 = pneg %p219
        %p425 = pneg %p216
        %p426 = pneg %p240
        %p427 = pneg %p237
        %p428 = pneg %p261
        %p429 = pneg %p258
        %p430 = pneg %p287
        %p431 = pneg %p284
        %p432 = scmp.lt.s32.totalorder %s30, 1
        %s433 = scalar_select %p432, %s30, 1
        %s434 = smul.addr %s433, 36
        %s435 = smul.addr %s434, 8
        %s436 = scalar_lea.vmem %s11, %s435
        %p437 = pneg %p313
        %p438 = pneg %p310
        %p439 = scmp.lt.s32.totalorder %s30, 1
        %s440 = scalar_select %p439, %s30, 1
        %s441 = smul.addr %s440, 36
        %s442 = smul.addr %s441, 8
        %s443 = scalar_lea.vmem %s12, %s442
        %p444 = pneg %p339
        %p445 = pneg %p336
        %s446 = sand.u32 %s326, 1
        %s447 = scalar_lea.sflag [#allocation4], %s446
        %s448 = sand.u32 %s326, 1
        %s449 = scalar_lea.vmem [#allocation3], %s448
        %p450 = scmp.lt.s32.totalorder %s30, 1
        %s451 = scalar_select %p450, %s30, 1
        %s452 = smul.addr %s451, 41
        %s453 = smul.addr %s452, 8
        %s454 = scalar_lea.vmem %s0, %s453
        %p455 = scmp.lt.s32.totalorder %s30, 1
        %s456 = scalar_select %p455, %s30, 1
        %s457 = smul.addr %s456, 36
        %s458 = smul.addr %s457, 8
        %s459 = scalar_lea.vmem %s11, %s458
        %p460 = scmp.lt.s32.totalorder %s30, 1
        %s461 = scalar_select %p460, %s30, 1
        %s462 = smul.addr %s461, 36
        %s463 = smul.addr %s462, 8
        %s464 = scalar_lea.vmem %s12, %s463
        %v465 = vld [vmem:[%s454] sm:$0xff]
        %v466 = vld [vmem:[%s454 + $0x8] sm:$0xff]
        %v467 = vld [vmem:[%s454 + $0x10] sm:$0xff]
        %v468 = vld [vmem:[%s454 + $0x18] sm:$0xff]
        %v469 = vld [vmem:[%s454 + $0x20] sm:$0xff]
        %v470 = vld [vmem:[%s454 + $0x28] sm:$0xff]
        %v471 = vld [vmem:[%s454 + $0x30] sm:$0xff]
        %v472 = vld [vmem:[%s454 + $0x38] sm:$0xff]
        %v473 = vld [vmem:[%s454 + $0x40] sm:$0xff]
        %v474 = vld [vmem:[%s454 + $0x48] sm:$0xff]
        %v475 = vld [vmem:[%s454 + $0x50] sm:$0xff]
        %v476 = vld [vmem:[%s454 + $0x58] sm:$0xff]
        %v477 = vld [vmem:[%s454 + $0x60] sm:$0xff]
        %v478 = vld [vmem:[%s454 + $0x68] sm:$0xff]
        %v479 = vld [vmem:[%s454 + $0x70] sm:$0xff]
        %v480 = vld [vmem:[%s454 + $0x78] sm:$0xff]
        %v481 = vld [vmem:[%s454 + $0x80] sm:$0xff]
        %v482 = vld [vmem:[%s454 + $0x88] sm:$0xff]
        %v483 = vld [vmem:[%s454 + $0x90] sm:$0xff]
        %v484 = vld [vmem:[%s454 + $0x98] sm:$0xff]
        %v485 = vld [vmem:[%s454 + $0xa0] sm:$0xff]
        %v486 = vld [vmem:[%s454 + $0xa8] sm:$0xff]
        %v487 = vld [vmem:[%s454 + $0xb0] sm:$0xff]
        %v488 = vld [vmem:[%s454 + $0xb8] sm:$0xff]
        %v489 = vld [vmem:[%s454 + $0xc0] sm:$0xff]
        %v490 = vld [vmem:[%s454 + $0xc8] sm:$0xff]
        %v491 = vld [vmem:[%s454 + $0xd0] sm:$0xff]
        %v492 = vld [vmem:[%s454 + $0xd8] sm:$0xff]
        %v493 = vld [vmem:[%s454 + $0xe0] sm:$0xff]
        %v494 = vld [vmem:[%s454 + $0xe8] sm:$0xff]
        %v495 = vld [vmem:[%s454 + $0xf0] sm:$0xff]
        %v496 = vld [vmem:[%s454 + $0xf8] sm:$0xff]
        %v497 = vld [vmem:[%s454 + $0x100] sm:$0xff]
        %v498 = vld [vmem:[%s454 + $0x108] sm:$0xff]
        %v499 = vld [vmem:[%s454 + $0x110] sm:$0xff]
        %v500 = vld [vmem:[%s454 + $0x118] sm:$0xff]
        %v501 = vld [vmem:[%s1] sm:$0xff]
        %v502 = vld [vmem:[%s1 + $0x8] sm:$0xff]
        %v503 = vld [vmem:[%s1 + $0x10] sm:$0xff]
        %v504 = vld [vmem:[%s1 + $0x18] sm:$0xff]
        %v505 = vld [vmem:[%s1 + $0x20] sm:$0xff]
        %v506 = vld [vmem:[%s1 + $0x28] sm:$0xff]
        %v507 = vld [vmem:[%s1 + $0x30] sm:$0xff]
        %v508 = vld [vmem:[%s1 + $0x38] sm:$0xff]
        %v509 = vld [vmem:[%s1 + $0x40] sm:$0xff]
        %v510 = vld [vmem:[%s1 + $0x48] sm:$0xff]
        %v511 = vld [vmem:[%s1 + $0x50] sm:$0xff]
        %v512 = vld [vmem:[%s1 + $0x58] sm:$0xff]
        %v513 = vld [vmem:[%s1 + $0x60] sm:$0xff]
        %v514 = vld [vmem:[%s1 + $0x68] sm:$0xff]
        %v515 = vld [vmem:[%s1 + $0x70] sm:$0xff]
        %v516 = vld [vmem:[%s1 + $0x78] sm:$0xff]
        %v517 = vld [vmem:[%s454 + $0x1] sm:$0xff]
        %v518 = vld [vmem:[%s454 + $0x9] sm:$0xff]
        %v519 = vld [vmem:[%s454 + $0x11] sm:$0xff]
        %v520 = vld [vmem:[%s454 + $0x19] sm:$0xff]
        %v521 = vld [vmem:[%s454 + $0x21] sm:$0xff]
        %v522 = vld [vmem:[%s454 + $0x29] sm:$0xff]
        %v523 = vld [vmem:[%s454 + $0x31] sm:$0xff]
        %v524 = vld [vmem:[%s454 + $0x39] sm:$0xff]
        %v525 = vld [vmem:[%s454 + $0x41] sm:$0xff]
        %v526 = vld [vmem:[%s454 + $0x49] sm:$0xff]
        %v527 = vld [vmem:[%s454 + $0x51] sm:$0xff]
        %v528 = vld [vmem:[%s454 + $0x59] sm:$0xff]
        %v529 = vld [vmem:[%s454 + $0x61] sm:$0xff]
        %v530 = vld [vmem:[%s454 + $0x69] sm:$0xff]
        %v531 = vld [vmem:[%s454 + $0x71] sm:$0xff]
        %v532 = vld [vmem:[%s454 + $0x79] sm:$0xff]
        %v533 = vld [vmem:[%s454 + $0x81] sm:$0xff]
        %v534 = vld [vmem:[%s454 + $0x89] sm:$0xff]
        %v535 = vld [vmem:[%s454 + $0x91] sm:$0xff]
        %v536 = vld [vmem:[%s454 + $0x99] sm:$0xff]
        %v537 = vld [vmem:[%s454 + $0xa1] sm:$0xff]
        %v538 = vld [vmem:[%s454 + $0xa9] sm:$0xff]
        %v539 = vld [vmem:[%s454 + $0xb1] sm:$0xff]
        %v540 = vld [vmem:[%s454 + $0xb9] sm:$0xff]
        %v541 = vld [vmem:[%s454 + $0xc1] sm:$0xff]
        %v542 = vld [vmem:[%s454 + $0xc9] sm:$0xff]
        %v543 = vld [vmem:[%s454 + $0xd1] sm:$0xff]
        %v544 = vld [vmem:[%s454 + $0xd9] sm:$0xff]
        %v545 = vld [vmem:[%s454 + $0xe1] sm:$0xff]
        %v546 = vld [vmem:[%s454 + $0xe9] sm:$0xff]
        %v547 = vld [vmem:[%s454 + $0xf1] sm:$0xff]
        %v548 = vld [vmem:[%s454 + $0xf9] sm:$0xff]
        %v549 = vld [vmem:[%s454 + $0x101] sm:$0xff]
        %v550 = vld [vmem:[%s454 + $0x109] sm:$0xff]
        %v551 = vld [vmem:[%s454 + $0x111] sm:$0xff]
        %v552 = vld [vmem:[%s454 + $0x119] sm:$0xff]
        %s553 = scalar_lea.vmem %s1, 128
        %v554 = vld [vmem:[%s553] sm:$0xff]
        %v555 = vld [vmem:[%s553 + $0x8] sm:$0xff]
        %v556 = vld [vmem:[%s553 + $0x10] sm:$0xff]
        %v557 = vld [vmem:[%s553 + $0x18] sm:$0xff]
        %v558 = vld [vmem:[%s553 + $0x20] sm:$0xff]
        %v559 = vld [vmem:[%s553 + $0x28] sm:$0xff]
        %v560 = vld [vmem:[%s553 + $0x30] sm:$0xff]
        %v561 = vld [vmem:[%s553 + $0x38] sm:$0xff]
        %v562 = vld [vmem:[%s553 + $0x40] sm:$0xff]
        %v563 = vld [vmem:[%s553 + $0x48] sm:$0xff]
        %v564 = vld [vmem:[%s553 + $0x50] sm:$0xff]
        %v565 = vld [vmem:[%s553 + $0x58] sm:$0xff]
        %v566 = vld [vmem:[%s553 + $0x60] sm:$0xff]
        %v567 = vld [vmem:[%s553 + $0x68] sm:$0xff]
        %v568 = vld [vmem:[%s553 + $0x70] sm:$0xff]
        %v569 = vld [vmem:[%s553 + $0x78] sm:$0xff]
        %vm570 = vcmask 261120
        %v572 = vsel %vm570, %v517, 0
        %v575 = vsel %vm570, %v518, 0
        %v578 = vsel %vm570, %v519, 0
        %v581 = vsel %vm570, %v520, 0
        %v584 = vsel %vm570, %v521, 0
        %v587 = vsel %vm570, %v522, 0
        %v590 = vsel %vm570, %v523, 0
        %v593 = vsel %vm570, %v524, 0
        %v596 = vsel %vm570, %v525, 0
        %v599 = vsel %vm570, %v526, 0
        %v602 = vsel %vm570, %v527, 0
        %v605 = vsel %vm570, %v528, 0
        %v608 = vsel %vm570, %v529, 0
        %v611 = vsel %vm570, %v530, 0
        %v614 = vsel %vm570, %v531, 0
        %v617 = vsel %vm570, %v532, 0
        %v620 = vsel %vm570, %v533, 0
        %v623 = vsel %vm570, %v534, 0
        %v626 = vsel %vm570, %v535, 0
        %v629 = vsel %vm570, %v536, 0
        %v632 = vsel %vm570, %v537, 0
        %v635 = vsel %vm570, %v538, 0
        %v638 = vsel %vm570, %v539, 0
        %v641 = vsel %vm570, %v540, 0
        %v644 = vsel %vm570, %v541, 0
        %v647 = vsel %vm570, %v542, 0
        %v650 = vsel %vm570, %v543, 0
        %v653 = vsel %vm570, %v544, 0
        %v656 = vsel %vm570, %v545, 0
        %v659 = vsel %vm570, %v546, 0
        %v662 = vsel %vm570, %v547, 0
        %v665 = vsel %vm570, %v548, 0
        %v668 = vsel %vm570, %v549, 0
        %v671 = vsel %vm570, %v550, 0
        %v674 = vsel %vm570, %v551, 0
        %v677 = vsel %vm570, %v552, 0
        %679 = vmatprep.subr.mxu0 %v555
        %680 = vmatpush1.msra.mxu0 %v554
        %681 = vmatprep.subr.mxu0 %v559
        %682 = vmatpush1.msra.mxu0 %v558
        %683 = vmatprep.subr.mxu0 %v563
        %684 = vmatpush1.msra.mxu0 %v562
        %685 = vmatprep.subr.mxu0 %v567
        %686 = vmatpush1.msra.mxu0 %v566
        %687 = vmatprep.subr.mxu0 0.0
        %688 = vmatpush1.msra.mxu0 0.0
        %689 = vmatprep.subr.mxu0 0.0
        %690 = vmatpush1.msra.mxu0 0.0
        %691 = vmatprep.subr.mxu0 0.0
        %692 = vmatpush1.msra.mxu0 0.0
        %693 = vmatprep.subr.mxu0 0.0
        %694 = vmatpush1.msra.mxu0 0.0
        %695 = vmatprep.subr.mxu0 0.0
        %696 = vmatpush1.msra.mxu0 0.0
        %697 = vmatprep.subr.mxu0 0.0
        %698 = vmatpush1.msra.mxu0 0.0
        %699 = vmatprep.subr.mxu0 0.0
        %700 = vmatpush1.msra.mxu0 0.0
        %701 = vmatprep.subr.mxu0 0.0
        %702 = vmatpush1.msra.mxu0 0.0
        %703 = vmatprep.subr.mxu0 0.0
        %704 = vmatpush1.msra.mxu0 0.0
        %705 = vmatprep.subr.mxu0 0.0
        %706 = vmatpush1.msra.mxu0 0.0
        %707 = vmatprep.subr.mxu0 0.0
        %708 = vmatpush1.msra.mxu0 0.0
        %709 = vmatprep.subr.mxu0 0.0
        %710 = vmatpush1.msra.mxu0 0.0
        %711 = vmatprep.subr.mxu0 0.0
        %712 = vmatpush1.msra.mxu0 0.0
        %713 = vmatprep.subr.mxu0 0.0
        %714 = vmatpush1.msra.mxu0 0.0
        %715 = vmatprep.subr.mxu0 0.0
        %716 = vmatpush1.msra.mxu0 0.0
        %717 = vmatprep.subr.mxu0 0.0
        %718 = vmatpush1.msra.mxu0 0.0
        %719 = vmatprep.subr.mxu0 0.0
        %720 = vmatpush1.msra.mxu0 0.0
        %721 = vmatprep.subr.mxu0 0.0
        %722 = vmatpush1.msra.mxu0 0.0
        %723 = vmatprep.subr.mxu0 0.0
        %724 = vmatpush1.msra.mxu0 0.0
        %725 = vmatprep.subr.mxu0 0.0
        %726 = vmatpush1.msra.mxu0 0.0
        %727 = vmatprep.subr.mxu0 0.0
        %728 = vmatpush1.msra.mxu0 0.0
        %729 = vmatprep.subr.mxu0 0.0
        %730 = vmatpush1.msra.mxu0 0.0
        %731 = vmatprep.subr.mxu0 0.0
        %732 = vmatpush1.msra.mxu0 0.0
        %733 = vmatprep.subr.mxu0 0.0
        %734 = vmatpush1.msra.mxu0 0.0
        %735 = vmatprep.subr.mxu0 0.0
        %736 = vmatpush1.msra.mxu0 0.0
        %737 = vmatprep.subr.mxu0 0.0
        %738 = vmatpush1.msra.mxu0 0.0
        %739 = vmatprep.subr.mxu0 0.0
        %740 = vmatpush1.msra.mxu0 0.0
        %741 = vmatprep.subr.mxu0 0.0
        %742 = vmatpush1.msra.mxu0 0.0
        %743 = vmatprep.mubr.f32.mxu0 0.0
        %744 = vmatmul.mubr.f32.gmra.mrb[0].mxu0 %v572
        %v745 = vpop.f32.mrb[0].mxu0
        %v746 = vadd.f32 0.0, %v745
        %v747 = vpop.f32.mrb[0].mxu0
        %v748 = vadd.f32 0.0, %v747
        %749 = vmatprep.mubr.f32.mxu0 0.0
        %750 = vmatmul.mubr.f32.gmra.mrb[0].mxu0 %v575
        %v751 = vpop.f32.mrb[0].mxu0
        %v752 = vadd.f32 0.0, %v751
        %v753 = vpop.f32.mrb[0].mxu0
        %v754 = vadd.f32 0.0, %v753
        %755 = vmatprep.mubr.f32.mxu0 0.0
        %756 = vmatmul.mubr.f32.gmra.mrb[0].mxu0 %v578
        %v757 = vpop.f32.mrb[0].mxu0
        %v758 = vadd.f32 0.0, %v757
        %v759 = vpop.f32.mrb[0].mxu0
        %v760 = vadd.f32 0.0, %v759
        %761 = vmatprep.mubr.f32.mxu0 0.0
        %762 = vmatmul.mubr.f32.gmra.mrb[0].mxu0 %v581
        %v763 = vpop.f32.mrb[0].mxu0
        %v764 = vadd.f32 0.0, %v763
        %v765 = vpop.f32.mrb[0].mxu0
        %v766 = vadd.f32 0.0, %v765
        %767 = vmatprep.mubr.f32.mxu0 0.0
        %768 = vmatmul.mubr.f32.gmra.mrb[0].mxu0 %v584
        %v769 = vpop.f32.mrb[0].mxu0
        %v770 = vadd.f32 0.0, %v769
        %v771 = vpop.f32.mrb[0].mxu0
        %v772 = vadd.f32 0.0, %v771
        %773 = vmatprep.mubr.f32.mxu0 0.0
        %774 = vmatmul.mubr.f32.gmra.mrb[0].mxu0 %v587
        %v775 = vpop.f32.mrb[0].mxu0
        %v776 = vadd.f32 0.0, %v775
        %v777 = vpop.f32.mrb[0].mxu0
        %v778 = vadd.f32 0.0, %v777
        %779 = vmatprep.mubr.f32.mxu0 0.0
        %780 = vmatmul.mubr.f32.gmra.mrb[0].mxu0 %v590
        %v781 = vpop.f32.mrb[0].mxu0
        %v782 = vadd.f32 0.0, %v781
        %v783 = vpop.f32.mrb[0].mxu0
        %v784 = vadd.f32 0.0, %v783
        %785 = vmatprep.mubr.f32.mxu0 0.0
        %786 = vmatmul.mubr.f32.gmra.mrb[0].mxu0 %v593
        %v787 = vpop.f32.mrb[0].mxu0
        %v788 = vadd.f32 0.0, %v787
        %v789 = vpop.f32.mrb[0].mxu0
        %v790 = vadd.f32 0.0, %v789
        %791 = vmatprep.mubr.f32.mxu0 0.0
        %792 = vmatmul.mubr.f32.gmra.mrb[0].mxu0 %v596
        %v793 = vpop.f32.mrb[0].mxu0
        %v794 = vadd.f32 0.0, %v793
        %v795 = vpop.f32.mrb[0].mxu0
        %v796 = vadd.f32 0.0, %v795
        %797 = vmatprep.mubr.f32.mxu0 0.0
        %798 = vmatmul.mubr.f32.gmra.mrb[0].mxu0 %v599
        %v799 = vpop.f32.mrb[0].mxu0
        %v800 = vadd.f32 0.0, %v799
        %v801 = vpop.f32.mrb[0].mxu0
        %v802 = vadd.f32 0.0, %v801
        %803 = vmatprep.mubr.f32.mxu0 0.0
        %804 = vmatmul.mubr.f32.gmra.mrb[0].mxu0 %v602
        %v805 = vpop.f32.mrb[0].mxu0
        %v806 = vadd.f32 0.0, %v805
        %v807 = vpop.f32.mrb[0].mxu0
        %v808 = vadd.f32 0.0, %v807
        %809 = vmatprep.mubr.f32.mxu0 0.0
        %810 = vmatmul.mubr.f32.gmra.mrb[0].mxu0 %v605
        %v811 = vpop.f32.mrb[0].mxu0
        %v812 = vadd.f32 0.0, %v811
        %v813 = vpop.f32.mrb[0].mxu0
        %v814 = vadd.f32 0.0, %v813
        %815 = vmatprep.mubr.f32.mxu0 0.0
        %816 = vmatmul.mubr.f32.gmra.mrb[0].mxu0 %v608
        %v817 = vpop.f32.mrb[0].mxu0
        %v818 = vadd.f32 0.0, %v817
        %v819 = vpop.f32.mrb[0].mxu0
        %v820 = vadd.f32 0.0, %v819
        %821 = vmatprep.mubr.f32.mxu0 0.0
        %822 = vmatmul.mubr.f32.gmra.mrb[0].mxu0 %v611
        %v823 = vpop.f32.mrb[0].mxu0
        %v824 = vadd.f32 0.0, %v823
        %v825 = vpop.f32.mrb[0].mxu0
        %v826 = vadd.f32 0.0, %v825
        %827 = vmatprep.mubr.f32.mxu0 0.0
        %828 = vmatmul.mubr.f32.gmra.mrb[0].mxu0 %v614
        %v829 = vpop.f32.mrb[0].mxu0
        %v830 = vadd.f32 0.0, %v829
        %v831 = vpop.f32.mrb[0].mxu0
        %v832 = vadd.f32 0.0, %v831
        %833 = vmatprep.mubr.f32.mxu0 0.0
        %834 = vmatmul.mubr.f32.gmra.mrb[0].mxu0 %v617
        %v835 = vpop.f32.mrb[0].mxu0
        %v836 = vadd.f32 0.0, %v835
        %v837 = vpop.f32.mrb[0].mxu0
        %v838 = vadd.f32 0.0, %v837
        %839 = vmatprep.mubr.f32.mxu0 0.0
        %840 = vmatmul.mubr.f32.gmra.mrb[0].mxu0 %v620
        %v841 = vpop.f32.mrb[0].mxu0
        %v842 = vadd.f32 0.0, %v841
        %v843 = vpop.f32.mrb[0].mxu0
        %v844 = vadd.f32 0.0, %v843
        %845 = vmatprep.mubr.f32.mxu0 0.0
        %846 = vmatmul.mubr.f32.gmra.mrb[0].mxu0 %v623
        %v847 = vpop.f32.mrb[0].mxu0
        %v848 = vadd.f32 0.0, %v847
        %v849 = vpop.f32.mrb[0].mxu0
        %v850 = vadd.f32 0.0, %v849
        %851 = vmatprep.mubr.f32.mxu0 0.0
        %852 = vmatmul.mubr.f32.gmra.mrb[0].mxu0 %v626
        %v853 = vpop.f32.mrb[0].mxu0
        %v854 = vadd.f32 0.0, %v853
        %v855 = vpop.f32.mrb[0].mxu0
        %v856 = vadd.f32 0.0, %v855
        %857 = vmatprep.mubr.f32.mxu0 0.0
        %858 = vmatmul.mubr.f32.gmra.mrb[0].mxu0 %v629
        %v859 = vpop.f32.mrb[0].mxu0
        %v860 = vadd.f32 0.0, %v859
        %v861 = vpop.f32.mrb[0].mxu0
        %v862 = vadd.f32 0.0, %v861
        %863 = vmatprep.mubr.f32.mxu0 0.0
        %864 = vmatmul.mubr.f32.gmra.mrb[0].mxu0 %v632
        %v865 = vpop.f32.mrb[0].mxu0
        %v866 = vadd.f32 0.0, %v865
        %v867 = vpop.f32.mrb[0].mxu0
        %v868 = vadd.f32 0.0, %v867
        %869 = vmatprep.mubr.f32.mxu0 0.0
        %870 = vmatmul.mubr.f32.gmra.mrb[0].mxu0 %v635
        %v871 = vpop.f32.mrb[0].mxu0
        %v872 = vadd.f32 0.0, %v871
        %v873 = vpop.f32.mrb[0].mxu0
        %v874 = vadd.f32 0.0, %v873
        %875 = vmatprep.mubr.f32.mxu0 0.0
        %876 = vmatmul.mubr.f32.gmra.mrb[0].mxu0 %v638
        %v877 = vpop.f32.mrb[0].mxu0
        %v878 = vadd.f32 0.0, %v877
        %v879 = vpop.f32.mrb[0].mxu0
        %v880 = vadd.f32 0.0, %v879
        %881 = vmatprep.mubr.f32.mxu0 0.0
        %882 = vmatmul.mubr.f32.gmra.mrb[0].mxu0 %v641
        %v883 = vpop.f32.mrb[0].mxu0
        %v884 = vadd.f32 0.0, %v883
        %v885 = vpop.f32.mrb[0].mxu0
        %v886 = vadd.f32 0.0, %v885
        %887 = vmatprep.mubr.f32.mxu0 0.0
        %888 = vmatmul.mubr.f32.gmra.mrb[0].mxu0 %v644
        %v889 = vpop.f32.mrb[0].mxu0
        %v890 = vadd.f32 0.0, %v889
        %v891 = vpop.f32.mrb[0].mxu0
        %v892 = vadd.f32 0.0, %v891
        %893 = vmatprep.mubr.f32.mxu0 0.0
        %894 = vmatmul.mubr.f32.gmra.mrb[0].mxu0 %v647
        %v895 = vpop.f32.mrb[0].mxu0
        %v896 = vadd.f32 0.0, %v895
        %v897 = vpop.f32.mrb[0].mxu0
        %v898 = vadd.f32 0.0, %v897
        %899 = vmatprep.mubr.f32.mxu0 0.0
        %900 = vmatmul.mubr.f32.gmra.mrb[0].mxu0 %v650
        %v901 = vpop.f32.mrb[0].mxu0
        %v902 = vadd.f32 0.0, %v901
        %v903 = vpop.f32.mrb[0].mxu0
        %v904 = vadd.f32 0.0, %v903
        %905 = vmatprep.mubr.f32.mxu0 0.0
        %906 = vmatmul.mubr.f32.gmra.mrb[0].mxu0 %v653
        %v907 = vpop.f32.mrb[0].mxu0
        %v908 = vadd.f32 0.0, %v907
        %v909 = vpop.f32.mrb[0].mxu0
        %v910 = vadd.f32 0.0, %v909
        %911 = vmatprep.mubr.f32.mxu0 0.0
        %912 = vmatmul.mubr.f32.gmra.mrb[0].mxu0 %v656
        %v913 = vpop.f32.mrb[0].mxu0
        %v914 = vadd.f32 0.0, %v913
        %v915 = vpop.f32.mrb[0].mxu0
        %v916 = vadd.f32 0.0, %v915
        %917 = vmatprep.mubr.f32.mxu0 0.0
        %918 = vmatmul.mubr.f32.gmra.mrb[0].mxu0 %v659
        %v919 = vpop.f32.mrb[0].mxu0
        %v920 = vadd.f32 0.0, %v919
        %v921 = vpop.f32.mrb[0].mxu0
        %v922 = vadd.f32 0.0, %v921
        %923 = vmatprep.mubr.f32.mxu0 0.0
        %924 = vmatmul.mubr.f32.gmra.mrb[0].mxu0 %v662
        %v925 = vpop.f32.mrb[0].mxu0
        %v926 = vadd.f32 0.0, %v925
        %v927 = vpop.f32.mrb[0].mxu0
        %v928 = vadd.f32 0.0, %v927
        %929 = vmatprep.mubr.f32.mxu0 0.0
        %930 = vmatmul.mubr.f32.gmra.mrb[0].mxu0 %v665
        %v931 = vpop.f32.mrb[0].mxu0
        %v932 = vadd.f32 0.0, %v931
        %v933 = vpop.f32.mrb[0].mxu0
        %v934 = vadd.f32 0.0, %v933
        %935 = vmatprep.mubr.f32.mxu0 0.0
        %936 = vmatmul.mubr.f32.gmra.mrb[0].mxu0 %v668
        %v937 = vpop.f32.mrb[0].mxu0
        %v938 = vadd.f32 0.0, %v937
        %v939 = vpop.f32.mrb[0].mxu0
        %v940 = vadd.f32 0.0, %v939
        %941 = vmatprep.mubr.f32.mxu0 0.0
        %942 = vmatmul.mubr.f32.gmra.mrb[0].mxu0 %v671
        %v943 = vpop.f32.mrb[0].mxu0
        %v944 = vadd.f32 0.0, %v943
        %v945 = vpop.f32.mrb[0].mxu0
        %v946 = vadd.f32 0.0, %v945
        %947 = vmatprep.mubr.f32.mxu0 0.0
        %948 = vmatmul.mubr.f32.gmra.mrb[0].mxu0 %v674
        %v949 = vpop.f32.mrb[0].mxu0
        %v950 = vadd.f32 0.0, %v949
        %v951 = vpop.f32.mrb[0].mxu0
        %v952 = vadd.f32 0.0, %v951
        %953 = vmatprep.mubr.f32.mxu0 0.0
        %954 = vmatmul.mubr.f32.gmra.mrb[0].mxu0 %v677
        %v955 = vpop.f32.mrb[0].mxu0
        %v956 = vadd.f32 0.0, %v955
        %v957 = vpop.f32.mrb[0].mxu0
        %v958 = vadd.f32 0.0, %v957
        %959 = vdwg.mxu0
        %960 = vmatprep.subr.mxu0 %v557
        %961 = vmatpush1.msra.mxu0 %v556
        %962 = vmatprep.subr.mxu0 %v561
        %963 = vmatpush1.msra.mxu0 %v560
        %964 = vmatprep.subr.mxu0 %v565
        %965 = vmatpush1.msra.mxu0 %v564
        %966 = vmatprep.subr.mxu0 %v569
        %967 = vmatpush1.msra.mxu0 %v568
        %968 = vmatprep.subr.mxu0 0.0
        %969 = vmatpush1.msra.mxu0 0.0
        %970 = vmatprep.subr.mxu0 0.0
        %971 = vmatpush1.msra.mxu0 0.0
        %972 = vmatprep.subr.mxu0 0.0
        %973 = vmatpush1.msra.mxu0 0.0
        %974 = vmatprep.subr.mxu0 0.0
        %975 = vmatpush1.msra.mxu0 0.0
        %976 = vmatprep.subr.mxu0 0.0
        %977 = vmatpush1.msra.mxu0 0.0
        %978 = vmatprep.subr.mxu0 0.0
        %979 = vmatpush1.msra.mxu0 0.0
        %980 = vmatprep.subr.mxu0 0.0
        %981 = vmatpush1.msra.mxu0 0.0
        %982 = vmatprep.subr.mxu0 0.0
        %983 = vmatpush1.msra.mxu0 0.0
        %984 = vmatprep.subr.mxu0 0.0
        %985 = vmatpush1.msra.mxu0 0.0
        %986 = vmatprep.subr.mxu0 0.0
        %987 = vmatpush1.msra.mxu0 0.0
        %988 = vmatprep.subr.mxu0 0.0
        %989 = vmatpush1.msra.mxu0 0.0
        %990 = vmatprep.subr.mxu0 0.0
        %991 = vmatpush1.msra.mxu0 0.0
        %992 = vmatprep.subr.mxu0 0.0
        %993 = vmatpush1.msra.mxu0 0.0
        %994 = vmatprep.subr.mxu0 0.0
        %995 = vmatpush1.msra.mxu0 0.0
        %996 = vmatprep.subr.mxu0 0.0
        %997 = vmatpush1.msra.mxu0 0.0
        %998 = vmatprep.subr.mxu0 0.0
        %999 = vmatpush1.msra.mxu0 0.0
        %1000 = vmatprep.subr.mxu0 0.0
        %1001 = vmatpush1.msra.mxu0 0.0
        %1002 = vmatprep.subr.mxu0 0.0
        %1003 = vmatpush1.msra.mxu0 0.0
        %1004 = vmatprep.subr.mxu0 0.0
        %1005 = vmatpush1.msra.mxu0 0.0
        %1006 = vmatprep.subr.mxu0 0.0
        %1007 = vmatpush1.msra.mxu0 0.0
        %1008 = vmatprep.subr.mxu0 0.0
        %1009 = vmatpush1.msra.mxu0 0.0
        %1010 = vmatprep.subr.mxu0 0.0
        %1011 = vmatpush1.msra.mxu0 0.0
        %1012 = vmatprep.subr.mxu0 0.0
        %1013 = vmatpush1.msra.mxu0 0.0
        %1014 = vmatprep.subr.mxu0 0.0
        %1015 = vmatpush1.msra.mxu0 0.0
        %1016 = vmatprep.subr.mxu0 0.0
        %1017 = vmatpush1.msra.mxu0 0.0
        %1018 = vmatprep.subr.mxu0 0.0
        %1019 = vmatpush1.msra.mxu0 0.0
        %1020 = vmatprep.subr.mxu0 0.0
        %1021 = vmatpush1.msra.mxu0 0.0
        %1022 = vmatprep.subr.mxu0 0.0
        %1023 = vmatpush1.msra.mxu0 0.0
        %1024 = vmatprep.mubr.f32.mxu0 0.0
        %1025 = vmatmul.mubr.f32.gmra.mrb[0].mxu0 %v572
        %v1026 = vpop.f32.mrb[0].mxu0
        %v1027 = vadd.f32 0.0, %v1026
        %v1028 = vpop.f32.mrb[0].mxu0
        %v1029 = vadd.f32 0.0, %v1028
        %1030 = vmatprep.mubr.f32.mxu0 0.0
        %1031 = vmatmul.mubr.f32.gmra.mrb[0].mxu0 %v575
        %v1032 = vpop.f32.mrb[0].mxu0
        %v1033 = vadd.f32 0.0, %v1032
        %v1034 = vpop.f32.mrb[0].mxu0
        %v1035 = vadd.f32 0.0, %v1034
        %1036 = vmatprep.mubr.f32.mxu0 0.0
        %1037 = vmatmul.mubr.f32.gmra.mrb[0].mxu0 %v578
        %v1038 = vpop.f32.mrb[0].mxu0
        %v1039 = vadd.f32 0.0, %v1038
        %v1040 = vpop.f32.mrb[0].mxu0
        %v1041 = vadd.f32 0.0, %v1040
        %1042 = vmatprep.mubr.f32.mxu0 0.0
        %1043 = vmatmul.mubr.f32.gmra.mrb[0].mxu0 %v581
        %v1044 = vpop.f32.mrb[0].mxu0
        %v1045 = vadd.f32 0.0, %v1044
        %v1046 = vpop.f32.mrb[0].mxu0
        %v1047 = vadd.f32 0.0, %v1046
        %1048 = vmatprep.mubr.f32.mxu0 0.0
        %1049 = vmatmul.mubr.f32.gmra.mrb[0].mxu0 %v584
        %v1050 = vpop.f32.mrb[0].mxu0
        %v1051 = vadd.f32 0.0, %v1050
        %v1052 = vpop.f32.mrb[0].mxu0
        %v1053 = vadd.f32 0.0, %v1052
        %1054 = vmatprep.mubr.f32.mxu0 0.0
        %1055 = vmatmul.mubr.f32.gmra.mrb[0].mxu0 %v587
        %v1056 = vpop.f32.mrb[0].mxu0
        %v1057 = vadd.f32 0.0, %v1056
        %v1058 = vpop.f32.mrb[0].mxu0
        %v1059 = vadd.f32 0.0, %v1058
        %1060 = vmatprep.mubr.f32.mxu0 0.0
        %1061 = vmatmul.mubr.f32.gmra.mrb[0].mxu0 %v590
        %v1062 = vpop.f32.mrb[0].mxu0
        %v1063 = vadd.f32 0.0, %v1062
        %v1064 = vpop.f32.mrb[0].mxu0
        %v1065 = vadd.f32 0.0, %v1064
        %1066 = vmatprep.mubr.f32.mxu0 0.0
        %1067 = vmatmul.mubr.f32.gmra.mrb[0].mxu0 %v593
        %v1068 = vpop.f32.mrb[0].mxu0
        %v1069 = vadd.f32 0.0, %v1068
        %v1070 = vpop.f32.mrb[0].mxu0
        %v1071 = vadd.f32 0.0, %v1070
        %1072 = vmatprep.mubr.f32.mxu0 0.0
        %1073 = vmatmul.mubr.f32.gmra.mrb[0].mxu0 %v596
        %v1074 = vpop.f32.mrb[0].mxu0
        %v1075 = vadd.f32 0.0, %v1074
        %v1076 = vpop.f32.mrb[0].mxu0
        %v1077 = vadd.f32 0.0, %v1076
        %1078 = vmatprep.mubr.f32.mxu0 0.0
        %1079 = vmatmul.mubr.f32.gmra.mrb[0].mxu0 %v599
        %v1080 = vpop.f32.mrb[0].mxu0
        %v1081 = vadd.f32 0.0, %v1080
        %v1082 = vpop.f32.mrb[0].mxu0
        %v1083 = vadd.f32 0.0, %v1082
        %1084 = vmatprep.mubr.f32.mxu0 0.0
        %1085 = vmatmul.mubr.f32.gmra.mrb[0].mxu0 %v602
        %v1086 = vpop.f32.mrb[0].mxu0
        %v1087 = vadd.f32 0.0, %v1086
        %v1088 = vpop.f32.mrb[0].mxu0
        %v1089 = vadd.f32 0.0, %v1088
        %1090 = vmatprep.mubr.f32.mxu0 0.0
        %1091 = vmatmul.mubr.f32.gmra.mrb[0].mxu0 %v605
        %v1092 = vpop.f32.mrb[0].mxu0
        %v1093 = vadd.f32 0.0, %v1092
        %v1094 = vpop.f32.mrb[0].mxu0
        %v1095 = vadd.f32 0.0, %v1094
        %1096 = vmatprep.mubr.f32.mxu0 0.0
        %1097 = vmatmul.mubr.f32.gmra.mrb[0].mxu0 %v608
        %v1098 = vpop.f32.mrb[0].mxu0
        %v1099 = vadd.f32 0.0, %v1098
        %v1100 = vpop.f32.mrb[0].mxu0
        %v1101 = vadd.f32 0.0, %v1100
        %1102 = vmatprep.mubr.f32.mxu0 0.0
        %1103 = vmatmul.mubr.f32.gmra.mrb[0].mxu0 %v611
        %v1104 = vpop.f32.mrb[0].mxu0
        %v1105 = vadd.f32 0.0, %v1104
        %v1106 = vpop.f32.mrb[0].mxu0
        %v1107 = vadd.f32 0.0, %v1106
        %1108 = vmatprep.mubr.f32.mxu0 0.0
        %1109 = vmatmul.mubr.f32.gmra.mrb[0].mxu0 %v614
        %v1110 = vpop.f32.mrb[0].mxu0
        %v1111 = vadd.f32 0.0, %v1110
        %v1112 = vpop.f32.mrb[0].mxu0
        %v1113 = vadd.f32 0.0, %v1112
        %1114 = vmatprep.mubr.f32.mxu0 0.0
        %1115 = vmatmul.mubr.f32.gmra.mrb[0].mxu0 %v617
        %v1116 = vpop.f32.mrb[0].mxu0
        %v1117 = vadd.f32 0.0, %v1116
        %v1118 = vpop.f32.mrb[0].mxu0
        %v1119 = vadd.f32 0.0, %v1118
        %1120 = vmatprep.mubr.f32.mxu0 0.0
        %1121 = vmatmul.mubr.f32.gmra.mrb[0].mxu0 %v620
        %v1122 = vpop.f32.mrb[0].mxu0
        %v1123 = vadd.f32 0.0, %v1122
        %v1124 = vpop.f32.mrb[0].mxu0
        %v1125 = vadd.f32 0.0, %v1124
        %1126 = vmatprep.mubr.f32.mxu0 0.0
        %1127 = vmatmul.mubr.f32.gmra.mrb[0].mxu0 %v623
        %v1128 = vpop.f32.mrb[0].mxu0
        %v1129 = vadd.f32 0.0, %v1128
        %v1130 = vpop.f32.mrb[0].mxu0
        %v1131 = vadd.f32 0.0, %v1130
        %1132 = vmatprep.mubr.f32.mxu0 0.0
        %1133 = vmatmul.mubr.f32.gmra.mrb[0].mxu0 %v626
        %v1134 = vpop.f32.mrb[0].mxu0
        %v1135 = vadd.f32 0.0, %v1134
        %v1136 = vpop.f32.mrb[0].mxu0
        %v1137 = vadd.f32 0.0, %v1136
        %1138 = vmatprep.mubr.f32.mxu0 0.0
        %1139 = vmatmul.mubr.f32.gmra.mrb[0].mxu0 %v629
        %v1140 = vpop.f32.mrb[0].mxu0
        %v1141 = vadd.f32 0.0, %v1140
        %v1142 = vpop.f32.mrb[0].mxu0
        %v1143 = vadd.f32 0.0, %v1142
        %1144 = vmatprep.mubr.f32.mxu0 0.0
        %1145 = vmatmul.mubr.f32.gmra.mrb[0].mxu0 %v632
        %v1146 = vpop.f32.mrb[0].mxu0
        %v1147 = vadd.f32 0.0, %v1146
        %v1148 = vpop.f32.mrb[0].mxu0
        %v1149 = vadd.f32 0.0, %v1148
        %1150 = vmatprep.mubr.f32.mxu0 0.0
        %1151 = vmatmul.mubr.f32.gmra.mrb[0].mxu0 %v635
        %v1152 = vpop.f32.mrb[0].mxu0
        %v1153 = vadd.f32 0.0, %v1152
        %v1154 = vpop.f32.mrb[0].mxu0
        %v1155 = vadd.f32 0.0, %v1154
        %1156 = vmatprep.mubr.f32.mxu0 0.0
        %1157 = vmatmul.mubr.f32.gmra.mrb[0].mxu0 %v638
        %v1158 = vpop.f32.mrb[0].mxu0
        %v1159 = vadd.f32 0.0, %v1158
        %v1160 = vpop.f32.mrb[0].mxu0
        %v1161 = vadd.f32 0.0, %v1160
        %1162 = vmatprep.mubr.f32.mxu0 0.0
        %1163 = vmatmul.mubr.f32.gmra.mrb[0].mxu0 %v641
        %v1164 = vpop.f32.mrb[0].mxu0
        %v1165 = vadd.f32 0.0, %v1164
        %v1166 = vpop.f32.mrb[0].mxu0
        %v1167 = vadd.f32 0.0, %v1166
        %1168 = vmatprep.mubr.f32.mxu0 0.0
        %1169 = vmatmul.mubr.f32.gmra.mrb[0].mxu0 %v644
        %v1170 = vpop.f32.mrb[0].mxu0
        %v1171 = vadd.f32 0.0, %v1170
        %v1172 = vpop.f32.mrb[0].mxu0
        %v1173 = vadd.f32 0.0, %v1172
        %1174 = vmatprep.mubr.f32.mxu0 0.0
        %1175 = vmatmul.mubr.f32.gmra.mrb[0].mxu0 %v647
        %v1176 = vpop.f32.mrb[0].mxu0
        %v1177 = vadd.f32 0.0, %v1176
        %v1178 = vpop.f32.mrb[0].mxu0
        %v1179 = vadd.f32 0.0, %v1178
        %1180 = vmatprep.mubr.f32.mxu0 0.0
        %1181 = vmatmul.mubr.f32.gmra.mrb[0].mxu0 %v650
        %v1182 = vpop.f32.mrb[0].mxu0
        %v1183 = vadd.f32 0.0, %v1182
        %v1184 = vpop.f32.mrb[0].mxu0
        %v1185 = vadd.f32 0.0, %v1184
        %1186 = vmatprep.mubr.f32.mxu0 0.0
        %1187 = vmatmul.mubr.f32.gmra.mrb[0].mxu0 %v653
        %v1188 = vpop.f32.mrb[0].mxu0
        %v1189 = vadd.f32 0.0, %v1188
        %v1190 = vpop.f32.mrb[0].mxu0
        %v1191 = vadd.f32 0.0, %v1190
        %1192 = vmatprep.mubr.f32.mxu0 0.0
        %1193 = vmatmul.mubr.f32.gmra.mrb[0].mxu0 %v656
        %v1194 = vpop.f32.mrb[0].mxu0
        %v1195 = vadd.f32 0.0, %v1194
        %v1196 = vpop.f32.mrb[0].mxu0
        %v1197 = vadd.f32 0.0, %v1196
        %1198 = vmatprep.mubr.f32.mxu0 0.0
        %1199 = vmatmul.mubr.f32.gmra.mrb[0].mxu0 %v659
        %v1200 = vpop.f32.mrb[0].mxu0
        %v1201 = vadd.f32 0.0, %v1200
        %v1202 = vpop.f32.mrb[0].mxu0
        %v1203 = vadd.f32 0.0, %v1202
        %1204 = vmatprep.mubr.f32.mxu0 0.0
        %1205 = vmatmul.mubr.f32.gmra.mrb[0].mxu0 %v662
        %v1206 = vpop.f32.mrb[0].mxu0
        %v1207 = vadd.f32 0.0, %v1206
        %v1208 = vpop.f32.mrb[0].mxu0
        %v1209 = vadd.f32 0.0, %v1208
        %1210 = vmatprep.mubr.f32.mxu0 0.0
        %1211 = vmatmul.mubr.f32.gmra.mrb[0].mxu0 %v665
        %v1212 = vpop.f32.mrb[0].mxu0
        %v1213 = vadd.f32 0.0, %v1212
        %v1214 = vpop.f32.mrb[0].mxu0
        %v1215 = vadd.f32 0.0, %v1214
        %1216 = vmatprep.mubr.f32.mxu0 0.0
        %1217 = vmatmul.mubr.f32.gmra.mrb[0].mxu0 %v668
        %v1218 = vpop.f32.mrb[0].mxu0
        %v1219 = vadd.f32 0.0, %v1218
        %v1220 = vpop.f32.mrb[0].mxu0
        %v1221 = vadd.f32 0.0, %v1220
        %1222 = vmatprep.mubr.f32.mxu0 0.0
        %1223 = vmatmul.mubr.f32.gmra.mrb[0].mxu0 %v671
        %v1224 = vpop.f32.mrb[0].mxu0
        %v1225 = vadd.f32 0.0, %v1224
        %v1226 = vpop.f32.mrb[0].mxu0
        %v1227 = vadd.f32 0.0, %v1226
        %1228 = vmatprep.mubr.f32.mxu0 0.0
        %1229 = vmatmul.mubr.f32.gmra.mrb[0].mxu0 %v674
        %v1230 = vpop.f32.mrb[0].mxu0
        %v1231 = vadd.f32 0.0, %v1230
        %v1232 = vpop.f32.mrb[0].mxu0
        %v1233 = vadd.f32 0.0, %v1232
        %1234 = vmatprep.mubr.f32.mxu0 0.0
        %1235 = vmatmul.mubr.f32.gmra.mrb[0].mxu0 %v677
        %v1236 = vpop.f32.mrb[0].mxu0
        %v1237 = vadd.f32 0.0, %v1236
        %v1238 = vpop.f32.mrb[0].mxu0
        %v1239 = vadd.f32 0.0, %v1238
        %1240 = vdwg.mxu0
        %v1242 = vsel %vm570, %v465, 0
        %v1245 = vsel %vm570, %v466, 0
        %v1248 = vsel %vm570, %v467, 0
        %v1251 = vsel %vm570, %v468, 0
        %v1254 = vsel %vm570, %v469, 0
        %v1257 = vsel %vm570, %v470, 0
        %v1260 = vsel %vm570, %v471, 0
        %v1263 = vsel %vm570, %v472, 0
        %v1266 = vsel %vm570, %v473, 0
        %v1269 = vsel %vm570, %v474, 0
        %v1272 = vsel %vm570, %v475, 0
        %v1275 = vsel %vm570, %v476, 0
        %v1278 = vsel %vm570, %v477, 0
        %v1281 = vsel %vm570, %v478, 0
        %v1284 = vsel %vm570, %v479, 0
        %v1287 = vsel %vm570, %v480, 0
        %v1290 = vsel %vm570, %v481, 0
        %v1293 = vsel %vm570, %v482, 0
        %v1296 = vsel %vm570, %v483, 0
        %v1299 = vsel %vm570, %v484, 0
        %v1302 = vsel %vm570, %v485, 0
        %v1305 = vsel %vm570, %v486, 0
        %v1308 = vsel %vm570, %v487, 0
        %v1311 = vsel %vm570, %v488, 0
        %v1314 = vsel %vm570, %v489, 0
        %v1317 = vsel %vm570, %v490, 0
        %v1320 = vsel %vm570, %v491, 0
        %v1323 = vsel %vm570, %v492, 0
        %v1326 = vsel %vm570, %v493, 0
        %v1329 = vsel %vm570, %v494, 0
        %v1332 = vsel %vm570, %v495, 0
        %v1335 = vsel %vm570, %v496, 0
        %v1338 = vsel %vm570, %v497, 0
        %v1341 = vsel %vm570, %v498, 0
        %v1344 = vsel %vm570, %v499, 0
        %v1347 = vsel %vm570, %v500, 0
        %1349 = vmatprep.subr.mxu0 %v502
        %1350 = vmatpush1.msra.mxu0 %v501
        %1351 = vmatprep.subr.mxu0 %v506
        %1352 = vmatpush1.msra.mxu0 %v505
        %1353 = vmatprep.subr.mxu0 %v510
        %1354 = vmatpush1.msra.mxu0 %v509
        %1355 = vmatprep.subr.mxu0 %v514
        %1356 = vmatpush1.msra.mxu0 %v513
        %1357 = vmatprep.subr.mxu0 0.0
        %1358 = vmatpush1.msra.mxu0 0.0
        %1359 = vmatprep.subr.mxu0 0.0
        %1360 = vmatpush1.msra.mxu0 0.0
        %1361 = vmatprep.subr.mxu0 0.0
        %1362 = vmatpush1.msra.mxu0 0.0
        %1363 = vmatprep.subr.mxu0 0.0
        %1364 = vmatpush1.msra.mxu0 0.0
        %1365 = vmatprep.subr.mxu0 0.0
        %1366 = vmatpush1.msra.mxu0 0.0
        %1367 = vmatprep.subr.mxu0 0.0
        %1368 = vmatpush1.msra.mxu0 0.0
        %1369 = vmatprep.subr.mxu0 0.0
        %1370 = vmatpush1.msra.mxu0 0.0
        %1371 = vmatprep.subr.mxu0 0.0
        %1372 = vmatpush1.msra.mxu0 0.0
        %1373 = vmatprep.subr.mxu0 0.0
        %1374 = vmatpush1.msra.mxu0 0.0
        %1375 = vmatprep.subr.mxu0 0.0
        %1376 = vmatpush1.msra.mxu0 0.0
        %1377 = vmatprep.subr.mxu0 0.0
        %1378 = vmatpush1.msra.mxu0 0.0
        %1379 = vmatprep.subr.mxu0 0.0
        %1380 = vmatpush1.msra.mxu0 0.0
        %1381 = vmatprep.subr.mxu0 0.0
        %1382 = vmatpush1.msra.mxu0 0.0
        %1383 = vmatprep.subr.mxu0 0.0
        %1384 = vmatpush1.msra.mxu0 0.0
        %1385 = vmatprep.subr.mxu0 0.0
        %1386 = vmatpush1.msra.mxu0 0.0
        %1387 = vmatprep.subr.mxu0 0.0
        %1388 = vmatpush1.msra.mxu0 0.0
        %1389 = vmatprep.subr.mxu0 0.0
        %1390 = vmatpush1.msra.mxu0 0.0
        %1391 = vmatprep.subr.mxu0 0.0
        %1392 = vmatpush1.msra.mxu0 0.0
        %1393 = vmatprep.subr.mxu0 0.0
        %1394 = vmatpush1.msra.mxu0 0.0
        %1395 = vmatprep.subr.mxu0 0.0
        %1396 = vmatpush1.msra.mxu0 0.0
        %1397 = vmatprep.subr.mxu0 0.0
        %1398 = vmatpush1.msra.mxu0 0.0
        %1399 = vmatprep.subr.mxu0 0.0
        %1400 = vmatpush1.msra.mxu0 0.0
        %1401 = vmatprep.subr.mxu0 0.0
        %1402 = vmatpush1.msra.mxu0 0.0
        %1403 = vmatprep.subr.mxu0 0.0
        %1404 = vmatpush1.msra.mxu0 0.0
        %1405 = vmatprep.subr.mxu0 0.0
        %1406 = vmatpush1.msra.mxu0 0.0
        %1407 = vmatprep.subr.mxu0 0.0
        %1408 = vmatpush1.msra.mxu0 0.0
        %1409 = vmatprep.subr.mxu0 0.0
        %1410 = vmatpush1.msra.mxu0 0.0
        %1411 = vmatprep.subr.mxu0 0.0
        %1412 = vmatpush1.msra.mxu0 0.0
        %1413 = vmatprep.mubr.f32.mxu0 0.0
        %1414 = vmatmul.mubr.f32.gmra.mrb[0].mxu0 %v1242
        %v1415 = vpop.f32.mrb[0].mxu0
        %v1416 = vadd.f32 %v746, %v1415
        %v1417 = vpop.f32.mrb[0].mxu0
        %v1418 = vadd.f32 %v748, %v1417
        %1419 = vmatprep.mubr.f32.mxu0 0.0
        %1420 = vmatmul.mubr.f32.gmra.mrb[0].mxu0 %v1245
        %v1421 = vpop.f32.mrb[0].mxu0
        %v1422 = vadd.f32 %v752, %v1421
        %v1423 = vpop.f32.mrb[0].mxu0
        %v1424 = vadd.f32 %v754, %v1423
        %1425 = vmatprep.mubr.f32.mxu0 0.0
        %1426 = vmatmul.mubr.f32.gmra.mrb[0].mxu0 %v1248
        %v1427 = vpop.f32.mrb[0].mxu0
        %v1428 = vadd.f32 %v758, %v1427
        %v1429 = vpop.f32.mrb[0].mxu0
        %v1430 = vadd.f32 %v760, %v1429
        %1431 = vmatprep.mubr.f32.mxu0 0.0
        %1432 = vmatmul.mubr.f32.gmra.mrb[0].mxu0 %v1251
        %v1433 = vpop.f32.mrb[0].mxu0
        %v1434 = vadd.f32 %v764, %v1433
        %v1435 = vpop.f32.mrb[0].mxu0
        %v1436 = vadd.f32 %v766, %v1435
        %1437 = vmatprep.mubr.f32.mxu0 0.0
        %1438 = vmatmul.mubr.f32.gmra.mrb[0].mxu0 %v1254
        %v1439 = vpop.f32.mrb[0].mxu0
        %v1440 = vadd.f32 %v770, %v1439
        %v1441 = vpop.f32.mrb[0].mxu0
        %v1442 = vadd.f32 %v772, %v1441
        %1443 = vmatprep.mubr.f32.mxu0 0.0
        %1444 = vmatmul.mubr.f32.gmra.mrb[0].mxu0 %v1257
        %v1445 = vpop.f32.mrb[0].mxu0
        %v1446 = vadd.f32 %v776, %v1445
        %v1447 = vpop.f32.mrb[0].mxu0
        %v1448 = vadd.f32 %v778, %v1447
        %1449 = vmatprep.mubr.f32.mxu0 0.0
        %1450 = vmatmul.mubr.f32.gmra.mrb[0].mxu0 %v1260
        %v1451 = vpop.f32.mrb[0].mxu0
        %v1452 = vadd.f32 %v782, %v1451
        %v1453 = vpop.f32.mrb[0].mxu0
        %v1454 = vadd.f32 %v784, %v1453
        %1455 = vmatprep.mubr.f32.mxu0 0.0
        %1456 = vmatmul.mubr.f32.gmra.mrb[0].mxu0 %v1263
        %v1457 = vpop.f32.mrb[0].mxu0
        %v1458 = vadd.f32 %v788, %v1457
        %v1459 = vpop.f32.mrb[0].mxu0
        %v1460 = vadd.f32 %v790, %v1459
        %1461 = vmatprep.mubr.f32.mxu0 0.0
        %1462 = vmatmul.mubr.f32.gmra.mrb[0].mxu0 %v1266
        %v1463 = vpop.f32.mrb[0].mxu0
        %v1464 = vadd.f32 %v794, %v1463
        %v1465 = vpop.f32.mrb[0].mxu0
        %v1466 = vadd.f32 %v796, %v1465
        %1467 = vmatprep.mubr.f32.mxu0 0.0
        %1468 = vmatmul.mubr.f32.gmra.mrb[0].mxu0 %v1269
        %v1469 = vpop.f32.mrb[0].mxu0
        %v1470 = vadd.f32 %v800, %v1469
        %v1471 = vpop.f32.mrb[0].mxu0
        %v1472 = vadd.f32 %v802, %v1471
        %1473 = vmatprep.mubr.f32.mxu0 0.0
        %1474 = vmatmul.mubr.f32.gmra.mrb[0].mxu0 %v1272
        %v1475 = vpop.f32.mrb[0].mxu0
        %v1476 = vadd.f32 %v806, %v1475
        %v1477 = vpop.f32.mrb[0].mxu0
        %v1478 = vadd.f32 %v808, %v1477
        %1479 = vmatprep.mubr.f32.mxu0 0.0
        %1480 = vmatmul.mubr.f32.gmra.mrb[0].mxu0 %v1275
        %v1481 = vpop.f32.mrb[0].mxu0
        %v1482 = vadd.f32 %v812, %v1481
        %v1483 = vpop.f32.mrb[0].mxu0
        %v1484 = vadd.f32 %v814, %v1483
        %1485 = vmatprep.mubr.f32.mxu0 0.0
        %1486 = vmatmul.mubr.f32.gmra.mrb[0].mxu0 %v1278
        %v1487 = vpop.f32.mrb[0].mxu0
        %v1488 = vadd.f32 %v818, %v1487
        %v1489 = vpop.f32.mrb[0].mxu0
        %v1490 = vadd.f32 %v820, %v1489
        %1491 = vmatprep.mubr.f32.mxu0 0.0
        %1492 = vmatmul.mubr.f32.gmra.mrb[0].mxu0 %v1281
        %v1493 = vpop.f32.mrb[0].mxu0
        %v1494 = vadd.f32 %v824, %v1493
        %v1495 = vpop.f32.mrb[0].mxu0
        %v1496 = vadd.f32 %v826, %v1495
        %1497 = vmatprep.mubr.f32.mxu0 0.0
        %1498 = vmatmul.mubr.f32.gmra.mrb[0].mxu0 %v1284
        %v1499 = vpop.f32.mrb[0].mxu0
        %v1500 = vadd.f32 %v830, %v1499
        %v1501 = vpop.f32.mrb[0].mxu0
        %v1502 = vadd.f32 %v832, %v1501
        %1503 = vmatprep.mubr.f32.mxu0 0.0
        %1504 = vmatmul.mubr.f32.gmra.mrb[0].mxu0 %v1287
        %v1505 = vpop.f32.mrb[0].mxu0
        %v1506 = vadd.f32 %v836, %v1505
        %v1507 = vpop.f32.mrb[0].mxu0
        %v1508 = vadd.f32 %v838, %v1507
        %1509 = vmatprep.mubr.f32.mxu0 0.0
        %1510 = vmatmul.mubr.f32.gmra.mrb[0].mxu0 %v1290
        %v1511 = vpop.f32.mrb[0].mxu0
        %v1512 = vadd.f32 %v842, %v1511
        %v1513 = vpop.f32.mrb[0].mxu0
        %v1514 = vadd.f32 %v844, %v1513
        %1515 = vmatprep.mubr.f32.mxu0 0.0
        %1516 = vmatmul.mubr.f32.gmra.mrb[0].mxu0 %v1293
        %v1517 = vpop.f32.mrb[0].mxu0
        %v1518 = vadd.f32 %v848, %v1517
        %v1519 = vpop.f32.mrb[0].mxu0
        %v1520 = vadd.f32 %v850, %v1519
        %1521 = vmatprep.mubr.f32.mxu0 0.0
        %1522 = vmatmul.mubr.f32.gmra.mrb[0].mxu0 %v1296
        %v1523 = vpop.f32.mrb[0].mxu0
        %v1524 = vadd.f32 %v854, %v1523
        %v1525 = vpop.f32.mrb[0].mxu0
        %v1526 = vadd.f32 %v856, %v1525
        %1527 = vmatprep.mubr.f32.mxu0 0.0
        %1528 = vmatmul.mubr.f32.gmra.mrb[0].mxu0 %v1299
        %v1529 = vpop.f32.mrb[0].mxu0
        %v1530 = vadd.f32 %v860, %v1529
        %v1531 = vpop.f32.mrb[0].mxu0
        %v1532 = vadd.f32 %v862, %v1531
        %1533 = vmatprep.mubr.f32.mxu0 0.0
        %1534 = vmatmul.mubr.f32.gmra.mrb[0].mxu0 %v1302
        %v1535 = vpop.f32.mrb[0].mxu0
        %v1536 = vadd.f32 %v866, %v1535
        %v1537 = vpop.f32.mrb[0].mxu0
        %v1538 = vadd.f32 %v868, %v1537
        %1539 = vmatprep.mubr.f32.mxu0 0.0
        %1540 = vmatmul.mubr.f32.gmra.mrb[0].mxu0 %v1305
        %v1541 = vpop.f32.mrb[0].mxu0
        %v1542 = vadd.f32 %v872, %v1541
        %v1543 = vpop.f32.mrb[0].mxu0
        %v1544 = vadd.f32 %v874, %v1543
        %1545 = vmatprep.mubr.f32.mxu0 0.0
        %1546 = vmatmul.mubr.f32.gmra.mrb[0].mxu0 %v1308
        %v1547 = vpop.f32.mrb[0].mxu0
        %v1548 = vadd.f32 %v878, %v1547
        %v1549 = vpop.f32.mrb[0].mxu0
        %v1550 = vadd.f32 %v880, %v1549
        %1551 = vmatprep.mubr.f32.mxu0 0.0
        %1552 = vmatmul.mubr.f32.gmra.mrb[0].mxu0 %v1311
        %v1553 = vpop.f32.mrb[0].mxu0
        %v1554 = vadd.f32 %v884, %v1553
        %v1555 = vpop.f32.mrb[0].mxu0
        %v1556 = vadd.f32 %v886, %v1555
        %1557 = vmatprep.mubr.f32.mxu0 0.0
        %1558 = vmatmul.mubr.f32.gmra.mrb[0].mxu0 %v1314
        %v1559 = vpop.f32.mrb[0].mxu0
        %v1560 = vadd.f32 %v890, %v1559
        %v1561 = vpop.f32.mrb[0].mxu0
        %v1562 = vadd.f32 %v892, %v1561
        %1563 = vmatprep.mubr.f32.mxu0 0.0
        %1564 = vmatmul.mubr.f32.gmra.mrb[0].mxu0 %v1317
        %v1565 = vpop.f32.mrb[0].mxu0
        %v1566 = vadd.f32 %v896, %v1565
        %v1567 = vpop.f32.mrb[0].mxu0
        %v1568 = vadd.f32 %v898, %v1567
        %1569 = vmatprep.mubr.f32.mxu0 0.0
        %1570 = vmatmul.mubr.f32.gmra.mrb[0].mxu0 %v1320
        %v1571 = vpop.f32.mrb[0].mxu0
        %v1572 = vadd.f32 %v902, %v1571
        %v1573 = vpop.f32.mrb[0].mxu0
        %v1574 = vadd.f32 %v904, %v1573
        %1575 = vmatprep.mubr.f32.mxu0 0.0
        %1576 = vmatmul.mubr.f32.gmra.mrb[0].mxu0 %v1323
        %v1577 = vpop.f32.mrb[0].mxu0
        %v1578 = vadd.f32 %v908, %v1577
        %v1579 = vpop.f32.mrb[0].mxu0
        %v1580 = vadd.f32 %v910, %v1579
        %1581 = vmatprep.mubr.f32.mxu0 0.0
        %1582 = vmatmul.mubr.f32.gmra.mrb[0].mxu0 %v1326
        %v1583 = vpop.f32.mrb[0].mxu0
        %v1584 = vadd.f32 %v914, %v1583
        %v1585 = vpop.f32.mrb[0].mxu0
        %v1586 = vadd.f32 %v916, %v1585
        %1587 = vmatprep.mubr.f32.mxu0 0.0
        %1588 = vmatmul.mubr.f32.gmra.mrb[0].mxu0 %v1329
        %v1589 = vpop.f32.mrb[0].mxu0
        %v1590 = vadd.f32 %v920, %v1589
        %v1591 = vpop.f32.mrb[0].mxu0
        %v1592 = vadd.f32 %v922, %v1591
        %1593 = vmatprep.mubr.f32.mxu0 0.0
        %1594 = vmatmul.mubr.f32.gmra.mrb[0].mxu0 %v1332
        %v1595 = vpop.f32.mrb[0].mxu0
        %v1596 = vadd.f32 %v926, %v1595
        %v1597 = vpop.f32.mrb[0].mxu0
        %v1598 = vadd.f32 %v928, %v1597
        %1599 = vmatprep.mubr.f32.mxu0 0.0
        %1600 = vmatmul.mubr.f32.gmra.mrb[0].mxu0 %v1335
        %v1601 = vpop.f32.mrb[0].mxu0
        %v1602 = vadd.f32 %v932, %v1601
        %v1603 = vpop.f32.mrb[0].mxu0
        %v1604 = vadd.f32 %v934, %v1603
        %1605 = vmatprep.mubr.f32.mxu0 0.0
        %1606 = vmatmul.mubr.f32.gmra.mrb[0].mxu0 %v1338
        %v1607 = vpop.f32.mrb[0].mxu0
        %v1608 = vadd.f32 %v938, %v1607
        %v1609 = vpop.f32.mrb[0].mxu0
        %v1610 = vadd.f32 %v940, %v1609
        %1611 = vmatprep.mubr.f32.mxu0 0.0
        %1612 = vmatmul.mubr.f32.gmra.mrb[0].mxu0 %v1341
        %v1613 = vpop.f32.mrb[0].mxu0
        %v1614 = vadd.f32 %v944, %v1613
        %v1615 = vpop.f32.mrb[0].mxu0
        %v1616 = vadd.f32 %v946, %v1615
        %1617 = vmatprep.mubr.f32.mxu0 0.0
        %1618 = vmatmul.mubr.f32.gmra.mrb[0].mxu0 %v1344
        %v1619 = vpop.f32.mrb[0].mxu0
        %v1620 = vadd.f32 %v950, %v1619
        %v1621 = vpop.f32.mrb[0].mxu0
        %v1622 = vadd.f32 %v952, %v1621
        %1623 = vmatprep.mubr.f32.mxu0 0.0
        %1624 = vmatmul.mubr.f32.gmra.mrb[0].mxu0 %v1347
        %v1625 = vpop.f32.mrb[0].mxu0
        %v1626 = vadd.f32 %v956, %v1625
        %v1627 = vpop.f32.mrb[0].mxu0
        %v1628 = vadd.f32 %v958, %v1627
        %1629 = vdwg.mxu0
        %1630 = vmatprep.subr.mxu0 %v504
        %1631 = vmatpush1.msra.mxu0 %v503
        %1632 = vmatprep.subr.mxu0 %v508
        %1633 = vmatpush1.msra.mxu0 %v507
        %1634 = vmatprep.subr.mxu0 %v512
        %1635 = vmatpush1.msra.mxu0 %v511
        %1636 = vmatprep.subr.mxu0 %v516
        %1637 = vmatpush1.msra.mxu0 %v515
        %1638 = vmatprep.subr.mxu0 0.0
        %1639 = vmatpush1.msra.mxu0 0.0
        %1640 = vmatprep.subr.mxu0 0.0
        %1641 = vmatpush1.msra.mxu0 0.0
        %1642 = vmatprep.subr.mxu0 0.0
        %1643 = vmatpush1.msra.mxu0 0.0
        %1644 = vmatprep.subr.mxu0 0.0
        %1645 = vmatpush1.msra.mxu0 0.0
        %1646 = vmatprep.subr.mxu0 0.0
        %1647 = vmatpush1.msra.mxu0 0.0
        %1648 = vmatprep.subr.mxu0 0.0
        %1649 = vmatpush1.msra.mxu0 0.0
        %1650 = vmatprep.subr.mxu0 0.0
        %1651 = vmatpush1.msra.mxu0 0.0
        %1652 = vmatprep.subr.mxu0 0.0
        %1653 = vmatpush1.msra.mxu0 0.0
        %1654 = vmatprep.subr.mxu0 0.0
        %1655 = vmatpush1.msra.mxu0 0.0
        %1656 = vmatprep.subr.mxu0 0.0
        %1657 = vmatpush1.msra.mxu0 0.0
        %1658 = vmatprep.subr.mxu0 0.0
        %1659 = vmatpush1.msra.mxu0 0.0
        %1660 = vmatprep.subr.mxu0 0.0
        %1661 = vmatpush1.msra.mxu0 0.0
        %1662 = vmatprep.subr.mxu0 0.0
        %1663 = vmatpush1.msra.mxu0 0.0
        %1664 = vmatprep.subr.mxu0 0.0
        %1665 = vmatpush1.msra.mxu0 0.0
        %1666 = vmatprep.subr.mxu0 0.0
        %1667 = vmatpush1.msra.mxu0 0.0
        %1668 = vmatprep.subr.mxu0 0.0
        %1669 = vmatpush1.msra.mxu0 0.0
        %1670 = vmatprep.subr.mxu0 0.0
        %1671 = vmatpush1.msra.mxu0 0.0
        %1672 = vmatprep.subr.mxu0 0.0
        %1673 = vmatpush1.msra.mxu0 0.0
        %1674 = vmatprep.subr.mxu0 0.0
        %1675 = vmatpush1.msra.mxu0 0.0
        %1676 = vmatprep.subr.mxu0 0.0
        %1677 = vmatpush1.msra.mxu0 0.0
        %1678 = vmatprep.subr.mxu0 0.0
        %1679 = vmatpush1.msra.mxu0 0.0
        %1680 = vmatprep.subr.mxu0 0.0
        %1681 = vmatpush1.msra.mxu0 0.0
        %1682 = vmatprep.subr.mxu0 0.0
        %1683 = vmatpush1.msra.mxu0 0.0
        %1684 = vmatprep.subr.mxu0 0.0
        %1685 = vmatpush1.msra.mxu0 0.0
        %1686 = vmatprep.subr.mxu0 0.0
        %1687 = vmatpush1.msra.mxu0 0.0
        %1688 = vmatprep.subr.mxu0 0.0
        %1689 = vmatpush1.msra.mxu0 0.0
        %1690 = vmatprep.subr.mxu0 0.0
        %1691 = vmatpush1.msra.mxu0 0.0
        %1692 = vmatprep.subr.mxu0 0.0
        %1693 = vmatpush1.msra.mxu0 0.0
        %1694 = vmatprep.mubr.f32.mxu0 0.0
        %1695 = vmatmul.mubr.f32.gmra.mrb[0].mxu0 %v1242
        %v1696 = vpop.f32.mrb[0].mxu0
        %v1697 = vadd.f32 %v1027, %v1696
        %v1698 = vpop.f32.mrb[0].mxu0
        %v1699 = vadd.f32 %v1029, %v1698
        %1700 = vmatprep.mubr.f32.mxu0 0.0
        %1701 = vmatmul.mubr.f32.gmra.mrb[0].mxu0 %v1245
        %v1702 = vpop.f32.mrb[0].mxu0
        %v1703 = vadd.f32 %v1033, %v1702
        %v1704 = vpop.f32.mrb[0].mxu0
        %v1705 = vadd.f32 %v1035, %v1704
        %1706 = vmatprep.mubr.f32.mxu0 0.0
        %1707 = vmatmul.mubr.f32.gmra.mrb[0].mxu0 %v1248
        %v1708 = vpop.f32.mrb[0].mxu0
        %v1709 = vadd.f32 %v1039, %v1708
        %v1710 = vpop.f32.mrb[0].mxu0
        %v1711 = vadd.f32 %v1041, %v1710
        %1712 = vmatprep.mubr.f32.mxu0 0.0
        %1713 = vmatmul.mubr.f32.gmra.mrb[0].mxu0 %v1251
        %v1714 = vpop.f32.mrb[0].mxu0
        %v1715 = vadd.f32 %v1045, %v1714
        %v1716 = vpop.f32.mrb[0].mxu0
        %v1717 = vadd.f32 %v1047, %v1716
        %1718 = vmatprep.mubr.f32.mxu0 0.0
        %1719 = vmatmul.mubr.f32.gmra.mrb[0].mxu0 %v1254
        %v1720 = vpop.f32.mrb[0].mxu0
        %v1721 = vadd.f32 %v1051, %v1720
        %v1722 = vpop.f32.mrb[0].mxu0
        %v1723 = vadd.f32 %v1053, %v1722
        %1724 = vmatprep.mubr.f32.mxu0 0.0
        %1725 = vmatmul.mubr.f32.gmra.mrb[0].mxu0 %v1257
        %v1726 = vpop.f32.mrb[0].mxu0
        %v1727 = vadd.f32 %v1057, %v1726
        %v1728 = vpop.f32.mrb[0].mxu0
        %v1729 = vadd.f32 %v1059, %v1728
        %1730 = vmatprep.mubr.f32.mxu0 0.0
        %1731 = vmatmul.mubr.f32.gmra.mrb[0].mxu0 %v1260
        %v1732 = vpop.f32.mrb[0].mxu0
        %v1733 = vadd.f32 %v1063, %v1732
        %v1734 = vpop.f32.mrb[0].mxu0
        %v1735 = vadd.f32 %v1065, %v1734
        %1736 = vmatprep.mubr.f32.mxu0 0.0
        %1737 = vmatmul.mubr.f32.gmra.mrb[0].mxu0 %v1263
        %v1738 = vpop.f32.mrb[0].mxu0
        %v1739 = vadd.f32 %v1069, %v1738
        %v1740 = vpop.f32.mrb[0].mxu0
        %v1741 = vadd.f32 %v1071, %v1740
        %1742 = vmatprep.mubr.f32.mxu0 0.0
        %1743 = vmatmul.mubr.f32.gmra.mrb[0].mxu0 %v1266
        %v1744 = vpop.f32.mrb[0].mxu0
        %v1745 = vadd.f32 %v1075, %v1744
        %v1746 = vpop.f32.mrb[0].mxu0
        %v1747 = vadd.f32 %v1077, %v1746
        %1748 = vmatprep.mubr.f32.mxu0 0.0
        %1749 = vmatmul.mubr.f32.gmra.mrb[0].mxu0 %v1269
        %v1750 = vpop.f32.mrb[0].mxu0
        %v1751 = vadd.f32 %v1081, %v1750
        %v1752 = vpop.f32.mrb[0].mxu0
        %v1753 = vadd.f32 %v1083, %v1752
        %1754 = vmatprep.mubr.f32.mxu0 0.0
        %1755 = vmatmul.mubr.f32.gmra.mrb[0].mxu0 %v1272
        %v1756 = vpop.f32.mrb[0].mxu0
        %v1757 = vadd.f32 %v1087, %v1756
        %v1758 = vpop.f32.mrb[0].mxu0
        %v1759 = vadd.f32 %v1089, %v1758
        %1760 = vmatprep.mubr.f32.mxu0 0.0
        %1761 = vmatmul.mubr.f32.gmra.mrb[0].mxu0 %v1275
        %v1762 = vpop.f32.mrb[0].mxu0
        %v1763 = vadd.f32 %v1093, %v1762
        %v1764 = vpop.f32.mrb[0].mxu0
        %v1765 = vadd.f32 %v1095, %v1764
        %1766 = vmatprep.mubr.f32.mxu0 0.0
        %1767 = vmatmul.mubr.f32.gmra.mrb[0].mxu0 %v1278
        %v1768 = vpop.f32.mrb[0].mxu0
        %v1769 = vadd.f32 %v1099, %v1768
        %v1770 = vpop.f32.mrb[0].mxu0
        %v1771 = vadd.f32 %v1101, %v1770
        %1772 = vmatprep.mubr.f32.mxu0 0.0
        %1773 = vmatmul.mubr.f32.gmra.mrb[0].mxu0 %v1281
        %v1774 = vpop.f32.mrb[0].mxu0
        %v1775 = vadd.f32 %v1105, %v1774
        %v1776 = vpop.f32.mrb[0].mxu0
        %v1777 = vadd.f32 %v1107, %v1776
        %1778 = vmatprep.mubr.f32.mxu0 0.0
        %1779 = vmatmul.mubr.f32.gmra.mrb[0].mxu0 %v1284
        %v1780 = vpop.f32.mrb[0].mxu0
        %v1781 = vadd.f32 %v1111, %v1780
        %v1782 = vpop.f32.mrb[0].mxu0
        %v1783 = vadd.f32 %v1113, %v1782
        %1784 = vmatprep.mubr.f32.mxu0 0.0
        %1785 = vmatmul.mubr.f32.gmra.mrb[0].mxu0 %v1287
        %v1786 = vpop.f32.mrb[0].mxu0
        %v1787 = vadd.f32 %v1117, %v1786
        %v1788 = vpop.f32.mrb[0].mxu0
        %v1789 = vadd.f32 %v1119, %v1788
        %1790 = vmatprep.mubr.f32.mxu0 0.0
        %1791 = vmatmul.mubr.f32.gmra.mrb[0].mxu0 %v1290
        %v1792 = vpop.f32.mrb[0].mxu0
        %v1793 = vadd.f32 %v1123, %v1792
        %v1794 = vpop.f32.mrb[0].mxu0
        %v1795 = vadd.f32 %v1125, %v1794
        %1796 = vmatprep.mubr.f32.mxu0 0.0
        %1797 = vmatmul.mubr.f32.gmra.mrb[0].mxu0 %v1293
        %v1798 = vpop.f32.mrb[0].mxu0
        %v1799 = vadd.f32 %v1129, %v1798
        %v1800 = vpop.f32.mrb[0].mxu0
        %v1801 = vadd.f32 %v1131, %v1800
        %1802 = vmatprep.mubr.f32.mxu0 0.0
        %1803 = vmatmul.mubr.f32.gmra.mrb[0].mxu0 %v1296
        %v1804 = vpop.f32.mrb[0].mxu0
        %v1805 = vadd.f32 %v1135, %v1804
        %v1806 = vpop.f32.mrb[0].mxu0
        %v1807 = vadd.f32 %v1137, %v1806
        %1808 = vmatprep.mubr.f32.mxu0 0.0
        %1809 = vmatmul.mubr.f32.gmra.mrb[0].mxu0 %v1299
        %v1810 = vpop.f32.mrb[0].mxu0
        %v1811 = vadd.f32 %v1141, %v1810
        %v1812 = vpop.f32.mrb[0].mxu0
        %v1813 = vadd.f32 %v1143, %v1812
        %1814 = vmatprep.mubr.f32.mxu0 0.0
        %1815 = vmatmul.mubr.f32.gmra.mrb[0].mxu0 %v1302
        %v1816 = vpop.f32.mrb[0].mxu0
        %v1817 = vadd.f32 %v1147, %v1816
        %v1818 = vpop.f32.mrb[0].mxu0
        %v1819 = vadd.f32 %v1149, %v1818
        %1820 = vmatprep.mubr.f32.mxu0 0.0
        %1821 = vmatmul.mubr.f32.gmra.mrb[0].mxu0 %v1305
        %v1822 = vpop.f32.mrb[0].mxu0
        %v1823 = vadd.f32 %v1153, %v1822
        %v1824 = vpop.f32.mrb[0].mxu0
        %v1825 = vadd.f32 %v1155, %v1824
        %1826 = vmatprep.mubr.f32.mxu0 0.0
        %1827 = vmatmul.mubr.f32.gmra.mrb[0].mxu0 %v1308
        %v1828 = vpop.f32.mrb[0].mxu0
        %v1829 = vadd.f32 %v1159, %v1828
        %v1830 = vpop.f32.mrb[0].mxu0
        %v1831 = vadd.f32 %v1161, %v1830
        %1832 = vmatprep.mubr.f32.mxu0 0.0
        %1833 = vmatmul.mubr.f32.gmra.mrb[0].mxu0 %v1311
        %v1834 = vpop.f32.mrb[0].mxu0
        %v1835 = vadd.f32 %v1165, %v1834
        %v1836 = vpop.f32.mrb[0].mxu0
        %v1837 = vadd.f32 %v1167, %v1836
        %1838 = vmatprep.mubr.f32.mxu0 0.0
        %1839 = vmatmul.mubr.f32.gmra.mrb[0].mxu0 %v1314
        %v1840 = vpop.f32.mrb[0].mxu0
        %v1841 = vadd.f32 %v1171, %v1840
        %v1842 = vpop.f32.mrb[0].mxu0
        %v1843 = vadd.f32 %v1173, %v1842
        %1844 = vmatprep.mubr.f32.mxu0 0.0
        %1845 = vmatmul.mubr.f32.gmra.mrb[0].mxu0 %v1317
        %v1846 = vpop.f32.mrb[0].mxu0
        %v1847 = vadd.f32 %v1177, %v1846
        %v1848 = vpop.f32.mrb[0].mxu0
        %v1849 = vadd.f32 %v1179, %v1848
        %1850 = vmatprep.mubr.f32.mxu0 0.0
        %1851 = vmatmul.mubr.f32.gmra.mrb[0].mxu0 %v1320
        %v1852 = vpop.f32.mrb[0].mxu0
        %v1853 = vadd.f32 %v1183, %v1852
        %v1854 = vpop.f32.mrb[0].mxu0
        %v1855 = vadd.f32 %v1185, %v1854
        %1856 = vmatprep.mubr.f32.mxu0 0.0
        %1857 = vmatmul.mubr.f32.gmra.mrb[0].mxu0 %v1323
        %v1858 = vpop.f32.mrb[0].mxu0
        %v1859 = vadd.f32 %v1189, %v1858
        %v1860 = vpop.f32.mrb[0].mxu0
        %v1861 = vadd.f32 %v1191, %v1860
        %1862 = vmatprep.mubr.f32.mxu0 0.0
        %1863 = vmatmul.mubr.f32.gmra.mrb[0].mxu0 %v1326
        %v1864 = vpop.f32.mrb[0].mxu0
        %v1865 = vadd.f32 %v1195, %v1864
        %v1866 = vpop.f32.mrb[0].mxu0
        %v1867 = vadd.f32 %v1197, %v1866
        %1868 = vmatprep.mubr.f32.mxu0 0.0
        %1869 = vmatmul.mubr.f32.gmra.mrb[0].mxu0 %v1329
        %v1870 = vpop.f32.mrb[0].mxu0
        %v1871 = vadd.f32 %v1201, %v1870
        %v1872 = vpop.f32.mrb[0].mxu0
        %v1873 = vadd.f32 %v1203, %v1872
        %1874 = vmatprep.mubr.f32.mxu0 0.0
        %1875 = vmatmul.mubr.f32.gmra.mrb[0].mxu0 %v1332
        %v1876 = vpop.f32.mrb[0].mxu0
        %v1877 = vadd.f32 %v1207, %v1876
        %v1878 = vpop.f32.mrb[0].mxu0
        %v1879 = vadd.f32 %v1209, %v1878
        %1880 = vmatprep.mubr.f32.mxu0 0.0
        %1881 = vmatmul.mubr.f32.gmra.mrb[0].mxu0 %v1335
        %v1882 = vpop.f32.mrb[0].mxu0
        %v1883 = vadd.f32 %v1213, %v1882
        %v1884 = vpop.f32.mrb[0].mxu0
        %v1885 = vadd.f32 %v1215, %v1884
        %1886 = vmatprep.mubr.f32.mxu0 0.0
        %1887 = vmatmul.mubr.f32.gmra.mrb[0].mxu0 %v1338
        %v1888 = vpop.f32.mrb[0].mxu0
        %v1889 = vadd.f32 %v1219, %v1888
        %v1890 = vpop.f32.mrb[0].mxu0
        %v1891 = vadd.f32 %v1221, %v1890
        %1892 = vmatprep.mubr.f32.mxu0 0.0
        %1893 = vmatmul.mubr.f32.gmra.mrb[0].mxu0 %v1341
        %v1894 = vpop.f32.mrb[0].mxu0
        %v1895 = vadd.f32 %v1225, %v1894
        %v1896 = vpop.f32.mrb[0].mxu0
        %v1897 = vadd.f32 %v1227, %v1896
        %1898 = vmatprep.mubr.f32.mxu0 0.0
        %1899 = vmatmul.mubr.f32.gmra.mrb[0].mxu0 %v1344
        %v1900 = vpop.f32.mrb[0].mxu0
        %v1901 = vadd.f32 %v1231, %v1900
        %v1902 = vpop.f32.mrb[0].mxu0
        %v1903 = vadd.f32 %v1233, %v1902
        %1904 = vmatprep.mubr.f32.mxu0 0.0
        %1905 = vmatmul.mubr.f32.gmra.mrb[0].mxu0 %v1347
        %v1906 = vpop.f32.mrb[0].mxu0
        %v1907 = vadd.f32 %v1237, %v1906
        %v1908 = vpop.f32.mrb[0].mxu0
        %v1909 = vadd.f32 %v1239, %v1908
        %1910 = vdwg.mxu0
        %v1911 = vld [vmem:[%s454 + $0x2] sm:$0xff]
        %v1912 = vld [vmem:[%s454 + $0xa] sm:$0xff]
        %v1913 = vld [vmem:[%s454 + $0x12] sm:$0xff]
        %v1914 = vld [vmem:[%s454 + $0x1a] sm:$0xff]
        %v1915 = vld [vmem:[%s454 + $0x22] sm:$0xff]
        %v1916 = vld [vmem:[%s454 + $0x2a] sm:$0xff]
        %v1917 = vld [vmem:[%s454 + $0x32] sm:$0xff]
        %v1918 = vld [vmem:[%s454 + $0x3a] sm:$0xff]
        %v1919 = vld [vmem:[%s454 + $0x42] sm:$0xff]
        %v1920 = vld [vmem:[%s454 + $0x4a] sm:$0xff]
        %v1921 = vld [vmem:[%s454 + $0x52] sm:$0xff]
        %v1922 = vld [vmem:[%s454 + $0x5a] sm:$0xff]
        %v1923 = vld [vmem:[%s454 + $0x62] sm:$0xff]
        %v1924 = vld [vmem:[%s454 + $0x6a] sm:$0xff]
        %v1925 = vld [vmem:[%s454 + $0x72] sm:$0xff]
        %v1926 = vld [vmem:[%s454 + $0x7a] sm:$0xff]
        %v1927 = vld [vmem:[%s454 + $0x82] sm:$0xff]
        %v1928 = vld [vmem:[%s454 + $0x8a] sm:$0xff]
        %v1929 = vld [vmem:[%s454 + $0x92] sm:$0xff]
        %v1930 = vld [vmem:[%s454 + $0x9a] sm:$0xff]
        %v1931 = vld [vmem:[%s454 + $0xa2] sm:$0xff]
        %v1932 = vld [vmem:[%s454 + $0xaa] sm:$0xff]
        %v1933 = vld [vmem:[%s454 + $0xb2] sm:$0xff]
        %v1934 = vld [vmem:[%s454 + $0xba] sm:$0xff]
        %v1935 = vld [vmem:[%s454 + $0xc2] sm:$0xff]
        %v1936 = vld [vmem:[%s454 + $0xca] sm:$0xff]
        %v1937 = vld [vmem:[%s454 + $0xd2] sm:$0xff]
        %v1938 = vld [vmem:[%s454 + $0xda] sm:$0xff]
        %v1939 = vld [vmem:[%s454 + $0xe2] sm:$0xff]
        %v1940 = vld [vmem:[%s454 + $0xea] sm:$0xff]
        %v1941 = vld [vmem:[%s454 + $0xf2] sm:$0xff]
        %v1942 = vld [vmem:[%s454 + $0xfa] sm:$0xff]
        %v1943 = vld [vmem:[%s454 + $0x102] sm:$0xff]
        %v1944 = vld [vmem:[%s454 + $0x10a] sm:$0xff]
        %v1945 = vld [vmem:[%s454 + $0x112] sm:$0xff]
        %v1946 = vld [vmem:[%s454 + $0x11a] sm:$0xff]
        %s1947 = scalar_lea.vmem %s1, 256
        %v1948 = vld [vmem:[%s1947] sm:$0xff]
        %v1949 = vld [vmem:[%s1947 + $0x8] sm:$0xff]
        %v1950 = vld [vmem:[%s1947 + $0x10] sm:$0xff]
        %v1951 = vld [vmem:[%s1947 + $0x18] sm:$0xff]
        %v1952 = vld [vmem:[%s1947 + $0x20] sm:$0xff]
        %v1953 = vld [vmem:[%s1947 + $0x28] sm:$0xff]
        %v1954 = vld [vmem:[%s1947 + $0x30] sm:$0xff]
        %v1955 = vld [vmem:[%s1947 + $0x38] sm:$0xff]
        %v1956 = vld [vmem:[%s1947 + $0x40] sm:$0xff]
        %v1957 = vld [vmem:[%s1947 + $0x48] sm:$0xff]
        %v1958 = vld [vmem:[%s1947 + $0x50] sm:$0xff]
        %v1959 = vld [vmem:[%s1947 + $0x58] sm:$0xff]
        %v1960 = vld [vmem:[%s1947 + $0x60] sm:$0xff]
        %v1961 = vld [vmem:[%s1947 + $0x68] sm:$0xff]
        %v1962 = vld [vmem:[%s1947 + $0x70] sm:$0xff]
        %v1963 = vld [vmem:[%s1947 + $0x78] sm:$0xff]
        %v1965 = vsel %vm570, %v1911, 0
        %v1968 = vsel %vm570, %v1912, 0
        %v1971 = vsel %vm570, %v1913, 0
        %v1974 = vsel %vm570, %v1914, 0
        %v1977 = vsel %vm570, %v1915, 0
        %v1980 = vsel %vm570, %v1916, 0
        %v1983 = vsel %vm570, %v1917, 0
        %v1986 = vsel %vm570, %v1918, 0
        %v1989 = vsel %vm570, %v1919, 0
        %v1992 = vsel %vm570, %v1920, 0
        %v1995 = vsel %vm570, %v1921, 0
        %v1998 = vsel %vm570, %v1922, 0
        %v2001 = vsel %vm570, %v1923, 0
        %v2004 = vsel %vm570, %v1924, 0
        %v2007 = vsel %vm570, %v1925, 0
        %v2010 = vsel %vm570, %v1926, 0
        %v2013 = vsel %vm570, %v1927, 0
        %v2016 = vsel %vm570, %v1928, 0
        %v2019 = vsel %vm570, %v1929, 0
        %v2022 = vsel %vm570, %v1930, 0
        %v2025 = vsel %vm570, %v1931, 0
        %v2028 = vsel %vm570, %v1932, 0
        %v2031 = vsel %vm570, %v1933, 0
        %v2034 = vsel %vm570, %v1934, 0
        %v2037 = vsel %vm570, %v1935, 0
        %v2040 = vsel %vm570, %v1936, 0
        %v2043 = vsel %vm570, %v1937, 0
        %v2046 = vsel %vm570, %v1938, 0
        %v2049 = vsel %vm570, %v1939, 0
        %v2052 = vsel %vm570, %v1940, 0
        %v2055 = vsel %vm570, %v1941, 0
        %v2058 = vsel %vm570, %v1942, 0
        %v2061 = vsel %vm570, %v1943, 0
        %v2064 = vsel %vm570, %v1944, 0
        %v2067 = vsel %vm570, %v1945, 0
        %v2070 = vsel %vm570, %v1946, 0
        %2072 = vmatprep.subr.mxu0 %v1949
        %2073 = vmatpush1.msra.mxu0 %v1948
        %2074 = vmatprep.subr.mxu0 %v1953
        %2075 = vmatpush1.msra.mxu0 %v1952
        %2076 = vmatprep.subr.mxu0 %v1957
        %2077 = vmatpush1.msra.mxu0 %v1956
        %2078 = vmatprep.subr.mxu0 %v1961
        %2079 = vmatpush1.msra.mxu0 %v1960
        %2080 = vmatprep.subr.mxu0 0.0
        %2081 = vmatpush1.msra.mxu0 0.0
        %2082 = vmatprep.subr.mxu0 0.0
        %2083 = vmatpush1.msra.mxu0 0.0
        %2084 = vmatprep.subr.mxu0 0.0
        %2085 = vmatpush1.msra.mxu0 0.0
        %2086 = vmatprep.subr.mxu0 0.0
        %2087 = vmatpush1.msra.mxu0 0.0
        %2088 = vmatprep.subr.mxu0 0.0
        %2089 = vmatpush1.msra.mxu0 0.0
        %2090 = vmatprep.subr.mxu0 0.0
        %2091 = vmatpush1.msra.mxu0 0.0
        %2092 = vmatprep.subr.mxu0 0.0
        %2093 = vmatpush1.msra.mxu0 0.0
        %2094 = vmatprep.subr.mxu0 0.0
        %2095 = vmatpush1.msra.mxu0 0.0
        %2096 = vmatprep.subr.mxu0 0.0
        %2097 = vmatpush1.msra.mxu0 0.0
        %2098 = vmatprep.subr.mxu0 0.0
        %2099 = vmatpush1.msra.mxu0 0.0
        %2100 = vmatprep.subr.mxu0 0.0
        %2101 = vmatpush1.msra.mxu0 0.0
        %2102 = vmatprep.subr.mxu0 0.0
        %2103 = vmatpush1.msra.mxu0 0.0
        %2104 = vmatprep.subr.mxu0 0.0
        %2105 = vmatpush1.msra.mxu0 0.0
        %2106 = vmatprep.subr.mxu0 0.0
        %2107 = vmatpush1.msra.mxu0 0.0
        %2108 = vmatprep.subr.mxu0 0.0
        %2109 = vmatpush1.msra.mxu0 0.0
        %2110 = vmatprep.subr.mxu0 0.0
        %2111 = vmatpush1.msra.mxu0 0.0
        %2112 = vmatprep.subr.mxu0 0.0
        %2113 = vmatpush1.msra.mxu0 0.0
        %2114 = vmatprep.subr.mxu0 0.0
        %2115 = vmatpush1.msra.mxu0 0.0
        %2116 = vmatprep.subr.mxu0 0.0
        %2117 = vmatpush1.msra.mxu0 0.0
        %2118 = vmatprep.subr.mxu0 0.0
        %2119 = vmatpush1.msra.mxu0 0.0
        %2120 = vmatprep.subr.mxu0 0.0
        %2121 = vmatpush1.msra.mxu0 0.0
        %2122 = vmatprep.subr.mxu0 0.0
        %2123 = vmatpush1.msra.mxu0 0.0
        %2124 = vmatprep.subr.mxu0 0.0
        %2125 = vmatpush1.msra.mxu0 0.0
        %2126 = vmatprep.subr.mxu0 0.0
        %2127 = vmatpush1.msra.mxu0 0.0
        %2128 = vmatprep.subr.mxu0 0.0
        %2129 = vmatpush1.msra.mxu0 0.0
        %2130 = vmatprep.subr.mxu0 0.0
        %2131 = vmatpush1.msra.mxu0 0.0
        %2132 = vmatprep.subr.mxu0 0.0
        %2133 = vmatpush1.msra.mxu0 0.0
        %2134 = vmatprep.subr.mxu0 0.0
        %2135 = vmatpush1.msra.mxu0 0.0
        %2136 = vmatprep.mubr.f32.mxu0 0.0
        %2137 = vmatmul.mubr.f32.gmra.mrb[0].mxu0 %v1965
        %v2138 = vpop.f32.mrb[0].mxu0
        %v2139 = vadd.f32 0.0, %v2138
        %v2140 = vpop.f32.mrb[0].mxu0
        %v2141 = vadd.f32 0.0, %v2140
        %2142 = vmatprep.mubr.f32.mxu0 0.0
        %2143 = vmatmul.mubr.f32.gmra.mrb[0].mxu0 %v1968
        %v2144 = vpop.f32.mrb[0].mxu0
        %v2145 = vadd.f32 0.0, %v2144
        %v2146 = vpop.f32.mrb[0].mxu0
        %v2147 = vadd.f32 0.0, %v2146
        %2148 = vmatprep.mubr.f32.mxu0 0.0
        %2149 = vmatmul.mubr.f32.gmra.mrb[0].mxu0 %v1971
        %v2150 = vpop.f32.mrb[0].mxu0
        %v2151 = vadd.f32 0.0, %v2150
        %v2152 = vpop.f32.mrb[0].mxu0
        %v2153 = vadd.f32 0.0, %v2152
        %2154 = vmatprep.mubr.f32.mxu0 0.0
        %2155 = vmatmul.mubr.f32.gmra.mrb[0].mxu0 %v1974
        %v2156 = vpop.f32.mrb[0].mxu0
        %v2157 = vadd.f32 0.0, %v2156
        %v2158 = vpop.f32.mrb[0].mxu0
        %v2159 = vadd.f32 0.0, %v2158
        %2160 = vmatprep.mubr.f32.mxu0 0.0
        %2161 = vmatmul.mubr.f32.gmra.mrb[0].mxu0 %v1977
        %v2162 = vpop.f32.mrb[0].mxu0
        %v2163 = vadd.f32 0.0, %v2162
        %v2164 = vpop.f32.mrb[0].mxu0
        %v2165 = vadd.f32 0.0, %v2164
        %2166 = vmatprep.mubr.f32.mxu0 0.0
        %2167 = vmatmul.mubr.f32.gmra.mrb[0].mxu0 %v1980
        %v2168 = vpop.f32.mrb[0].mxu0
        %v2169 = vadd.f32 0.0, %v2168
        %v2170 = vpop.f32.mrb[0].mxu0
        %v2171 = vadd.f32 0.0, %v2170
        %2172 = vmatprep.mubr.f32.mxu0 0.0
        %2173 = vmatmul.mubr.f32.gmra.mrb[0].mxu0 %v1983
        %v2174 = vpop.f32.mrb[0].mxu0
        %v2175 = vadd.f32 0.0, %v2174
        %v2176 = vpop.f32.mrb[0].mxu0
        %v2177 = vadd.f32 0.0, %v2176
        %2178 = vmatprep.mubr.f32.mxu0 0.0
        %2179 = vmatmul.mubr.f32.gmra.mrb[0].mxu0 %v1986
        %v2180 = vpop.f32.mrb[0].mxu0
        %v2181 = vadd.f32 0.0, %v2180
        %v2182 = vpop.f32.mrb[0].mxu0
        %v2183 = vadd.f32 0.0, %v2182
        %2184 = vmatprep.mubr.f32.mxu0 0.0
        %2185 = vmatmul.mubr.f32.gmra.mrb[0].mxu0 %v1989
        %v2186 = vpop.f32.mrb[0].mxu0
        %v2187 = vadd.f32 0.0, %v2186
        %v2188 = vpop.f32.mrb[0].mxu0
        %v2189 = vadd.f32 0.0, %v2188
        %2190 = vmatprep.mubr.f32.mxu0 0.0
        %2191 = vmatmul.mubr.f32.gmra.mrb[0].mxu0 %v1992
        %v2192 = vpop.f32.mrb[0].mxu0
        %v2193 = vadd.f32 0.0, %v2192
        %v2194 = vpop.f32.mrb[0].mxu0
        %v2195 = vadd.f32 0.0, %v2194
        %2196 = vmatprep.mubr.f32.mxu0 0.0
        %2197 = vmatmul.mubr.f32.gmra.mrb[0].mxu0 %v1995
        %v2198 = vpop.f32.mrb[0].mxu0
        %v2199 = vadd.f32 0.0, %v2198
        %v2200 = vpop.f32.mrb[0].mxu0
        %v2201 = vadd.f32 0.0, %v2200
        %2202 = vmatprep.mubr.f32.mxu0 0.0
        %2203 = vmatmul.mubr.f32.gmra.mrb[0].mxu0 %v1998
        %v2204 = vpop.f32.mrb[0].mxu0
        %v2205 = vadd.f32 0.0, %v2204
        %v2206 = vpop.f32.mrb[0].mxu0
        %v2207 = vadd.f32 0.0, %v2206
        %2208 = vmatprep.mubr.f32.mxu0 0.0
        %2209 = vmatmul.mubr.f32.gmra.mrb[0].mxu0 %v2001
        %v2210 = vpop.f32.mrb[0].mxu0
        %v2211 = vadd.f32 0.0, %v2210
        %v2212 = vpop.f32.mrb[0].mxu0
        %v2213 = vadd.f32 0.0, %v2212
        %2214 = vmatprep.mubr.f32.mxu0 0.0
        %2215 = vmatmul.mubr.f32.gmra.mrb[0].mxu0 %v2004
        %v2216 = vpop.f32.mrb[0].mxu0
        %v2217 = vadd.f32 0.0, %v2216
        %v2218 = vpop.f32.mrb[0].mxu0
        %v2219 = vadd.f32 0.0, %v2218
        %2220 = vmatprep.mubr.f32.mxu0 0.0
        %2221 = vmatmul.mubr.f32.gmra.mrb[0].mxu0 %v2007
        %v2222 = vpop.f32.mrb[0].mxu0
        %v2223 = vadd.f32 0.0, %v2222
        %v2224 = vpop.f32.mrb[0].mxu0
        %v2225 = vadd.f32 0.0, %v2224
        %2226 = vmatprep.mubr.f32.mxu0 0.0
        %2227 = vmatmul.mubr.f32.gmra.mrb[0].mxu0 %v2010
        %v2228 = vpop.f32.mrb[0].mxu0
        %v2229 = vadd.f32 0.0, %v2228
        %v2230 = vpop.f32.mrb[0].mxu0
        %v2231 = vadd.f32 0.0, %v2230
        %2232 = vmatprep.mubr.f32.mxu0 0.0
        %2233 = vmatmul.mubr.f32.gmra.mrb[0].mxu0 %v2013
        %v2234 = vpop.f32.mrb[0].mxu0
        %v2235 = vadd.f32 0.0, %v2234
        %v2236 = vpop.f32.mrb[0].mxu0
        %v2237 = vadd.f32 0.0, %v2236
        %2238 = vmatprep.mubr.f32.mxu0 0.0
        %2239 = vmatmul.mubr.f32.gmra.mrb[0].mxu0 %v2016
        %v2240 = vpop.f32.mrb[0].mxu0
        %v2241 = vadd.f32 0.0, %v2240
        %v2242 = vpop.f32.mrb[0].mxu0
        %v2243 = vadd.f32 0.0, %v2242
        %2244 = vmatprep.mubr.f32.mxu0 0.0
        %2245 = vmatmul.mubr.f32.gmra.mrb[0].mxu0 %v2019
        %v2246 = vpop.f32.mrb[0].mxu0
        %v2247 = vadd.f32 0.0, %v2246
        %v2248 = vpop.f32.mrb[0].mxu0
        %v2249 = vadd.f32 0.0, %v2248
        %2250 = vmatprep.mubr.f32.mxu0 0.0
        %2251 = vmatmul.mubr.f32.gmra.mrb[0].mxu0 %v2022
        %v2252 = vpop.f32.mrb[0].mxu0
        %v2253 = vadd.f32 0.0, %v2252
        %v2254 = vpop.f32.mrb[0].mxu0
        %v2255 = vadd.f32 0.0, %v2254
        %2256 = vmatprep.mubr.f32.mxu0 0.0
        %2257 = vmatmul.mubr.f32.gmra.mrb[0].mxu0 %v2025
        %v2258 = vpop.f32.mrb[0].mxu0
        %v2259 = vadd.f32 0.0, %v2258
        %v2260 = vpop.f32.mrb[0].mxu0
        %v2261 = vadd.f32 0.0, %v2260
        %2262 = vmatprep.mubr.f32.mxu0 0.0
        %2263 = vmatmul.mubr.f32.gmra.mrb[0].mxu0 %v2028
        %v2264 = vpop.f32.mrb[0].mxu0
        %v2265 = vadd.f32 0.0, %v2264
        %v2266 = vpop.f32.mrb[0].mxu0
        %v2267 = vadd.f32 0.0, %v2266
        %2268 = vmatprep.mubr.f32.mxu0 0.0
        %2269 = vmatmul.mubr.f32.gmra.mrb[0].mxu0 %v2031
        %v2270 = vpop.f32.mrb[0].mxu0
        %v2271 = vadd.f32 0.0, %v2270
        %v2272 = vpop.f32.mrb[0].mxu0
        %v2273 = vadd.f32 0.0, %v2272
        %2274 = vmatprep.mubr.f32.mxu0 0.0
        %2275 = vmatmul.mubr.f32.gmra.mrb[0].mxu0 %v2034
        %v2276 = vpop.f32.mrb[0].mxu0
        %v2277 = vadd.f32 0.0, %v2276
        %v2278 = vpop.f32.mrb[0].mxu0
        %v2279 = vadd.f32 0.0, %v2278
        %2280 = vmatprep.mubr.f32.mxu0 0.0
        %2281 = vmatmul.mubr.f32.gmra.mrb[0].mxu0 %v2037
        %v2282 = vpop.f32.mrb[0].mxu0
        %v2283 = vadd.f32 0.0, %v2282
        %v2284 = vpop.f32.mrb[0].mxu0
        %v2285 = vadd.f32 0.0, %v2284
        %2286 = vmatprep.mubr.f32.mxu0 0.0
        %2287 = vmatmul.mubr.f32.gmra.mrb[0].mxu0 %v2040
        %v2288 = vpop.f32.mrb[0].mxu0
        %v2289 = vadd.f32 0.0, %v2288
        %v2290 = vpop.f32.mrb[0].mxu0
        %v2291 = vadd.f32 0.0, %v2290
        %2292 = vmatprep.mubr.f32.mxu0 0.0
        %2293 = vmatmul.mubr.f32.gmra.mrb[0].mxu0 %v2043
        %v2294 = vpop.f32.mrb[0].mxu0
        %v2295 = vadd.f32 0.0, %v2294
        %v2296 = vpop.f32.mrb[0].mxu0
        %v2297 = vadd.f32 0.0, %v2296
        %2298 = vmatprep.mubr.f32.mxu0 0.0
        %2299 = vmatmul.mubr.f32.gmra.mrb[0].mxu0 %v2046
        %v2300 = vpop.f32.mrb[0].mxu0
        %v2301 = vadd.f32 0.0, %v2300
        %v2302 = vpop.f32.mrb[0].mxu0
        %v2303 = vadd.f32 0.0, %v2302
        %2304 = vmatprep.mubr.f32.mxu0 0.0
        %2305 = vmatmul.mubr.f32.gmra.mrb[0].mxu0 %v2049
        %v2306 = vpop.f32.mrb[0].mxu0
        %v2307 = vadd.f32 0.0, %v2306
        %v2308 = vpop.f32.mrb[0].mxu0
        %v2309 = vadd.f32 0.0, %v2308
        %2310 = vmatprep.mubr.f32.mxu0 0.0
        %2311 = vmatmul.mubr.f32.gmra.mrb[0].mxu0 %v2052
        %v2312 = vpop.f32.mrb[0].mxu0
        %v2313 = vadd.f32 0.0, %v2312
        %v2314 = vpop.f32.mrb[0].mxu0
        %v2315 = vadd.f32 0.0, %v2314
        %2316 = vmatprep.mubr.f32.mxu0 0.0
        %2317 = vmatmul.mubr.f32.gmra.mrb[0].mxu0 %v2055
        %v2318 = vpop.f32.mrb[0].mxu0
        %v2319 = vadd.f32 0.0, %v2318
        %v2320 = vpop.f32.mrb[0].mxu0
        %v2321 = vadd.f32 0.0, %v2320
        %2322 = vmatprep.mubr.f32.mxu0 0.0
        %2323 = vmatmul.mubr.f32.gmra.mrb[0].mxu0 %v2058
        %v2324 = vpop.f32.mrb[0].mxu0
        %v2325 = vadd.f32 0.0, %v2324
        %v2326 = vpop.f32.mrb[0].mxu0
        %v2327 = vadd.f32 0.0, %v2326
        %2328 = vmatprep.mubr.f32.mxu0 0.0
        %2329 = vmatmul.mubr.f32.gmra.mrb[0].mxu0 %v2061
        %v2330 = vpop.f32.mrb[0].mxu0
        %v2331 = vadd.f32 0.0, %v2330
        %v2332 = vpop.f32.mrb[0].mxu0
        %v2333 = vadd.f32 0.0, %v2332
        %2334 = vmatprep.mubr.f32.mxu0 0.0
        %2335 = vmatmul.mubr.f32.gmra.mrb[0].mxu0 %v2064
        %v2336 = vpop.f32.mrb[0].mxu0
        %v2337 = vadd.f32 0.0, %v2336
        %v2338 = vpop.f32.mrb[0].mxu0
        %v2339 = vadd.f32 0.0, %v2338
        %2340 = vmatprep.mubr.f32.mxu0 0.0
        %2341 = vmatmul.mubr.f32.gmra.mrb[0].mxu0 %v2067
        %v2342 = vpop.f32.mrb[0].mxu0
        %v2343 = vadd.f32 0.0, %v2342
        %v2344 = vpop.f32.mrb[0].mxu0
        %v2345 = vadd.f32 0.0, %v2344
        %2346 = vmatprep.mubr.f32.mxu0 0.0
        %2347 = vmatmul.mubr.f32.gmra.mrb[0].mxu0 %v2070
        %v2348 = vpop.f32.mrb[0].mxu0
        %v2349 = vadd.f32 0.0, %v2348
        %v2350 = vpop.f32.mrb[0].mxu0
        %v2351 = vadd.f32 0.0, %v2350
        %2352 = vdwg.mxu0
        %2353 = vmatprep.subr.mxu0 %v1951
        %2354 = vmatpush1.msra.mxu0 %v1950
        %2355 = vmatprep.subr.mxu0 %v1955
        %2356 = vmatpush1.msra.mxu0 %v1954
        %2357 = vmatprep.subr.mxu0 %v1959
        %2358 = vmatpush1.msra.mxu0 %v1958
        %2359 = vmatprep.subr.mxu0 %v1963
        %2360 = vmatpush1.msra.mxu0 %v1962
        %2361 = vmatprep.subr.mxu0 0.0
        %2362 = vmatpush1.msra.mxu0 0.0
        %2363 = vmatprep.subr.mxu0 0.0
        %2364 = vmatpush1.msra.mxu0 0.0
        %2365 = vmatprep.subr.mxu0 0.0
        %2366 = vmatpush1.msra.mxu0 0.0
        %2367 = vmatprep.subr.mxu0 0.0
        %2368 = vmatpush1.msra.mxu0 0.0
        %2369 = vmatprep.subr.mxu0 0.0
        %2370 = vmatpush1.msra.mxu0 0.0
        %2371 = vmatprep.subr.mxu0 0.0
        %2372 = vmatpush1.msra.mxu0 0.0
        %2373 = vmatprep.subr.mxu0 0.0
        %2374 = vmatpush1.msra.mxu0 0.0
        %2375 = vmatprep.subr.mxu0 0.0
        %2376 = vmatpush1.msra.mxu0 0.0
        %2377 = vmatprep.subr.mxu0 0.0
        %2378 = vmatpush1.msra.mxu0 0.0
        %2379 = vmatprep.subr.mxu0 0.0
        %2380 = vmatpush1.msra.mxu0 0.0
        %2381 = vmatprep.subr.mxu0 0.0
        %2382 = vmatpush1.msra.mxu0 0.0
        %2383 = vmatprep.subr.mxu0 0.0
        %2384 = vmatpush1.msra.mxu0 0.0
        %2385 = vmatprep.subr.mxu0 0.0
        %2386 = vmatpush1.msra.mxu0 0.0
        %2387 = vmatprep.subr.mxu0 0.0
        %2388 = vmatpush1.msra.mxu0 0.0
        %2389 = vmatprep.subr.mxu0 0.0
        %2390 = vmatpush1.msra.mxu0 0.0
        %2391 = vmatprep.subr.mxu0 0.0
        %2392 = vmatpush1.msra.mxu0 0.0
        %2393 = vmatprep.subr.mxu0 0.0
        %2394 = vmatpush1.msra.mxu0 0.0
        %2395 = vmatprep.subr.mxu0 0.0
        %2396 = vmatpush1.msra.mxu0 0.0
        %2397 = vmatprep.subr.mxu0 0.0
        %2398 = vmatpush1.msra.mxu0 0.0
        %2399 = vmatprep.subr.mxu0 0.0
        %2400 = vmatpush1.msra.mxu0 0.0
        %2401 = vmatprep.subr.mxu0 0.0
        %2402 = vmatpush1.msra.mxu0 0.0
        %2403 = vmatprep.subr.mxu0 0.0
        %2404 = vmatpush1.msra.mxu0 0.0
        %2405 = vmatprep.subr.mxu0 0.0
        %2406 = vmatpush1.msra.mxu0 0.0
        %2407 = vmatprep.subr.mxu0 0.0
        %2408 = vmatpush1.msra.mxu0 0.0
        %2409 = vmatprep.subr.mxu0 0.0
        %2410 = vmatpush1.msra.mxu0 0.0
        %2411 = vmatprep.subr.mxu0 0.0
        %2412 = vmatpush1.msra.mxu0 0.0
        %2413 = vmatprep.subr.mxu0 0.0
        %2414 = vmatpush1.msra.mxu0 0.0
        %2415 = vmatprep.subr.mxu0 0.0
        %2416 = vmatpush1.msra.mxu0 0.0
        %2417 = vmatprep.mubr.f32.mxu0 0.0
        %2418 = vmatmul.mubr.f32.gmra.mrb[0].mxu0 %v1965
        %v2419 = vpop.f32.mrb[0].mxu0
        %v2420 = vadd.f32 0.0, %v2419
        %v2421 = vpop.f32.mrb[0].mxu0
        %v2422 = vadd.f32 0.0, %v2421
        %2423 = vmatprep.mubr.f32.mxu0 0.0
        %2424 = vmatmul.mubr.f32.gmra.mrb[0].mxu0 %v1968
        %v2425 = vpop.f32.mrb[0].mxu0
        %v2426 = vadd.f32 0.0, %v2425
        %v2427 = vpop.f32.mrb[0].mxu0
        %v2428 = vadd.f32 0.0, %v2427
        %2429 = vmatprep.mubr.f32.mxu0 0.0
        %2430 = vmatmul.mubr.f32.gmra.mrb[0].mxu0 %v1971
        %v2431 = vpop.f32.mrb[0].mxu0
        %v2432 = vadd.f32 0.0, %v2431
        %v2433 = vpop.f32.mrb[0].mxu0
        %v2434 = vadd.f32 0.0, %v2433
        %2435 = vmatprep.mubr.f32.mxu0 0.0
        %2436 = vmatmul.mubr.f32.gmra.mrb[0].mxu0 %v1974
        %v2437 = vpop.f32.mrb[0].mxu0
        %v2438 = vadd.f32 0.0, %v2437
        %v2439 = vpop.f32.mrb[0].mxu0
        %v2440 = vadd.f32 0.0, %v2439
        %2441 = vmatprep.mubr.f32.mxu0 0.0
        %2442 = vmatmul.mubr.f32.gmra.mrb[0].mxu0 %v1977
        %v2443 = vpop.f32.mrb[0].mxu0
        %v2444 = vadd.f32 0.0, %v2443
        %v2445 = vpop.f32.mrb[0].mxu0
        %v2446 = vadd.f32 0.0, %v2445
        %2447 = vmatprep.mubr.f32.mxu0 0.0
        %2448 = vmatmul.mubr.f32.gmra.mrb[0].mxu0 %v1980
        %v2449 = vpop.f32.mrb[0].mxu0
        %v2450 = vadd.f32 0.0, %v2449
        %v2451 = vpop.f32.mrb[0].mxu0
        %v2452 = vadd.f32 0.0, %v2451
        %2453 = vmatprep.mubr.f32.mxu0 0.0
        %2454 = vmatmul.mubr.f32.gmra.mrb[0].mxu0 %v1983
        %v2455 = vpop.f32.mrb[0].mxu0
        %v2456 = vadd.f32 0.0, %v2455
        %v2457 = vpop.f32.mrb[0].mxu0
        %v2458 = vadd.f32 0.0, %v2457
        %2459 = vmatprep.mubr.f32.mxu0 0.0
        %2460 = vmatmul.mubr.f32.gmra.mrb[0].mxu0 %v1986
        %v2461 = vpop.f32.mrb[0].mxu0
        %v2462 = vadd.f32 0.0, %v2461
        %v2463 = vpop.f32.mrb[0].mxu0
        %v2464 = vadd.f32 0.0, %v2463
        %2465 = vmatprep.mubr.f32.mxu0 0.0
        %2466 = vmatmul.mubr.f32.gmra.mrb[0].mxu0 %v1989
        %v2467 = vpop.f32.mrb[0].mxu0
        %v2468 = vadd.f32 0.0, %v2467
        %v2469 = vpop.f32.mrb[0].mxu0
        %v2470 = vadd.f32 0.0, %v2469
        %2471 = vmatprep.mubr.f32.mxu0 0.0
        %2472 = vmatmul.mubr.f32.gmra.mrb[0].mxu0 %v1992
        %v2473 = vpop.f32.mrb[0].mxu0
        %v2474 = vadd.f32 0.0, %v2473
        %v2475 = vpop.f32.mrb[0].mxu0
        %v2476 = vadd.f32 0.0, %v2475
        %2477 = vmatprep.mubr.f32.mxu0 0.0
        %2478 = vmatmul.mubr.f32.gmra.mrb[0].mxu0 %v1995
        %v2479 = vpop.f32.mrb[0].mxu0
        %v2480 = vadd.f32 0.0, %v2479
        %v2481 = vpop.f32.mrb[0].mxu0
        %v2482 = vadd.f32 0.0, %v2481
        %2483 = vmatprep.mubr.f32.mxu0 0.0
        %2484 = vmatmul.mubr.f32.gmra.mrb[0].mxu0 %v1998
        %v2485 = vpop.f32.mrb[0].mxu0
        %v2486 = vadd.f32 0.0, %v2485
        %v2487 = vpop.f32.mrb[0].mxu0
        %v2488 = vadd.f32 0.0, %v2487
        %2489 = vmatprep.mubr.f32.mxu0 0.0
        %2490 = vmatmul.mubr.f32.gmra.mrb[0].mxu0 %v2001
        %v2491 = vpop.f32.mrb[0].mxu0
        %v2492 = vadd.f32 0.0, %v2491
        %v2493 = vpop.f32.mrb[0].mxu0
        %v2494 = vadd.f32 0.0, %v2493
        %2495 = vmatprep.mubr.f32.mxu0 0.0
        %2496 = vmatmul.mubr.f32.gmra.mrb[0].mxu0 %v2004
        %v2497 = vpop.f32.mrb[0].mxu0
        %v2498 = vadd.f32 0.0, %v2497
        %v2499 = vpop.f32.mrb[0].mxu0
        %v2500 = vadd.f32 0.0, %v2499
        %2501 = vmatprep.mubr.f32.mxu0 0.0
        %2502 = vmatmul.mubr.f32.gmra.mrb[0].mxu0 %v2007
        %v2503 = vpop.f32.mrb[0].mxu0
        %v2504 = vadd.f32 0.0, %v2503
        %v2505 = vpop.f32.mrb[0].mxu0
        %v2506 = vadd.f32 0.0, %v2505
        %2507 = vmatprep.mubr.f32.mxu0 0.0
        %2508 = vmatmul.mubr.f32.gmra.mrb[0].mxu0 %v2010
        %v2509 = vpop.f32.mrb[0].mxu0
        %v2510 = vadd.f32 0.0, %v2509
        %v2511 = vpop.f32.mrb[0].mxu0
        %v2512 = vadd.f32 0.0, %v2511
        %2513 = vmatprep.mubr.f32.mxu0 0.0
        %2514 = vmatmul.mubr.f32.gmra.mrb[0].mxu0 %v2013
        %v2515 = vpop.f32.mrb[0].mxu0
        %v2516 = vadd.f32 0.0, %v2515
        %v2517 = vpop.f32.mrb[0].mxu0
        %v2518 = vadd.f32 0.0, %v2517
        %2519 = vmatprep.mubr.f32.mxu0 0.0
        %2520 = vmatmul.mubr.f32.gmra.mrb[0].mxu0 %v2016
        %v2521 = vpop.f32.mrb[0].mxu0
        %v2522 = vadd.f32 0.0, %v2521
        %v2523 = vpop.f32.mrb[0].mxu0
        %v2524 = vadd.f32 0.0, %v2523
        %2525 = vmatprep.mubr.f32.mxu0 0.0
        %2526 = vmatmul.mubr.f32.gmra.mrb[0].mxu0 %v2019
        %v2527 = vpop.f32.mrb[0].mxu0
        %v2528 = vadd.f32 0.0, %v2527
        %v2529 = vpop.f32.mrb[0].mxu0
        %v2530 = vadd.f32 0.0, %v2529
        %2531 = vmatprep.mubr.f32.mxu0 0.0
        %2532 = vmatmul.mubr.f32.gmra.mrb[0].mxu0 %v2022
        %v2533 = vpop.f32.mrb[0].mxu0
        %v2534 = vadd.f32 0.0, %v2533
        %v2535 = vpop.f32.mrb[0].mxu0
        %v2536 = vadd.f32 0.0, %v2535
        %2537 = vmatprep.mubr.f32.mxu0 0.0
        %2538 = vmatmul.mubr.f32.gmra.mrb[0].mxu0 %v2025
        %v2539 = vpop.f32.mrb[0].mxu0
        %v2540 = vadd.f32 0.0, %v2539
        %v2541 = vpop.f32.mrb[0].mxu0
        %v2542 = vadd.f32 0.0, %v2541
        %2543 = vmatprep.mubr.f32.mxu0 0.0
        %2544 = vmatmul.mubr.f32.gmra.mrb[0].mxu0 %v2028
        %v2545 = vpop.f32.mrb[0].mxu0
        %v2546 = vadd.f32 0.0, %v2545
        %v2547 = vpop.f32.mrb[0].mxu0
        %v2548 = vadd.f32 0.0, %v2547
        %2549 = vmatprep.mubr.f32.mxu0 0.0
        %2550 = vmatmul.mubr.f32.gmra.mrb[0].mxu0 %v2031
        %v2551 = vpop.f32.mrb[0].mxu0
        %v2552 = vadd.f32 0.0, %v2551
        %v2553 = vpop.f32.mrb[0].mxu0
        %v2554 = vadd.f32 0.0, %v2553
        %2555 = vmatprep.mubr.f32.mxu0 0.0
        %2556 = vmatmul.mubr.f32.gmra.mrb[0].mxu0 %v2034
        %v2557 = vpop.f32.mrb[0].mxu0
        %v2558 = vadd.f32 0.0, %v2557
        %v2559 = vpop.f32.mrb[0].mxu0
        %v2560 = vadd.f32 0.0, %v2559
        %2561 = vmatprep.mubr.f32.mxu0 0.0
        %2562 = vmatmul.mubr.f32.gmra.mrb[0].mxu0 %v2037
        %v2563 = vpop.f32.mrb[0].mxu0
        %v2564 = vadd.f32 0.0, %v2563
        %v2565 = vpop.f32.mrb[0].mxu0
        %v2566 = vadd.f32 0.0, %v2565
        %2567 = vmatprep.mubr.f32.mxu0 0.0
        %2568 = vmatmul.mubr.f32.gmra.mrb[0].mxu0 %v2040
        %v2569 = vpop.f32.mrb[0].mxu0
        %v2570 = vadd.f32 0.0, %v2569
        %v2571 = vpop.f32.mrb[0].mxu0
        %v2572 = vadd.f32 0.0, %v2571
        %2573 = vmatprep.mubr.f32.mxu0 0.0
        %2574 = vmatmul.mubr.f32.gmra.mrb[0].mxu0 %v2043
        %v2575 = vpop.f32.mrb[0].mxu0
        %v2576 = vadd.f32 0.0, %v2575
        %v2577 = vpop.f32.mrb[0].mxu0
        %v2578 = vadd.f32 0.0, %v2577
        %2579 = vmatprep.mubr.f32.mxu0 0.0
        %2580 = vmatmul.mubr.f32.gmra.mrb[0].mxu0 %v2046
        %v2581 = vpop.f32.mrb[0].mxu0
        %v2582 = vadd.f32 0.0, %v2581
        %v2583 = vpop.f32.mrb[0].mxu0
        %v2584 = vadd.f32 0.0, %v2583
        %2585 = vmatprep.mubr.f32.mxu0 0.0
        %2586 = vmatmul.mubr.f32.gmra.mrb[0].mxu0 %v2049
        %v2587 = vpop.f32.mrb[0].mxu0
        %v2588 = vadd.f32 0.0, %v2587
        %v2589 = vpop.f32.mrb[0].mxu0
        %v2590 = vadd.f32 0.0, %v2589
        %2591 = vmatprep.mubr.f32.mxu0 0.0
        %2592 = vmatmul.mubr.f32.gmra.mrb[0].mxu0 %v2052
        %v2593 = vpop.f32.mrb[0].mxu0
        %v2594 = vadd.f32 0.0, %v2593
        %v2595 = vpop.f32.mrb[0].mxu0
        %v2596 = vadd.f32 0.0, %v2595
        %2597 = vmatprep.mubr.f32.mxu0 0.0
        %2598 = vmatmul.mubr.f32.gmra.mrb[0].mxu0 %v2055
        %v2599 = vpop.f32.mrb[0].mxu0
        %v2600 = vadd.f32 0.0, %v2599
        %v2601 = vpop.f32.mrb[0].mxu0
        %v2602 = vadd.f32 0.0, %v2601
        %2603 = vmatprep.mubr.f32.mxu0 0.0
        %2604 = vmatmul.mubr.f32.gmra.mrb[0].mxu0 %v2058
        %v2605 = vpop.f32.mrb[0].mxu0
        %v2606 = vadd.f32 0.0, %v2605
        %v2607 = vpop.f32.mrb[0].mxu0
        %v2608 = vadd.f32 0.0, %v2607
        %2609 = vmatprep.mubr.f32.mxu0 0.0
        %2610 = vmatmul.mubr.f32.gmra.mrb[0].mxu0 %v2061
        %v2611 = vpop.f32.mrb[0].mxu0
        %v2612 = vadd.f32 0.0, %v2611
        %v2613 = vpop.f32.mrb[0].mxu0
        %v2614 = vadd.f32 0.0, %v2613
        %2615 = vmatprep.mubr.f32.mxu0 0.0
        %2616 = vmatmul.mubr.f32.gmra.mrb[0].mxu0 %v2064
        %v2617 = vpop.f32.mrb[0].mxu0
        %v2618 = vadd.f32 0.0, %v2617
        %v2619 = vpop.f32.mrb[0].mxu0
        %v2620 = vadd.f32 0.0, %v2619
        %2621 = vmatprep.mubr.f32.mxu0 0.0
        %2622 = vmatmul.mubr.f32.gmra.mrb[0].mxu0 %v2067
        %v2623 = vpop.f32.mrb[0].mxu0
        %v2624 = vadd.f32 0.0, %v2623
        %v2625 = vpop.f32.mrb[0].mxu0
        %v2626 = vadd.f32 0.0, %v2625
        %2627 = vmatprep.mubr.f32.mxu0 0.0
        %2628 = vmatmul.mubr.f32.gmra.mrb[0].mxu0 %v2070
        %v2629 = vpop.f32.mrb[0].mxu0
        %v2630 = vadd.f32 0.0, %v2629
        %v2631 = vpop.f32.mrb[0].mxu0
        %v2632 = vadd.f32 0.0, %v2631
        %2633 = vdwg.mxu0
        %v2634 = vadd.f32 %v1416, %v2139
        %v2635 = vadd.f32 %v1418, %v2141
        %v2636 = vadd.f32 %v1697, %v2420
        %v2637 = vadd.f32 %v1699, %v2422
        %v2638 = vadd.f32 %v1422, %v2145
        %v2639 = vadd.f32 %v1424, %v2147
        %v2640 = vadd.f32 %v1703, %v2426
        %v2641 = vadd.f32 %v1705, %v2428
        %v2642 = vadd.f32 %v1428, %v2151
        %v2643 = vadd.f32 %v1430, %v2153
        %v2644 = vadd.f32 %v1709, %v2432
        %v2645 = vadd.f32 %v1711, %v2434
        %v2646 = vadd.f32 %v1434, %v2157
        %v2647 = vadd.f32 %v1436, %v2159
        %v2648 = vadd.f32 %v1715, %v2438
        %v2649 = vadd.f32 %v1717, %v2440
        %v2650 = vadd.f32 %v1440, %v2163
        %v2651 = vadd.f32 %v1442, %v2165
        %v2652 = vadd.f32 %v1721, %v2444
        %v2653 = vadd.f32 %v1723, %v2446
        %v2654 = vadd.f32 %v1446, %v2169
        %v2655 = vadd.f32 %v1448, %v2171
        %v2656 = vadd.f32 %v1727, %v2450
        %v2657 = vadd.f32 %v1729, %v2452
        %v2658 = vadd.f32 %v1452, %v2175
        %v2659 = vadd.f32 %v1454, %v2177
        %v2660 = vadd.f32 %v1733, %v2456
        %v2661 = vadd.f32 %v1735, %v2458
        %v2662 = vadd.f32 %v1458, %v2181
        %v2663 = vadd.f32 %v1460, %v2183
        %v2664 = vadd.f32 %v1739, %v2462
        %v2665 = vadd.f32 %v1741, %v2464
        %v2666 = vadd.f32 %v1464, %v2187
        %v2667 = vadd.f32 %v1466, %v2189
        %v2668 = vadd.f32 %v1745, %v2468
        %v2669 = vadd.f32 %v1747, %v2470
        %v2670 = vadd.f32 %v1470, %v2193
        %v2671 = vadd.f32 %v1472, %v2195
        %v2672 = vadd.f32 %v1751, %v2474
        %v2673 = vadd.f32 %v1753, %v2476
        %v2674 = vadd.f32 %v1476, %v2199
        %v2675 = vadd.f32 %v1478, %v2201
        %v2676 = vadd.f32 %v1757, %v2480
        %v2677 = vadd.f32 %v1759, %v2482
        %v2678 = vadd.f32 %v1482, %v2205
        %v2679 = vadd.f32 %v1484, %v2207
        %v2680 = vadd.f32 %v1763, %v2486
        %v2681 = vadd.f32 %v1765, %v2488
        %v2682 = vadd.f32 %v1488, %v2211
        %v2683 = vadd.f32 %v1490, %v2213
        %v2684 = vadd.f32 %v1769, %v2492
        %v2685 = vadd.f32 %v1771, %v2494
        %v2686 = vadd.f32 %v1494, %v2217
        %v2687 = vadd.f32 %v1496, %v2219
        %v2688 = vadd.f32 %v1775, %v2498
        %v2689 = vadd.f32 %v1777, %v2500
        %v2690 = vadd.f32 %v1500, %v2223
        %v2691 = vadd.f32 %v1502, %v2225
        %v2692 = vadd.f32 %v1781, %v2504
        %v2693 = vadd.f32 %v1783, %v2506
        %v2694 = vadd.f32 %v1506, %v2229
        %v2695 = vadd.f32 %v1508, %v2231
        %v2696 = vadd.f32 %v1787, %v2510
        %v2697 = vadd.f32 %v1789, %v2512
        %v2698 = vadd.f32 %v1512, %v2235
        %v2699 = vadd.f32 %v1514, %v2237
        %v2700 = vadd.f32 %v1793, %v2516
        %v2701 = vadd.f32 %v1795, %v2518
        %v2702 = vadd.f32 %v1518, %v2241
        %v2703 = vadd.f32 %v1520, %v2243
        %v2704 = vadd.f32 %v1799, %v2522
        %v2705 = vadd.f32 %v1801, %v2524
        %v2706 = vadd.f32 %v1524, %v2247
        %v2707 = vadd.f32 %v1526, %v2249
        %v2708 = vadd.f32 %v1805, %v2528
        %v2709 = vadd.f32 %v1807, %v2530
        %v2710 = vadd.f32 %v1530, %v2253
        %v2711 = vadd.f32 %v1532, %v2255
        %v2712 = vadd.f32 %v1811, %v2534
        %v2713 = vadd.f32 %v1813, %v2536
        %v2714 = vadd.f32 %v1536, %v2259
        %v2715 = vadd.f32 %v1538, %v2261
        %v2716 = vadd.f32 %v1817, %v2540
        %v2717 = vadd.f32 %v1819, %v2542
        %v2718 = vadd.f32 %v1542, %v2265
        %v2719 = vadd.f32 %v1544, %v2267
        %v2720 = vadd.f32 %v1823, %v2546
        %v2721 = vadd.f32 %v1825, %v2548
        %v2722 = vadd.f32 %v1548, %v2271
        %v2723 = vadd.f32 %v1550, %v2273
        %v2724 = vadd.f32 %v1829, %v2552
        %v2725 = vadd.f32 %v1831, %v2554
        %v2726 = vadd.f32 %v1554, %v2277
        %v2727 = vadd.f32 %v1556, %v2279
        %v2728 = vadd.f32 %v1835, %v2558
        %v2729 = vadd.f32 %v1837, %v2560
        %v2730 = vadd.f32 %v1560, %v2283
        %v2731 = vadd.f32 %v1562, %v2285
        %v2732 = vadd.f32 %v1841, %v2564
        %v2733 = vadd.f32 %v1843, %v2566
        %v2734 = vadd.f32 %v1566, %v2289
        %v2735 = vadd.f32 %v1568, %v2291
        %v2736 = vadd.f32 %v1847, %v2570
        %v2737 = vadd.f32 %v1849, %v2572
        %v2738 = vadd.f32 %v1572, %v2295
        %v2739 = vadd.f32 %v1574, %v2297
        %v2740 = vadd.f32 %v1853, %v2576
        %v2741 = vadd.f32 %v1855, %v2578
        %v2742 = vadd.f32 %v1578, %v2301
        %v2743 = vadd.f32 %v1580, %v2303
        %v2744 = vadd.f32 %v1859, %v2582
        %v2745 = vadd.f32 %v1861, %v2584
        %v2746 = vadd.f32 %v1584, %v2307
        %v2747 = vadd.f32 %v1586, %v2309
        %v2748 = vadd.f32 %v1865, %v2588
        %v2749 = vadd.f32 %v1867, %v2590
        %v2750 = vadd.f32 %v1590, %v2313
        %v2751 = vadd.f32 %v1592, %v2315
        %v2752 = vadd.f32 %v1871, %v2594
        %v2753 = vadd.f32 %v1873, %v2596
        %v2754 = vadd.f32 %v1596, %v2319
        %v2755 = vadd.f32 %v1598, %v2321
        %v2756 = vadd.f32 %v1877, %v2600
        %v2757 = vadd.f32 %v1879, %v2602
        %v2758 = vadd.f32 %v1602, %v2325
        %v2759 = vadd.f32 %v1604, %v2327
        %v2760 = vadd.f32 %v1883, %v2606
        %v2761 = vadd.f32 %v1885, %v2608
        %v2762 = vadd.f32 %v1608, %v2331
        %v2763 = vadd.f32 %v1610, %v2333
        %v2764 = vadd.f32 %v1889, %v2612
        %v2765 = vadd.f32 %v1891, %v2614
        %v2766 = vadd.f32 %v1614, %v2337
        %v2767 = vadd.f32 %v1616, %v2339
        %v2768 = vadd.f32 %v1895, %v2618
        %v2769 = vadd.f32 %v1897, %v2620
        %v2770 = vadd.f32 %v1620, %v2343
        %v2771 = vadd.f32 %v1622, %v2345
        %v2772 = vadd.f32 %v1901, %v2624
        %v2773 = vadd.f32 %v1903, %v2626
        %v2774 = vadd.f32 %v1626, %v2349
        %v2775 = vadd.f32 %v1628, %v2351
        %v2776 = vadd.f32 %v1907, %v2630
        %v2777 = vadd.f32 %v1909, %v2632
        %v2778 = vld [vmem:[%s454 + $0x12] sm:$0xff]
        %v2779 = vld [vmem:[%s454 + $0x1a] sm:$0xff]
        %v2780 = vld [vmem:[%s454 + $0x22] sm:$0xff]
        %v2781 = vld [vmem:[%s454 + $0x2a] sm:$0xff]
        %v2782 = vld [vmem:[%s454 + $0x32] sm:$0xff]
        %v2783 = vld [vmem:[%s454 + $0x3a] sm:$0xff]
        %v2784 = vld [vmem:[%s454 + $0x42] sm:$0xff]
        %v2785 = vld [vmem:[%s454 + $0x4a] sm:$0xff]
        %v2786 = vld [vmem:[%s454 + $0x52] sm:$0xff]
        %v2787 = vld [vmem:[%s454 + $0x5a] sm:$0xff]
        %v2788 = vld [vmem:[%s454 + $0x62] sm:$0xff]
        %v2789 = vld [vmem:[%s454 + $0x6a] sm:$0xff]
        %v2790 = vld [vmem:[%s454 + $0x72] sm:$0xff]
        %v2791 = vld [vmem:[%s454 + $0x7a] sm:$0xff]
        %v2792 = vld [vmem:[%s454 + $0x82] sm:$0xff]
        %v2793 = vld [vmem:[%s454 + $0x8a] sm:$0xff]
        %v2794 = vld [vmem:[%s454 + $0x92] sm:$0xff]
        %v2795 = vld [vmem:[%s454 + $0x9a] sm:$0xff]
        %v2796 = vld [vmem:[%s454 + $0xa2] sm:$0xff]
        %v2797 = vld [vmem:[%s454 + $0xaa] sm:$0xff]
        %v2798 = vld [vmem:[%s454 + $0xb2] sm:$0xff]
        %v2799 = vld [vmem:[%s454 + $0xba] sm:$0xff]
        %v2800 = vld [vmem:[%s454 + $0xc2] sm:$0xff]
        %v2801 = vld [vmem:[%s454 + $0xca] sm:$0xff]
        %v2802 = vld [vmem:[%s454 + $0xd2] sm:$0xff]
        %v2803 = vld [vmem:[%s454 + $0xda] sm:$0xff]
        %v2804 = vld [vmem:[%s454 + $0xe2] sm:$0xff]
        %v2805 = vld [vmem:[%s454 + $0xea] sm:$0xff]
        %v2806 = vld [vmem:[%s454 + $0xf2] sm:$0xff]
        %v2807 = vld [vmem:[%s454 + $0xfa] sm:$0xff]
        %v2808 = vld [vmem:[%s454 + $0x102] sm:$0xff]
        %v2809 = vld [vmem:[%s454 + $0x10a] sm:$0xff]
        %v2810 = vld [vmem:[%s454 + $0x112] sm:$0xff]
        %v2811 = vld [vmem:[%s454 + $0x11a] sm:$0xff]
        %v2812 = vld [vmem:[%s454 + $0x122] sm:$0xff]
        %v2813 = vld [vmem:[%s454 + $0x12a] sm:$0xff]
        %s2814 = scalar_lea.vmem %s1, 384
        %v2815 = vld [vmem:[%s2814] sm:$0xff]
        %v2816 = vld [vmem:[%s2814 + $0x8] sm:$0xff]
        %v2817 = vld [vmem:[%s2814 + $0x10] sm:$0xff]
        %v2818 = vld [vmem:[%s2814 + $0x18] sm:$0xff]
        %v2819 = vld [vmem:[%s2814 + $0x20] sm:$0xff]
        %v2820 = vld [vmem:[%s2814 + $0x28] sm:$0xff]
        %v2821 = vld [vmem:[%s2814 + $0x30] sm:$0xff]
        %v2822 = vld [vmem:[%s2814 + $0x38] sm:$0xff]
        %v2823 = vld [vmem:[%s2814 + $0x40] sm:$0xff]
        %v2824 = vld [vmem:[%s2814 + $0x48] sm:$0xff]
        %v2825 = vld [vmem:[%s2814 + $0x50] sm:$0xff]
        %v2826 = vld [vmem:[%s2814 + $0x58] sm:$0xff]
        %v2827 = vld [vmem:[%s2814 + $0x60] sm:$0xff]
        %v2828 = vld [vmem:[%s2814 + $0x68] sm:$0xff]
        %v2829 = vld [vmem:[%s2814 + $0x70] sm:$0xff]
        %v2830 = vld [vmem:[%s2814 + $0x78] sm:$0xff]
        %v2832 = vsel %vm570, %v2778, 0
        %v2835 = vsel %vm570, %v2779, 0
        %v2838 = vsel %vm570, %v2780, 0
        %v2841 = vsel %vm570, %v2781, 0
        %v2844 = vsel %vm570, %v2782, 0
        %v2847 = vsel %vm570, %v2783, 0
        %v2850 = vsel %vm570, %v2784, 0
        %v2853 = vsel %vm570, %v2785, 0
        %v2856 = vsel %vm570, %v2786, 0
        %v2859 = vsel %vm570, %v2787, 0
        %v2862 = vsel %vm570, %v2788, 0
        %v2865 = vsel %vm570, %v2789, 0
        %v2868 = vsel %vm570, %v2790, 0
        %v2871 = vsel %vm570, %v2791, 0
        %v2874 = vsel %vm570, %v2792, 0
        %v2877 = vsel %vm570, %v2793, 0
        %v2880 = vsel %vm570, %v2794, 0
        %v2883 = vsel %vm570, %v2795, 0
        %v2886 = vsel %vm570, %v2796, 0
        %v2889 = vsel %vm570, %v2797, 0
        %v2892 = vsel %vm570, %v2798, 0
        %v2895 = vsel %vm570, %v2799, 0
        %v2898 = vsel %vm570, %v2800, 0
        %v2901 = vsel %vm570, %v2801, 0
        %v2904 = vsel %vm570, %v2802, 0
        %v2907 = vsel %vm570, %v2803, 0
        %v2910 = vsel %vm570, %v2804, 0
        %v2913 = vsel %vm570, %v2805, 0
        %v2916 = vsel %vm570, %v2806, 0
        %v2919 = vsel %vm570, %v2807, 0
        %v2922 = vsel %vm570, %v2808, 0
        %v2925 = vsel %vm570, %v2809, 0
        %v2928 = vsel %vm570, %v2810, 0
        %v2931 = vsel %vm570, %v2811, 0
        %v2934 = vsel %vm570, %v2812, 0
        %v2937 = vsel %vm570, %v2813, 0
        %2939 = vmatprep.subr.mxu0 %v2816
        %2940 = vmatpush1.msra.mxu0 %v2815
        %2941 = vmatprep.subr.mxu0 %v2820
        %2942 = vmatpush1.msra.mxu0 %v2819
        %2943 = vmatprep.subr.mxu0 %v2824
        %2944 = vmatpush1.msra.mxu0 %v2823
        %2945 = vmatprep.subr.mxu0 %v2828
        %2946 = vmatpush1.msra.mxu0 %v2827
        %2947 = vmatprep.subr.mxu0 0.0
        %2948 = vmatpush1.msra.mxu0 0.0
        %2949 = vmatprep.subr.mxu0 0.0
        %2950 = vmatpush1.msra.mxu0 0.0
        %2951 = vmatprep.subr.mxu0 0.0
        %2952 = vmatpush1.msra.mxu0 0.0
        %2953 = vmatprep.subr.mxu0 0.0
        %2954 = vmatpush1.msra.mxu0 0.0
        %2955 = vmatprep.subr.mxu0 0.0
        %2956 = vmatpush1.msra.mxu0 0.0
        %2957 = vmatprep.subr.mxu0 0.0
        %2958 = vmatpush1.msra.mxu0 0.0
        %2959 = vmatprep.subr.mxu0 0.0
        %2960 = vmatpush1.msra.mxu0 0.0
        %2961 = vmatprep.subr.mxu0 0.0
        %2962 = vmatpush1.msra.mxu0 0.0
        %2963 = vmatprep.subr.mxu0 0.0
        %2964 = vmatpush1.msra.mxu0 0.0
        %2965 = vmatprep.subr.mxu0 0.0
        %2966 = vmatpush1.msra.mxu0 0.0
        %2967 = vmatprep.subr.mxu0 0.0
        %2968 = vmatpush1.msra.mxu0 0.0
        %2969 = vmatprep.subr.mxu0 0.0
        %2970 = vmatpush1.msra.mxu0 0.0
        %2971 = vmatprep.subr.mxu0 0.0
        %2972 = vmatpush1.msra.mxu0 0.0
        %2973 = vmatprep.subr.mxu0 0.0
        %2974 = vmatpush1.msra.mxu0 0.0
        %2975 = vmatprep.subr.mxu0 0.0
        %2976 = vmatpush1.msra.mxu0 0.0
        %2977 = vmatprep.subr.mxu0 0.0
        %2978 = vmatpush1.msra.mxu0 0.0
        %2979 = vmatprep.subr.mxu0 0.0
        %2980 = vmatpush1.msra.mxu0 0.0
        %2981 = vmatprep.subr.mxu0 0.0
        %2982 = vmatpush1.msra.mxu0 0.0
        %2983 = vmatprep.subr.mxu0 0.0
        %2984 = vmatpush1.msra.mxu0 0.0
        %2985 = vmatprep.subr.mxu0 0.0
        %2986 = vmatpush1.msra.mxu0 0.0
        %2987 = vmatprep.subr.mxu0 0.0
        %2988 = vmatpush1.msra.mxu0 0.0
        %2989 = vmatprep.subr.mxu0 0.0
        %2990 = vmatpush1.msra.mxu0 0.0
        %2991 = vmatprep.subr.mxu0 0.0
        %2992 = vmatpush1.msra.mxu0 0.0
        %2993 = vmatprep.subr.mxu0 0.0
        %2994 = vmatpush1.msra.mxu0 0.0
        %2995 = vmatprep.subr.mxu0 0.0
        %2996 = vmatpush1.msra.mxu0 0.0
        %2997 = vmatprep.subr.mxu0 0.0
        %2998 = vmatpush1.msra.mxu0 0.0
        %2999 = vmatprep.subr.mxu0 0.0
        %3000 = vmatpush1.msra.mxu0 0.0
        %3001 = vmatprep.subr.mxu0 0.0
        %3002 = vmatpush1.msra.mxu0 0.0
        %3003 = vmatprep.mubr.f32.mxu0 0.0
        %3004 = vmatmul.mubr.f32.gmra.mrb[0].mxu0 %v2832
        %v3005 = vpop.f32.mrb[0].mxu0
        %v3006 = vadd.f32 0.0, %v3005
        %v3007 = vpop.f32.mrb[0].mxu0
        %v3008 = vadd.f32 0.0, %v3007
        %3009 = vmatprep.mubr.f32.mxu0 0.0
        %3010 = vmatmul.mubr.f32.gmra.mrb[0].mxu0 %v2835
        %v3011 = vpop.f32.mrb[0].mxu0
        %v3012 = vadd.f32 0.0, %v3011
        %v3013 = vpop.f32.mrb[0].mxu0
        %v3014 = vadd.f32 0.0, %v3013
        %3015 = vmatprep.mubr.f32.mxu0 0.0
        %3016 = vmatmul.mubr.f32.gmra.mrb[0].mxu0 %v2838
        %v3017 = vpop.f32.mrb[0].mxu0
        %v3018 = vadd.f32 0.0, %v3017
        %v3019 = vpop.f32.mrb[0].mxu0
        %v3020 = vadd.f32 0.0, %v3019
        %3021 = vmatprep.mubr.f32.mxu0 0.0
        %3022 = vmatmul.mubr.f32.gmra.mrb[0].mxu0 %v2841
        %v3023 = vpop.f32.mrb[0].mxu0
        %v3024 = vadd.f32 0.0, %v3023
        %v3025 = vpop.f32.mrb[0].mxu0
        %v3026 = vadd.f32 0.0, %v3025
        %3027 = vmatprep.mubr.f32.mxu0 0.0
        %3028 = vmatmul.mubr.f32.gmra.mrb[0].mxu0 %v2844
        %v3029 = vpop.f32.mrb[0].mxu0
        %v3030 = vadd.f32 0.0, %v3029
        %v3031 = vpop.f32.mrb[0].mxu0
        %v3032 = vadd.f32 0.0, %v3031
        %3033 = vmatprep.mubr.f32.mxu0 0.0
        %3034 = vmatmul.mubr.f32.gmra.mrb[0].mxu0 %v2847
        %v3035 = vpop.f32.mrb[0].mxu0
        %v3036 = vadd.f32 0.0, %v3035
        %v3037 = vpop.f32.mrb[0].mxu0
        %v3038 = vadd.f32 0.0, %v3037
        %3039 = vmatprep.mubr.f32.mxu0 0.0
        %3040 = vmatmul.mubr.f32.gmra.mrb[0].mxu0 %v2850
        %v3041 = vpop.f32.mrb[0].mxu0
        %v3042 = vadd.f32 0.0, %v3041
        %v3043 = vpop.f32.mrb[0].mxu0
        %v3044 = vadd.f32 0.0, %v3043
        %3045 = vmatprep.mubr.f32.mxu0 0.0
        %3046 = vmatmul.mubr.f32.gmra.mrb[0].mxu0 %v2853
        %v3047 = vpop.f32.mrb[0].mxu0
        %v3048 = vadd.f32 0.0, %v3047
        %v3049 = vpop.f32.mrb[0].mxu0
        %v3050 = vadd.f32 0.0, %v3049
        %3051 = vmatprep.mubr.f32.mxu0 0.0
        %3052 = vmatmul.mubr.f32.gmra.mrb[0].mxu0 %v2856
        %v3053 = vpop.f32.mrb[0].mxu0
        %v3054 = vadd.f32 0.0, %v3053
        %v3055 = vpop.f32.mrb[0].mxu0
        %v3056 = vadd.f32 0.0, %v3055
        %3057 = vmatprep.mubr.f32.mxu0 0.0
        %3058 = vmatmul.mubr.f32.gmra.mrb[0].mxu0 %v2859
        %v3059 = vpop.f32.mrb[0].mxu0
        %v3060 = vadd.f32 0.0, %v3059
        %v3061 = vpop.f32.mrb[0].mxu0
        %v3062 = vadd.f32 0.0, %v3061
        %3063 = vmatprep.mubr.f32.mxu0 0.0
        %3064 = vmatmul.mubr.f32.gmra.mrb[0].mxu0 %v2862
        %v3065 = vpop.f32.mrb[0].mxu0
        %v3066 = vadd.f32 0.0, %v3065
        %v3067 = vpop.f32.mrb[0].mxu0
        %v3068 = vadd.f32 0.0, %v3067
        %3069 = vmatprep.mubr.f32.mxu0 0.0
        %3070 = vmatmul.mubr.f32.gmra.mrb[0].mxu0 %v2865
        %v3071 = vpop.f32.mrb[0].mxu0
        %v3072 = vadd.f32 0.0, %v3071
        %v3073 = vpop.f32.mrb[0].mxu0
        %v3074 = vadd.f32 0.0, %v3073
        %3075 = vmatprep.mubr.f32.mxu0 0.0
        %3076 = vmatmul.mubr.f32.gmra.mrb[0].mxu0 %v2868
        %v3077 = vpop.f32.mrb[0].mxu0
        %v3078 = vadd.f32 0.0, %v3077
        %v3079 = vpop.f32.mrb[0].mxu0
        %v3080 = vadd.f32 0.0, %v3079
        %3081 = vmatprep.mubr.f32.mxu0 0.0
        %3082 = vmatmul.mubr.f32.gmra.mrb[0].mxu0 %v2871
        %v3083 = vpop.f32.mrb[0].mxu0
        %v3084 = vadd.f32 0.0, %v3083
        %v3085 = vpop.f32.mrb[0].mxu0
        %v3086 = vadd.f32 0.0, %v3085
        %3087 = vmatprep.mubr.f32.mxu0 0.0
        %3088 = vmatmul.mubr.f32.gmra.mrb[0].mxu0 %v2874
        %v3089 = vpop.f32.mrb[0].mxu0
        %v3090 = vadd.f32 0.0, %v3089
        %v3091 = vpop.f32.mrb[0].mxu0
        %v3092 = vadd.f32 0.0, %v3091
        %3093 = vmatprep.mubr.f32.mxu0 0.0
        %3094 = vmatmul.mubr.f32.gmra.mrb[0].mxu0 %v2877
        %v3095 = vpop.f32.mrb[0].mxu0
        %v3096 = vadd.f32 0.0, %v3095
        %v3097 = vpop.f32.mrb[0].mxu0
        %v3098 = vadd.f32 0.0, %v3097
        %3099 = vmatprep.mubr.f32.mxu0 0.0
        %3100 = vmatmul.mubr.f32.gmra.mrb[0].mxu0 %v2880
        %v3101 = vpop.f32.mrb[0].mxu0
        %v3102 = vadd.f32 0.0, %v3101
        %v3103 = vpop.f32.mrb[0].mxu0
        %v3104 = vadd.f32 0.0, %v3103
        %3105 = vmatprep.mubr.f32.mxu0 0.0
        %3106 = vmatmul.mubr.f32.gmra.mrb[0].mxu0 %v2883
        %v3107 = vpop.f32.mrb[0].mxu0
        %v3108 = vadd.f32 0.0, %v3107
        %v3109 = vpop.f32.mrb[0].mxu0
        %v3110 = vadd.f32 0.0, %v3109
        %3111 = vmatprep.mubr.f32.mxu0 0.0
        %3112 = vmatmul.mubr.f32.gmra.mrb[0].mxu0 %v2886
        %v3113 = vpop.f32.mrb[0].mxu0
        %v3114 = vadd.f32 0.0, %v3113
        %v3115 = vpop.f32.mrb[0].mxu0
        %v3116 = vadd.f32 0.0, %v3115
        %3117 = vmatprep.mubr.f32.mxu0 0.0
        %3118 = vmatmul.mubr.f32.gmra.mrb[0].mxu0 %v2889
        %v3119 = vpop.f32.mrb[0].mxu0
        %v3120 = vadd.f32 0.0, %v3119
        %v3121 = vpop.f32.mrb[0].mxu0
        %v3122 = vadd.f32 0.0, %v3121
        %3123 = vmatprep.mubr.f32.mxu0 0.0
        %3124 = vmatmul.mubr.f32.gmra.mrb[0].mxu0 %v2892
        %v3125 = vpop.f32.mrb[0].mxu0
        %v3126 = vadd.f32 0.0, %v3125
        %v3127 = vpop.f32.mrb[0].mxu0
        %v3128 = vadd.f32 0.0, %v3127
        %3129 = vmatprep.mubr.f32.mxu0 0.0
        %3130 = vmatmul.mubr.f32.gmra.mrb[0].mxu0 %v2895
        %v3131 = vpop.f32.mrb[0].mxu0
        %v3132 = vadd.f32 0.0, %v3131
        %v3133 = vpop.f32.mrb[0].mxu0
        %v3134 = vadd.f32 0.0, %v3133
        %3135 = vmatprep.mubr.f32.mxu0 0.0
        %3136 = vmatmul.mubr.f32.gmra.mrb[0].mxu0 %v2898
        %v3137 = vpop.f32.mrb[0].mxu0
        %v3138 = vadd.f32 0.0, %v3137
        %v3139 = vpop.f32.mrb[0].mxu0
        %v3140 = vadd.f32 0.0, %v3139
        %3141 = vmatprep.mubr.f32.mxu0 0.0
        %3142 = vmatmul.mubr.f32.gmra.mrb[0].mxu0 %v2901
        %v3143 = vpop.f32.mrb[0].mxu0
        %v3144 = vadd.f32 0.0, %v3143
        %v3145 = vpop.f32.mrb[0].mxu0
        %v3146 = vadd.f32 0.0, %v3145
        %3147 = vmatprep.mubr.f32.mxu0 0.0
        %3148 = vmatmul.mubr.f32.gmra.mrb[0].mxu0 %v2904
        %v3149 = vpop.f32.mrb[0].mxu0
        %v3150 = vadd.f32 0.0, %v3149
        %v3151 = vpop.f32.mrb[0].mxu0
        %v3152 = vadd.f32 0.0, %v3151
        %3153 = vmatprep.mubr.f32.mxu0 0.0
        %3154 = vmatmul.mubr.f32.gmra.mrb[0].mxu0 %v2907
        %v3155 = vpop.f32.mrb[0].mxu0
        %v3156 = vadd.f32 0.0, %v3155
        %v3157 = vpop.f32.mrb[0].mxu0
        %v3158 = vadd.f32 0.0, %v3157
        %3159 = vmatprep.mubr.f32.mxu0 0.0
        %3160 = vmatmul.mubr.f32.gmra.mrb[0].mxu0 %v2910
        %v3161 = vpop.f32.mrb[0].mxu0
        %v3162 = vadd.f32 0.0, %v3161
        %v3163 = vpop.f32.mrb[0].mxu0
        %v3164 = vadd.f32 0.0, %v3163
        %3165 = vmatprep.mubr.f32.mxu0 0.0
        %3166 = vmatmul.mubr.f32.gmra.mrb[0].mxu0 %v2913
        %v3167 = vpop.f32.mrb[0].mxu0
        %v3168 = vadd.f32 0.0, %v3167
        %v3169 = vpop.f32.mrb[0].mxu0
        %v3170 = vadd.f32 0.0, %v3169
        %3171 = vmatprep.mubr.f32.mxu0 0.0
        %3172 = vmatmul.mubr.f32.gmra.mrb[0].mxu0 %v2916
        %v3173 = vpop.f32.mrb[0].mxu0
        %v3174 = vadd.f32 0.0, %v3173
        %v3175 = vpop.f32.mrb[0].mxu0
        %v3176 = vadd.f32 0.0, %v3175
        %3177 = vmatprep.mubr.f32.mxu0 0.0
        %3178 = vmatmul.mubr.f32.gmra.mrb[0].mxu0 %v2919
        %v3179 = vpop.f32.mrb[0].mxu0
        %v3180 = vadd.f32 0.0, %v3179
        %v3181 = vpop.f32.mrb[0].mxu0
        %v3182 = vadd.f32 0.0, %v3181
        %3183 = vmatprep.mubr.f32.mxu0 0.0
        %3184 = vmatmul.mubr.f32.gmra.mrb[0].mxu0 %v2922
        %v3185 = vpop.f32.mrb[0].mxu0
        %v3186 = vadd.f32 0.0, %v3185
        %v3187 = vpop.f32.mrb[0].mxu0
        %v3188 = vadd.f32 0.0, %v3187
        %3189 = vmatprep.mubr.f32.mxu0 0.0
        %3190 = vmatmul.mubr.f32.gmra.mrb[0].mxu0 %v2925
        %v3191 = vpop.f32.mrb[0].mxu0
        %v3192 = vadd.f32 0.0, %v3191
        %v3193 = vpop.f32.mrb[0].mxu0
        %v3194 = vadd.f32 0.0, %v3193
        %3195 = vmatprep.mubr.f32.mxu0 0.0
        %3196 = vmatmul.mubr.f32.gmra.mrb[0].mxu0 %v2928
        %v3197 = vpop.f32.mrb[0].mxu0
        %v3198 = vadd.f32 0.0, %v3197
        %v3199 = vpop.f32.mrb[0].mxu0
        %v3200 = vadd.f32 0.0, %v3199
        %3201 = vmatprep.mubr.f32.mxu0 0.0
        %3202 = vmatmul.mubr.f32.gmra.mrb[0].mxu0 %v2931
        %v3203 = vpop.f32.mrb[0].mxu0
        %v3204 = vadd.f32 0.0, %v3203
        %v3205 = vpop.f32.mrb[0].mxu0
        %v3206 = vadd.f32 0.0, %v3205
        %3207 = vmatprep.mubr.f32.mxu0 0.0
        %3208 = vmatmul.mubr.f32.gmra.mrb[0].mxu0 %v2934
        %v3209 = vpop.f32.mrb[0].mxu0
        %v3210 = vadd.f32 0.0, %v3209
        %v3211 = vpop.f32.mrb[0].mxu0
        %v3212 = vadd.f32 0.0, %v3211
        %3213 = vmatprep.mubr.f32.mxu0 0.0
        %3214 = vmatmul.mubr.f32.gmra.mrb[0].mxu0 %v2937
        %v3215 = vpop.f32.mrb[0].mxu0
        %v3216 = vadd.f32 0.0, %v3215
        %v3217 = vpop.f32.mrb[0].mxu0
        %v3218 = vadd.f32 0.0, %v3217
        %3219 = vdwg.mxu0
        %3220 = vmatprep.subr.mxu0 %v2818
        %3221 = vmatpush1.msra.mxu0 %v2817
        %3222 = vmatprep.subr.mxu0 %v2822
        %3223 = vmatpush1.msra.mxu0 %v2821
        %3224 = vmatprep.subr.mxu0 %v2826
        %3225 = vmatpush1.msra.mxu0 %v2825
        %3226 = vmatprep.subr.mxu0 %v2830
        %3227 = vmatpush1.msra.mxu0 %v2829
        %3228 = vmatprep.subr.mxu0 0.0
        %3229 = vmatpush1.msra.mxu0 0.0
        %3230 = vmatprep.subr.mxu0 0.0
        %3231 = vmatpush1.msra.mxu0 0.0
        %3232 = vmatprep.subr.mxu0 0.0
        %3233 = vmatpush1.msra.mxu0 0.0
        %3234 = vmatprep.subr.mxu0 0.0
        %3235 = vmatpush1.msra.mxu0 0.0
        %3236 = vmatprep.subr.mxu0 0.0
        %3237 = vmatpush1.msra.mxu0 0.0
        %3238 = vmatprep.subr.mxu0 0.0
        %3239 = vmatpush1.msra.mxu0 0.0
        %3240 = vmatprep.subr.mxu0 0.0
        %3241 = vmatpush1.msra.mxu0 0.0
        %3242 = vmatprep.subr.mxu0 0.0
        %3243 = vmatpush1.msra.mxu0 0.0
        %3244 = vmatprep.subr.mxu0 0.0
        %3245 = vmatpush1.msra.mxu0 0.0
        %3246 = vmatprep.subr.mxu0 0.0
        %3247 = vmatpush1.msra.mxu0 0.0
        %3248 = vmatprep.subr.mxu0 0.0
        %3249 = vmatpush1.msra.mxu0 0.0
        %3250 = vmatprep.subr.mxu0 0.0
        %3251 = vmatpush1.msra.mxu0 0.0
        %3252 = vmatprep.subr.mxu0 0.0
        %3253 = vmatpush1.msra.mxu0 0.0
        %3254 = vmatprep.subr.mxu0 0.0
        %3255 = vmatpush1.msra.mxu0 0.0
        %3256 = vmatprep.subr.mxu0 0.0
        %3257 = vmatpush1.msra.mxu0 0.0
        %3258 = vmatprep.subr.mxu0 0.0
        %3259 = vmatpush1.msra.mxu0 0.0
        %3260 = vmatprep.subr.mxu0 0.0
        %3261 = vmatpush1.msra.mxu0 0.0
        %3262 = vmatprep.subr.mxu0 0.0
        %3263 = vmatpush1.msra.mxu0 0.0
        %3264 = vmatprep.subr.mxu0 0.0
        %3265 = vmatpush1.msra.mxu0 0.0
        %3266 = vmatprep.subr.mxu0 0.0
        %3267 = vmatpush1.msra.mxu0 0.0
        %3268 = vmatprep.subr.mxu0 0.0
        %3269 = vmatpush1.msra.mxu0 0.0
        %3270 = vmatprep.subr.mxu0 0.0
        %3271 = vmatpush1.msra.mxu0 0.0
        %3272 = vmatprep.subr.mxu0 0.0
        %3273 = vmatpush1.msra.mxu0 0.0
        %3274 = vmatprep.subr.mxu0 0.0
        %3275 = vmatpush1.msra.mxu0 0.0
        %3276 = vmatprep.subr.mxu0 0.0
        %3277 = vmatpush1.msra.mxu0 0.0
        %3278 = vmatprep.subr.mxu0 0.0
        %3279 = vmatpush1.msra.mxu0 0.0
        %3280 = vmatprep.subr.mxu0 0.0
        %3281 = vmatpush1.msra.mxu0 0.0
        %3282 = vmatprep.subr.mxu0 0.0
        %3283 = vmatpush1.msra.mxu0 0.0
        %3284 = vmatprep.mubr.f32.mxu0 0.0
        %3285 = vmatmul.mubr.f32.gmra.mrb[0].mxu0 %v2832
        %v3286 = vpop.f32.mrb[0].mxu0
        %v3287 = vadd.f32 0.0, %v3286
        %v3288 = vpop.f32.mrb[0].mxu0
        %v3289 = vadd.f32 0.0, %v3288
        %3290 = vmatprep.mubr.f32.mxu0 0.0
        %3291 = vmatmul.mubr.f32.gmra.mrb[0].mxu0 %v2835
        %v3292 = vpop.f32.mrb[0].mxu0
        %v3293 = vadd.f32 0.0, %v3292
        %v3294 = vpop.f32.mrb[0].mxu0
        %v3295 = vadd.f32 0.0, %v3294
        %3296 = vmatprep.mubr.f32.mxu0 0.0
        %3297 = vmatmul.mubr.f32.gmra.mrb[0].mxu0 %v2838
        %v3298 = vpop.f32.mrb[0].mxu0
        %v3299 = vadd.f32 0.0, %v3298
        %v3300 = vpop.f32.mrb[0].mxu0
        %v3301 = vadd.f32 0.0, %v3300
        %3302 = vmatprep.mubr.f32.mxu0 0.0
        %3303 = vmatmul.mubr.f32.gmra.mrb[0].mxu0 %v2841
        %v3304 = vpop.f32.mrb[0].mxu0
        %v3305 = vadd.f32 0.0, %v3304
        %v3306 = vpop.f32.mrb[0].mxu0
        %v3307 = vadd.f32 0.0, %v3306
        %3308 = vmatprep.mubr.f32.mxu0 0.0
        %3309 = vmatmul.mubr.f32.gmra.mrb[0].mxu0 %v2844
        %v3310 = vpop.f32.mrb[0].mxu0
        %v3311 = vadd.f32 0.0, %v3310
        %v3312 = vpop.f32.mrb[0].mxu0
        %v3313 = vadd.f32 0.0, %v3312
        %3314 = vmatprep.mubr.f32.mxu0 0.0
        %3315 = vmatmul.mubr.f32.gmra.mrb[0].mxu0 %v2847
        %v3316 = vpop.f32.mrb[0].mxu0
        %v3317 = vadd.f32 0.0, %v3316
        %v3318 = vpop.f32.mrb[0].mxu0
        %v3319 = vadd.f32 0.0, %v3318
        %3320 = vmatprep.mubr.f32.mxu0 0.0
        %3321 = vmatmul.mubr.f32.gmra.mrb[0].mxu0 %v2850
        %v3322 = vpop.f32.mrb[0].mxu0
        %v3323 = vadd.f32 0.0, %v3322
        %v3324 = vpop.f32.mrb[0].mxu0
        %v3325 = vadd.f32 0.0, %v3324
        %3326 = vmatprep.mubr.f32.mxu0 0.0
        %3327 = vmatmul.mubr.f32.gmra.mrb[0].mxu0 %v2853
        %v3328 = vpop.f32.mrb[0].mxu0
        %v3329 = vadd.f32 0.0, %v3328
        %v3330 = vpop.f32.mrb[0].mxu0
        %v3331 = vadd.f32 0.0, %v3330
        %3332 = vmatprep.mubr.f32.mxu0 0.0
        %3333 = vmatmul.mubr.f32.gmra.mrb[0].mxu0 %v2856
        %v3334 = vpop.f32.mrb[0].mxu0
        %v3335 = vadd.f32 0.0, %v3334
        %v3336 = vpop.f32.mrb[0].mxu0
        %v3337 = vadd.f32 0.0, %v3336
        %3338 = vmatprep.mubr.f32.mxu0 0.0
        %3339 = vmatmul.mubr.f32.gmra.mrb[0].mxu0 %v2859
        %v3340 = vpop.f32.mrb[0].mxu0
        %v3341 = vadd.f32 0.0, %v3340
        %v3342 = vpop.f32.mrb[0].mxu0
        %v3343 = vadd.f32 0.0, %v3342
        %3344 = vmatprep.mubr.f32.mxu0 0.0
        %3345 = vmatmul.mubr.f32.gmra.mrb[0].mxu0 %v2862
        %v3346 = vpop.f32.mrb[0].mxu0
        %v3347 = vadd.f32 0.0, %v3346
        %v3348 = vpop.f32.mrb[0].mxu0
        %v3349 = vadd.f32 0.0, %v3348
        %3350 = vmatprep.mubr.f32.mxu0 0.0
        %3351 = vmatmul.mubr.f32.gmra.mrb[0].mxu0 %v2865
        %v3352 = vpop.f32.mrb[0].mxu0
        %v3353 = vadd.f32 0.0, %v3352
        %v3354 = vpop.f32.mrb[0].mxu0
        %v3355 = vadd.f32 0.0, %v3354
        %3356 = vmatprep.mubr.f32.mxu0 0.0
        %3357 = vmatmul.mubr.f32.gmra.mrb[0].mxu0 %v2868
        %v3358 = vpop.f32.mrb[0].mxu0
        %v3359 = vadd.f32 0.0, %v3358
        %v3360 = vpop.f32.mrb[0].mxu0
        %v3361 = vadd.f32 0.0, %v3360
        %3362 = vmatprep.mubr.f32.mxu0 0.0
        %3363 = vmatmul.mubr.f32.gmra.mrb[0].mxu0 %v2871
        %v3364 = vpop.f32.mrb[0].mxu0
        %v3365 = vadd.f32 0.0, %v3364
        %v3366 = vpop.f32.mrb[0].mxu0
        %v3367 = vadd.f32 0.0, %v3366
        %3368 = vmatprep.mubr.f32.mxu0 0.0
        %3369 = vmatmul.mubr.f32.gmra.mrb[0].mxu0 %v2874
        %v3370 = vpop.f32.mrb[0].mxu0
        %v3371 = vadd.f32 0.0, %v3370
        %v3372 = vpop.f32.mrb[0].mxu0
        %v3373 = vadd.f32 0.0, %v3372
        %3374 = vmatprep.mubr.f32.mxu0 0.0
        %3375 = vmatmul.mubr.f32.gmra.mrb[0].mxu0 %v2877
        %v3376 = vpop.f32.mrb[0].mxu0
        %v3377 = vadd.f32 0.0, %v3376
        %v3378 = vpop.f32.mrb[0].mxu0
        %v3379 = vadd.f32 0.0, %v3378
        %3380 = vmatprep.mubr.f32.mxu0 0.0
        %3381 = vmatmul.mubr.f32.gmra.mrb[0].mxu0 %v2880
        %v3382 = vpop.f32.mrb[0].mxu0
        %v3383 = vadd.f32 0.0, %v3382
        %v3384 = vpop.f32.mrb[0].mxu0
        %v3385 = vadd.f32 0.0, %v3384
        %3386 = vmatprep.mubr.f32.mxu0 0.0
        %3387 = vmatmul.mubr.f32.gmra.mrb[0].mxu0 %v2883
        %v3388 = vpop.f32.mrb[0].mxu0
        %v3389 = vadd.f32 0.0, %v3388
        %v3390 = vpop.f32.mrb[0].mxu0
        %v3391 = vadd.f32 0.0, %v3390
        %3392 = vmatprep.mubr.f32.mxu0 0.0
        %3393 = vmatmul.mubr.f32.gmra.mrb[0].mxu0 %v2886
        %v3394 = vpop.f32.mrb[0].mxu0
        %v3395 = vadd.f32 0.0, %v3394
        %v3396 = vpop.f32.mrb[0].mxu0
        %v3397 = vadd.f32 0.0, %v3396
        %3398 = vmatprep.mubr.f32.mxu0 0.0
        %3399 = vmatmul.mubr.f32.gmra.mrb[0].mxu0 %v2889
        %v3400 = vpop.f32.mrb[0].mxu0
        %v3401 = vadd.f32 0.0, %v3400
        %v3402 = vpop.f32.mrb[0].mxu0
        %v3403 = vadd.f32 0.0, %v3402
        %3404 = vmatprep.mubr.f32.mxu0 0.0
        %3405 = vmatmul.mubr.f32.gmra.mrb[0].mxu0 %v2892
        %v3406 = vpop.f32.mrb[0].mxu0
        %v3407 = vadd.f32 0.0, %v3406
        %v3408 = vpop.f32.mrb[0].mxu0
        %v3409 = vadd.f32 0.0, %v3408
        %3410 = vmatprep.mubr.f32.mxu0 0.0
        %3411 = vmatmul.mubr.f32.gmra.mrb[0].mxu0 %v2895
        %v3412 = vpop.f32.mrb[0].mxu0
        %v3413 = vadd.f32 0.0, %v3412
        %v3414 = vpop.f32.mrb[0].mxu0
        %v3415 = vadd.f32 0.0, %v3414
        %3416 = vmatprep.mubr.f32.mxu0 0.0
        %3417 = vmatmul.mubr.f32.gmra.mrb[0].mxu0 %v2898
        %v3418 = vpop.f32.mrb[0].mxu0
        %v3419 = vadd.f32 0.0, %v3418
        %v3420 = vpop.f32.mrb[0].mxu0
        %v3421 = vadd.f32 0.0, %v3420
        %3422 = vmatprep.mubr.f32.mxu0 0.0
        %3423 = vmatmul.mubr.f32.gmra.mrb[0].mxu0 %v2901
        %v3424 = vpop.f32.mrb[0].mxu0
        %v3425 = vadd.f32 0.0, %v3424
        %v3426 = vpop.f32.mrb[0].mxu0
        %v3427 = vadd.f32 0.0, %v3426
        %3428 = vmatprep.mubr.f32.mxu0 0.0
        %3429 = vmatmul.mubr.f32.gmra.mrb[0].mxu0 %v2904
        %v3430 = vpop.f32.mrb[0].mxu0
        %v3431 = vadd.f32 0.0, %v3430
        %v3432 = vpop.f32.mrb[0].mxu0
        %v3433 = vadd.f32 0.0, %v3432
        %3434 = vmatprep.mubr.f32.mxu0 0.0
        %3435 = vmatmul.mubr.f32.gmra.mrb[0].mxu0 %v2907
        %v3436 = vpop.f32.mrb[0].mxu0
        %v3437 = vadd.f32 0.0, %v3436
        %v3438 = vpop.f32.mrb[0].mxu0
        %v3439 = vadd.f32 0.0, %v3438
        %3440 = vmatprep.mubr.f32.mxu0 0.0
        %3441 = vmatmul.mubr.f32.gmra.mrb[0].mxu0 %v2910
        %v3442 = vpop.f32.mrb[0].mxu0
        %v3443 = vadd.f32 0.0, %v3442
        %v3444 = vpop.f32.mrb[0].mxu0
        %v3445 = vadd.f32 0.0, %v3444
        %3446 = vmatprep.mubr.f32.mxu0 0.0
        %3447 = vmatmul.mubr.f32.gmra.mrb[0].mxu0 %v2913
        %v3448 = vpop.f32.mrb[0].mxu0
        %v3449 = vadd.f32 0.0, %v3448
        %v3450 = vpop.f32.mrb[0].mxu0
        %v3451 = vadd.f32 0.0, %v3450
        %3452 = vmatprep.mubr.f32.mxu0 0.0
        %3453 = vmatmul.mubr.f32.gmra.mrb[0].mxu0 %v2916
        %v3454 = vpop.f32.mrb[0].mxu0
        %v3455 = vadd.f32 0.0, %v3454
        %v3456 = vpop.f32.mrb[0].mxu0
        %v3457 = vadd.f32 0.0, %v3456
        %3458 = vmatprep.mubr.f32.mxu0 0.0
        %3459 = vmatmul.mubr.f32.gmra.mrb[0].mxu0 %v2919
        %v3460 = vpop.f32.mrb[0].mxu0
        %v3461 = vadd.f32 0.0, %v3460
        %v3462 = vpop.f32.mrb[0].mxu0
        %v3463 = vadd.f32 0.0, %v3462
        %3464 = vmatprep.mubr.f32.mxu0 0.0
        %3465 = vmatmul.mubr.f32.gmra.mrb[0].mxu0 %v2922
        %v3466 = vpop.f32.mrb[0].mxu0
        %v3467 = vadd.f32 0.0, %v3466
        %v3468 = vpop.f32.mrb[0].mxu0
        %v3469 = vadd.f32 0.0, %v3468
        %3470 = vmatprep.mubr.f32.mxu0 0.0
        %3471 = vmatmul.mubr.f32.gmra.mrb[0].mxu0 %v2925
        %v3472 = vpop.f32.mrb[0].mxu0
        %v3473 = vadd.f32 0.0, %v3472
        %v3474 = vpop.f32.mrb[0].mxu0
        %v3475 = vadd.f32 0.0, %v3474
        %3476 = vmatprep.mubr.f32.mxu0 0.0
        %3477 = vmatmul.mubr.f32.gmra.mrb[0].mxu0 %v2928
        %v3478 = vpop.f32.mrb[0].mxu0
        %v3479 = vadd.f32 0.0, %v3478
        %v3480 = vpop.f32.mrb[0].mxu0
        %v3481 = vadd.f32 0.0, %v3480
        %3482 = vmatprep.mubr.f32.mxu0 0.0
        %3483 = vmatmul.mubr.f32.gmra.mrb[0].mxu0 %v2931
        %v3484 = vpop.f32.mrb[0].mxu0
        %v3485 = vadd.f32 0.0, %v3484
        %v3486 = vpop.f32.mrb[0].mxu0
        %v3487 = vadd.f32 0.0, %v3486
        %3488 = vmatprep.mubr.f32.mxu0 0.0
        %3489 = vmatmul.mubr.f32.gmra.mrb[0].mxu0 %v2934
        %v3490 = vpop.f32.mrb[0].mxu0
        %v3491 = vadd.f32 0.0, %v3490
        %v3492 = vpop.f32.mrb[0].mxu0
        %v3493 = vadd.f32 0.0, %v3492
        %3494 = vmatprep.mubr.f32.mxu0 0.0
        %3495 = vmatmul.mubr.f32.gmra.mrb[0].mxu0 %v2937
        %v3496 = vpop.f32.mrb[0].mxu0
        %v3497 = vadd.f32 0.0, %v3496
        %v3498 = vpop.f32.mrb[0].mxu0
        %v3499 = vadd.f32 0.0, %v3498
        %3500 = vdwg.mxu0
        %v3501 = vadd.f32 %v2634, %v3006
        %v3502 = vadd.f32 %v2635, %v3008
        %v3503 = vadd.f32 %v2636, %v3287
        %v3504 = vadd.f32 %v2637, %v3289
        %v3505 = vadd.f32 %v2638, %v3012
        %v3506 = vadd.f32 %v2639, %v3014
        %v3507 = vadd.f32 %v2640, %v3293
        %v3508 = vadd.f32 %v2641, %v3295
        %v3509 = vadd.f32 %v2642, %v3018
        %v3510 = vadd.f32 %v2643, %v3020
        %v3511 = vadd.f32 %v2644, %v3299
        %v3512 = vadd.f32 %v2645, %v3301
        %v3513 = vadd.f32 %v2646, %v3024
        %v3514 = vadd.f32 %v2647, %v3026
        %v3515 = vadd.f32 %v2648, %v3305
        %v3516 = vadd.f32 %v2649, %v3307
        %v3517 = vadd.f32 %v2650, %v3030
        %v3518 = vadd.f32 %v2651, %v3032
        %v3519 = vadd.f32 %v2652, %v3311
        %v3520 = vadd.f32 %v2653, %v3313
        %v3521 = vadd.f32 %v2654, %v3036
        %v3522 = vadd.f32 %v2655, %v3038
        %v3523 = vadd.f32 %v2656, %v3317
        %v3524 = vadd.f32 %v2657, %v3319
        %v3525 = vadd.f32 %v2658, %v3042
        %v3526 = vadd.f32 %v2659, %v3044
        %v3527 = vadd.f32 %v2660, %v3323
        %v3528 = vadd.f32 %v2661, %v3325
        %v3529 = vadd.f32 %v2662, %v3048
        %v3530 = vadd.f32 %v2663, %v3050
        %v3531 = vadd.f32 %v2664, %v3329
        %v3532 = vadd.f32 %v2665, %v3331
        %v3533 = vadd.f32 %v2666, %v3054
        %v3534 = vadd.f32 %v2667, %v3056
        %v3535 = vadd.f32 %v2668, %v3335
        %v3536 = vadd.f32 %v2669, %v3337
        %v3537 = vadd.f32 %v2670, %v3060
        %v3538 = vadd.f32 %v2671, %v3062
        %v3539 = vadd.f32 %v2672, %v3341
        %v3540 = vadd.f32 %v2673, %v3343
        %v3541 = vadd.f32 %v2674, %v3066
        %v3542 = vadd.f32 %v2675, %v3068
        %v3543 = vadd.f32 %v2676, %v3347
        %v3544 = vadd.f32 %v2677, %v3349
        %v3545 = vadd.f32 %v2678, %v3072
        %v3546 = vadd.f32 %v2679, %v3074
        %v3547 = vadd.f32 %v2680, %v3353
        %v3548 = vadd.f32 %v2681, %v3355
        %v3549 = vadd.f32 %v2682, %v3078
        %v3550 = vadd.f32 %v2683, %v3080
        %v3551 = vadd.f32 %v2684, %v3359
        %v3552 = vadd.f32 %v2685, %v3361
        %v3553 = vadd.f32 %v2686, %v3084
        %v3554 = vadd.f32 %v2687, %v3086
        %v3555 = vadd.f32 %v2688, %v3365
        %v3556 = vadd.f32 %v2689, %v3367
        %v3557 = vadd.f32 %v2690, %v3090
        %v3558 = vadd.f32 %v2691, %v3092
        %v3559 = vadd.f32 %v2692, %v3371
        %v3560 = vadd.f32 %v2693, %v3373
        %v3561 = vadd.f32 %v2694, %v3096
        %v3562 = vadd.f32 %v2695, %v3098
        %v3563 = vadd.f32 %v2696, %v3377
        %v3564 = vadd.f32 %v2697, %v3379
        %v3565 = vadd.f32 %v2698, %v3102
        %v3566 = vadd.f32 %v2699, %v3104
        %v3567 = vadd.f32 %v2700, %v3383
        %v3568 = vadd.f32 %v2701, %v3385
        %v3569 = vadd.f32 %v2702, %v3108
        %v3570 = vadd.f32 %v2703, %v3110
        %v3571 = vadd.f32 %v2704, %v3389
        %v3572 = vadd.f32 %v2705, %v3391
        %v3573 = vadd.f32 %v2706, %v3114
        %v3574 = vadd.f32 %v2707, %v3116
        %v3575 = vadd.f32 %v2708, %v3395
        %v3576 = vadd.f32 %v2709, %v3397
        %v3577 = vadd.f32 %v2710, %v3120
        %v3578 = vadd.f32 %v2711, %v3122
        %v3579 = vadd.f32 %v2712, %v3401
        %v3580 = vadd.f32 %v2713, %v3403
        %v3581 = vadd.f32 %v2714, %v3126
        %v3582 = vadd.f32 %v2715, %v3128
        %v3583 = vadd.f32 %v2716, %v3407
        %v3584 = vadd.f32 %v2717, %v3409
        %v3585 = vadd.f32 %v2718, %v3132
        %v3586 = vadd.f32 %v2719, %v3134
        %v3587 = vadd.f32 %v2720, %v3413
        %v3588 = vadd.f32 %v2721, %v3415
        %v3589 = vadd.f32 %v2722, %v3138
        %v3590 = vadd.f32 %v2723, %v3140
        %v3591 = vadd.f32 %v2724, %v3419
        %v3592 = vadd.f32 %v2725, %v3421
        %v3593 = vadd.f32 %v2726, %v3144
        %v3594 = vadd.f32 %v2727, %v3146
        %v3595 = vadd.f32 %v2728, %v3425
        %v3596 = vadd.f32 %v2729, %v3427
        %v3597 = vadd.f32 %v2730, %v3150
        %v3598 = vadd.f32 %v2731, %v3152
        %v3599 = vadd.f32 %v2732, %v3431
        %v3600 = vadd.f32 %v2733, %v3433
        %v3601 = vadd.f32 %v2734, %v3156
        %v3602 = vadd.f32 %v2735, %v3158
        %v3603 = vadd.f32 %v2736, %v3437
        %v3604 = vadd.f32 %v2737, %v3439
        %v3605 = vadd.f32 %v2738, %v3162
        %v3606 = vadd.f32 %v2739, %v3164
        %v3607 = vadd.f32 %v2740, %v3443
        %v3608 = vadd.f32 %v2741, %v3445
        %v3609 = vadd.f32 %v2742, %v3168
        %v3610 = vadd.f32 %v2743, %v3170
        %v3611 = vadd.f32 %v2744, %v3449
        %v3612 = vadd.f32 %v2745, %v3451
        %v3613 = vadd.f32 %v2746, %v3174
        %v3614 = vadd.f32 %v2747, %v3176
        %v3615 = vadd.f32 %v2748, %v3455
        %v3616 = vadd.f32 %v2749, %v3457
        %v3617 = vadd.f32 %v2750, %v3180
        %v3618 = vadd.f32 %v2751, %v3182
        %v3619 = vadd.f32 %v2752, %v3461
        %v3620 = vadd.f32 %v2753, %v3463
        %v3621 = vadd.f32 %v2754, %v3186
        %v3622 = vadd.f32 %v2755, %v3188
        %v3623 = vadd.f32 %v2756, %v3467
        %v3624 = vadd.f32 %v2757, %v3469
        %v3625 = vadd.f32 %v2758, %v3192
        %v3626 = vadd.f32 %v2759, %v3194
        %v3627 = vadd.f32 %v2760, %v3473
        %v3628 = vadd.f32 %v2761, %v3475
        %v3629 = vadd.f32 %v2762, %v3198
        %v3630 = vadd.f32 %v2763, %v3200
        %v3631 = vadd.f32 %v2764, %v3479
        %v3632 = vadd.f32 %v2765, %v3481
        %v3633 = vadd.f32 %v2766, %v3204
        %v3634 = vadd.f32 %v2767, %v3206
        %v3635 = vadd.f32 %v2768, %v3485
        %v3636 = vadd.f32 %v2769, %v3487
        %v3637 = vadd.f32 %v2770, %v3210
        %v3638 = vadd.f32 %v2771, %v3212
        %v3639 = vadd.f32 %v2772, %v3491
        %v3640 = vadd.f32 %v2773, %v3493
        %v3641 = vadd.f32 %v2774, %v3216
        %v3642 = vadd.f32 %v2775, %v3218
        %v3643 = vadd.f32 %v2776, %v3497
        %v3644 = vadd.f32 %v2777, %v3499
        %v3645 = vld [vmem:[%s454 + $0x13] sm:$0xff]
        %v3646 = vld [vmem:[%s454 + $0x1b] sm:$0xff]
        %v3647 = vld [vmem:[%s454 + $0x23] sm:$0xff]
        %v3648 = vld [vmem:[%s454 + $0x2b] sm:$0xff]
        %v3649 = vld [vmem:[%s454 + $0x33] sm:$0xff]
        %v3650 = vld [vmem:[%s454 + $0x3b] sm:$0xff]
        %v3651 = vld [vmem:[%s454 + $0x43] sm:$0xff]
        %v3652 = vld [vmem:[%s454 + $0x4b] sm:$0xff]
        %v3653 = vld [vmem:[%s454 + $0x53] sm:$0xff]
        %v3654 = vld [vmem:[%s454 + $0x5b] sm:$0xff]
        %v3655 = vld [vmem:[%s454 + $0x63] sm:$0xff]
        %v3656 = vld [vmem:[%s454 + $0x6b] sm:$0xff]
        %v3657 = vld [vmem:[%s454 + $0x73] sm:$0xff]
        %v3658 = vld [vmem:[%s454 + $0x7b] sm:$0xff]
        %v3659 = vld [vmem:[%s454 + $0x83] sm:$0xff]
        %v3660 = vld [vmem:[%s454 + $0x8b] sm:$0xff]
        %v3661 = vld [vmem:[%s454 + $0x93] sm:$0xff]
        %v3662 = vld [vmem:[%s454 + $0x9b] sm:$0xff]
        %v3663 = vld [vmem:[%s454 + $0xa3] sm:$0xff]
        %v3664 = vld [vmem:[%s454 + $0xab] sm:$0xff]
        %v3665 = vld [vmem:[%s454 + $0xb3] sm:$0xff]
        %v3666 = vld [vmem:[%s454 + $0xbb] sm:$0xff]
        %v3667 = vld [vmem:[%s454 + $0xc3] sm:$0xff]
        %v3668 = vld [vmem:[%s454 + $0xcb] sm:$0xff]
        %v3669 = vld [vmem:[%s454 + $0xd3] sm:$0xff]
        %v3670 = vld [vmem:[%s454 + $0xdb] sm:$0xff]
        %v3671 = vld [vmem:[%s454 + $0xe3] sm:$0xff]
        %v3672 = vld [vmem:[%s454 + $0xeb] sm:$0xff]
        %v3673 = vld [vmem:[%s454 + $0xf3] sm:$0xff]
        %v3674 = vld [vmem:[%s454 + $0xfb] sm:$0xff]
        %v3675 = vld [vmem:[%s454 + $0x103] sm:$0xff]
        %v3676 = vld [vmem:[%s454 + $0x10b] sm:$0xff]
        %v3677 = vld [vmem:[%s454 + $0x113] sm:$0xff]
        %v3678 = vld [vmem:[%s454 + $0x11b] sm:$0xff]
        %v3679 = vld [vmem:[%s454 + $0x123] sm:$0xff]
        %v3680 = vld [vmem:[%s454 + $0x12b] sm:$0xff]
        %s3681 = scalar_lea.vmem %s1, 512
        %v3682 = vld [vmem:[%s3681] sm:$0xff]
        %v3683 = vld [vmem:[%s3681 + $0x8] sm:$0xff]
        %v3684 = vld [vmem:[%s3681 + $0x10] sm:$0xff]
        %v3685 = vld [vmem:[%s3681 + $0x18] sm:$0xff]
        %v3686 = vld [vmem:[%s3681 + $0x20] sm:$0xff]
        %v3687 = vld [vmem:[%s3681 + $0x28] sm:$0xff]
        %v3688 = vld [vmem:[%s3681 + $0x30] sm:$0xff]
        %v3689 = vld [vmem:[%s3681 + $0x38] sm:$0xff]
        %v3690 = vld [vmem:[%s3681 + $0x40] sm:$0xff]
        %v3691 = vld [vmem:[%s3681 + $0x48] sm:$0xff]
        %v3692 = vld [vmem:[%s3681 + $0x50] sm:$0xff]
        %v3693 = vld [vmem:[%s3681 + $0x58] sm:$0xff]
        %v3694 = vld [vmem:[%s3681 + $0x60] sm:$0xff]
        %v3695 = vld [vmem:[%s3681 + $0x68] sm:$0xff]
        %v3696 = vld [vmem:[%s3681 + $0x70] sm:$0xff]
        %v3697 = vld [vmem:[%s3681 + $0x78] sm:$0xff]
        %v3699 = vsel %vm570, %v3645, 0
        %v3702 = vsel %vm570, %v3646, 0
        %v3705 = vsel %vm570, %v3647, 0
        %v3708 = vsel %vm570, %v3648, 0
        %v3711 = vsel %vm570, %v3649, 0
        %v3714 = vsel %vm570, %v3650, 0
        %v3717 = vsel %vm570, %v3651, 0
        %v3720 = vsel %vm570, %v3652, 0
        %v3723 = vsel %vm570, %v3653, 0
        %v3726 = vsel %vm570, %v3654, 0
        %v3729 = vsel %vm570, %v3655, 0
        %v3732 = vsel %vm570, %v3656, 0
        %v3735 = vsel %vm570, %v3657, 0
        %v3738 = vsel %vm570, %v3658, 0
        %v3741 = vsel %vm570, %v3659, 0
        %v3744 = vsel %vm570, %v3660, 0
        %v3747 = vsel %vm570, %v3661, 0
        %v3750 = vsel %vm570, %v3662, 0
        %v3753 = vsel %vm570, %v3663, 0
        %v3756 = vsel %vm570, %v3664, 0
        %v3759 = vsel %vm570, %v3665, 0
        %v3762 = vsel %vm570, %v3666, 0
        %v3765 = vsel %vm570, %v3667, 0
        %v3768 = vsel %vm570, %v3668, 0
        %v3771 = vsel %vm570, %v3669, 0
        %v3774 = vsel %vm570, %v3670, 0
        %v3777 = vsel %vm570, %v3671, 0
        %v3780 = vsel %vm570, %v3672, 0
        %v3783 = vsel %vm570, %v3673, 0
        %v3786 = vsel %vm570, %v3674, 0
        %v3789 = vsel %vm570, %v3675, 0
        %v3792 = vsel %vm570, %v3676, 0
        %v3795 = vsel %vm570, %v3677, 0
        %v3798 = vsel %vm570, %v3678, 0
        %v3801 = vsel %vm570, %v3679, 0
        %v3804 = vsel %vm570, %v3680, 0
        %3806 = vmatprep.subr.mxu0 %v3683
        %3807 = vmatpush1.msra.mxu0 %v3682
        %3808 = vmatprep.subr.mxu0 %v3687
        %3809 = vmatpush1.msra.mxu0 %v3686
        %3810 = vmatprep.subr.mxu0 %v3691
        %3811 = vmatpush1.msra.mxu0 %v3690
        %3812 = vmatprep.subr.mxu0 %v3695
        %3813 = vmatpush1.msra.mxu0 %v3694
        %3814 = vmatprep.subr.mxu0 0.0
        %3815 = vmatpush1.msra.mxu0 0.0
        %3816 = vmatprep.subr.mxu0 0.0
        %3817 = vmatpush1.msra.mxu0 0.0
        %3818 = vmatprep.subr.mxu0 0.0
        %3819 = vmatpush1.msra.mxu0 0.0
        %3820 = vmatprep.subr.mxu0 0.0
        %3821 = vmatpush1.msra.mxu0 0.0
        %3822 = vmatprep.subr.mxu0 0.0
        %3823 = vmatpush1.msra.mxu0 0.0
        %3824 = vmatprep.subr.mxu0 0.0
        %3825 = vmatpush1.msra.mxu0 0.0
        %3826 = vmatprep.subr.mxu0 0.0
        %3827 = vmatpush1.msra.mxu0 0.0
        %3828 = vmatprep.subr.mxu0 0.0
        %3829 = vmatpush1.msra.mxu0 0.0
        %3830 = vmatprep.subr.mxu0 0.0
        %3831 = vmatpush1.msra.mxu0 0.0
        %3832 = vmatprep.subr.mxu0 0.0
        %3833 = vmatpush1.msra.mxu0 0.0
        %3834 = vmatprep.subr.mxu0 0.0
        %3835 = vmatpush1.msra.mxu0 0.0
        %3836 = vmatprep.subr.mxu0 0.0
        %3837 = vmatpush1.msra.mxu0 0.0
        %3838 = vmatprep.subr.mxu0 0.0
        %3839 = vmatpush1.msra.mxu0 0.0
        %3840 = vmatprep.subr.mxu0 0.0
        %3841 = vmatpush1.msra.mxu0 0.0
        %3842 = vmatprep.subr.mxu0 0.0
        %3843 = vmatpush1.msra.mxu0 0.0
        %3844 = vmatprep.subr.mxu0 0.0
        %3845 = vmatpush1.msra.mxu0 0.0
        %3846 = vmatprep.subr.mxu0 0.0
        %3847 = vmatpush1.msra.mxu0 0.0
        %3848 = vmatprep.subr.mxu0 0.0
        %3849 = vmatpush1.msra.mxu0 0.0
        %3850 = vmatprep.subr.mxu0 0.0
        %3851 = vmatpush1.msra.mxu0 0.0
        %3852 = vmatprep.subr.mxu0 0.0
        %3853 = vmatpush1.msra.mxu0 0.0
        %3854 = vmatprep.subr.mxu0 0.0
        %3855 = vmatpush1.msra.mxu0 0.0
        %3856 = vmatprep.subr.mxu0 0.0
        %3857 = vmatpush1.msra.mxu0 0.0
        %3858 = vmatprep.subr.mxu0 0.0
        %3859 = vmatpush1.msra.mxu0 0.0
        %3860 = vmatprep.subr.mxu0 0.0
        %3861 = vmatpush1.msra.mxu0 0.0
        %3862 = vmatprep.subr.mxu0 0.0
        %3863 = vmatpush1.msra.mxu0 0.0
        %3864 = vmatprep.subr.mxu0 0.0
        %3865 = vmatpush1.msra.mxu0 0.0
        %3866 = vmatprep.subr.mxu0 0.0
        %3867 = vmatpush1.msra.mxu0 0.0
        %3868 = vmatprep.subr.mxu0 0.0
        %3869 = vmatpush1.msra.mxu0 0.0
        %3870 = vmatprep.mubr.f32.mxu0 0.0
        %3871 = vmatmul.mubr.f32.gmra.mrb[0].mxu0 %v3699
        %v3872 = vpop.f32.mrb[0].mxu0
        %v3873 = vadd.f32 0.0, %v3872
        %v3874 = vpop.f32.mrb[0].mxu0
        %v3875 = vadd.f32 0.0, %v3874
        %3876 = vmatprep.mubr.f32.mxu0 0.0
        %3877 = vmatmul.mubr.f32.gmra.mrb[0].mxu0 %v3702
        %v3878 = vpop.f32.mrb[0].mxu0
        %v3879 = vadd.f32 0.0, %v3878
        %v3880 = vpop.f32.mrb[0].mxu0
        %v3881 = vadd.f32 0.0, %v3880
        %3882 = vmatprep.mubr.f32.mxu0 0.0
        %3883 = vmatmul.mubr.f32.gmra.mrb[0].mxu0 %v3705
        %v3884 = vpop.f32.mrb[0].mxu0
        %v3885 = vadd.f32 0.0, %v3884
        %v3886 = vpop.f32.mrb[0].mxu0
        %v3887 = vadd.f32 0.0, %v3886
        %3888 = vmatprep.mubr.f32.mxu0 0.0
        %3889 = vmatmul.mubr.f32.gmra.mrb[0].mxu0 %v3708
        %v3890 = vpop.f32.mrb[0].mxu0
        %v3891 = vadd.f32 0.0, %v3890
        %v3892 = vpop.f32.mrb[0].mxu0
        %v3893 = vadd.f32 0.0, %v3892
        %3894 = vmatprep.mubr.f32.mxu0 0.0
        %3895 = vmatmul.mubr.f32.gmra.mrb[0].mxu0 %v3711
        %v3896 = vpop.f32.mrb[0].mxu0
        %v3897 = vadd.f32 0.0, %v3896
        %v3898 = vpop.f32.mrb[0].mxu0
        %v3899 = vadd.f32 0.0, %v3898
        %3900 = vmatprep.mubr.f32.mxu0 0.0
        %3901 = vmatmul.mubr.f32.gmra.mrb[0].mxu0 %v3714
        %v3902 = vpop.f32.mrb[0].mxu0
        %v3903 = vadd.f32 0.0, %v3902
        %v3904 = vpop.f32.mrb[0].mxu0
        %v3905 = vadd.f32 0.0, %v3904
        %3906 = vmatprep.mubr.f32.mxu0 0.0
        %3907 = vmatmul.mubr.f32.gmra.mrb[0].mxu0 %v3717
        %v3908 = vpop.f32.mrb[0].mxu0
        %v3909 = vadd.f32 0.0, %v3908
        %v3910 = vpop.f32.mrb[0].mxu0
        %v3911 = vadd.f32 0.0, %v3910
        %3912 = vmatprep.mubr.f32.mxu0 0.0
        %3913 = vmatmul.mubr.f32.gmra.mrb[0].mxu0 %v3720
        %v3914 = vpop.f32.mrb[0].mxu0
        %v3915 = vadd.f32 0.0, %v3914
        %v3916 = vpop.f32.mrb[0].mxu0
        %v3917 = vadd.f32 0.0, %v3916
        %3918 = vmatprep.mubr.f32.mxu0 0.0
        %3919 = vmatmul.mubr.f32.gmra.mrb[0].mxu0 %v3723
        %v3920 = vpop.f32.mrb[0].mxu0
        %v3921 = vadd.f32 0.0, %v3920
        %v3922 = vpop.f32.mrb[0].mxu0
        %v3923 = vadd.f32 0.0, %v3922
        %3924 = vmatprep.mubr.f32.mxu0 0.0
        %3925 = vmatmul.mubr.f32.gmra.mrb[0].mxu0 %v3726
        %v3926 = vpop.f32.mrb[0].mxu0
        %v3927 = vadd.f32 0.0, %v3926
        %v3928 = vpop.f32.mrb[0].mxu0
        %v3929 = vadd.f32 0.0, %v3928
        %3930 = vmatprep.mubr.f32.mxu0 0.0
        %3931 = vmatmul.mubr.f32.gmra.mrb[0].mxu0 %v3729
        %v3932 = vpop.f32.mrb[0].mxu0
        %v3933 = vadd.f32 0.0, %v3932
        %v3934 = vpop.f32.mrb[0].mxu0
        %v3935 = vadd.f32 0.0, %v3934
        %3936 = vmatprep.mubr.f32.mxu0 0.0
        %3937 = vmatmul.mubr.f32.gmra.mrb[0].mxu0 %v3732
        %v3938 = vpop.f32.mrb[0].mxu0
        %v3939 = vadd.f32 0.0, %v3938
        %v3940 = vpop.f32.mrb[0].mxu0
        %v3941 = vadd.f32 0.0, %v3940
        %3942 = vmatprep.mubr.f32.mxu0 0.0
        %3943 = vmatmul.mubr.f32.gmra.mrb[0].mxu0 %v3735
        %v3944 = vpop.f32.mrb[0].mxu0
        %v3945 = vadd.f32 0.0, %v3944
        %v3946 = vpop.f32.mrb[0].mxu0
        %v3947 = vadd.f32 0.0, %v3946
        %3948 = vmatprep.mubr.f32.mxu0 0.0
        %3949 = vmatmul.mubr.f32.gmra.mrb[0].mxu0 %v3738
        %v3950 = vpop.f32.mrb[0].mxu0
        %v3951 = vadd.f32 0.0, %v3950
        %v3952 = vpop.f32.mrb[0].mxu0
        %v3953 = vadd.f32 0.0, %v3952
        %3954 = vmatprep.mubr.f32.mxu0 0.0
        %3955 = vmatmul.mubr.f32.gmra.mrb[0].mxu0 %v3741
        %v3956 = vpop.f32.mrb[0].mxu0
        %v3957 = vadd.f32 0.0, %v3956
        %v3958 = vpop.f32.mrb[0].mxu0
        %v3959 = vadd.f32 0.0, %v3958
        %3960 = vmatprep.mubr.f32.mxu0 0.0
        %3961 = vmatmul.mubr.f32.gmra.mrb[0].mxu0 %v3744
        %v3962 = vpop.f32.mrb[0].mxu0
        %v3963 = vadd.f32 0.0, %v3962
        %v3964 = vpop.f32.mrb[0].mxu0
        %v3965 = vadd.f32 0.0, %v3964
        %3966 = vmatprep.mubr.f32.mxu0 0.0
        %3967 = vmatmul.mubr.f32.gmra.mrb[0].mxu0 %v3747
        %v3968 = vpop.f32.mrb[0].mxu0
        %v3969 = vadd.f32 0.0, %v3968
        %v3970 = vpop.f32.mrb[0].mxu0
        %v3971 = vadd.f32 0.0, %v3970
        %3972 = vmatprep.mubr.f32.mxu0 0.0
        %3973 = vmatmul.mubr.f32.gmra.mrb[0].mxu0 %v3750
        %v3974 = vpop.f32.mrb[0].mxu0
        %v3975 = vadd.f32 0.0, %v3974
        %v3976 = vpop.f32.mrb[0].mxu0
        %v3977 = vadd.f32 0.0, %v3976
        %3978 = vmatprep.mubr.f32.mxu0 0.0
        %3979 = vmatmul.mubr.f32.gmra.mrb[0].mxu0 %v3753
        %v3980 = vpop.f32.mrb[0].mxu0
        %v3981 = vadd.f32 0.0, %v3980
        %v3982 = vpop.f32.mrb[0].mxu0
        %v3983 = vadd.f32 0.0, %v3982
        %3984 = vmatprep.mubr.f32.mxu0 0.0
        %3985 = vmatmul.mubr.f32.gmra.mrb[0].mxu0 %v3756
        %v3986 = vpop.f32.mrb[0].mxu0
        %v3987 = vadd.f32 0.0, %v3986
        %v3988 = vpop.f32.mrb[0].mxu0
        %v3989 = vadd.f32 0.0, %v3988
        %3990 = vmatprep.mubr.f32.mxu0 0.0
        %3991 = vmatmul.mubr.f32.gmra.mrb[0].mxu0 %v3759
        %v3992 = vpop.f32.mrb[0].mxu0
        %v3993 = vadd.f32 0.0, %v3992
        %v3994 = vpop.f32.mrb[0].mxu0
        %v3995 = vadd.f32 0.0, %v3994
        %3996 = vmatprep.mubr.f32.mxu0 0.0
        %3997 = vmatmul.mubr.f32.gmra.mrb[0].mxu0 %v3762
        %v3998 = vpop.f32.mrb[0].mxu0
        %v3999 = vadd.f32 0.0, %v3998
        %v4000 = vpop.f32.mrb[0].mxu0
        %v4001 = vadd.f32 0.0, %v4000
        %4002 = vmatprep.mubr.f32.mxu0 0.0
        %4003 = vmatmul.mubr.f32.gmra.mrb[0].mxu0 %v3765
        %v4004 = vpop.f32.mrb[0].mxu0
        %v4005 = vadd.f32 0.0, %v4004
        %v4006 = vpop.f32.mrb[0].mxu0
        %v4007 = vadd.f32 0.0, %v4006
        %4008 = vmatprep.mubr.f32.mxu0 0.0
        %4009 = vmatmul.mubr.f32.gmra.mrb[0].mxu0 %v3768
        %v4010 = vpop.f32.mrb[0].mxu0
        %v4011 = vadd.f32 0.0, %v4010
        %v4012 = vpop.f32.mrb[0].mxu0
        %v4013 = vadd.f32 0.0, %v4012
        %4014 = vmatprep.mubr.f32.mxu0 0.0
        %4015 = vmatmul.mubr.f32.gmra.mrb[0].mxu0 %v3771
        %v4016 = vpop.f32.mrb[0].mxu0
        %v4017 = vadd.f32 0.0, %v4016
        %v4018 = vpop.f32.mrb[0].mxu0
        %v4019 = vadd.f32 0.0, %v4018
        %4020 = vmatprep.mubr.f32.mxu0 0.0
        %4021 = vmatmul.mubr.f32.gmra.mrb[0].mxu0 %v3774
        %v4022 = vpop.f32.mrb[0].mxu0
        %v4023 = vadd.f32 0.0, %v4022
        %v4024 = vpop.f32.mrb[0].mxu0
        %v4025 = vadd.f32 0.0, %v4024
        %4026 = vmatprep.mubr.f32.mxu0 0.0
        %4027 = vmatmul.mubr.f32.gmra.mrb[0].mxu0 %v3777
        %v4028 = vpop.f32.mrb[0].mxu0
        %v4029 = vadd.f32 0.0, %v4028
        %v4030 = vpop.f32.mrb[0].mxu0
        %v4031 = vadd.f32 0.0, %v4030
        %4032 = vmatprep.mubr.f32.mxu0 0.0
        %4033 = vmatmul.mubr.f32.gmra.mrb[0].mxu0 %v3780
        %v4034 = vpop.f32.mrb[0].mxu0
        %v4035 = vadd.f32 0.0, %v4034
        %v4036 = vpop.f32.mrb[0].mxu0
        %v4037 = vadd.f32 0.0, %v4036
        %4038 = vmatprep.mubr.f32.mxu0 0.0
        %4039 = vmatmul.mubr.f32.gmra.mrb[0].mxu0 %v3783
        %v4040 = vpop.f32.mrb[0].mxu0
        %v4041 = vadd.f32 0.0, %v4040
        %v4042 = vpop.f32.mrb[0].mxu0
        %v4043 = vadd.f32 0.0, %v4042
        %4044 = vmatprep.mubr.f32.mxu0 0.0
        %4045 = vmatmul.mubr.f32.gmra.mrb[0].mxu0 %v3786
        %v4046 = vpop.f32.mrb[0].mxu0
        %v4047 = vadd.f32 0.0, %v4046
        %v4048 = vpop.f32.mrb[0].mxu0
        %v4049 = vadd.f32 0.0, %v4048
        %4050 = vmatprep.mubr.f32.mxu0 0.0
        %4051 = vmatmul.mubr.f32.gmra.mrb[0].mxu0 %v3789
        %v4052 = vpop.f32.mrb[0].mxu0
        %v4053 = vadd.f32 0.0, %v4052
        %v4054 = vpop.f32.mrb[0].mxu0
        %v4055 = vadd.f32 0.0, %v4054
        %4056 = vmatprep.mubr.f32.mxu0 0.0
        %4057 = vmatmul.mubr.f32.gmra.mrb[0].mxu0 %v3792
        %v4058 = vpop.f32.mrb[0].mxu0
        %v4059 = vadd.f32 0.0, %v4058
        %v4060 = vpop.f32.mrb[0].mxu0
        %v4061 = vadd.f32 0.0, %v4060
        %4062 = vmatprep.mubr.f32.mxu0 0.0
        %4063 = vmatmul.mubr.f32.gmra.mrb[0].mxu0 %v3795
        %v4064 = vpop.f32.mrb[0].mxu0
        %v4065 = vadd.f32 0.0, %v4064
        %v4066 = vpop.f32.mrb[0].mxu0
        %v4067 = vadd.f32 0.0, %v4066
        %4068 = vmatprep.mubr.f32.mxu0 0.0
        %4069 = vmatmul.mubr.f32.gmra.mrb[0].mxu0 %v3798
        %v4070 = vpop.f32.mrb[0].mxu0
        %v4071 = vadd.f32 0.0, %v4070
        %v4072 = vpop.f32.mrb[0].mxu0
        %v4073 = vadd.f32 0.0, %v4072
        %4074 = vmatprep.mubr.f32.mxu0 0.0
        %4075 = vmatmul.mubr.f32.gmra.mrb[0].mxu0 %v3801
        %v4076 = vpop.f32.mrb[0].mxu0
        %v4077 = vadd.f32 0.0, %v4076
        %v4078 = vpop.f32.mrb[0].mxu0
        %v4079 = vadd.f32 0.0, %v4078
        %4080 = vmatprep.mubr.f32.mxu0 0.0
        %4081 = vmatmul.mubr.f32.gmra.mrb[0].mxu0 %v3804
        %v4082 = vpop.f32.mrb[0].mxu0
        %v4083 = vadd.f32 0.0, %v4082
        %v4084 = vpop.f32.mrb[0].mxu0
        %v4085 = vadd.f32 0.0, %v4084
        %4086 = vdwg.mxu0
        %4087 = vmatprep.subr.mxu0 %v3685
        %4088 = vmatpush1.msra.mxu0 %v3684
        %4089 = vmatprep.subr.mxu0 %v3689
        %4090 = vmatpush1.msra.mxu0 %v3688
        %4091 = vmatprep.subr.mxu0 %v3693
        %4092 = vmatpush1.msra.mxu0 %v3692
        %4093 = vmatprep.subr.mxu0 %v3697
        %4094 = vmatpush1.msra.mxu0 %v3696
        %4095 = vmatprep.subr.mxu0 0.0
        %4096 = vmatpush1.msra.mxu0 0.0
        %4097 = vmatprep.subr.mxu0 0.0
        %4098 = vmatpush1.msra.mxu0 0.0
        %4099 = vmatprep.subr.mxu0 0.0
        %4100 = vmatpush1.msra.mxu0 0.0
        %4101 = vmatprep.subr.mxu0 0.0
        %4102 = vmatpush1.msra.mxu0 0.0
        %4103 = vmatprep.subr.mxu0 0.0
        %4104 = vmatpush1.msra.mxu0 0.0
        %4105 = vmatprep.subr.mxu0 0.0
        %4106 = vmatpush1.msra.mxu0 0.0
        %4107 = vmatprep.subr.mxu0 0.0
        %4108 = vmatpush1.msra.mxu0 0.0
        %4109 = vmatprep.subr.mxu0 0.0
        %4110 = vmatpush1.msra.mxu0 0.0
        %4111 = vmatprep.subr.mxu0 0.0
        %4112 = vmatpush1.msra.mxu0 0.0
        %4113 = vmatprep.subr.mxu0 0.0
        %4114 = vmatpush1.msra.mxu0 0.0
        %4115 = vmatprep.subr.mxu0 0.0
        %4116 = vmatpush1.msra.mxu0 0.0
        %4117 = vmatprep.subr.mxu0 0.0
        %4118 = vmatpush1.msra.mxu0 0.0
        %4119 = vmatprep.subr.mxu0 0.0
        %4120 = vmatpush1.msra.mxu0 0.0
        %4121 = vmatprep.subr.mxu0 0.0
        %4122 = vmatpush1.msra.mxu0 0.0
        %4123 = vmatprep.subr.mxu0 0.0
        %4124 = vmatpush1.msra.mxu0 0.0
        %4125 = vmatprep.subr.mxu0 0.0
        %4126 = vmatpush1.msra.mxu0 0.0
        %4127 = vmatprep.subr.mxu0 0.0
        %4128 = vmatpush1.msra.mxu0 0.0
        %4129 = vmatprep.subr.mxu0 0.0
        %4130 = vmatpush1.msra.mxu0 0.0
        %4131 = vmatprep.subr.mxu0 0.0
        %4132 = vmatpush1.msra.mxu0 0.0
        %4133 = vmatprep.subr.mxu0 0.0
        %4134 = vmatpush1.msra.mxu0 0.0
        %4135 = vmatprep.subr.mxu0 0.0
        %4136 = vmatpush1.msra.mxu0 0.0
        %4137 = vmatprep.subr.mxu0 0.0
        %4138 = vmatpush1.msra.mxu0 0.0
        %4139 = vmatprep.subr.mxu0 0.0
        %4140 = vmatpush1.msra.mxu0 0.0
        %4141 = vmatprep.subr.mxu0 0.0
        %4142 = vmatpush1.msra.mxu0 0.0
        %4143 = vmatprep.subr.mxu0 0.0
        %4144 = vmatpush1.msra.mxu0 0.0
        %4145 = vmatprep.subr.mxu0 0.0
        %4146 = vmatpush1.msra.mxu0 0.0
        %4147 = vmatprep.subr.mxu0 0.0
        %4148 = vmatpush1.msra.mxu0 0.0
        %4149 = vmatprep.subr.mxu0 0.0
        %4150 = vmatpush1.msra.mxu0 0.0
        %4151 = vmatprep.mubr.f32.mxu0 0.0
        %4152 = vmatmul.mubr.f32.gmra.mrb[0].mxu0 %v3699
        %v4153 = vpop.f32.mrb[0].mxu0
        %v4154 = vadd.f32 0.0, %v4153
        %v4155 = vpop.f32.mrb[0].mxu0
        %v4156 = vadd.f32 0.0, %v4155
        %4157 = vmatprep.mubr.f32.mxu0 0.0
        %4158 = vmatmul.mubr.f32.gmra.mrb[0].mxu0 %v3702
        %v4159 = vpop.f32.mrb[0].mxu0
        %v4160 = vadd.f32 0.0, %v4159
        %v4161 = vpop.f32.mrb[0].mxu0
        %v4162 = vadd.f32 0.0, %v4161
        %4163 = vmatprep.mubr.f32.mxu0 0.0
        %4164 = vmatmul.mubr.f32.gmra.mrb[0].mxu0 %v3705
        %v4165 = vpop.f32.mrb[0].mxu0
        %v4166 = vadd.f32 0.0, %v4165
        %v4167 = vpop.f32.mrb[0].mxu0
        %v4168 = vadd.f32 0.0, %v4167
        %4169 = vmatprep.mubr.f32.mxu0 0.0
        %4170 = vmatmul.mubr.f32.gmra.mrb[0].mxu0 %v3708
        %v4171 = vpop.f32.mrb[0].mxu0
        %v4172 = vadd.f32 0.0, %v4171
        %v4173 = vpop.f32.mrb[0].mxu0
        %v4174 = vadd.f32 0.0, %v4173
        %4175 = vmatprep.mubr.f32.mxu0 0.0
        %4176 = vmatmul.mubr.f32.gmra.mrb[0].mxu0 %v3711
        %v4177 = vpop.f32.mrb[0].mxu0
        %v4178 = vadd.f32 0.0, %v4177
        %v4179 = vpop.f32.mrb[0].mxu0
        %v4180 = vadd.f32 0.0, %v4179
        %4181 = vmatprep.mubr.f32.mxu0 0.0
        %4182 = vmatmul.mubr.f32.gmra.mrb[0].mxu0 %v3714
        %v4183 = vpop.f32.mrb[0].mxu0
        %v4184 = vadd.f32 0.0, %v4183
        %v4185 = vpop.f32.mrb[0].mxu0
        %v4186 = vadd.f32 0.0, %v4185
        %4187 = vmatprep.mubr.f32.mxu0 0.0
        %4188 = vmatmul.mubr.f32.gmra.mrb[0].mxu0 %v3717
        %v4189 = vpop.f32.mrb[0].mxu0
        %v4190 = vadd.f32 0.0, %v4189
        %v4191 = vpop.f32.mrb[0].mxu0
        %v4192 = vadd.f32 0.0, %v4191
        %4193 = vmatprep.mubr.f32.mxu0 0.0
        %4194 = vmatmul.mubr.f32.gmra.mrb[0].mxu0 %v3720
        %v4195 = vpop.f32.mrb[0].mxu0
        %v4196 = vadd.f32 0.0, %v4195
        %v4197 = vpop.f32.mrb[0].mxu0
        %v4198 = vadd.f32 0.0, %v4197
        %4199 = vmatprep.mubr.f32.mxu0 0.0
        %4200 = vmatmul.mubr.f32.gmra.mrb[0].mxu0 %v3723
        %v4201 = vpop.f32.mrb[0].mxu0
        %v4202 = vadd.f32 0.0, %v4201
        %v4203 = vpop.f32.mrb[0].mxu0
        %v4204 = vadd.f32 0.0, %v4203
        %4205 = vmatprep.mubr.f32.mxu0 0.0
        %4206 = vmatmul.mubr.f32.gmra.mrb[0].mxu0 %v3726
        %v4207 = vpop.f32.mrb[0].mxu0
        %v4208 = vadd.f32 0.0, %v4207
        %v4209 = vpop.f32.mrb[0].mxu0
        %v4210 = vadd.f32 0.0, %v4209
        %4211 = vmatprep.mubr.f32.mxu0 0.0
        %4212 = vmatmul.mubr.f32.gmra.mrb[0].mxu0 %v3729
        %v4213 = vpop.f32.mrb[0].mxu0
        %v4214 = vadd.f32 0.0, %v4213
        %v4215 = vpop.f32.mrb[0].mxu0
        %v4216 = vadd.f32 0.0, %v4215
        %4217 = vmatprep.mubr.f32.mxu0 0.0
        %4218 = vmatmul.mubr.f32.gmra.mrb[0].mxu0 %v3732
        %v4219 = vpop.f32.mrb[0].mxu0
        %v4220 = vadd.f32 0.0, %v4219
        %v4221 = vpop.f32.mrb[0].mxu0
        %v4222 = vadd.f32 0.0, %v4221
        %4223 = vmatprep.mubr.f32.mxu0 0.0
        %4224 = vmatmul.mubr.f32.gmra.mrb[0].mxu0 %v3735
        %v4225 = vpop.f32.mrb[0].mxu0
        %v4226 = vadd.f32 0.0, %v4225
        %v4227 = vpop.f32.mrb[0].mxu0
        %v4228 = vadd.f32 0.0, %v4227
        %4229 = vmatprep.mubr.f32.mxu0 0.0
        %4230 = vmatmul.mubr.f32.gmra.mrb[0].mxu0 %v3738
        %v4231 = vpop.f32.mrb[0].mxu0
        %v4232 = vadd.f32 0.0, %v4231
        %v4233 = vpop.f32.mrb[0].mxu0
        %v4234 = vadd.f32 0.0, %v4233
        %4235 = vmatprep.mubr.f32.mxu0 0.0
        %4236 = vmatmul.mubr.f32.gmra.mrb[0].mxu0 %v3741
        %v4237 = vpop.f32.mrb[0].mxu0
        %v4238 = vadd.f32 0.0, %v4237
        %v4239 = vpop.f32.mrb[0].mxu0
        %v4240 = vadd.f32 0.0, %v4239
        %4241 = vmatprep.mubr.f32.mxu0 0.0
        %4242 = vmatmul.mubr.f32.gmra.mrb[0].mxu0 %v3744
        %v4243 = vpop.f32.mrb[0].mxu0
        %v4244 = vadd.f32 0.0, %v4243
        %v4245 = vpop.f32.mrb[0].mxu0
        %v4246 = vadd.f32 0.0, %v4245
        %4247 = vmatprep.mubr.f32.mxu0 0.0
        %4248 = vmatmul.mubr.f32.gmra.mrb[0].mxu0 %v3747
        %v4249 = vpop.f32.mrb[0].mxu0
        %v4250 = vadd.f32 0.0, %v4249
        %v4251 = vpop.f32.mrb[0].mxu0
        %v4252 = vadd.f32 0.0, %v4251
        %4253 = vmatprep.mubr.f32.mxu0 0.0
        %4254 = vmatmul.mubr.f32.gmra.mrb[0].mxu0 %v3750
        %v4255 = vpop.f32.mrb[0].mxu0
        %v4256 = vadd.f32 0.0, %v4255
        %v4257 = vpop.f32.mrb[0].mxu0
        %v4258 = vadd.f32 0.0, %v4257
        %4259 = vmatprep.mubr.f32.mxu0 0.0
        %4260 = vmatmul.mubr.f32.gmra.mrb[0].mxu0 %v3753
        %v4261 = vpop.f32.mrb[0].mxu0
        %v4262 = vadd.f32 0.0, %v4261
        %v4263 = vpop.f32.mrb[0].mxu0
        %v4264 = vadd.f32 0.0, %v4263
        %4265 = vmatprep.mubr.f32.mxu0 0.0
        %4266 = vmatmul.mubr.f32.gmra.mrb[0].mxu0 %v3756
        %v4267 = vpop.f32.mrb[0].mxu0
        %v4268 = vadd.f32 0.0, %v4267
        %v4269 = vpop.f32.mrb[0].mxu0
        %v4270 = vadd.f32 0.0, %v4269
        %4271 = vmatprep.mubr.f32.mxu0 0.0
        %4272 = vmatmul.mubr.f32.gmra.mrb[0].mxu0 %v3759
        %v4273 = vpop.f32.mrb[0].mxu0
        %v4274 = vadd.f32 0.0, %v4273
        %v4275 = vpop.f32.mrb[0].mxu0
        %v4276 = vadd.f32 0.0, %v4275
        %4277 = vmatprep.mubr.f32.mxu0 0.0
        %4278 = vmatmul.mubr.f32.gmra.mrb[0].mxu0 %v3762
        %v4279 = vpop.f32.mrb[0].mxu0
        %v4280 = vadd.f32 0.0, %v4279
        %v4281 = vpop.f32.mrb[0].mxu0
        %v4282 = vadd.f32 0.0, %v4281
        %4283 = vmatprep.mubr.f32.mxu0 0.0
        %4284 = vmatmul.mubr.f32.gmra.mrb[0].mxu0 %v3765
        %v4285 = vpop.f32.mrb[0].mxu0
        %v4286 = vadd.f32 0.0, %v4285
        %v4287 = vpop.f32.mrb[0].mxu0
        %v4288 = vadd.f32 0.0, %v4287
        %4289 = vmatprep.mubr.f32.mxu0 0.0
        %4290 = vmatmul.mubr.f32.gmra.mrb[0].mxu0 %v3768
        %v4291 = vpop.f32.mrb[0].mxu0
        %v4292 = vadd.f32 0.0, %v4291
        %v4293 = vpop.f32.mrb[0].mxu0
        %v4294 = vadd.f32 0.0, %v4293
        %4295 = vmatprep.mubr.f32.mxu0 0.0
        %4296 = vmatmul.mubr.f32.gmra.mrb[0].mxu0 %v3771
        %v4297 = vpop.f32.mrb[0].mxu0
        %v4298 = vadd.f32 0.0, %v4297
        %v4299 = vpop.f32.mrb[0].mxu0
        %v4300 = vadd.f32 0.0, %v4299
        %4301 = vmatprep.mubr.f32.mxu0 0.0
        %4302 = vmatmul.mubr.f32.gmra.mrb[0].mxu0 %v3774
        %v4303 = vpop.f32.mrb[0].mxu0
        %v4304 = vadd.f32 0.0, %v4303
        %v4305 = vpop.f32.mrb[0].mxu0
        %v4306 = vadd.f32 0.0, %v4305
        %4307 = vmatprep.mubr.f32.mxu0 0.0
        %4308 = vmatmul.mubr.f32.gmra.mrb[0].mxu0 %v3777
        %v4309 = vpop.f32.mrb[0].mxu0
        %v4310 = vadd.f32 0.0, %v4309
        %v4311 = vpop.f32.mrb[0].mxu0
        %v4312 = vadd.f32 0.0, %v4311
        %4313 = vmatprep.mubr.f32.mxu0 0.0
        %4314 = vmatmul.mubr.f32.gmra.mrb[0].mxu0 %v3780
        %v4315 = vpop.f32.mrb[0].mxu0
        %v4316 = vadd.f32 0.0, %v4315
        %v4317 = vpop.f32.mrb[0].mxu0
        %v4318 = vadd.f32 0.0, %v4317
        %4319 = vmatprep.mubr.f32.mxu0 0.0
        %4320 = vmatmul.mubr.f32.gmra.mrb[0].mxu0 %v3783
        %v4321 = vpop.f32.mrb[0].mxu0
        %v4322 = vadd.f32 0.0, %v4321
        %v4323 = vpop.f32.mrb[0].mxu0
        %v4324 = vadd.f32 0.0, %v4323
        %4325 = vmatprep.mubr.f32.mxu0 0.0
        %4326 = vmatmul.mubr.f32.gmra.mrb[0].mxu0 %v3786
        %v4327 = vpop.f32.mrb[0].mxu0
        %v4328 = vadd.f32 0.0, %v4327
        %v4329 = vpop.f32.mrb[0].mxu0
        %v4330 = vadd.f32 0.0, %v4329
        %4331 = vmatprep.mubr.f32.mxu0 0.0
        %4332 = vmatmul.mubr.f32.gmra.mrb[0].mxu0 %v3789
        %v4333 = vpop.f32.mrb[0].mxu0
        %v4334 = vadd.f32 0.0, %v4333
        %v4335 = vpop.f32.mrb[0].mxu0
        %v4336 = vadd.f32 0.0, %v4335
        %4337 = vmatprep.mubr.f32.mxu0 0.0
        %4338 = vmatmul.mubr.f32.gmra.mrb[0].mxu0 %v3792
        %v4339 = vpop.f32.mrb[0].mxu0
        %v4340 = vadd.f32 0.0, %v4339
        %v4341 = vpop.f32.mrb[0].mxu0
        %v4342 = vadd.f32 0.0, %v4341
        %4343 = vmatprep.mubr.f32.mxu0 0.0
        %4344 = vmatmul.mubr.f32.gmra.mrb[0].mxu0 %v3795
        %v4345 = vpop.f32.mrb[0].mxu0
        %v4346 = vadd.f32 0.0, %v4345
        %v4347 = vpop.f32.mrb[0].mxu0
        %v4348 = vadd.f32 0.0, %v4347
        %4349 = vmatprep.mubr.f32.mxu0 0.0
        %4350 = vmatmul.mubr.f32.gmra.mrb[0].mxu0 %v3798
        %v4351 = vpop.f32.mrb[0].mxu0
        %v4352 = vadd.f32 0.0, %v4351
        %v4353 = vpop.f32.mrb[0].mxu0
        %v4354 = vadd.f32 0.0, %v4353
        %4355 = vmatprep.mubr.f32.mxu0 0.0
        %4356 = vmatmul.mubr.f32.gmra.mrb[0].mxu0 %v3801
        %v4357 = vpop.f32.mrb[0].mxu0
        %v4358 = vadd.f32 0.0, %v4357
        %v4359 = vpop.f32.mrb[0].mxu0
        %v4360 = vadd.f32 0.0, %v4359
        %4361 = vmatprep.mubr.f32.mxu0 0.0
        %4362 = vmatmul.mubr.f32.gmra.mrb[0].mxu0 %v3804
        %v4363 = vpop.f32.mrb[0].mxu0
        %v4364 = vadd.f32 0.0, %v4363
        %v4365 = vpop.f32.mrb[0].mxu0
        %v4366 = vadd.f32 0.0, %v4365
        %4367 = vdwg.mxu0
        %v4368 = vadd.f32 %v3501, %v3873
        %v4369 = vadd.f32 %v3502, %v3875
        %v4370 = vadd.f32 %v3503, %v4154
        %v4371 = vadd.f32 %v3504, %v4156
        %v4372 = vadd.f32 %v3505, %v3879
        %v4373 = vadd.f32 %v3506, %v3881
        %v4374 = vadd.f32 %v3507, %v4160
        %v4375 = vadd.f32 %v3508, %v4162
        %v4376 = vadd.f32 %v3509, %v3885
        %v4377 = vadd.f32 %v3510, %v3887
        %v4378 = vadd.f32 %v3511, %v4166
        %v4379 = vadd.f32 %v3512, %v4168
        %v4380 = vadd.f32 %v3513, %v3891
        %v4381 = vadd.f32 %v3514, %v3893
        %v4382 = vadd.f32 %v3515, %v4172
        %v4383 = vadd.f32 %v3516, %v4174
        %v4384 = vadd.f32 %v3517, %v3897
        %v4385 = vadd.f32 %v3518, %v3899
        %v4386 = vadd.f32 %v3519, %v4178
        %v4387 = vadd.f32 %v3520, %v4180
        %v4388 = vadd.f32 %v3521, %v3903
        %v4389 = vadd.f32 %v3522, %v3905
        %v4390 = vadd.f32 %v3523, %v4184
        %v4391 = vadd.f32 %v3524, %v4186
        %v4392 = vadd.f32 %v3525, %v3909
        %v4393 = vadd.f32 %v3526, %v3911
        %v4394 = vadd.f32 %v3527, %v4190
        %v4395 = vadd.f32 %v3528, %v4192
        %v4396 = vadd.f32 %v3529, %v3915
        %v4397 = vadd.f32 %v3530, %v3917
        %v4398 = vadd.f32 %v3531, %v4196
        %v4399 = vadd.f32 %v3532, %v4198
        %v4400 = vadd.f32 %v3533, %v3921
        %v4401 = vadd.f32 %v3534, %v3923
        %v4402 = vadd.f32 %v3535, %v4202
        %v4403 = vadd.f32 %v3536, %v4204
        %v4404 = vadd.f32 %v3537, %v3927
        %v4405 = vadd.f32 %v3538, %v3929
        %v4406 = vadd.f32 %v3539, %v4208
        %v4407 = vadd.f32 %v3540, %v4210
        %v4408 = vadd.f32 %v3541, %v3933
        %v4409 = vadd.f32 %v3542, %v3935
        %v4410 = vadd.f32 %v3543, %v4214
        %v4411 = vadd.f32 %v3544, %v4216
        %v4412 = vadd.f32 %v3545, %v3939
        %v4413 = vadd.f32 %v3546, %v3941
        %v4414 = vadd.f32 %v3547, %v4220
        %v4415 = vadd.f32 %v3548, %v4222
        %v4416 = vadd.f32 %v3549, %v3945
        %v4417 = vadd.f32 %v3550, %v3947
        %v4418 = vadd.f32 %v3551, %v4226
        %v4419 = vadd.f32 %v3552, %v4228
        %v4420 = vadd.f32 %v3553, %v3951
        %v4421 = vadd.f32 %v3554, %v3953
        %v4422 = vadd.f32 %v3555, %v4232
        %v4423 = vadd.f32 %v3556, %v4234
        %v4424 = vadd.f32 %v3557, %v3957
        %v4425 = vadd.f32 %v3558, %v3959
        %v4426 = vadd.f32 %v3559, %v4238
        %v4427 = vadd.f32 %v3560, %v4240
        %v4428 = vadd.f32 %v3561, %v3963
        %v4429 = vadd.f32 %v3562, %v3965
        %v4430 = vadd.f32 %v3563, %v4244
        %v4431 = vadd.f32 %v3564, %v4246
        %v4432 = vadd.f32 %v3565, %v3969
        %v4433 = vadd.f32 %v3566, %v3971
        %v4434 = vadd.f32 %v3567, %v4250
        %v4435 = vadd.f32 %v3568, %v4252
        %v4436 = vadd.f32 %v3569, %v3975
        %v4437 = vadd.f32 %v3570, %v3977
        %v4438 = vadd.f32 %v3571, %v4256
        %v4439 = vadd.f32 %v3572, %v4258
        %v4440 = vadd.f32 %v3573, %v3981
        %v4441 = vadd.f32 %v3574, %v3983
        %v4442 = vadd.f32 %v3575, %v4262
        %v4443 = vadd.f32 %v3576, %v4264
        %v4444 = vadd.f32 %v3577, %v3987
        %v4445 = vadd.f32 %v3578, %v3989
        %v4446 = vadd.f32 %v3579, %v4268
        %v4447 = vadd.f32 %v3580, %v4270
        %v4448 = vadd.f32 %v3581, %v3993
        %v4449 = vadd.f32 %v3582, %v3995
        %v4450 = vadd.f32 %v3583, %v4274
        %v4451 = vadd.f32 %v3584, %v4276
        %v4452 = vadd.f32 %v3585, %v3999
        %v4453 = vadd.f32 %v3586, %v4001
        %v4454 = vadd.f32 %v3587, %v4280
        %v4455 = vadd.f32 %v3588, %v4282
        %v4456 = vadd.f32 %v3589, %v4005
        %v4457 = vadd.f32 %v3590, %v4007
        %v4458 = vadd.f32 %v3591, %v4286
        %v4459 = vadd.f32 %v3592, %v4288
        %v4460 = vadd.f32 %v3593, %v4011
        %v4461 = vadd.f32 %v3594, %v4013
        %v4462 = vadd.f32 %v3595, %v4292
        %v4463 = vadd.f32 %v3596, %v4294
        %v4464 = vadd.f32 %v3597, %v4017
        %v4465 = vadd.f32 %v3598, %v4019
        %v4466 = vadd.f32 %v3599, %v4298
        %v4467 = vadd.f32 %v3600, %v4300
        %v4468 = vadd.f32 %v3601, %v4023
        %v4469 = vadd.f32 %v3602, %v4025
        %v4470 = vadd.f32 %v3603, %v4304
        %v4471 = vadd.f32 %v3604, %v4306
        %v4472 = vadd.f32 %v3605, %v4029
        %v4473 = vadd.f32 %v3606, %v4031
        %v4474 = vadd.f32 %v3607, %v4310
        %v4475 = vadd.f32 %v3608, %v4312
        %v4476 = vadd.f32 %v3609, %v4035
        %v4477 = vadd.f32 %v3610, %v4037
        %v4478 = vadd.f32 %v3611, %v4316
        %v4479 = vadd.f32 %v3612, %v4318
        %v4480 = vadd.f32 %v3613, %v4041
        %v4481 = vadd.f32 %v3614, %v4043
        %v4482 = vadd.f32 %v3615, %v4322
        %v4483 = vadd.f32 %v3616, %v4324
        %v4484 = vadd.f32 %v3617, %v4047
        %v4485 = vadd.f32 %v3618, %v4049
        %v4486 = vadd.f32 %v3619, %v4328
        %v4487 = vadd.f32 %v3620, %v4330
        %v4488 = vadd.f32 %v3621, %v4053
        %v4489 = vadd.f32 %v3622, %v4055
        %v4490 = vadd.f32 %v3623, %v4334
        %v4491 = vadd.f32 %v3624, %v4336
        %v4492 = vadd.f32 %v3625, %v4059
        %v4493 = vadd.f32 %v3626, %v4061
        %v4494 = vadd.f32 %v3627, %v4340
        %v4495 = vadd.f32 %v3628, %v4342
        %v4496 = vadd.f32 %v3629, %v4065
        %v4497 = vadd.f32 %v3630, %v4067
        %v4498 = vadd.f32 %v3631, %v4346
        %v4499 = vadd.f32 %v3632, %v4348
        %v4500 = vadd.f32 %v3633, %v4071
        %v4501 = vadd.f32 %v3634, %v4073
        %v4502 = vadd.f32 %v3635, %v4352
        %v4503 = vadd.f32 %v3636, %v4354
        %v4504 = vadd.f32 %v3637, %v4077
        %v4505 = vadd.f32 %v3638, %v4079
        %v4506 = vadd.f32 %v3639, %v4358
        %v4507 = vadd.f32 %v3640, %v4360
        %v4508 = vadd.f32 %v3641, %v4083
        %v4509 = vadd.f32 %v3642, %v4085
        %v4510 = vadd.f32 %v3643, %v4364
        %v4511 = vadd.f32 %v3644, %v4366
        %v4512 = vld [vmem:[%s454 + $0x14] sm:$0xff]
        %v4513 = vld [vmem:[%s454 + $0x1c] sm:$0xff]
        %v4514 = vld [vmem:[%s454 + $0x24] sm:$0xff]
        %v4515 = vld [vmem:[%s454 + $0x2c] sm:$0xff]
        %v4516 = vld [vmem:[%s454 + $0x34] sm:$0xff]
        %v4517 = vld [vmem:[%s454 + $0x3c] sm:$0xff]
        %v4518 = vld [vmem:[%s454 + $0x44] sm:$0xff]
        %v4519 = vld [vmem:[%s454 + $0x4c] sm:$0xff]
        %v4520 = vld [vmem:[%s454 + $0x54] sm:$0xff]
        %v4521 = vld [vmem:[%s454 + $0x5c] sm:$0xff]
        %v4522 = vld [vmem:[%s454 + $0x64] sm:$0xff]
        %v4523 = vld [vmem:[%s454 + $0x6c] sm:$0xff]
        %v4524 = vld [vmem:[%s454 + $0x74] sm:$0xff]
        %v4525 = vld [vmem:[%s454 + $0x7c] sm:$0xff]
        %v4526 = vld [vmem:[%s454 + $0x84] sm:$0xff]
        %v4527 = vld [vmem:[%s454 + $0x8c] sm:$0xff]
        %v4528 = vld [vmem:[%s454 + $0x94] sm:$0xff]
        %v4529 = vld [vmem:[%s454 + $0x9c] sm:$0xff]
        %v4530 = vld [vmem:[%s454 + $0xa4] sm:$0xff]
        %v4531 = vld [vmem:[%s454 + $0xac] sm:$0xff]
        %v4532 = vld [vmem:[%s454 + $0xb4] sm:$0xff]
        %v4533 = vld [vmem:[%s454 + $0xbc] sm:$0xff]
        %v4534 = vld [vmem:[%s454 + $0xc4] sm:$0xff]
        %v4535 = vld [vmem:[%s454 + $0xcc] sm:$0xff]
        %v4536 = vld [vmem:[%s454 + $0xd4] sm:$0xff]
        %v4537 = vld [vmem:[%s454 + $0xdc] sm:$0xff]
        %v4538 = vld [vmem:[%s454 + $0xe4] sm:$0xff]
        %v4539 = vld [vmem:[%s454 + $0xec] sm:$0xff]
        %v4540 = vld [vmem:[%s454 + $0xf4] sm:$0xff]
        %v4541 = vld [vmem:[%s454 + $0xfc] sm:$0xff]
        %v4542 = vld [vmem:[%s454 + $0x104] sm:$0xff]
        %v4543 = vld [vmem:[%s454 + $0x10c] sm:$0xff]
        %v4544 = vld [vmem:[%s454 + $0x114] sm:$0xff]
        %v4545 = vld [vmem:[%s454 + $0x11c] sm:$0xff]
        %v4546 = vld [vmem:[%s454 + $0x124] sm:$0xff]
        %v4547 = vld [vmem:[%s454 + $0x12c] sm:$0xff]
        %s4548 = scalar_lea.vmem %s1, 640
        %v4549 = vld [vmem:[%s4548] sm:$0xff]
        %v4550 = vld [vmem:[%s4548 + $0x8] sm:$0xff]
        %v4551 = vld [vmem:[%s4548 + $0x10] sm:$0xff]
        %v4552 = vld [vmem:[%s4548 + $0x18] sm:$0xff]
        %v4553 = vld [vmem:[%s4548 + $0x20] sm:$0xff]
        %v4554 = vld [vmem:[%s4548 + $0x28] sm:$0xff]
        %v4555 = vld [vmem:[%s4548 + $0x30] sm:$0xff]
        %v4556 = vld [vmem:[%s4548 + $0x38] sm:$0xff]
        %v4557 = vld [vmem:[%s4548 + $0x40] sm:$0xff]
        %v4558 = vld [vmem:[%s4548 + $0x48] sm:$0xff]
        %v4559 = vld [vmem:[%s4548 + $0x50] sm:$0xff]
        %v4560 = vld [vmem:[%s4548 + $0x58] sm:$0xff]
        %v4561 = vld [vmem:[%s4548 + $0x60] sm:$0xff]
        %v4562 = vld [vmem:[%s4548 + $0x68] sm:$0xff]
        %v4563 = vld [vmem:[%s4548 + $0x70] sm:$0xff]
        %v4564 = vld [vmem:[%s4548 + $0x78] sm:$0xff]
        %v4566 = vsel %vm570, %v4512, 0
        %v4569 = vsel %vm570, %v4513, 0
        %v4572 = vsel %vm570, %v4514, 0
        %v4575 = vsel %vm570, %v4515, 0
        %v4578 = vsel %vm570, %v4516, 0
        %v4581 = vsel %vm570, %v4517, 0
        %v4584 = vsel %vm570, %v4518, 0
        %v4587 = vsel %vm570, %v4519, 0
        %v4590 = vsel %vm570, %v4520, 0
        %v4593 = vsel %vm570, %v4521, 0
        %v4596 = vsel %vm570, %v4522, 0
        %v4599 = vsel %vm570, %v4523, 0
        %v4602 = vsel %vm570, %v4524, 0
        %v4605 = vsel %vm570, %v4525, 0
        %v4608 = vsel %vm570, %v4526, 0
        %v4611 = vsel %vm570, %v4527, 0
        %v4614 = vsel %vm570, %v4528, 0
        %v4617 = vsel %vm570, %v4529, 0
        %v4620 = vsel %vm570, %v4530, 0
        %v4623 = vsel %vm570, %v4531, 0
        %v4626 = vsel %vm570, %v4532, 0
        %v4629 = vsel %vm570, %v4533, 0
        %v4632 = vsel %vm570, %v4534, 0
        %v4635 = vsel %vm570, %v4535, 0
        %v4638 = vsel %vm570, %v4536, 0
        %v4641 = vsel %vm570, %v4537, 0
        %v4644 = vsel %vm570, %v4538, 0
        %v4647 = vsel %vm570, %v4539, 0
        %v4650 = vsel %vm570, %v4540, 0
        %v4653 = vsel %vm570, %v4541, 0
        %v4656 = vsel %vm570, %v4542, 0
        %v4659 = vsel %vm570, %v4543, 0
        %v4662 = vsel %vm570, %v4544, 0
        %v4665 = vsel %vm570, %v4545, 0
        %v4668 = vsel %vm570, %v4546, 0
        %v4671 = vsel %vm570, %v4547, 0
        %4673 = vmatprep.subr.mxu0 %v4550
        %4674 = vmatpush1.msra.mxu0 %v4549
        %4675 = vmatprep.subr.mxu0 %v4554
        %4676 = vmatpush1.msra.mxu0 %v4553
        %4677 = vmatprep.subr.mxu0 %v4558
        %4678 = vmatpush1.msra.mxu0 %v4557
        %4679 = vmatprep.subr.mxu0 %v4562
        %4680 = vmatpush1.msra.mxu0 %v4561
        %4681 = vmatprep.subr.mxu0 0.0
        %4682 = vmatpush1.msra.mxu0 0.0
        %4683 = vmatprep.subr.mxu0 0.0
        %4684 = vmatpush1.msra.mxu0 0.0
        %4685 = vmatprep.subr.mxu0 0.0
        %4686 = vmatpush1.msra.mxu0 0.0
        %4687 = vmatprep.subr.mxu0 0.0
        %4688 = vmatpush1.msra.mxu0 0.0
        %4689 = vmatprep.subr.mxu0 0.0
        %4690 = vmatpush1.msra.mxu0 0.0
        %4691 = vmatprep.subr.mxu0 0.0
        %4692 = vmatpush1.msra.mxu0 0.0
        %4693 = vmatprep.subr.mxu0 0.0
        %4694 = vmatpush1.msra.mxu0 0.0
        %4695 = vmatprep.subr.mxu0 0.0
        %4696 = vmatpush1.msra.mxu0 0.0
        %4697 = vmatprep.subr.mxu0 0.0
        %4698 = vmatpush1.msra.mxu0 0.0
        %4699 = vmatprep.subr.mxu0 0.0
        %4700 = vmatpush1.msra.mxu0 0.0
        %4701 = vmatprep.subr.mxu0 0.0
        %4702 = vmatpush1.msra.mxu0 0.0
        %4703 = vmatprep.subr.mxu0 0.0
        %4704 = vmatpush1.msra.mxu0 0.0
        %4705 = vmatprep.subr.mxu0 0.0
        %4706 = vmatpush1.msra.mxu0 0.0
        %4707 = vmatprep.subr.mxu0 0.0
        %4708 = vmatpush1.msra.mxu0 0.0
        %4709 = vmatprep.subr.mxu0 0.0
        %4710 = vmatpush1.msra.mxu0 0.0
        %4711 = vmatprep.subr.mxu0 0.0
        %4712 = vmatpush1.msra.mxu0 0.0
        %4713 = vmatprep.subr.mxu0 0.0
        %4714 = vmatpush1.msra.mxu0 0.0
        %4715 = vmatprep.subr.mxu0 0.0
        %4716 = vmatpush1.msra.mxu0 0.0
        %4717 = vmatprep.subr.mxu0 0.0
        %4718 = vmatpush1.msra.mxu0 0.0
        %4719 = vmatprep.subr.mxu0 0.0
        %4720 = vmatpush1.msra.mxu0 0.0
        %4721 = vmatprep.subr.mxu0 0.0
        %4722 = vmatpush1.msra.mxu0 0.0
        %4723 = vmatprep.subr.mxu0 0.0
        %4724 = vmatpush1.msra.mxu0 0.0
        %4725 = vmatprep.subr.mxu0 0.0
        %4726 = vmatpush1.msra.mxu0 0.0
        %4727 = vmatprep.subr.mxu0 0.0
        %4728 = vmatpush1.msra.mxu0 0.0
        %4729 = vmatprep.subr.mxu0 0.0
        %4730 = vmatpush1.msra.mxu0 0.0
        %4731 = vmatprep.subr.mxu0 0.0
        %4732 = vmatpush1.msra.mxu0 0.0
        %4733 = vmatprep.subr.mxu0 0.0
        %4734 = vmatpush1.msra.mxu0 0.0
        %4735 = vmatprep.subr.mxu0 0.0
        %4736 = vmatpush1.msra.mxu0 0.0
        %4737 = vmatprep.mubr.f32.mxu0 0.0
        %4738 = vmatmul.mubr.f32.gmra.mrb[0].mxu0 %v4566
        %v4739 = vpop.f32.mrb[0].mxu0
        %v4740 = vadd.f32 0.0, %v4739
        %v4741 = vpop.f32.mrb[0].mxu0
        %v4742 = vadd.f32 0.0, %v4741
        %4743 = vmatprep.mubr.f32.mxu0 0.0
        %4744 = vmatmul.mubr.f32.gmra.mrb[0].mxu0 %v4569
        %v4745 = vpop.f32.mrb[0].mxu0
        %v4746 = vadd.f32 0.0, %v4745
        %v4747 = vpop.f32.mrb[0].mxu0
        %v4748 = vadd.f32 0.0, %v4747
        %4749 = vmatprep.mubr.f32.mxu0 0.0
        %4750 = vmatmul.mubr.f32.gmra.mrb[0].mxu0 %v4572
        %v4751 = vpop.f32.mrb[0].mxu0
        %v4752 = vadd.f32 0.0, %v4751
        %v4753 = vpop.f32.mrb[0].mxu0
        %v4754 = vadd.f32 0.0, %v4753
        %4755 = vmatprep.mubr.f32.mxu0 0.0
        %4756 = vmatmul.mubr.f32.gmra.mrb[0].mxu0 %v4575
        %v4757 = vpop.f32.mrb[0].mxu0
        %v4758 = vadd.f32 0.0, %v4757
        %v4759 = vpop.f32.mrb[0].mxu0
        %v4760 = vadd.f32 0.0, %v4759
        %4761 = vmatprep.mubr.f32.mxu0 0.0
        %4762 = vmatmul.mubr.f32.gmra.mrb[0].mxu0 %v4578
        %v4763 = vpop.f32.mrb[0].mxu0
        %v4764 = vadd.f32 0.0, %v4763
        %v4765 = vpop.f32.mrb[0].mxu0
        %v4766 = vadd.f32 0.0, %v4765
        %4767 = vmatprep.mubr.f32.mxu0 0.0
        %4768 = vmatmul.mubr.f32.gmra.mrb[0].mxu0 %v4581
        %v4769 = vpop.f32.mrb[0].mxu0
        %v4770 = vadd.f32 0.0, %v4769
        %v4771 = vpop.f32.mrb[0].mxu0
        %v4772 = vadd.f32 0.0, %v4771
        %4773 = vmatprep.mubr.f32.mxu0 0.0
        %4774 = vmatmul.mubr.f32.gmra.mrb[0].mxu0 %v4584
        %v4775 = vpop.f32.mrb[0].mxu0
        %v4776 = vadd.f32 0.0, %v4775
        %v4777 = vpop.f32.mrb[0].mxu0
        %v4778 = vadd.f32 0.0, %v4777
        %4779 = vmatprep.mubr.f32.mxu0 0.0
        %4780 = vmatmul.mubr.f32.gmra.mrb[0].mxu0 %v4587
        %v4781 = vpop.f32.mrb[0].mxu0
        %v4782 = vadd.f32 0.0, %v4781
        %v4783 = vpop.f32.mrb[0].mxu0
        %v4784 = vadd.f32 0.0, %v4783
        %4785 = vmatprep.mubr.f32.mxu0 0.0
        %4786 = vmatmul.mubr.f32.gmra.mrb[0].mxu0 %v4590
        %v4787 = vpop.f32.mrb[0].mxu0
        %v4788 = vadd.f32 0.0, %v4787
        %v4789 = vpop.f32.mrb[0].mxu0
        %v4790 = vadd.f32 0.0, %v4789
        %4791 = vmatprep.mubr.f32.mxu0 0.0
        %4792 = vmatmul.mubr.f32.gmra.mrb[0].mxu0 %v4593
        %v4793 = vpop.f32.mrb[0].mxu0
        %v4794 = vadd.f32 0.0, %v4793
        %v4795 = vpop.f32.mrb[0].mxu0
        %v4796 = vadd.f32 0.0, %v4795
        %4797 = vmatprep.mubr.f32.mxu0 0.0
        %4798 = vmatmul.mubr.f32.gmra.mrb[0].mxu0 %v4596
        %v4799 = vpop.f32.mrb[0].mxu0
        %v4800 = vadd.f32 0.0, %v4799
        %v4801 = vpop.f32.mrb[0].mxu0
        %v4802 = vadd.f32 0.0, %v4801
        %4803 = vmatprep.mubr.f32.mxu0 0.0
        %4804 = vmatmul.mubr.f32.gmra.mrb[0].mxu0 %v4599
        %v4805 = vpop.f32.mrb[0].mxu0
        %v4806 = vadd.f32 0.0, %v4805
        %v4807 = vpop.f32.mrb[0].mxu0
        %v4808 = vadd.f32 0.0, %v4807
        %4809 = vmatprep.mubr.f32.mxu0 0.0
        %4810 = vmatmul.mubr.f32.gmra.mrb[0].mxu0 %v4602
        %v4811 = vpop.f32.mrb[0].mxu0
        %v4812 = vadd.f32 0.0, %v4811
        %v4813 = vpop.f32.mrb[0].mxu0
        %v4814 = vadd.f32 0.0, %v4813
        %4815 = vmatprep.mubr.f32.mxu0 0.0
        %4816 = vmatmul.mubr.f32.gmra.mrb[0].mxu0 %v4605
        %v4817 = vpop.f32.mrb[0].mxu0
        %v4818 = vadd.f32 0.0, %v4817
        %v4819 = vpop.f32.mrb[0].mxu0
        %v4820 = vadd.f32 0.0, %v4819
        %4821 = vmatprep.mubr.f32.mxu0 0.0
        %4822 = vmatmul.mubr.f32.gmra.mrb[0].mxu0 %v4608
        %v4823 = vpop.f32.mrb[0].mxu0
        %v4824 = vadd.f32 0.0, %v4823
        %v4825 = vpop.f32.mrb[0].mxu0
        %v4826 = vadd.f32 0.0, %v4825
        %4827 = vmatprep.mubr.f32.mxu0 0.0
        %4828 = vmatmul.mubr.f32.gmra.mrb[0].mxu0 %v4611
        %v4829 = vpop.f32.mrb[0].mxu0
        %v4830 = vadd.f32 0.0, %v4829
        %v4831 = vpop.f32.mrb[0].mxu0
        %v4832 = vadd.f32 0.0, %v4831
        %4833 = vmatprep.mubr.f32.mxu0 0.0
        %4834 = vmatmul.mubr.f32.gmra.mrb[0].mxu0 %v4614
        %v4835 = vpop.f32.mrb[0].mxu0
        %v4836 = vadd.f32 0.0, %v4835
        %v4837 = vpop.f32.mrb[0].mxu0
        %v4838 = vadd.f32 0.0, %v4837
        %4839 = vmatprep.mubr.f32.mxu0 0.0
        %4840 = vmatmul.mubr.f32.gmra.mrb[0].mxu0 %v4617
        %v4841 = vpop.f32.mrb[0].mxu0
        %v4842 = vadd.f32 0.0, %v4841
        %v4843 = vpop.f32.mrb[0].mxu0
        %v4844 = vadd.f32 0.0, %v4843
        %4845 = vmatprep.mubr.f32.mxu0 0.0
        %4846 = vmatmul.mubr.f32.gmra.mrb[0].mxu0 %v4620
        %v4847 = vpop.f32.mrb[0].mxu0
        %v4848 = vadd.f32 0.0, %v4847
        %v4849 = vpop.f32.mrb[0].mxu0
        %v4850 = vadd.f32 0.0, %v4849
        %4851 = vmatprep.mubr.f32.mxu0 0.0
        %4852 = vmatmul.mubr.f32.gmra.mrb[0].mxu0 %v4623
        %v4853 = vpop.f32.mrb[0].mxu0
        %v4854 = vadd.f32 0.0, %v4853
        %v4855 = vpop.f32.mrb[0].mxu0
        %v4856 = vadd.f32 0.0, %v4855
        %4857 = vmatprep.mubr.f32.mxu0 0.0
        %4858 = vmatmul.mubr.f32.gmra.mrb[0].mxu0 %v4626
        %v4859 = vpop.f32.mrb[0].mxu0
        %v4860 = vadd.f32 0.0, %v4859
        %v4861 = vpop.f32.mrb[0].mxu0
        %v4862 = vadd.f32 0.0, %v4861
        %4863 = vmatprep.mubr.f32.mxu0 0.0
        %4864 = vmatmul.mubr.f32.gmra.mrb[0].mxu0 %v4629
        %v4865 = vpop.f32.mrb[0].mxu0
        %v4866 = vadd.f32 0.0, %v4865
        %v4867 = vpop.f32.mrb[0].mxu0
        %v4868 = vadd.f32 0.0, %v4867
        %4869 = vmatprep.mubr.f32.mxu0 0.0
        %4870 = vmatmul.mubr.f32.gmra.mrb[0].mxu0 %v4632
        %v4871 = vpop.f32.mrb[0].mxu0
        %v4872 = vadd.f32 0.0, %v4871
        %v4873 = vpop.f32.mrb[0].mxu0
        %v4874 = vadd.f32 0.0, %v4873
        %4875 = vmatprep.mubr.f32.mxu0 0.0
        %4876 = vmatmul.mubr.f32.gmra.mrb[0].mxu0 %v4635
        %v4877 = vpop.f32.mrb[0].mxu0
        %v4878 = vadd.f32 0.0, %v4877
        %v4879 = vpop.f32.mrb[0].mxu0
        %v4880 = vadd.f32 0.0, %v4879
        %4881 = vmatprep.mubr.f32.mxu0 0.0
        %4882 = vmatmul.mubr.f32.gmra.mrb[0].mxu0 %v4638
        %v4883 = vpop.f32.mrb[0].mxu0
        %v4884 = vadd.f32 0.0, %v4883
        %v4885 = vpop.f32.mrb[0].mxu0
        %v4886 = vadd.f32 0.0, %v4885
        %4887 = vmatprep.mubr.f32.mxu0 0.0
        %4888 = vmatmul.mubr.f32.gmra.mrb[0].mxu0 %v4641
        %v4889 = vpop.f32.mrb[0].mxu0
        %v4890 = vadd.f32 0.0, %v4889
        %v4891 = vpop.f32.mrb[0].mxu0
        %v4892 = vadd.f32 0.0, %v4891
        %4893 = vmatprep.mubr.f32.mxu0 0.0
        %4894 = vmatmul.mubr.f32.gmra.mrb[0].mxu0 %v4644
        %v4895 = vpop.f32.mrb[0].mxu0
        %v4896 = vadd.f32 0.0, %v4895
        %v4897 = vpop.f32.mrb[0].mxu0
        %v4898 = vadd.f32 0.0, %v4897
        %4899 = vmatprep.mubr.f32.mxu0 0.0
        %4900 = vmatmul.mubr.f32.gmra.mrb[0].mxu0 %v4647
        %v4901 = vpop.f32.mrb[0].mxu0
        %v4902 = vadd.f32 0.0, %v4901
        %v4903 = vpop.f32.mrb[0].mxu0
        %v4904 = vadd.f32 0.0, %v4903
        %4905 = vmatprep.mubr.f32.mxu0 0.0
        %4906 = vmatmul.mubr.f32.gmra.mrb[0].mxu0 %v4650
        %v4907 = vpop.f32.mrb[0].mxu0
        %v4908 = vadd.f32 0.0, %v4907
        %v4909 = vpop.f32.mrb[0].mxu0
        %v4910 = vadd.f32 0.0, %v4909
        %4911 = vmatprep.mubr.f32.mxu0 0.0
        %4912 = vmatmul.mubr.f32.gmra.mrb[0].mxu0 %v4653
        %v4913 = vpop.f32.mrb[0].mxu0
        %v4914 = vadd.f32 0.0, %v4913
        %v4915 = vpop.f32.mrb[0].mxu0
        %v4916 = vadd.f32 0.0, %v4915
        %4917 = vmatprep.mubr.f32.mxu0 0.0
        %4918 = vmatmul.mubr.f32.gmra.mrb[0].mxu0 %v4656
        %v4919 = vpop.f32.mrb[0].mxu0
        %v4920 = vadd.f32 0.0, %v4919
        %v4921 = vpop.f32.mrb[0].mxu0
        %v4922 = vadd.f32 0.0, %v4921
        %4923 = vmatprep.mubr.f32.mxu0 0.0
        %4924 = vmatmul.mubr.f32.gmra.mrb[0].mxu0 %v4659
        %v4925 = vpop.f32.mrb[0].mxu0
        %v4926 = vadd.f32 0.0, %v4925
        %v4927 = vpop.f32.mrb[0].mxu0
        %v4928 = vadd.f32 0.0, %v4927
        %4929 = vmatprep.mubr.f32.mxu0 0.0
        %4930 = vmatmul.mubr.f32.gmra.mrb[0].mxu0 %v4662
        %v4931 = vpop.f32.mrb[0].mxu0
        %v4932 = vadd.f32 0.0, %v4931
        %v4933 = vpop.f32.mrb[0].mxu0
        %v4934 = vadd.f32 0.0, %v4933
        %4935 = vmatprep.mubr.f32.mxu0 0.0
        %4936 = vmatmul.mubr.f32.gmra.mrb[0].mxu0 %v4665
        %v4937 = vpop.f32.mrb[0].mxu0
        %v4938 = vadd.f32 0.0, %v4937
        %v4939 = vpop.f32.mrb[0].mxu0
        %v4940 = vadd.f32 0.0, %v4939
        %4941 = vmatprep.mubr.f32.mxu0 0.0
        %4942 = vmatmul.mubr.f32.gmra.mrb[0].mxu0 %v4668
        %v4943 = vpop.f32.mrb[0].mxu0
        %v4944 = vadd.f32 0.0, %v4943
        %v4945 = vpop.f32.mrb[0].mxu0
        %v4946 = vadd.f32 0.0, %v4945
        %4947 = vmatprep.mubr.f32.mxu0 0.0
        %4948 = vmatmul.mubr.f32.gmra.mrb[0].mxu0 %v4671
        %v4949 = vpop.f32.mrb[0].mxu0
        %v4950 = vadd.f32 0.0, %v4949
        %v4951 = vpop.f32.mrb[0].mxu0
        %v4952 = vadd.f32 0.0, %v4951
        %4953 = vdwg.mxu0
        %4954 = vmatprep.subr.mxu0 %v4552
        %4955 = vmatpush1.msra.mxu0 %v4551
        %4956 = vmatprep.subr.mxu0 %v4556
        %4957 = vmatpush1.msra.mxu0 %v4555
        %4958 = vmatprep.subr.mxu0 %v4560
        %4959 = vmatpush1.msra.mxu0 %v4559
        %4960 = vmatprep.subr.mxu0 %v4564
        %4961 = vmatpush1.msra.mxu0 %v4563
        %4962 = vmatprep.subr.mxu0 0.0
        %4963 = vmatpush1.msra.mxu0 0.0
        %4964 = vmatprep.subr.mxu0 0.0
        %4965 = vmatpush1.msra.mxu0 0.0
        %4966 = vmatprep.subr.mxu0 0.0
        %4967 = vmatpush1.msra.mxu0 0.0
        %4968 = vmatprep.subr.mxu0 0.0
        %4969 = vmatpush1.msra.mxu0 0.0
        %4970 = vmatprep.subr.mxu0 0.0
        %4971 = vmatpush1.msra.mxu0 0.0
        %4972 = vmatprep.subr.mxu0 0.0
        %4973 = vmatpush1.msra.mxu0 0.0
        %4974 = vmatprep.subr.mxu0 0.0
        %4975 = vmatpush1.msra.mxu0 0.0
        %4976 = vmatprep.subr.mxu0 0.0
        %4977 = vmatpush1.msra.mxu0 0.0
        %4978 = vmatprep.subr.mxu0 0.0
        %4979 = vmatpush1.msra.mxu0 0.0
        %4980 = vmatprep.subr.mxu0 0.0
        %4981 = vmatpush1.msra.mxu0 0.0
        %4982 = vmatprep.subr.mxu0 0.0
        %4983 = vmatpush1.msra.mxu0 0.0
        %4984 = vmatprep.subr.mxu0 0.0
        %4985 = vmatpush1.msra.mxu0 0.0
        %4986 = vmatprep.subr.mxu0 0.0
        %4987 = vmatpush1.msra.mxu0 0.0
        %4988 = vmatprep.subr.mxu0 0.0
        %4989 = vmatpush1.msra.mxu0 0.0
        %4990 = vmatprep.subr.mxu0 0.0
        %4991 = vmatpush1.msra.mxu0 0.0
        %4992 = vmatprep.subr.mxu0 0.0
        %4993 = vmatpush1.msra.mxu0 0.0
        %4994 = vmatprep.subr.mxu0 0.0
        %4995 = vmatpush1.msra.mxu0 0.0
        %4996 = vmatprep.subr.mxu0 0.0
        %4997 = vmatpush1.msra.mxu0 0.0
        %4998 = vmatprep.subr.mxu0 0.0
        %4999 = vmatpush1.msra.mxu0 0.0
        %5000 = vmatprep.subr.mxu0 0.0
        %5001 = vmatpush1.msra.mxu0 0.0
        %5002 = vmatprep.subr.mxu0 0.0
        %5003 = vmatpush1.msra.mxu0 0.0
        %5004 = vmatprep.subr.mxu0 0.0
        %5005 = vmatpush1.msra.mxu0 0.0
        %5006 = vmatprep.subr.mxu0 0.0
        %5007 = vmatpush1.msra.mxu0 0.0
        %5008 = vmatprep.subr.mxu0 0.0
        %5009 = vmatpush1.msra.mxu0 0.0
        %5010 = vmatprep.subr.mxu0 0.0
        %5011 = vmatpush1.msra.mxu0 0.0
        %5012 = vmatprep.subr.mxu0 0.0
        %5013 = vmatpush1.msra.mxu0 0.0
        %5014 = vmatprep.subr.mxu0 0.0
        %5015 = vmatpush1.msra.mxu0 0.0
        %5016 = vmatprep.subr.mxu0 0.0
        %5017 = vmatpush1.msra.mxu0 0.0
        %5018 = vmatprep.mubr.f32.mxu0 0.0
        %5019 = vmatmul.mubr.f32.gmra.mrb[0].mxu0 %v4566
        %v5020 = vpop.f32.mrb[0].mxu0
        %v5021 = vadd.f32 0.0, %v5020
        %v5022 = vpop.f32.mrb[0].mxu0
        %v5023 = vadd.f32 0.0, %v5022
        %5024 = vmatprep.mubr.f32.mxu0 0.0
        %5025 = vmatmul.mubr.f32.gmra.mrb[0].mxu0 %v4569
        %v5026 = vpop.f32.mrb[0].mxu0
        %v5027 = vadd.f32 0.0, %v5026
        %v5028 = vpop.f32.mrb[0].mxu0
        %v5029 = vadd.f32 0.0, %v5028
        %5030 = vmatprep.mubr.f32.mxu0 0.0
        %5031 = vmatmul.mubr.f32.gmra.mrb[0].mxu0 %v4572
        %v5032 = vpop.f32.mrb[0].mxu0
        %v5033 = vadd.f32 0.0, %v5032
        %v5034 = vpop.f32.mrb[0].mxu0
        %v5035 = vadd.f32 0.0, %v5034
        %5036 = vmatprep.mubr.f32.mxu0 0.0
        %5037 = vmatmul.mubr.f32.gmra.mrb[0].mxu0 %v4575
        %v5038 = vpop.f32.mrb[0].mxu0
        %v5039 = vadd.f32 0.0, %v5038
        %v5040 = vpop.f32.mrb[0].mxu0
        %v5041 = vadd.f32 0.0, %v5040
        %5042 = vmatprep.mubr.f32.mxu0 0.0
        %5043 = vmatmul.mubr.f32.gmra.mrb[0].mxu0 %v4578
        %v5044 = vpop.f32.mrb[0].mxu0
        %v5045 = vadd.f32 0.0, %v5044
        %v5046 = vpop.f32.mrb[0].mxu0
        %v5047 = vadd.f32 0.0, %v5046
        %5048 = vmatprep.mubr.f32.mxu0 0.0
        %5049 = vmatmul.mubr.f32.gmra.mrb[0].mxu0 %v4581
        %v5050 = vpop.f32.mrb[0].mxu0
        %v5051 = vadd.f32 0.0, %v5050
        %v5052 = vpop.f32.mrb[0].mxu0
        %v5053 = vadd.f32 0.0, %v5052
        %5054 = vmatprep.mubr.f32.mxu0 0.0
        %5055 = vmatmul.mubr.f32.gmra.mrb[0].mxu0 %v4584
        %v5056 = vpop.f32.mrb[0].mxu0
        %v5057 = vadd.f32 0.0, %v5056
        %v5058 = vpop.f32.mrb[0].mxu0
        %v5059 = vadd.f32 0.0, %v5058
        %5060 = vmatprep.mubr.f32.mxu0 0.0
        %5061 = vmatmul.mubr.f32.gmra.mrb[0].mxu0 %v4587
        %v5062 = vpop.f32.mrb[0].mxu0
        %v5063 = vadd.f32 0.0, %v5062
        %v5064 = vpop.f32.mrb[0].mxu0
        %v5065 = vadd.f32 0.0, %v5064
        %5066 = vmatprep.mubr.f32.mxu0 0.0
        %5067 = vmatmul.mubr.f32.gmra.mrb[0].mxu0 %v4590
        %v5068 = vpop.f32.mrb[0].mxu0
        %v5069 = vadd.f32 0.0, %v5068
        %v5070 = vpop.f32.mrb[0].mxu0
        %v5071 = vadd.f32 0.0, %v5070
        %5072 = vmatprep.mubr.f32.mxu0 0.0
        %5073 = vmatmul.mubr.f32.gmra.mrb[0].mxu0 %v4593
        %v5074 = vpop.f32.mrb[0].mxu0
        %v5075 = vadd.f32 0.0, %v5074
        %v5076 = vpop.f32.mrb[0].mxu0
        %v5077 = vadd.f32 0.0, %v5076
        %5078 = vmatprep.mubr.f32.mxu0 0.0
        %5079 = vmatmul.mubr.f32.gmra.mrb[0].mxu0 %v4596
        %v5080 = vpop.f32.mrb[0].mxu0
        %v5081 = vadd.f32 0.0, %v5080
        %v5082 = vpop.f32.mrb[0].mxu0
        %v5083 = vadd.f32 0.0, %v5082
        %5084 = vmatprep.mubr.f32.mxu0 0.0
        %5085 = vmatmul.mubr.f32.gmra.mrb[0].mxu0 %v4599
        %v5086 = vpop.f32.mrb[0].mxu0
        %v5087 = vadd.f32 0.0, %v5086
        %v5088 = vpop.f32.mrb[0].mxu0
        %v5089 = vadd.f32 0.0, %v5088
        %5090 = vmatprep.mubr.f32.mxu0 0.0
        %5091 = vmatmul.mubr.f32.gmra.mrb[0].mxu0 %v4602
        %v5092 = vpop.f32.mrb[0].mxu0
        %v5093 = vadd.f32 0.0, %v5092
        %v5094 = vpop.f32.mrb[0].mxu0
        %v5095 = vadd.f32 0.0, %v5094
        %5096 = vmatprep.mubr.f32.mxu0 0.0
        %5097 = vmatmul.mubr.f32.gmra.mrb[0].mxu0 %v4605
        %v5098 = vpop.f32.mrb[0].mxu0
        %v5099 = vadd.f32 0.0, %v5098
        %v5100 = vpop.f32.mrb[0].mxu0
        %v5101 = vadd.f32 0.0, %v5100
        %5102 = vmatprep.mubr.f32.mxu0 0.0
        %5103 = vmatmul.mubr.f32.gmra.mrb[0].mxu0 %v4608
        %v5104 = vpop.f32.mrb[0].mxu0
        %v5105 = vadd.f32 0.0, %v5104
        %v5106 = vpop.f32.mrb[0].mxu0
        %v5107 = vadd.f32 0.0, %v5106
        %5108 = vmatprep.mubr.f32.mxu0 0.0
        %5109 = vmatmul.mubr.f32.gmra.mrb[0].mxu0 %v4611
        %v5110 = vpop.f32.mrb[0].mxu0
        %v5111 = vadd.f32 0.0, %v5110
        %v5112 = vpop.f32.mrb[0].mxu0
        %v5113 = vadd.f32 0.0, %v5112
        %5114 = vmatprep.mubr.f32.mxu0 0.0
        %5115 = vmatmul.mubr.f32.gmra.mrb[0].mxu0 %v4614
        %v5116 = vpop.f32.mrb[0].mxu0
        %v5117 = vadd.f32 0.0, %v5116
        %v5118 = vpop.f32.mrb[0].mxu0
        %v5119 = vadd.f32 0.0, %v5118
        %5120 = vmatprep.mubr.f32.mxu0 0.0
        %5121 = vmatmul.mubr.f32.gmra.mrb[0].mxu0 %v4617
        %v5122 = vpop.f32.mrb[0].mxu0
        %v5123 = vadd.f32 0.0, %v5122
        %v5124 = vpop.f32.mrb[0].mxu0
        %v5125 = vadd.f32 0.0, %v5124
        %5126 = vmatprep.mubr.f32.mxu0 0.0
        %5127 = vmatmul.mubr.f32.gmra.mrb[0].mxu0 %v4620
        %v5128 = vpop.f32.mrb[0].mxu0
        %v5129 = vadd.f32 0.0, %v5128
        %v5130 = vpop.f32.mrb[0].mxu0
        %v5131 = vadd.f32 0.0, %v5130
        %5132 = vmatprep.mubr.f32.mxu0 0.0
        %5133 = vmatmul.mubr.f32.gmra.mrb[0].mxu0 %v4623
        %v5134 = vpop.f32.mrb[0].mxu0
        %v5135 = vadd.f32 0.0, %v5134
        %v5136 = vpop.f32.mrb[0].mxu0
        %v5137 = vadd.f32 0.0, %v5136
        %5138 = vmatprep.mubr.f32.mxu0 0.0
        %5139 = vmatmul.mubr.f32.gmra.mrb[0].mxu0 %v4626
        %v5140 = vpop.f32.mrb[0].mxu0
        %v5141 = vadd.f32 0.0, %v5140
        %v5142 = vpop.f32.mrb[0].mxu0
        %v5143 = vadd.f32 0.0, %v5142
        %5144 = vmatprep.mubr.f32.mxu0 0.0
        %5145 = vmatmul.mubr.f32.gmra.mrb[0].mxu0 %v4629
        %v5146 = vpop.f32.mrb[0].mxu0
        %v5147 = vadd.f32 0.0, %v5146
        %v5148 = vpop.f32.mrb[0].mxu0
        %v5149 = vadd.f32 0.0, %v5148
        %5150 = vmatprep.mubr.f32.mxu0 0.0
        %5151 = vmatmul.mubr.f32.gmra.mrb[0].mxu0 %v4632
        %v5152 = vpop.f32.mrb[0].mxu0
        %v5153 = vadd.f32 0.0, %v5152
        %v5154 = vpop.f32.mrb[0].mxu0
        %v5155 = vadd.f32 0.0, %v5154
        %5156 = vmatprep.mubr.f32.mxu0 0.0
        %5157 = vmatmul.mubr.f32.gmra.mrb[0].mxu0 %v4635
        %v5158 = vpop.f32.mrb[0].mxu0
        %v5159 = vadd.f32 0.0, %v5158
        %v5160 = vpop.f32.mrb[0].mxu0
        %v5161 = vadd.f32 0.0, %v5160
        %5162 = vmatprep.mubr.f32.mxu0 0.0
        %5163 = vmatmul.mubr.f32.gmra.mrb[0].mxu0 %v4638
        %v5164 = vpop.f32.mrb[0].mxu0
        %v5165 = vadd.f32 0.0, %v5164
        %v5166 = vpop.f32.mrb[0].mxu0
        %v5167 = vadd.f32 0.0, %v5166
        %5168 = vmatprep.mubr.f32.mxu0 0.0
        %5169 = vmatmul.mubr.f32.gmra.mrb[0].mxu0 %v4641
        %v5170 = vpop.f32.mrb[0].mxu0
        %v5171 = vadd.f32 0.0, %v5170
        %v5172 = vpop.f32.mrb[0].mxu0
        %v5173 = vadd.f32 0.0, %v5172
        %5174 = vmatprep.mubr.f32.mxu0 0.0
        %5175 = vmatmul.mubr.f32.gmra.mrb[0].mxu0 %v4644
        %v5176 = vpop.f32.mrb[0].mxu0
        %v5177 = vadd.f32 0.0, %v5176
        %v5178 = vpop.f32.mrb[0].mxu0
        %v5179 = vadd.f32 0.0, %v5178
        %5180 = vmatprep.mubr.f32.mxu0 0.0
        %5181 = vmatmul.mubr.f32.gmra.mrb[0].mxu0 %v4647
        %v5182 = vpop.f32.mrb[0].mxu0
        %v5183 = vadd.f32 0.0, %v5182
        %v5184 = vpop.f32.mrb[0].mxu0
        %v5185 = vadd.f32 0.0, %v5184
        %5186 = vmatprep.mubr.f32.mxu0 0.0
        %5187 = vmatmul.mubr.f32.gmra.mrb[0].mxu0 %v4650
        %v5188 = vpop.f32.mrb[0].mxu0
        %v5189 = vadd.f32 0.0, %v5188
        %v5190 = vpop.f32.mrb[0].mxu0
        %v5191 = vadd.f32 0.0, %v5190
        %5192 = vmatprep.mubr.f32.mxu0 0.0
        %5193 = vmatmul.mubr.f32.gmra.mrb[0].mxu0 %v4653
        %v5194 = vpop.f32.mrb[0].mxu0
        %v5195 = vadd.f32 0.0, %v5194
        %v5196 = vpop.f32.mrb[0].mxu0
        %v5197 = vadd.f32 0.0, %v5196
        %5198 = vmatprep.mubr.f32.mxu0 0.0
        %5199 = vmatmul.mubr.f32.gmra.mrb[0].mxu0 %v4656
        %v5200 = vpop.f32.mrb[0].mxu0
        %v5201 = vadd.f32 0.0, %v5200
        %v5202 = vpop.f32.mrb[0].mxu0
        %v5203 = vadd.f32 0.0, %v5202
        %5204 = vmatprep.mubr.f32.mxu0 0.0
        %5205 = vmatmul.mubr.f32.gmra.mrb[0].mxu0 %v4659
        %v5206 = vpop.f32.mrb[0].mxu0
        %v5207 = vadd.f32 0.0, %v5206
        %v5208 = vpop.f32.mrb[0].mxu0
        %v5209 = vadd.f32 0.0, %v5208
        %5210 = vmatprep.mubr.f32.mxu0 0.0
        %5211 = vmatmul.mubr.f32.gmra.mrb[0].mxu0 %v4662
        %v5212 = vpop.f32.mrb[0].mxu0
        %v5213 = vadd.f32 0.0, %v5212
        %v5214 = vpop.f32.mrb[0].mxu0
        %v5215 = vadd.f32 0.0, %v5214
        %5216 = vmatprep.mubr.f32.mxu0 0.0
        %5217 = vmatmul.mubr.f32.gmra.mrb[0].mxu0 %v4665
        %v5218 = vpop.f32.mrb[0].mxu0
        %v5219 = vadd.f32 0.0, %v5218
        %v5220 = vpop.f32.mrb[0].mxu0
        %v5221 = vadd.f32 0.0, %v5220
        %5222 = vmatprep.mubr.f32.mxu0 0.0
        %5223 = vmatmul.mubr.f32.gmra.mrb[0].mxu0 %v4668
        %v5224 = vpop.f32.mrb[0].mxu0
        %v5225 = vadd.f32 0.0, %v5224
        %v5226 = vpop.f32.mrb[0].mxu0
        %v5227 = vadd.f32 0.0, %v5226
        %5228 = vmatprep.mubr.f32.mxu0 0.0
        %5229 = vmatmul.mubr.f32.gmra.mrb[0].mxu0 %v4671
        %v5230 = vpop.f32.mrb[0].mxu0
        %v5231 = vadd.f32 0.0, %v5230
        %v5232 = vpop.f32.mrb[0].mxu0
        %v5233 = vadd.f32 0.0, %v5232
        %5234 = vdwg.mxu0
        %v5235 = vadd.f32 %v4368, %v4740
        %v5236 = vadd.f32 %v4369, %v4742
        %v5237 = vadd.f32 %v4370, %v5021
        %v5238 = vadd.f32 %v4371, %v5023
        %v5239 = vadd.f32 %v4372, %v4746
        %v5240 = vadd.f32 %v4373, %v4748
        %v5241 = vadd.f32 %v4374, %v5027
        %v5242 = vadd.f32 %v4375, %v5029
        %v5243 = vadd.f32 %v4376, %v4752
        %v5244 = vadd.f32 %v4377, %v4754
        %v5245 = vadd.f32 %v4378, %v5033
        %v5246 = vadd.f32 %v4379, %v5035
        %v5247 = vadd.f32 %v4380, %v4758
        %v5248 = vadd.f32 %v4381, %v4760
        %v5249 = vadd.f32 %v4382, %v5039
        %v5250 = vadd.f32 %v4383, %v5041
        %v5251 = vadd.f32 %v4384, %v4764
        %v5252 = vadd.f32 %v4385, %v4766
        %v5253 = vadd.f32 %v4386, %v5045
        %v5254 = vadd.f32 %v4387, %v5047
        %v5255 = vadd.f32 %v4388, %v4770
        %v5256 = vadd.f32 %v4389, %v4772
        %v5257 = vadd.f32 %v4390, %v5051
        %v5258 = vadd.f32 %v4391, %v5053
        %v5259 = vadd.f32 %v4392, %v4776
        %v5260 = vadd.f32 %v4393, %v4778
        %v5261 = vadd.f32 %v4394, %v5057
        %v5262 = vadd.f32 %v4395, %v5059
        %v5263 = vadd.f32 %v4396, %v4782
        %v5264 = vadd.f32 %v4397, %v4784
        %v5265 = vadd.f32 %v4398, %v5063
        %v5266 = vadd.f32 %v4399, %v5065
        %v5267 = vadd.f32 %v4400, %v4788
        %v5268 = vadd.f32 %v4401, %v4790
        %v5269 = vadd.f32 %v4402, %v5069
        %v5270 = vadd.f32 %v4403, %v5071
        %v5271 = vadd.f32 %v4404, %v4794
        %v5272 = vadd.f32 %v4405, %v4796
        %v5273 = vadd.f32 %v4406, %v5075
        %v5274 = vadd.f32 %v4407, %v5077
        %v5275 = vadd.f32 %v4408, %v4800
        %v5276 = vadd.f32 %v4409, %v4802
        %v5277 = vadd.f32 %v4410, %v5081
        %v5278 = vadd.f32 %v4411, %v5083
        %v5279 = vadd.f32 %v4412, %v4806
        %v5280 = vadd.f32 %v4413, %v4808
        %v5281 = vadd.f32 %v4414, %v5087
        %v5282 = vadd.f32 %v4415, %v5089
        %v5283 = vadd.f32 %v4416, %v4812
        %v5284 = vadd.f32 %v4417, %v4814
        %v5285 = vadd.f32 %v4418, %v5093
        %v5286 = vadd.f32 %v4419, %v5095
        %v5287 = vadd.f32 %v4420, %v4818
        %v5288 = vadd.f32 %v4421, %v4820
        %v5289 = vadd.f32 %v4422, %v5099
        %v5290 = vadd.f32 %v4423, %v5101
        %v5291 = vadd.f32 %v4424, %v4824
        %v5292 = vadd.f32 %v4425, %v4826
        %v5293 = vadd.f32 %v4426, %v5105
        %v5294 = vadd.f32 %v4427, %v5107
        %v5295 = vadd.f32 %v4428, %v4830
        %v5296 = vadd.f32 %v4429, %v4832
        %v5297 = vadd.f32 %v4430, %v5111
        %v5298 = vadd.f32 %v4431, %v5113
        %v5299 = vadd.f32 %v4432, %v4836
        %v5300 = vadd.f32 %v4433, %v4838
        %v5301 = vadd.f32 %v4434, %v5117
        %v5302 = vadd.f32 %v4435, %v5119
        %v5303 = vadd.f32 %v4436, %v4842
        %v5304 = vadd.f32 %v4437, %v4844
        %v5305 = vadd.f32 %v4438, %v5123
        %v5306 = vadd.f32 %v4439, %v5125
        %v5307 = vadd.f32 %v4440, %v4848
        %v5308 = vadd.f32 %v4441, %v4850
        %v5309 = vadd.f32 %v4442, %v5129
        %v5310 = vadd.f32 %v4443, %v5131
        %v5311 = vadd.f32 %v4444, %v4854
        %v5312 = vadd.f32 %v4445, %v4856
        %v5313 = vadd.f32 %v4446, %v5135
        %v5314 = vadd.f32 %v4447, %v5137
        %v5315 = vadd.f32 %v4448, %v4860
        %v5316 = vadd.f32 %v4449, %v4862
        %v5317 = vadd.f32 %v4450, %v5141
        %v5318 = vadd.f32 %v4451, %v5143
        %v5319 = vadd.f32 %v4452, %v4866
        %v5320 = vadd.f32 %v4453, %v4868
        %v5321 = vadd.f32 %v4454, %v5147
        %v5322 = vadd.f32 %v4455, %v5149
        %v5323 = vadd.f32 %v4456, %v4872
        %v5324 = vadd.f32 %v4457, %v4874
        %v5325 = vadd.f32 %v4458, %v5153
        %v5326 = vadd.f32 %v4459, %v5155
        %v5327 = vadd.f32 %v4460, %v4878
        %v5328 = vadd.f32 %v4461, %v4880
        %v5329 = vadd.f32 %v4462, %v5159
        %v5330 = vadd.f32 %v4463, %v5161
        %v5331 = vadd.f32 %v4464, %v4884
        %v5332 = vadd.f32 %v4465, %v4886
        %v5333 = vadd.f32 %v4466, %v5165
        %v5334 = vadd.f32 %v4467, %v5167
        %v5335 = vadd.f32 %v4468, %v4890
        %v5336 = vadd.f32 %v4469, %v4892
        %v5337 = vadd.f32 %v4470, %v5171
        %v5338 = vadd.f32 %v4471, %v5173
        %v5339 = vadd.f32 %v4472, %v4896
        %v5340 = vadd.f32 %v4473, %v4898
        %v5341 = vadd.f32 %v4474, %v5177
        %v5342 = vadd.f32 %v4475, %v5179
        %v5343 = vadd.f32 %v4476, %v4902
        %v5344 = vadd.f32 %v4477, %v4904
        %v5345 = vadd.f32 %v4478, %v5183
        %v5346 = vadd.f32 %v4479, %v5185
        %v5347 = vadd.f32 %v4480, %v4908
        %v5348 = vadd.f32 %v4481, %v4910
        %v5349 = vadd.f32 %v4482, %v5189
        %v5350 = vadd.f32 %v4483, %v5191
        %v5351 = vadd.f32 %v4484, %v4914
        %v5352 = vadd.f32 %v4485, %v4916
        %v5353 = vadd.f32 %v4486, %v5195
        %v5354 = vadd.f32 %v4487, %v5197
        %v5355 = vadd.f32 %v4488, %v4920
        %v5356 = vadd.f32 %v4489, %v4922
        %v5357 = vadd.f32 %v4490, %v5201
        %v5358 = vadd.f32 %v4491, %v5203
        %v5359 = vadd.f32 %v4492, %v4926
        %v5360 = vadd.f32 %v4493, %v4928
        %v5361 = vadd.f32 %v4494, %v5207
        %v5362 = vadd.f32 %v4495, %v5209
        %v5363 = vadd.f32 %v4496, %v4932
        %v5364 = vadd.f32 %v4497, %v4934
        %v5365 = vadd.f32 %v4498, %v5213
        %v5366 = vadd.f32 %v4499, %v5215
        %v5367 = vadd.f32 %v4500, %v4938
        %v5368 = vadd.f32 %v4501, %v4940
        %v5369 = vadd.f32 %v4502, %v5219
        %v5370 = vadd.f32 %v4503, %v5221
        %v5371 = vadd.f32 %v4504, %v4944
        %v5372 = vadd.f32 %v4505, %v4946
        %v5373 = vadd.f32 %v4506, %v5225
        %v5374 = vadd.f32 %v4507, %v5227
        %v5375 = vadd.f32 %v4508, %v4950
        %v5376 = vadd.f32 %v4509, %v4952
        %v5377 = vadd.f32 %v4510, %v5231
        %v5378 = vadd.f32 %v4511, %v5233
        %v5379 = vld [vmem:[%s454 + $0x24] sm:$0xff]
        %v5380 = vld [vmem:[%s454 + $0x2c] sm:$0xff]
        %v5381 = vld [vmem:[%s454 + $0x34] sm:$0xff]
        %v5382 = vld [vmem:[%s454 + $0x3c] sm:$0xff]
        %v5383 = vld [vmem:[%s454 + $0x44] sm:$0xff]
        %v5384 = vld [vmem:[%s454 + $0x4c] sm:$0xff]
        %v5385 = vld [vmem:[%s454 + $0x54] sm:$0xff]
        %v5386 = vld [vmem:[%s454 + $0x5c] sm:$0xff]
        %v5387 = vld [vmem:[%s454 + $0x64] sm:$0xff]
        %v5388 = vld [vmem:[%s454 + $0x6c] sm:$0xff]
        %v5389 = vld [vmem:[%s454 + $0x74] sm:$0xff]
        %v5390 = vld [vmem:[%s454 + $0x7c] sm:$0xff]
        %v5391 = vld [vmem:[%s454 + $0x84] sm:$0xff]
        %v5392 = vld [vmem:[%s454 + $0x8c] sm:$0xff]
        %v5393 = vld [vmem:[%s454 + $0x94] sm:$0xff]
        %v5394 = vld [vmem:[%s454 + $0x9c] sm:$0xff]
        %v5395 = vld [vmem:[%s454 + $0xa4] sm:$0xff]
        %v5396 = vld [vmem:[%s454 + $0xac] sm:$0xff]
        %v5397 = vld [vmem:[%s454 + $0xb4] sm:$0xff]
        %v5398 = vld [vmem:[%s454 + $0xbc] sm:$0xff]
        %v5399 = vld [vmem:[%s454 + $0xc4] sm:$0xff]
        %v5400 = vld [vmem:[%s454 + $0xcc] sm:$0xff]
        %v5401 = vld [vmem:[%s454 + $0xd4] sm:$0xff]
        %v5402 = vld [vmem:[%s454 + $0xdc] sm:$0xff]
        %v5403 = vld [vmem:[%s454 + $0xe4] sm:$0xff]
        %v5404 = vld [vmem:[%s454 + $0xec] sm:$0xff]
        %v5405 = vld [vmem:[%s454 + $0xf4] sm:$0xff]
        %v5406 = vld [vmem:[%s454 + $0xfc] sm:$0xff]
        %v5407 = vld [vmem:[%s454 + $0x104] sm:$0xff]
        %v5408 = vld [vmem:[%s454 + $0x10c] sm:$0xff]
        %v5409 = vld [vmem:[%s454 + $0x114] sm:$0xff]
        %v5410 = vld [vmem:[%s454 + $0x11c] sm:$0xff]
        %v5411 = vld [vmem:[%s454 + $0x124] sm:$0xff]
        %v5412 = vld [vmem:[%s454 + $0x12c] sm:$0xff]
        %v5413 = vld [vmem:[%s454 + $0x134] sm:$0xff]
        %v5414 = vld [vmem:[%s454 + $0x13c] sm:$0xff]
        %s5415 = scalar_lea.vmem %s1, 768
        %v5416 = vld [vmem:[%s5415] sm:$0xff]
        %v5417 = vld [vmem:[%s5415 + $0x8] sm:$0xff]
        %v5418 = vld [vmem:[%s5415 + $0x10] sm:$0xff]
        %v5419 = vld [vmem:[%s5415 + $0x18] sm:$0xff]
        %v5420 = vld [vmem:[%s5415 + $0x20] sm:$0xff]
        %v5421 = vld [vmem:[%s5415 + $0x28] sm:$0xff]
        %v5422 = vld [vmem:[%s5415 + $0x30] sm:$0xff]
        %v5423 = vld [vmem:[%s5415 + $0x38] sm:$0xff]
        %v5424 = vld [vmem:[%s5415 + $0x40] sm:$0xff]
        %v5425 = vld [vmem:[%s5415 + $0x48] sm:$0xff]
        %v5426 = vld [vmem:[%s5415 + $0x50] sm:$0xff]
        %v5427 = vld [vmem:[%s5415 + $0x58] sm:$0xff]
        %v5428 = vld [vmem:[%s5415 + $0x60] sm:$0xff]
        %v5429 = vld [vmem:[%s5415 + $0x68] sm:$0xff]
        %v5430 = vld [vmem:[%s5415 + $0x70] sm:$0xff]
        %v5431 = vld [vmem:[%s5415 + $0x78] sm:$0xff]
        %v5433 = vsel %vm570, %v5379, 0
        %v5436 = vsel %vm570, %v5380, 0
        %v5439 = vsel %vm570, %v5381, 0
        %v5442 = vsel %vm570, %v5382, 0
        %v5445 = vsel %vm570, %v5383, 0
        %v5448 = vsel %vm570, %v5384, 0
        %v5451 = vsel %vm570, %v5385, 0
        %v5454 = vsel %vm570, %v5386, 0
        %v5457 = vsel %vm570, %v5387, 0
        %v5460 = vsel %vm570, %v5388, 0
        %v5463 = vsel %vm570, %v5389, 0
        %v5466 = vsel %vm570, %v5390, 0
        %v5469 = vsel %vm570, %v5391, 0
        %v5472 = vsel %vm570, %v5392, 0
        %v5475 = vsel %vm570, %v5393, 0
        %v5478 = vsel %vm570, %v5394, 0
        %v5481 = vsel %vm570, %v5395, 0
        %v5484 = vsel %vm570, %v5396, 0
        %v5487 = vsel %vm570, %v5397, 0
        %v5490 = vsel %vm570, %v5398, 0
        %v5493 = vsel %vm570, %v5399, 0
        %v5496 = vsel %vm570, %v5400, 0
        %v5499 = vsel %vm570, %v5401, 0
        %v5502 = vsel %vm570, %v5402, 0
        %v5505 = vsel %vm570, %v5403, 0
        %v5508 = vsel %vm570, %v5404, 0
        %v5511 = vsel %vm570, %v5405, 0
        %v5514 = vsel %vm570, %v5406, 0
        %v5517 = vsel %vm570, %v5407, 0
        %v5520 = vsel %vm570, %v5408, 0
        %v5523 = vsel %vm570, %v5409, 0
        %v5526 = vsel %vm570, %v5410, 0
        %v5529 = vsel %vm570, %v5411, 0
        %v5532 = vsel %vm570, %v5412, 0
        %v5535 = vsel %vm570, %v5413, 0
        %v5538 = vsel %vm570, %v5414, 0
        %5540 = vmatprep.subr.mxu0 %v5417
        %5541 = vmatpush1.msra.mxu0 %v5416
        %5542 = vmatprep.subr.mxu0 %v5421
        %5543 = vmatpush1.msra.mxu0 %v5420
        %5544 = vmatprep.subr.mxu0 %v5425
        %5545 = vmatpush1.msra.mxu0 %v5424
        %5546 = vmatprep.subr.mxu0 %v5429
        %5547 = vmatpush1.msra.mxu0 %v5428
        %5548 = vmatprep.subr.mxu0 0.0
        %5549 = vmatpush1.msra.mxu0 0.0
        %5550 = vmatprep.subr.mxu0 0.0
        %5551 = vmatpush1.msra.mxu0 0.0
        %5552 = vmatprep.subr.mxu0 0.0
        %5553 = vmatpush1.msra.mxu0 0.0
        %5554 = vmatprep.subr.mxu0 0.0
        %5555 = vmatpush1.msra.mxu0 0.0
        %5556 = vmatprep.subr.mxu0 0.0
        %5557 = vmatpush1.msra.mxu0 0.0
        %5558 = vmatprep.subr.mxu0 0.0
        %5559 = vmatpush1.msra.mxu0 0.0
        %5560 = vmatprep.subr.mxu0 0.0
        %5561 = vmatpush1.msra.mxu0 0.0
        %5562 = vmatprep.subr.mxu0 0.0
        %5563 = vmatpush1.msra.mxu0 0.0
        %5564 = vmatprep.subr.mxu0 0.0
        %5565 = vmatpush1.msra.mxu0 0.0
        %5566 = vmatprep.subr.mxu0 0.0
        %5567 = vmatpush1.msra.mxu0 0.0
        %5568 = vmatprep.subr.mxu0 0.0
        %5569 = vmatpush1.msra.mxu0 0.0
        %5570 = vmatprep.subr.mxu0 0.0
        %5571 = vmatpush1.msra.mxu0 0.0
        %5572 = vmatprep.subr.mxu0 0.0
        %5573 = vmatpush1.msra.mxu0 0.0
        %5574 = vmatprep.subr.mxu0 0.0
        %5575 = vmatpush1.msra.mxu0 0.0
        %5576 = vmatprep.subr.mxu0 0.0
        %5577 = vmatpush1.msra.mxu0 0.0
        %5578 = vmatprep.subr.mxu0 0.0
        %5579 = vmatpush1.msra.mxu0 0.0
        %5580 = vmatprep.subr.mxu0 0.0
        %5581 = vmatpush1.msra.mxu0 0.0
        %5582 = vmatprep.subr.mxu0 0.0
        %5583 = vmatpush1.msra.mxu0 0.0
        %5584 = vmatprep.subr.mxu0 0.0
        %5585 = vmatpush1.msra.mxu0 0.0
        %5586 = vmatprep.subr.mxu0 0.0
        %5587 = vmatpush1.msra.mxu0 0.0
        %5588 = vmatprep.subr.mxu0 0.0
        %5589 = vmatpush1.msra.mxu0 0.0
        %5590 = vmatprep.subr.mxu0 0.0
        %5591 = vmatpush1.msra.mxu0 0.0
        %5592 = vmatprep.subr.mxu0 0.0
        %5593 = vmatpush1.msra.mxu0 0.0
        %5594 = vmatprep.subr.mxu0 0.0
        %5595 = vmatpush1.msra.mxu0 0.0
        %5596 = vmatprep.subr.mxu0 0.0
        %5597 = vmatpush1.msra.mxu0 0.0
        %5598 = vmatprep.subr.mxu0 0.0
        %5599 = vmatpush1.msra.mxu0 0.0
        %5600 = vmatprep.subr.mxu0 0.0
        %5601 = vmatpush1.msra.mxu0 0.0
        %5602 = vmatprep.subr.mxu0 0.0
        %5603 = vmatpush1.msra.mxu0 0.0
        %5604 = vmatprep.mubr.f32.mxu0 0.0
        %5605 = vmatmul.mubr.f32.gmra.mrb[0].mxu0 %v5433
        %v5606 = vpop.f32.mrb[0].mxu0
        %v5607 = vadd.f32 0.0, %v5606
        %v5608 = vpop.f32.mrb[0].mxu0
        %v5609 = vadd.f32 0.0, %v5608
        %5610 = vmatprep.mubr.f32.mxu0 0.0
        %5611 = vmatmul.mubr.f32.gmra.mrb[0].mxu0 %v5436
        %v5612 = vpop.f32.mrb[0].mxu0
        %v5613 = vadd.f32 0.0, %v5612
        %v5614 = vpop.f32.mrb[0].mxu0
        %v5615 = vadd.f32 0.0, %v5614
        %5616 = vmatprep.mubr.f32.mxu0 0.0
        %5617 = vmatmul.mubr.f32.gmra.mrb[0].mxu0 %v5439
        %v5618 = vpop.f32.mrb[0].mxu0
        %v5619 = vadd.f32 0.0, %v5618
        %v5620 = vpop.f32.mrb[0].mxu0
        %v5621 = vadd.f32 0.0, %v5620
        %5622 = vmatprep.mubr.f32.mxu0 0.0
        %5623 = vmatmul.mubr.f32.gmra.mrb[0].mxu0 %v5442
        %v5624 = vpop.f32.mrb[0].mxu0
        %v5625 = vadd.f32 0.0, %v5624
        %v5626 = vpop.f32.mrb[0].mxu0
        %v5627 = vadd.f32 0.0, %v5626
        %5628 = vmatprep.mubr.f32.mxu0 0.0
        %5629 = vmatmul.mubr.f32.gmra.mrb[0].mxu0 %v5445
        %v5630 = vpop.f32.mrb[0].mxu0
        %v5631 = vadd.f32 0.0, %v5630
        %v5632 = vpop.f32.mrb[0].mxu0
        %v5633 = vadd.f32 0.0, %v5632
        %5634 = vmatprep.mubr.f32.mxu0 0.0
        %5635 = vmatmul.mubr.f32.gmra.mrb[0].mxu0 %v5448
        %v5636 = vpop.f32.mrb[0].mxu0
        %v5637 = vadd.f32 0.0, %v5636
        %v5638 = vpop.f32.mrb[0].mxu0
        %v5639 = vadd.f32 0.0, %v5638
        %5640 = vmatprep.mubr.f32.mxu0 0.0
        %5641 = vmatmul.mubr.f32.gmra.mrb[0].mxu0 %v5451
        %v5642 = vpop.f32.mrb[0].mxu0
        %v5643 = vadd.f32 0.0, %v5642
        %v5644 = vpop.f32.mrb[0].mxu0
        %v5645 = vadd.f32 0.0, %v5644
        %5646 = vmatprep.mubr.f32.mxu0 0.0
        %5647 = vmatmul.mubr.f32.gmra.mrb[0].mxu0 %v5454
        %v5648 = vpop.f32.mrb[0].mxu0
        %v5649 = vadd.f32 0.0, %v5648
        %v5650 = vpop.f32.mrb[0].mxu0
        %v5651 = vadd.f32 0.0, %v5650
        %5652 = vmatprep.mubr.f32.mxu0 0.0
        %5653 = vmatmul.mubr.f32.gmra.mrb[0].mxu0 %v5457
        %v5654 = vpop.f32.mrb[0].mxu0
        %v5655 = vadd.f32 0.0, %v5654
        %v5656 = vpop.f32.mrb[0].mxu0
        %v5657 = vadd.f32 0.0, %v5656
        %5658 = vmatprep.mubr.f32.mxu0 0.0
        %5659 = vmatmul.mubr.f32.gmra.mrb[0].mxu0 %v5460
        %v5660 = vpop.f32.mrb[0].mxu0
        %v5661 = vadd.f32 0.0, %v5660
        %v5662 = vpop.f32.mrb[0].mxu0
        %v5663 = vadd.f32 0.0, %v5662
        %5664 = vmatprep.mubr.f32.mxu0 0.0
        %5665 = vmatmul.mubr.f32.gmra.mrb[0].mxu0 %v5463
        %v5666 = vpop.f32.mrb[0].mxu0
        %v5667 = vadd.f32 0.0, %v5666
        %v5668 = vpop.f32.mrb[0].mxu0
        %v5669 = vadd.f32 0.0, %v5668
        %5670 = vmatprep.mubr.f32.mxu0 0.0
        %5671 = vmatmul.mubr.f32.gmra.mrb[0].mxu0 %v5466
        %v5672 = vpop.f32.mrb[0].mxu0
        %v5673 = vadd.f32 0.0, %v5672
        %v5674 = vpop.f32.mrb[0].mxu0
        %v5675 = vadd.f32 0.0, %v5674
        %5676 = vmatprep.mubr.f32.mxu0 0.0
        %5677 = vmatmul.mubr.f32.gmra.mrb[0].mxu0 %v5469
        %v5678 = vpop.f32.mrb[0].mxu0
        %v5679 = vadd.f32 0.0, %v5678
        %v5680 = vpop.f32.mrb[0].mxu0
        %v5681 = vadd.f32 0.0, %v5680
        %5682 = vmatprep.mubr.f32.mxu0 0.0
        %5683 = vmatmul.mubr.f32.gmra.mrb[0].mxu0 %v5472
        %v5684 = vpop.f32.mrb[0].mxu0
        %v5685 = vadd.f32 0.0, %v5684
        %v5686 = vpop.f32.mrb[0].mxu0
        %v5687 = vadd.f32 0.0, %v5686
        %5688 = vmatprep.mubr.f32.mxu0 0.0
        %5689 = vmatmul.mubr.f32.gmra.mrb[0].mxu0 %v5475
        %v5690 = vpop.f32.mrb[0].mxu0
        %v5691 = vadd.f32 0.0, %v5690
        %v5692 = vpop.f32.mrb[0].mxu0
        %v5693 = vadd.f32 0.0, %v5692
        %5694 = vmatprep.mubr.f32.mxu0 0.0
        %5695 = vmatmul.mubr.f32.gmra.mrb[0].mxu0 %v5478
        %v5696 = vpop.f32.mrb[0].mxu0
        %v5697 = vadd.f32 0.0, %v5696
        %v5698 = vpop.f32.mrb[0].mxu0
        %v5699 = vadd.f32 0.0, %v5698
        %5700 = vmatprep.mubr.f32.mxu0 0.0
        %5701 = vmatmul.mubr.f32.gmra.mrb[0].mxu0 %v5481
        %v5702 = vpop.f32.mrb[0].mxu0
        %v5703 = vadd.f32 0.0, %v5702
        %v5704 = vpop.f32.mrb[0].mxu0
        %v5705 = vadd.f32 0.0, %v5704
        %5706 = vmatprep.mubr.f32.mxu0 0.0
        %5707 = vmatmul.mubr.f32.gmra.mrb[0].mxu0 %v5484
        %v5708 = vpop.f32.mrb[0].mxu0
        %v5709 = vadd.f32 0.0, %v5708
        %v5710 = vpop.f32.mrb[0].mxu0
        %v5711 = vadd.f32 0.0, %v5710
        %5712 = vmatprep.mubr.f32.mxu0 0.0
        %5713 = vmatmul.mubr.f32.gmra.mrb[0].mxu0 %v5487
        %v5714 = vpop.f32.mrb[0].mxu0
        %v5715 = vadd.f32 0.0, %v5714
        %v5716 = vpop.f32.mrb[0].mxu0
        %v5717 = vadd.f32 0.0, %v5716
        %5718 = vmatprep.mubr.f32.mxu0 0.0
        %5719 = vmatmul.mubr.f32.gmra.mrb[0].mxu0 %v5490
        %v5720 = vpop.f32.mrb[0].mxu0
        %v5721 = vadd.f32 0.0, %v5720
        %v5722 = vpop.f32.mrb[0].mxu0
        %v5723 = vadd.f32 0.0, %v5722
        %5724 = vmatprep.mubr.f32.mxu0 0.0
        %5725 = vmatmul.mubr.f32.gmra.mrb[0].mxu0 %v5493
        %v5726 = vpop.f32.mrb[0].mxu0
        %v5727 = vadd.f32 0.0, %v5726
        %v5728 = vpop.f32.mrb[0].mxu0
        %v5729 = vadd.f32 0.0, %v5728
        %5730 = vmatprep.mubr.f32.mxu0 0.0
        %5731 = vmatmul.mubr.f32.gmra.mrb[0].mxu0 %v5496
        %v5732 = vpop.f32.mrb[0].mxu0
        %v5733 = vadd.f32 0.0, %v5732
        %v5734 = vpop.f32.mrb[0].mxu0
        %v5735 = vadd.f32 0.0, %v5734
        %5736 = vmatprep.mubr.f32.mxu0 0.0
        %5737 = vmatmul.mubr.f32.gmra.mrb[0].mxu0 %v5499
        %v5738 = vpop.f32.mrb[0].mxu0
        %v5739 = vadd.f32 0.0, %v5738
        %v5740 = vpop.f32.mrb[0].mxu0
        %v5741 = vadd.f32 0.0, %v5740
        %5742 = vmatprep.mubr.f32.mxu0 0.0
        %5743 = vmatmul.mubr.f32.gmra.mrb[0].mxu0 %v5502
        %v5744 = vpop.f32.mrb[0].mxu0
        %v5745 = vadd.f32 0.0, %v5744
        %v5746 = vpop.f32.mrb[0].mxu0
        %v5747 = vadd.f32 0.0, %v5746
        %5748 = vmatprep.mubr.f32.mxu0 0.0
        %5749 = vmatmul.mubr.f32.gmra.mrb[0].mxu0 %v5505
        %v5750 = vpop.f32.mrb[0].mxu0
        %v5751 = vadd.f32 0.0, %v5750
        %v5752 = vpop.f32.mrb[0].mxu0
        %v5753 = vadd.f32 0.0, %v5752
        %5754 = vmatprep.mubr.f32.mxu0 0.0
        %5755 = vmatmul.mubr.f32.gmra.mrb[0].mxu0 %v5508
        %v5756 = vpop.f32.mrb[0].mxu0
        %v5757 = vadd.f32 0.0, %v5756
        %v5758 = vpop.f32.mrb[0].mxu0
        %v5759 = vadd.f32 0.0, %v5758
        %5760 = vmatprep.mubr.f32.mxu0 0.0
        %5761 = vmatmul.mubr.f32.gmra.mrb[0].mxu0 %v5511
        %v5762 = vpop.f32.mrb[0].mxu0
        %v5763 = vadd.f32 0.0, %v5762
        %v5764 = vpop.f32.mrb[0].mxu0
        %v5765 = vadd.f32 0.0, %v5764
        %5766 = vmatprep.mubr.f32.mxu0 0.0
        %5767 = vmatmul.mubr.f32.gmra.mrb[0].mxu0 %v5514
        %v5768 = vpop.f32.mrb[0].mxu0
        %v5769 = vadd.f32 0.0, %v5768
        %v5770 = vpop.f32.mrb[0].mxu0
        %v5771 = vadd.f32 0.0, %v5770
        %5772 = vmatprep.mubr.f32.mxu0 0.0
        %5773 = vmatmul.mubr.f32.gmra.mrb[0].mxu0 %v5517
        %v5774 = vpop.f32.mrb[0].mxu0
        %v5775 = vadd.f32 0.0, %v5774
        %v5776 = vpop.f32.mrb[0].mxu0
        %v5777 = vadd.f32 0.0, %v5776
        %5778 = vmatprep.mubr.f32.mxu0 0.0
        %5779 = vmatmul.mubr.f32.gmra.mrb[0].mxu0 %v5520
        %v5780 = vpop.f32.mrb[0].mxu0
        %v5781 = vadd.f32 0.0, %v5780
        %v5782 = vpop.f32.mrb[0].mxu0
        %v5783 = vadd.f32 0.0, %v5782
        %5784 = vmatprep.mubr.f32.mxu0 0.0
        %5785 = vmatmul.mubr.f32.gmra.mrb[0].mxu0 %v5523
        %v5786 = vpop.f32.mrb[0].mxu0
        %v5787 = vadd.f32 0.0, %v5786
        %v5788 = vpop.f32.mrb[0].mxu0
        %v5789 = vadd.f32 0.0, %v5788
        %5790 = vmatprep.mubr.f32.mxu0 0.0
        %5791 = vmatmul.mubr.f32.gmra.mrb[0].mxu0 %v5526
        %v5792 = vpop.f32.mrb[0].mxu0
        %v5793 = vadd.f32 0.0, %v5792
        %v5794 = vpop.f32.mrb[0].mxu0
        %v5795 = vadd.f32 0.0, %v5794
        %5796 = vmatprep.mubr.f32.mxu0 0.0
        %5797 = vmatmul.mubr.f32.gmra.mrb[0].mxu0 %v5529
        %v5798 = vpop.f32.mrb[0].mxu0
        %v5799 = vadd.f32 0.0, %v5798
        %v5800 = vpop.f32.mrb[0].mxu0
        %v5801 = vadd.f32 0.0, %v5800
        %5802 = vmatprep.mubr.f32.mxu0 0.0
        %5803 = vmatmul.mubr.f32.gmra.mrb[0].mxu0 %v5532
        %v5804 = vpop.f32.mrb[0].mxu0
        %v5805 = vadd.f32 0.0, %v5804
        %v5806 = vpop.f32.mrb[0].mxu0
        %v5807 = vadd.f32 0.0, %v5806
        %5808 = vmatprep.mubr.f32.mxu0 0.0
        %5809 = vmatmul.mubr.f32.gmra.mrb[0].mxu0 %v5535
        %v5810 = vpop.f32.mrb[0].mxu0
        %v5811 = vadd.f32 0.0, %v5810
        %v5812 = vpop.f32.mrb[0].mxu0
        %v5813 = vadd.f32 0.0, %v5812
        %5814 = vmatprep.mubr.f32.mxu0 0.0
        %5815 = vmatmul.mubr.f32.gmra.mrb[0].mxu0 %v5538
        %v5816 = vpop.f32.mrb[0].mxu0
        %v5817 = vadd.f32 0.0, %v5816
        %v5818 = vpop.f32.mrb[0].mxu0
        %v5819 = vadd.f32 0.0, %v5818
        %5820 = vdwg.mxu0
        %5821 = vmatprep.subr.mxu0 %v5419
        %5822 = vmatpush1.msra.mxu0 %v5418
        %5823 = vmatprep.subr.mxu0 %v5423
        %5824 = vmatpush1.msra.mxu0 %v5422
        %5825 = vmatprep.subr.mxu0 %v5427
        %5826 = vmatpush1.msra.mxu0 %v5426
        %5827 = vmatprep.subr.mxu0 %v5431
        %5828 = vmatpush1.msra.mxu0 %v5430
        %5829 = vmatprep.subr.mxu0 0.0
        %5830 = vmatpush1.msra.mxu0 0.0
        %5831 = vmatprep.subr.mxu0 0.0
        %5832 = vmatpush1.msra.mxu0 0.0
        %5833 = vmatprep.subr.mxu0 0.0
        %5834 = vmatpush1.msra.mxu0 0.0
        %5835 = vmatprep.subr.mxu0 0.0
        %5836 = vmatpush1.msra.mxu0 0.0
        %5837 = vmatprep.subr.mxu0 0.0
        %5838 = vmatpush1.msra.mxu0 0.0
        %5839 = vmatprep.subr.mxu0 0.0
        %5840 = vmatpush1.msra.mxu0 0.0
        %5841 = vmatprep.subr.mxu0 0.0
        %5842 = vmatpush1.msra.mxu0 0.0
        %5843 = vmatprep.subr.mxu0 0.0
        %5844 = vmatpush1.msra.mxu0 0.0
        %5845 = vmatprep.subr.mxu0 0.0
        %5846 = vmatpush1.msra.mxu0 0.0
        %5847 = vmatprep.subr.mxu0 0.0
        %5848 = vmatpush1.msra.mxu0 0.0
        %5849 = vmatprep.subr.mxu0 0.0
        %5850 = vmatpush1.msra.mxu0 0.0
        %5851 = vmatprep.subr.mxu0 0.0
        %5852 = vmatpush1.msra.mxu0 0.0
        %5853 = vmatprep.subr.mxu0 0.0
        %5854 = vmatpush1.msra.mxu0 0.0
        %5855 = vmatprep.subr.mxu0 0.0
        %5856 = vmatpush1.msra.mxu0 0.0
        %5857 = vmatprep.subr.mxu0 0.0
        %5858 = vmatpush1.msra.mxu0 0.0
        %5859 = vmatprep.subr.mxu0 0.0
        %5860 = vmatpush1.msra.mxu0 0.0
        %5861 = vmatprep.subr.mxu0 0.0
        %5862 = vmatpush1.msra.mxu0 0.0
        %5863 = vmatprep.subr.mxu0 0.0
        %5864 = vmatpush1.msra.mxu0 0.0
        %5865 = vmatprep.subr.mxu0 0.0
        %5866 = vmatpush1.msra.mxu0 0.0
        %5867 = vmatprep.subr.mxu0 0.0
        %5868 = vmatpush1.msra.mxu0 0.0
        %5869 = vmatprep.subr.mxu0 0.0
        %5870 = vmatpush1.msra.mxu0 0.0
        %5871 = vmatprep.subr.mxu0 0.0
        %5872 = vmatpush1.msra.mxu0 0.0
        %5873 = vmatprep.subr.mxu0 0.0
        %5874 = vmatpush1.msra.mxu0 0.0
        %5875 = vmatprep.subr.mxu0 0.0
        %5876 = vmatpush1.msra.mxu0 0.0
        %5877 = vmatprep.subr.mxu0 0.0
        %5878 = vmatpush1.msra.mxu0 0.0
        %5879 = vmatprep.subr.mxu0 0.0
        %5880 = vmatpush1.msra.mxu0 0.0
        %5881 = vmatprep.subr.mxu0 0.0
        %5882 = vmatpush1.msra.mxu0 0.0
        %5883 = vmatprep.subr.mxu0 0.0
        %5884 = vmatpush1.msra.mxu0 0.0
        %5885 = vmatprep.mubr.f32.mxu0 0.0
        %5886 = vmatmul.mubr.f32.gmra.mrb[0].mxu0 %v5433
        %v5887 = vpop.f32.mrb[0].mxu0
        %v5888 = vadd.f32 0.0, %v5887
        %v5889 = vpop.f32.mrb[0].mxu0
        %v5890 = vadd.f32 0.0, %v5889
        %5891 = vmatprep.mubr.f32.mxu0 0.0
        %5892 = vmatmul.mubr.f32.gmra.mrb[0].mxu0 %v5436
        %v5893 = vpop.f32.mrb[0].mxu0
        %v5894 = vadd.f32 0.0, %v5893
        %v5895 = vpop.f32.mrb[0].mxu0
        %v5896 = vadd.f32 0.0, %v5895
        %5897 = vmatprep.mubr.f32.mxu0 0.0
        %5898 = vmatmul.mubr.f32.gmra.mrb[0].mxu0 %v5439
        %v5899 = vpop.f32.mrb[0].mxu0
        %v5900 = vadd.f32 0.0, %v5899
        %v5901 = vpop.f32.mrb[0].mxu0
        %v5902 = vadd.f32 0.0, %v5901
        %5903 = vmatprep.mubr.f32.mxu0 0.0
        %5904 = vmatmul.mubr.f32.gmra.mrb[0].mxu0 %v5442
        %v5905 = vpop.f32.mrb[0].mxu0
        %v5906 = vadd.f32 0.0, %v5905
        %v5907 = vpop.f32.mrb[0].mxu0
        %v5908 = vadd.f32 0.0, %v5907
        %5909 = vmatprep.mubr.f32.mxu0 0.0
        %5910 = vmatmul.mubr.f32.gmra.mrb[0].mxu0 %v5445
        %v5911 = vpop.f32.mrb[0].mxu0
        %v5912 = vadd.f32 0.0, %v5911
        %v5913 = vpop.f32.mrb[0].mxu0
        %v5914 = vadd.f32 0.0, %v5913
        %5915 = vmatprep.mubr.f32.mxu0 0.0
        %5916 = vmatmul.mubr.f32.gmra.mrb[0].mxu0 %v5448
        %v5917 = vpop.f32.mrb[0].mxu0
        %v5918 = vadd.f32 0.0, %v5917
        %v5919 = vpop.f32.mrb[0].mxu0
        %v5920 = vadd.f32 0.0, %v5919
        %5921 = vmatprep.mubr.f32.mxu0 0.0
        %5922 = vmatmul.mubr.f32.gmra.mrb[0].mxu0 %v5451
        %v5923 = vpop.f32.mrb[0].mxu0
        %v5924 = vadd.f32 0.0, %v5923
        %v5925 = vpop.f32.mrb[0].mxu0
        %v5926 = vadd.f32 0.0, %v5925
        %5927 = vmatprep.mubr.f32.mxu0 0.0
        %5928 = vmatmul.mubr.f32.gmra.mrb[0].mxu0 %v5454
        %v5929 = vpop.f32.mrb[0].mxu0
        %v5930 = vadd.f32 0.0, %v5929
        %v5931 = vpop.f32.mrb[0].mxu0
        %v5932 = vadd.f32 0.0, %v5931
        %5933 = vmatprep.mubr.f32.mxu0 0.0
        %5934 = vmatmul.mubr.f32.gmra.mrb[0].mxu0 %v5457
        %v5935 = vpop.f32.mrb[0].mxu0
        %v5936 = vadd.f32 0.0, %v5935
        %v5937 = vpop.f32.mrb[0].mxu0
        %v5938 = vadd.f32 0.0, %v5937
        %5939 = vmatprep.mubr.f32.mxu0 0.0
        %5940 = vmatmul.mubr.f32.gmra.mrb[0].mxu0 %v5460
        %v5941 = vpop.f32.mrb[0].mxu0
        %v5942 = vadd.f32 0.0, %v5941
        %v5943 = vpop.f32.mrb[0].mxu0
        %v5944 = vadd.f32 0.0, %v5943
        %5945 = vmatprep.mubr.f32.mxu0 0.0
        %5946 = vmatmul.mubr.f32.gmra.mrb[0].mxu0 %v5463
        %v5947 = vpop.f32.mrb[0].mxu0
        %v5948 = vadd.f32 0.0, %v5947
        %v5949 = vpop.f32.mrb[0].mxu0
        %v5950 = vadd.f32 0.0, %v5949
        %5951 = vmatprep.mubr.f32.mxu0 0.0
        %5952 = vmatmul.mubr.f32.gmra.mrb[0].mxu0 %v5466
        %v5953 = vpop.f32.mrb[0].mxu0
        %v5954 = vadd.f32 0.0, %v5953
        %v5955 = vpop.f32.mrb[0].mxu0
        %v5956 = vadd.f32 0.0, %v5955
        %5957 = vmatprep.mubr.f32.mxu0 0.0
        %5958 = vmatmul.mubr.f32.gmra.mrb[0].mxu0 %v5469
        %v5959 = vpop.f32.mrb[0].mxu0
        %v5960 = vadd.f32 0.0, %v5959
        %v5961 = vpop.f32.mrb[0].mxu0
        %v5962 = vadd.f32 0.0, %v5961
        %5963 = vmatprep.mubr.f32.mxu0 0.0
        %5964 = vmatmul.mubr.f32.gmra.mrb[0].mxu0 %v5472
        %v5965 = vpop.f32.mrb[0].mxu0
        %v5966 = vadd.f32 0.0, %v5965
        %v5967 = vpop.f32.mrb[0].mxu0
        %v5968 = vadd.f32 0.0, %v5967
        %5969 = vmatprep.mubr.f32.mxu0 0.0
        %5970 = vmatmul.mubr.f32.gmra.mrb[0].mxu0 %v5475
        %v5971 = vpop.f32.mrb[0].mxu0
        %v5972 = vadd.f32 0.0, %v5971
        %v5973 = vpop.f32.mrb[0].mxu0
        %v5974 = vadd.f32 0.0, %v5973
        %5975 = vmatprep.mubr.f32.mxu0 0.0
        %5976 = vmatmul.mubr.f32.gmra.mrb[0].mxu0 %v5478
        %v5977 = vpop.f32.mrb[0].mxu0
        %v5978 = vadd.f32 0.0, %v5977
        %v5979 = vpop.f32.mrb[0].mxu0
        %v5980 = vadd.f32 0.0, %v5979
        %5981 = vmatprep.mubr.f32.mxu0 0.0
        %5982 = vmatmul.mubr.f32.gmra.mrb[0].mxu0 %v5481
        %v5983 = vpop.f32.mrb[0].mxu0
        %v5984 = vadd.f32 0.0, %v5983
        %v5985 = vpop.f32.mrb[0].mxu0
        %v5986 = vadd.f32 0.0, %v5985
        %5987 = vmatprep.mubr.f32.mxu0 0.0
        %5988 = vmatmul.mubr.f32.gmra.mrb[0].mxu0 %v5484
        %v5989 = vpop.f32.mrb[0].mxu0
        %v5990 = vadd.f32 0.0, %v5989
        %v5991 = vpop.f32.mrb[0].mxu0
        %v5992 = vadd.f32 0.0, %v5991
        %5993 = vmatprep.mubr.f32.mxu0 0.0
        %5994 = vmatmul.mubr.f32.gmra.mrb[0].mxu0 %v5487
        %v5995 = vpop.f32.mrb[0].mxu0
        %v5996 = vadd.f32 0.0, %v5995
        %v5997 = vpop.f32.mrb[0].mxu0
        %v5998 = vadd.f32 0.0, %v5997
        %5999 = vmatprep.mubr.f32.mxu0 0.0
        %6000 = vmatmul.mubr.f32.gmra.mrb[0].mxu0 %v5490
        %v6001 = vpop.f32.mrb[0].mxu0
        %v6002 = vadd.f32 0.0, %v6001
        %v6003 = vpop.f32.mrb[0].mxu0
        %v6004 = vadd.f32 0.0, %v6003
        %6005 = vmatprep.mubr.f32.mxu0 0.0
        %6006 = vmatmul.mubr.f32.gmra.mrb[0].mxu0 %v5493
        %v6007 = vpop.f32.mrb[0].mxu0
        %v6008 = vadd.f32 0.0, %v6007
        %v6009 = vpop.f32.mrb[0].mxu0
        %v6010 = vadd.f32 0.0, %v6009
        %6011 = vmatprep.mubr.f32.mxu0 0.0
        %6012 = vmatmul.mubr.f32.gmra.mrb[0].mxu0 %v5496
        %v6013 = vpop.f32.mrb[0].mxu0
        %v6014 = vadd.f32 0.0, %v6013
        %v6015 = vpop.f32.mrb[0].mxu0
        %v6016 = vadd.f32 0.0, %v6015
        %6017 = vmatprep.mubr.f32.mxu0 0.0
        %6018 = vmatmul.mubr.f32.gmra.mrb[0].mxu0 %v5499
        %v6019 = vpop.f32.mrb[0].mxu0
        %v6020 = vadd.f32 0.0, %v6019
        %v6021 = vpop.f32.mrb[0].mxu0
        %v6022 = vadd.f32 0.0, %v6021
        %6023 = vmatprep.mubr.f32.mxu0 0.0
        %6024 = vmatmul.mubr.f32.gmra.mrb[0].mxu0 %v5502
        %v6025 = vpop.f32.mrb[0].mxu0
        %v6026 = vadd.f32 0.0, %v6025
        %v6027 = vpop.f32.mrb[0].mxu0
        %v6028 = vadd.f32 0.0, %v6027
        %6029 = vmatprep.mubr.f32.mxu0 0.0
        %6030 = vmatmul.mubr.f32.gmra.mrb[0].mxu0 %v5505
        %v6031 = vpop.f32.mrb[0].mxu0
        %v6032 = vadd.f32 0.0, %v6031
        %v6033 = vpop.f32.mrb[0].mxu0
        %v6034 = vadd.f32 0.0, %v6033
        %6035 = vmatprep.mubr.f32.mxu0 0.0
        %6036 = vmatmul.mubr.f32.gmra.mrb[0].mxu0 %v5508
        %v6037 = vpop.f32.mrb[0].mxu0
        %v6038 = vadd.f32 0.0, %v6037
        %v6039 = vpop.f32.mrb[0].mxu0
        %v6040 = vadd.f32 0.0, %v6039
        %6041 = vmatprep.mubr.f32.mxu0 0.0
        %6042 = vmatmul.mubr.f32.gmra.mrb[0].mxu0 %v5511
        %v6043 = vpop.f32.mrb[0].mxu0
        %v6044 = vadd.f32 0.0, %v6043
        %v6045 = vpop.f32.mrb[0].mxu0
        %v6046 = vadd.f32 0.0, %v6045
        %6047 = vmatprep.mubr.f32.mxu0 0.0
        %6048 = vmatmul.mubr.f32.gmra.mrb[0].mxu0 %v5514
        %v6049 = vpop.f32.mrb[0].mxu0
        %v6050 = vadd.f32 0.0, %v6049
        %v6051 = vpop.f32.mrb[0].mxu0
        %v6052 = vadd.f32 0.0, %v6051
        %6053 = vmatprep.mubr.f32.mxu0 0.0
        %6054 = vmatmul.mubr.f32.gmra.mrb[0].mxu0 %v5517
        %v6055 = vpop.f32.mrb[0].mxu0
        %v6056 = vadd.f32 0.0, %v6055
        %v6057 = vpop.f32.mrb[0].mxu0
        %v6058 = vadd.f32 0.0, %v6057
        %6059 = vmatprep.mubr.f32.mxu0 0.0
        %6060 = vmatmul.mubr.f32.gmra.mrb[0].mxu0 %v5520
        %v6061 = vpop.f32.mrb[0].mxu0
        %v6062 = vadd.f32 0.0, %v6061
        %v6063 = vpop.f32.mrb[0].mxu0
        %v6064 = vadd.f32 0.0, %v6063
        %6065 = vmatprep.mubr.f32.mxu0 0.0
        %6066 = vmatmul.mubr.f32.gmra.mrb[0].mxu0 %v5523
        %v6067 = vpop.f32.mrb[0].mxu0
        %v6068 = vadd.f32 0.0, %v6067
        %v6069 = vpop.f32.mrb[0].mxu0
        %v6070 = vadd.f32 0.0, %v6069
        %6071 = vmatprep.mubr.f32.mxu0 0.0
        %6072 = vmatmul.mubr.f32.gmra.mrb[0].mxu0 %v5526
        %v6073 = vpop.f32.mrb[0].mxu0
        %v6074 = vadd.f32 0.0, %v6073
        %v6075 = vpop.f32.mrb[0].mxu0
        %v6076 = vadd.f32 0.0, %v6075
        %6077 = vmatprep.mubr.f32.mxu0 0.0
        %6078 = vmatmul.mubr.f32.gmra.mrb[0].mxu0 %v5529
        %v6079 = vpop.f32.mrb[0].mxu0
        %v6080 = vadd.f32 0.0, %v6079
        %v6081 = vpop.f32.mrb[0].mxu0
        %v6082 = vadd.f32 0.0, %v6081
        %6083 = vmatprep.mubr.f32.mxu0 0.0
        %6084 = vmatmul.mubr.f32.gmra.mrb[0].mxu0 %v5532
        %v6085 = vpop.f32.mrb[0].mxu0
        %v6086 = vadd.f32 0.0, %v6085
        %v6087 = vpop.f32.mrb[0].mxu0
        %v6088 = vadd.f32 0.0, %v6087
        %6089 = vmatprep.mubr.f32.mxu0 0.0
        %6090 = vmatmul.mubr.f32.gmra.mrb[0].mxu0 %v5535
        %v6091 = vpop.f32.mrb[0].mxu0
        %v6092 = vadd.f32 0.0, %v6091
        %v6093 = vpop.f32.mrb[0].mxu0
        %v6094 = vadd.f32 0.0, %v6093
        %6095 = vmatprep.mubr.f32.mxu0 0.0
        %6096 = vmatmul.mubr.f32.gmra.mrb[0].mxu0 %v5538
        %v6097 = vpop.f32.mrb[0].mxu0
        %v6098 = vadd.f32 0.0, %v6097
        %v6099 = vpop.f32.mrb[0].mxu0
        %v6100 = vadd.f32 0.0, %v6099
        %6101 = vdwg.mxu0
        %v6102 = vadd.f32 %v5235, %v5607
        %v6103 = vadd.f32 %v5236, %v5609
        %v6104 = vadd.f32 %v5237, %v5888
        %v6105 = vadd.f32 %v5238, %v5890
        %v6106 = vadd.f32 %v5239, %v5613
        %v6107 = vadd.f32 %v5240, %v5615
        %v6108 = vadd.f32 %v5241, %v5894
        %v6109 = vadd.f32 %v5242, %v5896
        %v6110 = vadd.f32 %v5243, %v5619
        %v6111 = vadd.f32 %v5244, %v5621
        %v6112 = vadd.f32 %v5245, %v5900
        %v6113 = vadd.f32 %v5246, %v5902
        %v6114 = vadd.f32 %v5247, %v5625
        %v6115 = vadd.f32 %v5248, %v5627
        %v6116 = vadd.f32 %v5249, %v5906
        %v6117 = vadd.f32 %v5250, %v5908
        %v6118 = vadd.f32 %v5251, %v5631
        %v6119 = vadd.f32 %v5252, %v5633
        %v6120 = vadd.f32 %v5253, %v5912
        %v6121 = vadd.f32 %v5254, %v5914
        %v6122 = vadd.f32 %v5255, %v5637
        %v6123 = vadd.f32 %v5256, %v5639
        %v6124 = vadd.f32 %v5257, %v5918
        %v6125 = vadd.f32 %v5258, %v5920
        %v6126 = vadd.f32 %v5259, %v5643
        %v6127 = vadd.f32 %v5260, %v5645
        %v6128 = vadd.f32 %v5261, %v5924
        %v6129 = vadd.f32 %v5262, %v5926
        %v6130 = vadd.f32 %v5263, %v5649
        %v6131 = vadd.f32 %v5264, %v5651
        %v6132 = vadd.f32 %v5265, %v5930
        %v6133 = vadd.f32 %v5266, %v5932
        %v6134 = vadd.f32 %v5267, %v5655
        %v6135 = vadd.f32 %v5268, %v5657
        %v6136 = vadd.f32 %v5269, %v5936
        %v6137 = vadd.f32 %v5270, %v5938
        %v6138 = vadd.f32 %v5271, %v5661
        %v6139 = vadd.f32 %v5272, %v5663
        %v6140 = vadd.f32 %v5273, %v5942
        %v6141 = vadd.f32 %v5274, %v5944
        %v6142 = vadd.f32 %v5275, %v5667
        %v6143 = vadd.f32 %v5276, %v5669
        %v6144 = vadd.f32 %v5277, %v5948
        %v6145 = vadd.f32 %v5278, %v5950
        %v6146 = vadd.f32 %v5279, %v5673
        %v6147 = vadd.f32 %v5280, %v5675
        %v6148 = vadd.f32 %v5281, %v5954
        %v6149 = vadd.f32 %v5282, %v5956
        %v6150 = vadd.f32 %v5283, %v5679
        %v6151 = vadd.f32 %v5284, %v5681
        %v6152 = vadd.f32 %v5285, %v5960
        %v6153 = vadd.f32 %v5286, %v5962
        %v6154 = vadd.f32 %v5287, %v5685
        %v6155 = vadd.f32 %v5288, %v5687
        %v6156 = vadd.f32 %v5289, %v5966
        %v6157 = vadd.f32 %v5290, %v5968
        %v6158 = vadd.f32 %v5291, %v5691
        %v6159 = vadd.f32 %v5292, %v5693
        %v6160 = vadd.f32 %v5293, %v5972
        %v6161 = vadd.f32 %v5294, %v5974
        %v6162 = vadd.f32 %v5295, %v5697
        %v6163 = vadd.f32 %v5296, %v5699
        %v6164 = vadd.f32 %v5297, %v5978
        %v6165 = vadd.f32 %v5298, %v5980
        %v6166 = vadd.f32 %v5299, %v5703
        %v6167 = vadd.f32 %v5300, %v5705
        %v6168 = vadd.f32 %v5301, %v5984
        %v6169 = vadd.f32 %v5302, %v5986
        %v6170 = vadd.f32 %v5303, %v5709
        %v6171 = vadd.f32 %v5304, %v5711
        %v6172 = vadd.f32 %v5305, %v5990
        %v6173 = vadd.f32 %v5306, %v5992
        %v6174 = vadd.f32 %v5307, %v5715
        %v6175 = vadd.f32 %v5308, %v5717
        %v6176 = vadd.f32 %v5309, %v5996
        %v6177 = vadd.f32 %v5310, %v5998
        %v6178 = vadd.f32 %v5311, %v5721
        %v6179 = vadd.f32 %v5312, %v5723
        %v6180 = vadd.f32 %v5313, %v6002
        %v6181 = vadd.f32 %v5314, %v6004
        %v6182 = vadd.f32 %v5315, %v5727
        %v6183 = vadd.f32 %v5316, %v5729
        %v6184 = vadd.f32 %v5317, %v6008
        %v6185 = vadd.f32 %v5318, %v6010
        %v6186 = vadd.f32 %v5319, %v5733
        %v6187 = vadd.f32 %v5320, %v5735
        %v6188 = vadd.f32 %v5321, %v6014
        %v6189 = vadd.f32 %v5322, %v6016
        %v6190 = vadd.f32 %v5323, %v5739
        %v6191 = vadd.f32 %v5324, %v5741
        %v6192 = vadd.f32 %v5325, %v6020
        %v6193 = vadd.f32 %v5326, %v6022
        %v6194 = vadd.f32 %v5327, %v5745
        %v6195 = vadd.f32 %v5328, %v5747
        %v6196 = vadd.f32 %v5329, %v6026
        %v6197 = vadd.f32 %v5330, %v6028
        %v6198 = vadd.f32 %v5331, %v5751
        %v6199 = vadd.f32 %v5332, %v5753
        %v6200 = vadd.f32 %v5333, %v6032
        %v6201 = vadd.f32 %v5334, %v6034
        %v6202 = vadd.f32 %v5335, %v5757
        %v6203 = vadd.f32 %v5336, %v5759
        %v6204 = vadd.f32 %v5337, %v6038
        %v6205 = vadd.f32 %v5338, %v6040
        %v6206 = vadd.f32 %v5339, %v5763
        %v6207 = vadd.f32 %v5340, %v5765
        %v6208 = vadd.f32 %v5341, %v6044
        %v6209 = vadd.f32 %v5342, %v6046
        %v6210 = vadd.f32 %v5343, %v5769
        %v6211 = vadd.f32 %v5344, %v5771
        %v6212 = vadd.f32 %v5345, %v6050
        %v6213 = vadd.f32 %v5346, %v6052
        %v6214 = vadd.f32 %v5347, %v5775
        %v6215 = vadd.f32 %v5348, %v5777
        %v6216 = vadd.f32 %v5349, %v6056
        %v6217 = vadd.f32 %v5350, %v6058
        %v6218 = vadd.f32 %v5351, %v5781
        %v6219 = vadd.f32 %v5352, %v5783
        %v6220 = vadd.f32 %v5353, %v6062
        %v6221 = vadd.f32 %v5354, %v6064
        %v6222 = vadd.f32 %v5355, %v5787
        %v6223 = vadd.f32 %v5356, %v5789
        %v6224 = vadd.f32 %v5357, %v6068
        %v6225 = vadd.f32 %v5358, %v6070
        %v6226 = vadd.f32 %v5359, %v5793
        %v6227 = vadd.f32 %v5360, %v5795
        %v6228 = vadd.f32 %v5361, %v6074
        %v6229 = vadd.f32 %v5362, %v6076
        %v6230 = vadd.f32 %v5363, %v5799
        %v6231 = vadd.f32 %v5364, %v5801
        %v6232 = vadd.f32 %v5365, %v6080
        %v6233 = vadd.f32 %v5366, %v6082
        %v6234 = vadd.f32 %v5367, %v5805
        %v6235 = vadd.f32 %v5368, %v5807
        %v6236 = vadd.f32 %v5369, %v6086
        %v6237 = vadd.f32 %v5370, %v6088
        %v6238 = vadd.f32 %v5371, %v5811
        %v6239 = vadd.f32 %v5372, %v5813
        %v6240 = vadd.f32 %v5373, %v6092
        %v6241 = vadd.f32 %v5374, %v6094
        %v6242 = vadd.f32 %v5375, %v5817
        %v6243 = vadd.f32 %v5376, %v5819
        %v6244 = vadd.f32 %v5377, %v6098
        %v6245 = vadd.f32 %v5378, %v6100
        %v6246 = vld [vmem:[%s454 + $0x25] sm:$0xff]
        %v6247 = vld [vmem:[%s454 + $0x2d] sm:$0xff]
        %v6248 = vld [vmem:[%s454 + $0x35] sm:$0xff]
        %v6249 = vld [vmem:[%s454 + $0x3d] sm:$0xff]
        %v6250 = vld [vmem:[%s454 + $0x45] sm:$0xff]
        %v6251 = vld [vmem:[%s454 + $0x4d] sm:$0xff]
        %v6252 = vld [vmem:[%s454 + $0x55] sm:$0xff]
        %v6253 = vld [vmem:[%s454 + $0x5d] sm:$0xff]
        %v6254 = vld [vmem:[%s454 + $0x65] sm:$0xff]
        %v6255 = vld [vmem:[%s454 + $0x6d] sm:$0xff]
        %v6256 = vld [vmem:[%s454 + $0x75] sm:$0xff]
        %v6257 = vld [vmem:[%s454 + $0x7d] sm:$0xff]
        %v6258 = vld [vmem:[%s454 + $0x85] sm:$0xff]
        %v6259 = vld [vmem:[%s454 + $0x8d] sm:$0xff]
        %v6260 = vld [vmem:[%s454 + $0x95] sm:$0xff]
        %v6261 = vld [vmem:[%s454 + $0x9d] sm:$0xff]
        %v6262 = vld [vmem:[%s454 + $0xa5] sm:$0xff]
        %v6263 = vld [vmem:[%s454 + $0xad] sm:$0xff]
        %v6264 = vld [vmem:[%s454 + $0xb5] sm:$0xff]
        %v6265 = vld [vmem:[%s454 + $0xbd] sm:$0xff]
        %v6266 = vld [vmem:[%s454 + $0xc5] sm:$0xff]
        %v6267 = vld [vmem:[%s454 + $0xcd] sm:$0xff]
        %v6268 = vld [vmem:[%s454 + $0xd5] sm:$0xff]
        %v6269 = vld [vmem:[%s454 + $0xdd] sm:$0xff]
        %v6270 = vld [vmem:[%s454 + $0xe5] sm:$0xff]
        %v6271 = vld [vmem:[%s454 + $0xed] sm:$0xff]
        %v6272 = vld [vmem:[%s454 + $0xf5] sm:$0xff]
        %v6273 = vld [vmem:[%s454 + $0xfd] sm:$0xff]
        %v6274 = vld [vmem:[%s454 + $0x105] sm:$0xff]
        %v6275 = vld [vmem:[%s454 + $0x10d] sm:$0xff]
        %v6276 = vld [vmem:[%s454 + $0x115] sm:$0xff]
        %v6277 = vld [vmem:[%s454 + $0x11d] sm:$0xff]
        %v6278 = vld [vmem:[%s454 + $0x125] sm:$0xff]
        %v6279 = vld [vmem:[%s454 + $0x12d] sm:$0xff]
        %v6280 = vld [vmem:[%s454 + $0x135] sm:$0xff]
        %v6281 = vld [vmem:[%s454 + $0x13d] sm:$0xff]
        %s6282 = scalar_lea.vmem %s1, 896
        %v6283 = vld [vmem:[%s6282] sm:$0xff]
        %v6284 = vld [vmem:[%s6282 + $0x8] sm:$0xff]
        %v6285 = vld [vmem:[%s6282 + $0x10] sm:$0xff]
        %v6286 = vld [vmem:[%s6282 + $0x18] sm:$0xff]
        %v6287 = vld [vmem:[%s6282 + $0x20] sm:$0xff]
        %v6288 = vld [vmem:[%s6282 + $0x28] sm:$0xff]
        %v6289 = vld [vmem:[%s6282 + $0x30] sm:$0xff]
        %v6290 = vld [vmem:[%s6282 + $0x38] sm:$0xff]
        %v6291 = vld [vmem:[%s6282 + $0x40] sm:$0xff]
        %v6292 = vld [vmem:[%s6282 + $0x48] sm:$0xff]
        %v6293 = vld [vmem:[%s6282 + $0x50] sm:$0xff]
        %v6294 = vld [vmem:[%s6282 + $0x58] sm:$0xff]
        %v6295 = vld [vmem:[%s6282 + $0x60] sm:$0xff]
        %v6296 = vld [vmem:[%s6282 + $0x68] sm:$0xff]
        %v6297 = vld [vmem:[%s6282 + $0x70] sm:$0xff]
        %v6298 = vld [vmem:[%s6282 + $0x78] sm:$0xff]
        %v6300 = vsel %vm570, %v6246, 0
        %v6303 = vsel %vm570, %v6247, 0
        %v6306 = vsel %vm570, %v6248, 0
        %v6309 = vsel %vm570, %v6249, 0
        %v6312 = vsel %vm570, %v6250, 0
        %v6315 = vsel %vm570, %v6251, 0
        %v6318 = vsel %vm570, %v6252, 0
        %v6321 = vsel %vm570, %v6253, 0
        %v6324 = vsel %vm570, %v6254, 0
        %v6327 = vsel %vm570, %v6255, 0
        %v6330 = vsel %vm570, %v6256, 0
        %v6333 = vsel %vm570, %v6257, 0
        %v6336 = vsel %vm570, %v6258, 0
        %v6339 = vsel %vm570, %v6259, 0
        %v6342 = vsel %vm570, %v6260, 0
        %v6345 = vsel %vm570, %v6261, 0
        %v6348 = vsel %vm570, %v6262, 0
        %v6351 = vsel %vm570, %v6263, 0
        %v6354 = vsel %vm570, %v6264, 0
        %v6357 = vsel %vm570, %v6265, 0
        %v6360 = vsel %vm570, %v6266, 0
        %v6363 = vsel %vm570, %v6267, 0
        %v6366 = vsel %vm570, %v6268, 0
        %v6369 = vsel %vm570, %v6269, 0
        %v6372 = vsel %vm570, %v6270, 0
        %v6375 = vsel %vm570, %v6271, 0
        %v6378 = vsel %vm570, %v6272, 0
        %v6381 = vsel %vm570, %v6273, 0
        %v6384 = vsel %vm570, %v6274, 0
        %v6387 = vsel %vm570, %v6275, 0
        %v6390 = vsel %vm570, %v6276, 0
        %v6393 = vsel %vm570, %v6277, 0
        %v6396 = vsel %vm570, %v6278, 0
        %v6399 = vsel %vm570, %v6279, 0
        %v6402 = vsel %vm570, %v6280, 0
        %v6405 = vsel %vm570, %v6281, 0
        %6407 = vmatprep.subr.mxu0 %v6284
        %6408 = vmatpush1.msra.mxu0 %v6283
        %6409 = vmatprep.subr.mxu0 %v6288
        %6410 = vmatpush1.msra.mxu0 %v6287
        %6411 = vmatprep.subr.mxu0 %v6292
        %6412 = vmatpush1.msra.mxu0 %v6291
        %6413 = vmatprep.subr.mxu0 %v6296
        %6414 = vmatpush1.msra.mxu0 %v6295
        %6415 = vmatprep.subr.mxu0 0.0
        %6416 = vmatpush1.msra.mxu0 0.0
        %6417 = vmatprep.subr.mxu0 0.0
        %6418 = vmatpush1.msra.mxu0 0.0
        %6419 = vmatprep.subr.mxu0 0.0
        %6420 = vmatpush1.msra.mxu0 0.0
        %6421 = vmatprep.subr.mxu0 0.0
        %6422 = vmatpush1.msra.mxu0 0.0
        %6423 = vmatprep.subr.mxu0 0.0
        %6424 = vmatpush1.msra.mxu0 0.0
        %6425 = vmatprep.subr.mxu0 0.0
        %6426 = vmatpush1.msra.mxu0 0.0
        %6427 = vmatprep.subr.mxu0 0.0
        %6428 = vmatpush1.msra.mxu0 0.0
        %6429 = vmatprep.subr.mxu0 0.0
        %6430 = vmatpush1.msra.mxu0 0.0
        %6431 = vmatprep.subr.mxu0 0.0
        %6432 = vmatpush1.msra.mxu0 0.0
        %6433 = vmatprep.subr.mxu0 0.0
        %6434 = vmatpush1.msra.mxu0 0.0
        %6435 = vmatprep.subr.mxu0 0.0
        %6436 = vmatpush1.msra.mxu0 0.0
        %6437 = vmatprep.subr.mxu0 0.0
        %6438 = vmatpush1.msra.mxu0 0.0
        %6439 = vmatprep.subr.mxu0 0.0
        %6440 = vmatpush1.msra.mxu0 0.0
        %6441 = vmatprep.subr.mxu0 0.0
        %6442 = vmatpush1.msra.mxu0 0.0
        %6443 = vmatprep.subr.mxu0 0.0
        %6444 = vmatpush1.msra.mxu0 0.0
        %6445 = vmatprep.subr.mxu0 0.0
        %6446 = vmatpush1.msra.mxu0 0.0
        %6447 = vmatprep.subr.mxu0 0.0
        %6448 = vmatpush1.msra.mxu0 0.0
        %6449 = vmatprep.subr.mxu0 0.0
        %6450 = vmatpush1.msra.mxu0 0.0
        %6451 = vmatprep.subr.mxu0 0.0
        %6452 = vmatpush1.msra.mxu0 0.0
        %6453 = vmatprep.subr.mxu0 0.0
        %6454 = vmatpush1.msra.mxu0 0.0
        %6455 = vmatprep.subr.mxu0 0.0
        %6456 = vmatpush1.msra.mxu0 0.0
        %6457 = vmatprep.subr.mxu0 0.0
        %6458 = vmatpush1.msra.mxu0 0.0
        %6459 = vmatprep.subr.mxu0 0.0
        %6460 = vmatpush1.msra.mxu0 0.0
        %6461 = vmatprep.subr.mxu0 0.0
        %6462 = vmatpush1.msra.mxu0 0.0
        %6463 = vmatprep.subr.mxu0 0.0
        %6464 = vmatpush1.msra.mxu0 0.0
        %6465 = vmatprep.subr.mxu0 0.0
        %6466 = vmatpush1.msra.mxu0 0.0
        %6467 = vmatprep.subr.mxu0 0.0
        %6468 = vmatpush1.msra.mxu0 0.0
        %6469 = vmatprep.subr.mxu0 0.0
        %6470 = vmatpush1.msra.mxu0 0.0
        %6471 = vmatprep.mubr.f32.mxu0 0.0
        %6472 = vmatmul.mubr.f32.gmra.mrb[0].mxu0 %v6300
        %v6473 = vpop.f32.mrb[0].mxu0
        %v6474 = vadd.f32 0.0, %v6473
        %v6475 = vpop.f32.mrb[0].mxu0
        %v6476 = vadd.f32 0.0, %v6475
        %6477 = vmatprep.mubr.f32.mxu0 0.0
        %6478 = vmatmul.mubr.f32.gmra.mrb[0].mxu0 %v6303
        %v6479 = vpop.f32.mrb[0].mxu0
        %v6480 = vadd.f32 0.0, %v6479
        %v6481 = vpop.f32.mrb[0].mxu0
        %v6482 = vadd.f32 0.0, %v6481
        %6483 = vmatprep.mubr.f32.mxu0 0.0
        %6484 = vmatmul.mubr.f32.gmra.mrb[0].mxu0 %v6306
        %v6485 = vpop.f32.mrb[0].mxu0
        %v6486 = vadd.f32 0.0, %v6485
        %v6487 = vpop.f32.mrb[0].mxu0
        %v6488 = vadd.f32 0.0, %v6487
        %6489 = vmatprep.mubr.f32.mxu0 0.0
        %6490 = vmatmul.mubr.f32.gmra.mrb[0].mxu0 %v6309
        %v6491 = vpop.f32.mrb[0].mxu0
        %v6492 = vadd.f32 0.0, %v6491
        %v6493 = vpop.f32.mrb[0].mxu0
        %v6494 = vadd.f32 0.0, %v6493
        %6495 = vmatprep.mubr.f32.mxu0 0.0
        %6496 = vmatmul.mubr.f32.gmra.mrb[0].mxu0 %v6312
        %v6497 = vpop.f32.mrb[0].mxu0
        %v6498 = vadd.f32 0.0, %v6497
        %v6499 = vpop.f32.mrb[0].mxu0
        %v6500 = vadd.f32 0.0, %v6499
        %6501 = vmatprep.mubr.f32.mxu0 0.0
        %6502 = vmatmul.mubr.f32.gmra.mrb[0].mxu0 %v6315
        %v6503 = vpop.f32.mrb[0].mxu0
        %v6504 = vadd.f32 0.0, %v6503
        %v6505 = vpop.f32.mrb[0].mxu0
        %v6506 = vadd.f32 0.0, %v6505
        %6507 = vmatprep.mubr.f32.mxu0 0.0
        %6508 = vmatmul.mubr.f32.gmra.mrb[0].mxu0 %v6318
        %v6509 = vpop.f32.mrb[0].mxu0
        %v6510 = vadd.f32 0.0, %v6509
        %v6511 = vpop.f32.mrb[0].mxu0
        %v6512 = vadd.f32 0.0, %v6511
        %6513 = vmatprep.mubr.f32.mxu0 0.0
        %6514 = vmatmul.mubr.f32.gmra.mrb[0].mxu0 %v6321
        %v6515 = vpop.f32.mrb[0].mxu0
        %v6516 = vadd.f32 0.0, %v6515
        %v6517 = vpop.f32.mrb[0].mxu0
        %v6518 = vadd.f32 0.0, %v6517
        %6519 = vmatprep.mubr.f32.mxu0 0.0
        %6520 = vmatmul.mubr.f32.gmra.mrb[0].mxu0 %v6324
        %v6521 = vpop.f32.mrb[0].mxu0
        %v6522 = vadd.f32 0.0, %v6521
        %v6523 = vpop.f32.mrb[0].mxu0
        %v6524 = vadd.f32 0.0, %v6523
        %6525 = vmatprep.mubr.f32.mxu0 0.0
        %6526 = vmatmul.mubr.f32.gmra.mrb[0].mxu0 %v6327
        %v6527 = vpop.f32.mrb[0].mxu0
        %v6528 = vadd.f32 0.0, %v6527
        %v6529 = vpop.f32.mrb[0].mxu0
        %v6530 = vadd.f32 0.0, %v6529
        %6531 = vmatprep.mubr.f32.mxu0 0.0
        %6532 = vmatmul.mubr.f32.gmra.mrb[0].mxu0 %v6330
        %v6533 = vpop.f32.mrb[0].mxu0
        %v6534 = vadd.f32 0.0, %v6533
        %v6535 = vpop.f32.mrb[0].mxu0
        %v6536 = vadd.f32 0.0, %v6535
        %6537 = vmatprep.mubr.f32.mxu0 0.0
        %6538 = vmatmul.mubr.f32.gmra.mrb[0].mxu0 %v6333
        %v6539 = vpop.f32.mrb[0].mxu0
        %v6540 = vadd.f32 0.0, %v6539
        %v6541 = vpop.f32.mrb[0].mxu0
        %v6542 = vadd.f32 0.0, %v6541
        %6543 = vmatprep.mubr.f32.mxu0 0.0
        %6544 = vmatmul.mubr.f32.gmra.mrb[0].mxu0 %v6336
        %v6545 = vpop.f32.mrb[0].mxu0
        %v6546 = vadd.f32 0.0, %v6545
        %v6547 = vpop.f32.mrb[0].mxu0
        %v6548 = vadd.f32 0.0, %v6547
        %6549 = vmatprep.mubr.f32.mxu0 0.0
        %6550 = vmatmul.mubr.f32.gmra.mrb[0].mxu0 %v6339
        %v6551 = vpop.f32.mrb[0].mxu0
        %v6552 = vadd.f32 0.0, %v6551
        %v6553 = vpop.f32.mrb[0].mxu0
        %v6554 = vadd.f32 0.0, %v6553
        %6555 = vmatprep.mubr.f32.mxu0 0.0
        %6556 = vmatmul.mubr.f32.gmra.mrb[0].mxu0 %v6342
        %v6557 = vpop.f32.mrb[0].mxu0
        %v6558 = vadd.f32 0.0, %v6557
        %v6559 = vpop.f32.mrb[0].mxu0
        %v6560 = vadd.f32 0.0, %v6559
        %6561 = vmatprep.mubr.f32.mxu0 0.0
        %6562 = vmatmul.mubr.f32.gmra.mrb[0].mxu0 %v6345
        %v6563 = vpop.f32.mrb[0].mxu0
        %v6564 = vadd.f32 0.0, %v6563
        %v6565 = vpop.f32.mrb[0].mxu0
        %v6566 = vadd.f32 0.0, %v6565
        %6567 = vmatprep.mubr.f32.mxu0 0.0
        %6568 = vmatmul.mubr.f32.gmra.mrb[0].mxu0 %v6348
        %v6569 = vpop.f32.mrb[0].mxu0
        %v6570 = vadd.f32 0.0, %v6569
        %v6571 = vpop.f32.mrb[0].mxu0
        %v6572 = vadd.f32 0.0, %v6571
        %6573 = vmatprep.mubr.f32.mxu0 0.0
        %6574 = vmatmul.mubr.f32.gmra.mrb[0].mxu0 %v6351
        %v6575 = vpop.f32.mrb[0].mxu0
        %v6576 = vadd.f32 0.0, %v6575
        %v6577 = vpop.f32.mrb[0].mxu0
        %v6578 = vadd.f32 0.0, %v6577
        %6579 = vmatprep.mubr.f32.mxu0 0.0
        %6580 = vmatmul.mubr.f32.gmra.mrb[0].mxu0 %v6354
        %v6581 = vpop.f32.mrb[0].mxu0
        %v6582 = vadd.f32 0.0, %v6581
        %v6583 = vpop.f32.mrb[0].mxu0
        %v6584 = vadd.f32 0.0, %v6583
        %6585 = vmatprep.mubr.f32.mxu0 0.0
        %6586 = vmatmul.mubr.f32.gmra.mrb[0].mxu0 %v6357
        %v6587 = vpop.f32.mrb[0].mxu0
        %v6588 = vadd.f32 0.0, %v6587
        %v6589 = vpop.f32.mrb[0].mxu0
        %v6590 = vadd.f32 0.0, %v6589
        %6591 = vmatprep.mubr.f32.mxu0 0.0
        %6592 = vmatmul.mubr.f32.gmra.mrb[0].mxu0 %v6360
        %v6593 = vpop.f32.mrb[0].mxu0
        %v6594 = vadd.f32 0.0, %v6593
        %v6595 = vpop.f32.mrb[0].mxu0
        %v6596 = vadd.f32 0.0, %v6595
        %6597 = vmatprep.mubr.f32.mxu0 0.0
        %6598 = vmatmul.mubr.f32.gmra.mrb[0].mxu0 %v6363
        %v6599 = vpop.f32.mrb[0].mxu0
        %v6600 = vadd.f32 0.0, %v6599
        %v6601 = vpop.f32.mrb[0].mxu0
        %v6602 = vadd.f32 0.0, %v6601
        %6603 = vmatprep.mubr.f32.mxu0 0.0
        %6604 = vmatmul.mubr.f32.gmra.mrb[0].mxu0 %v6366
        %v6605 = vpop.f32.mrb[0].mxu0
        %v6606 = vadd.f32 0.0, %v6605
        %v6607 = vpop.f32.mrb[0].mxu0
        %v6608 = vadd.f32 0.0, %v6607
        %6609 = vmatprep.mubr.f32.mxu0 0.0
        %6610 = vmatmul.mubr.f32.gmra.mrb[0].mxu0 %v6369
        %v6611 = vpop.f32.mrb[0].mxu0
        %v6612 = vadd.f32 0.0, %v6611
        %v6613 = vpop.f32.mrb[0].mxu0
        %v6614 = vadd.f32 0.0, %v6613
        %6615 = vmatprep.mubr.f32.mxu0 0.0
        %6616 = vmatmul.mubr.f32.gmra.mrb[0].mxu0 %v6372
        %v6617 = vpop.f32.mrb[0].mxu0
        %v6618 = vadd.f32 0.0, %v6617
        %v6619 = vpop.f32.mrb[0].mxu0
        %v6620 = vadd.f32 0.0, %v6619
        %6621 = vmatprep.mubr.f32.mxu0 0.0
        %6622 = vmatmul.mubr.f32.gmra.mrb[0].mxu0 %v6375
        %v6623 = vpop.f32.mrb[0].mxu0
        %v6624 = vadd.f32 0.0, %v6623
        %v6625 = vpop.f32.mrb[0].mxu0
        %v6626 = vadd.f32 0.0, %v6625
        %6627 = vmatprep.mubr.f32.mxu0 0.0
        %6628 = vmatmul.mubr.f32.gmra.mrb[0].mxu0 %v6378
        %v6629 = vpop.f32.mrb[0].mxu0
        %v6630 = vadd.f32 0.0, %v6629
        %v6631 = vpop.f32.mrb[0].mxu0
        %v6632 = vadd.f32 0.0, %v6631
        %6633 = vmatprep.mubr.f32.mxu0 0.0
        %6634 = vmatmul.mubr.f32.gmra.mrb[0].mxu0 %v6381
        %v6635 = vpop.f32.mrb[0].mxu0
        %v6636 = vadd.f32 0.0, %v6635
        %v6637 = vpop.f32.mrb[0].mxu0
        %v6638 = vadd.f32 0.0, %v6637
        %6639 = vmatprep.mubr.f32.mxu0 0.0
        %6640 = vmatmul.mubr.f32.gmra.mrb[0].mxu0 %v6384
        %v6641 = vpop.f32.mrb[0].mxu0
        %v6642 = vadd.f32 0.0, %v6641
        %v6643 = vpop.f32.mrb[0].mxu0
        %v6644 = vadd.f32 0.0, %v6643
        %6645 = vmatprep.mubr.f32.mxu0 0.0
        %6646 = vmatmul.mubr.f32.gmra.mrb[0].mxu0 %v6387
        %v6647 = vpop.f32.mrb[0].mxu0
        %v6648 = vadd.f32 0.0, %v6647
        %v6649 = vpop.f32.mrb[0].mxu0
        %v6650 = vadd.f32 0.0, %v6649
        %6651 = vmatprep.mubr.f32.mxu0 0.0
        %6652 = vmatmul.mubr.f32.gmra.mrb[0].mxu0 %v6390
        %v6653 = vpop.f32.mrb[0].mxu0
        %v6654 = vadd.f32 0.0, %v6653
        %v6655 = vpop.f32.mrb[0].mxu0
        %v6656 = vadd.f32 0.0, %v6655
        %6657 = vmatprep.mubr.f32.mxu0 0.0
        %6658 = vmatmul.mubr.f32.gmra.mrb[0].mxu0 %v6393
        %v6659 = vpop.f32.mrb[0].mxu0
        %v6660 = vadd.f32 0.0, %v6659
        %v6661 = vpop.f32.mrb[0].mxu0
        %v6662 = vadd.f32 0.0, %v6661
        %6663 = vmatprep.mubr.f32.mxu0 0.0
        %6664 = vmatmul.mubr.f32.gmra.mrb[0].mxu0 %v6396
        %v6665 = vpop.f32.mrb[0].mxu0
        %v6666 = vadd.f32 0.0, %v6665
        %v6667 = vpop.f32.mrb[0].mxu0
        %v6668 = vadd.f32 0.0, %v6667
        %6669 = vmatprep.mubr.f32.mxu0 0.0
        %6670 = vmatmul.mubr.f32.gmra.mrb[0].mxu0 %v6399
        %v6671 = vpop.f32.mrb[0].mxu0
        %v6672 = vadd.f32 0.0, %v6671
        %v6673 = vpop.f32.mrb[0].mxu0
        %v6674 = vadd.f32 0.0, %v6673
        %6675 = vmatprep.mubr.f32.mxu0 0.0
        %6676 = vmatmul.mubr.f32.gmra.mrb[0].mxu0 %v6402
        %v6677 = vpop.f32.mrb[0].mxu0
        %v6678 = vadd.f32 0.0, %v6677
        %v6679 = vpop.f32.mrb[0].mxu0
        %v6680 = vadd.f32 0.0, %v6679
        %6681 = vmatprep.mubr.f32.mxu0 0.0
        %6682 = vmatmul.mubr.f32.gmra.mrb[0].mxu0 %v6405
        %v6683 = vpop.f32.mrb[0].mxu0
        %v6684 = vadd.f32 0.0, %v6683
        %v6685 = vpop.f32.mrb[0].mxu0
        %v6686 = vadd.f32 0.0, %v6685
        %6687 = vdwg.mxu0
        %6688 = vmatprep.subr.mxu0 %v6286
        %6689 = vmatpush1.msra.mxu0 %v6285
        %6690 = vmatprep.subr.mxu0 %v6290
        %6691 = vmatpush1.msra.mxu0 %v6289
        %6692 = vmatprep.subr.mxu0 %v6294
        %6693 = vmatpush1.msra.mxu0 %v6293
        %6694 = vmatprep.subr.mxu0 %v6298
        %6695 = vmatpush1.msra.mxu0 %v6297
        %6696 = vmatprep.subr.mxu0 0.0
        %6697 = vmatpush1.msra.mxu0 0.0
        %6698 = vmatprep.subr.mxu0 0.0
        %6699 = vmatpush1.msra.mxu0 0.0
        %6700 = vmatprep.subr.mxu0 0.0
        %6701 = vmatpush1.msra.mxu0 0.0
        %6702 = vmatprep.subr.mxu0 0.0
        %6703 = vmatpush1.msra.mxu0 0.0
        %6704 = vmatprep.subr.mxu0 0.0
        %6705 = vmatpush1.msra.mxu0 0.0
        %6706 = vmatprep.subr.mxu0 0.0
        %6707 = vmatpush1.msra.mxu0 0.0
        %6708 = vmatprep.subr.mxu0 0.0
        %6709 = vmatpush1.msra.mxu0 0.0
        %6710 = vmatprep.subr.mxu0 0.0
        %6711 = vmatpush1.msra.mxu0 0.0
        %6712 = vmatprep.subr.mxu0 0.0
        %6713 = vmatpush1.msra.mxu0 0.0
        %6714 = vmatprep.subr.mxu0 0.0
        %6715 = vmatpush1.msra.mxu0 0.0
        %6716 = vmatprep.subr.mxu0 0.0
        %6717 = vmatpush1.msra.mxu0 0.0
        %6718 = vmatprep.subr.mxu0 0.0
        %6719 = vmatpush1.msra.mxu0 0.0
        %6720 = vmatprep.subr.mxu0 0.0
        %6721 = vmatpush1.msra.mxu0 0.0
        %6722 = vmatprep.subr.mxu0 0.0
        %6723 = vmatpush1.msra.mxu0 0.0
        %6724 = vmatprep.subr.mxu0 0.0
        %6725 = vmatpush1.msra.mxu0 0.0
        %6726 = vmatprep.subr.mxu0 0.0
        %6727 = vmatpush1.msra.mxu0 0.0
        %6728 = vmatprep.subr.mxu0 0.0
        %6729 = vmatpush1.msra.mxu0 0.0
        %6730 = vmatprep.subr.mxu0 0.0
        %6731 = vmatpush1.msra.mxu0 0.0
        %6732 = vmatprep.subr.mxu0 0.0
        %6733 = vmatpush1.msra.mxu0 0.0
        %6734 = vmatprep.subr.mxu0 0.0
        %6735 = vmatpush1.msra.mxu0 0.0
        %6736 = vmatprep.subr.mxu0 0.0
        %6737 = vmatpush1.msra.mxu0 0.0
        %6738 = vmatprep.subr.mxu0 0.0
        %6739 = vmatpush1.msra.mxu0 0.0
        %6740 = vmatprep.subr.mxu0 0.0
        %6741 = vmatpush1.msra.mxu0 0.0
        %6742 = vmatprep.subr.mxu0 0.0
        %6743 = vmatpush1.msra.mxu0 0.0
        %6744 = vmatprep.subr.mxu0 0.0
        %6745 = vmatpush1.msra.mxu0 0.0
        %6746 = vmatprep.subr.mxu0 0.0
        %6747 = vmatpush1.msra.mxu0 0.0
        %6748 = vmatprep.subr.mxu0 0.0
        %6749 = vmatpush1.msra.mxu0 0.0
        %6750 = vmatprep.subr.mxu0 0.0
        %6751 = vmatpush1.msra.mxu0 0.0
        %6752 = vmatprep.mubr.f32.mxu0 0.0
        %6753 = vmatmul.mubr.f32.gmra.mrb[0].mxu0 %v6300
        %v6754 = vpop.f32.mrb[0].mxu0
        %v6755 = vadd.f32 0.0, %v6754
        %v6756 = vpop.f32.mrb[0].mxu0
        %v6757 = vadd.f32 0.0, %v6756
        %6758 = vmatprep.mubr.f32.mxu0 0.0
        %6759 = vmatmul.mubr.f32.gmra.mrb[0].mxu0 %v6303
        %v6760 = vpop.f32.mrb[0].mxu0
        %v6761 = vadd.f32 0.0, %v6760
        %v6762 = vpop.f32.mrb[0].mxu0
        %v6763 = vadd.f32 0.0, %v6762
        %6764 = vmatprep.mubr.f32.mxu0 0.0
        %6765 = vmatmul.mubr.f32.gmra.mrb[0].mxu0 %v6306
        %v6766 = vpop.f32.mrb[0].mxu0
        %v6767 = vadd.f32 0.0, %v6766
        %v6768 = vpop.f32.mrb[0].mxu0
        %v6769 = vadd.f32 0.0, %v6768
        %6770 = vmatprep.mubr.f32.mxu0 0.0
        %6771 = vmatmul.mubr.f32.gmra.mrb[0].mxu0 %v6309
        %v6772 = vpop.f32.mrb[0].mxu0
        %v6773 = vadd.f32 0.0, %v6772
        %v6774 = vpop.f32.mrb[0].mxu0
        %v6775 = vadd.f32 0.0, %v6774
        %6776 = vmatprep.mubr.f32.mxu0 0.0
        %6777 = vmatmul.mubr.f32.gmra.mrb[0].mxu0 %v6312
        %v6778 = vpop.f32.mrb[0].mxu0
        %v6779 = vadd.f32 0.0, %v6778
        %v6780 = vpop.f32.mrb[0].mxu0
        %v6781 = vadd.f32 0.0, %v6780
        %6782 = vmatprep.mubr.f32.mxu0 0.0
        %6783 = vmatmul.mubr.f32.gmra.mrb[0].mxu0 %v6315
        %v6784 = vpop.f32.mrb[0].mxu0
        %v6785 = vadd.f32 0.0, %v6784
        %v6786 = vpop.f32.mrb[0].mxu0
        %v6787 = vadd.f32 0.0, %v6786
        %6788 = vmatprep.mubr.f32.mxu0 0.0
        %6789 = vmatmul.mubr.f32.gmra.mrb[0].mxu0 %v6318
        %v6790 = vpop.f32.mrb[0].mxu0
        %v6791 = vadd.f32 0.0, %v6790
        %v6792 = vpop.f32.mrb[0].mxu0
        %v6793 = vadd.f32 0.0, %v6792
        %6794 = vmatprep.mubr.f32.mxu0 0.0
        %6795 = vmatmul.mubr.f32.gmra.mrb[0].mxu0 %v6321
        %v6796 = vpop.f32.mrb[0].mxu0
        %v6797 = vadd.f32 0.0, %v6796
        %v6798 = vpop.f32.mrb[0].mxu0
        %v6799 = vadd.f32 0.0, %v6798
        %6800 = vmatprep.mubr.f32.mxu0 0.0
        %6801 = vmatmul.mubr.f32.gmra.mrb[0].mxu0 %v6324
        %v6802 = vpop.f32.mrb[0].mxu0
        %v6803 = vadd.f32 0.0, %v6802
        %v6804 = vpop.f32.mrb[0].mxu0
        %v6805 = vadd.f32 0.0, %v6804
        %6806 = vmatprep.mubr.f32.mxu0 0.0
        %6807 = vmatmul.mubr.f32.gmra.mrb[0].mxu0 %v6327
        %v6808 = vpop.f32.mrb[0].mxu0
        %v6809 = vadd.f32 0.0, %v6808
        %v6810 = vpop.f32.mrb[0].mxu0
        %v6811 = vadd.f32 0.0, %v6810
        %6812 = vmatprep.mubr.f32.mxu0 0.0
        %6813 = vmatmul.mubr.f32.gmra.mrb[0].mxu0 %v6330
        %v6814 = vpop.f32.mrb[0].mxu0
        %v6815 = vadd.f32 0.0, %v6814
        %v6816 = vpop.f32.mrb[0].mxu0
        %v6817 = vadd.f32 0.0, %v6816
        %6818 = vmatprep.mubr.f32.mxu0 0.0
        %6819 = vmatmul.mubr.f32.gmra.mrb[0].mxu0 %v6333
        %v6820 = vpop.f32.mrb[0].mxu0
        %v6821 = vadd.f32 0.0, %v6820
        %v6822 = vpop.f32.mrb[0].mxu0
        %v6823 = vadd.f32 0.0, %v6822
        %6824 = vmatprep.mubr.f32.mxu0 0.0
        %6825 = vmatmul.mubr.f32.gmra.mrb[0].mxu0 %v6336
        %v6826 = vpop.f32.mrb[0].mxu0
        %v6827 = vadd.f32 0.0, %v6826
        %v6828 = vpop.f32.mrb[0].mxu0
        %v6829 = vadd.f32 0.0, %v6828
        %6830 = vmatprep.mubr.f32.mxu0 0.0
        %6831 = vmatmul.mubr.f32.gmra.mrb[0].mxu0 %v6339
        %v6832 = vpop.f32.mrb[0].mxu0
        %v6833 = vadd.f32 0.0, %v6832
        %v6834 = vpop.f32.mrb[0].mxu0
        %v6835 = vadd.f32 0.0, %v6834
        %6836 = vmatprep.mubr.f32.mxu0 0.0
        %6837 = vmatmul.mubr.f32.gmra.mrb[0].mxu0 %v6342
        %v6838 = vpop.f32.mrb[0].mxu0
        %v6839 = vadd.f32 0.0, %v6838
        %v6840 = vpop.f32.mrb[0].mxu0
        %v6841 = vadd.f32 0.0, %v6840
        %6842 = vmatprep.mubr.f32.mxu0 0.0
        %6843 = vmatmul.mubr.f32.gmra.mrb[0].mxu0 %v6345
        %v6844 = vpop.f32.mrb[0].mxu0
        %v6845 = vadd.f32 0.0, %v6844
        %v6846 = vpop.f32.mrb[0].mxu0
        %v6847 = vadd.f32 0.0, %v6846
        %6848 = vmatprep.mubr.f32.mxu0 0.0
        %6849 = vmatmul.mubr.f32.gmra.mrb[0].mxu0 %v6348
        %v6850 = vpop.f32.mrb[0].mxu0
        %v6851 = vadd.f32 0.0, %v6850
        %v6852 = vpop.f32.mrb[0].mxu0
        %v6853 = vadd.f32 0.0, %v6852
        %6854 = vmatprep.mubr.f32.mxu0 0.0
        %6855 = vmatmul.mubr.f32.gmra.mrb[0].mxu0 %v6351
        %v6856 = vpop.f32.mrb[0].mxu0
        %v6857 = vadd.f32 0.0, %v6856
        %v6858 = vpop.f32.mrb[0].mxu0
        %v6859 = vadd.f32 0.0, %v6858
        %6860 = vmatprep.mubr.f32.mxu0 0.0
        %6861 = vmatmul.mubr.f32.gmra.mrb[0].mxu0 %v6354
        %v6862 = vpop.f32.mrb[0].mxu0
        %v6863 = vadd.f32 0.0, %v6862
        %v6864 = vpop.f32.mrb[0].mxu0
        %v6865 = vadd.f32 0.0, %v6864
        %6866 = vmatprep.mubr.f32.mxu0 0.0
        %6867 = vmatmul.mubr.f32.gmra.mrb[0].mxu0 %v6357
        %v6868 = vpop.f32.mrb[0].mxu0
        %v6869 = vadd.f32 0.0, %v6868
        %v6870 = vpop.f32.mrb[0].mxu0
        %v6871 = vadd.f32 0.0, %v6870
        %6872 = vmatprep.mubr.f32.mxu0 0.0
        %6873 = vmatmul.mubr.f32.gmra.mrb[0].mxu0 %v6360
        %v6874 = vpop.f32.mrb[0].mxu0
        %v6875 = vadd.f32 0.0, %v6874
        %v6876 = vpop.f32.mrb[0].mxu0
        %v6877 = vadd.f32 0.0, %v6876
        %6878 = vmatprep.mubr.f32.mxu0 0.0
        %6879 = vmatmul.mubr.f32.gmra.mrb[0].mxu0 %v6363
        %v6880 = vpop.f32.mrb[0].mxu0
        %v6881 = vadd.f32 0.0, %v6880
        %v6882 = vpop.f32.mrb[0].mxu0
        %v6883 = vadd.f32 0.0, %v6882
        %6884 = vmatprep.mubr.f32.mxu0 0.0
        %6885 = vmatmul.mubr.f32.gmra.mrb[0].mxu0 %v6366
        %v6886 = vpop.f32.mrb[0].mxu0
        %v6887 = vadd.f32 0.0, %v6886
        %v6888 = vpop.f32.mrb[0].mxu0
        %v6889 = vadd.f32 0.0, %v6888
        %6890 = vmatprep.mubr.f32.mxu0 0.0
        %6891 = vmatmul.mubr.f32.gmra.mrb[0].mxu0 %v6369
        %v6892 = vpop.f32.mrb[0].mxu0
        %v6893 = vadd.f32 0.0, %v6892
        %v6894 = vpop.f32.mrb[0].mxu0
        %v6895 = vadd.f32 0.0, %v6894
        %6896 = vmatprep.mubr.f32.mxu0 0.0
        %6897 = vmatmul.mubr.f32.gmra.mrb[0].mxu0 %v6372
        %v6898 = vpop.f32.mrb[0].mxu0
        %v6899 = vadd.f32 0.0, %v6898
        %v6900 = vpop.f32.mrb[0].mxu0
        %v6901 = vadd.f32 0.0, %v6900
        %6902 = vmatprep.mubr.f32.mxu0 0.0
        %6903 = vmatmul.mubr.f32.gmra.mrb[0].mxu0 %v6375
        %v6904 = vpop.f32.mrb[0].mxu0
        %v6905 = vadd.f32 0.0, %v6904
        %v6906 = vpop.f32.mrb[0].mxu0
        %v6907 = vadd.f32 0.0, %v6906
        %6908 = vmatprep.mubr.f32.mxu0 0.0
        %6909 = vmatmul.mubr.f32.gmra.mrb[0].mxu0 %v6378
        %v6910 = vpop.f32.mrb[0].mxu0
        %v6911 = vadd.f32 0.0, %v6910
        %v6912 = vpop.f32.mrb[0].mxu0
        %v6913 = vadd.f32 0.0, %v6912
        %6914 = vmatprep.mubr.f32.mxu0 0.0
        %6915 = vmatmul.mubr.f32.gmra.mrb[0].mxu0 %v6381
        %v6916 = vpop.f32.mrb[0].mxu0
        %v6917 = vadd.f32 0.0, %v6916
        %v6918 = vpop.f32.mrb[0].mxu0
        %v6919 = vadd.f32 0.0, %v6918
        %6920 = vmatprep.mubr.f32.mxu0 0.0
        %6921 = vmatmul.mubr.f32.gmra.mrb[0].mxu0 %v6384
        %v6922 = vpop.f32.mrb[0].mxu0
        %v6923 = vadd.f32 0.0, %v6922
        %v6924 = vpop.f32.mrb[0].mxu0
        %v6925 = vadd.f32 0.0, %v6924
        %6926 = vmatprep.mubr.f32.mxu0 0.0
        %6927 = vmatmul.mubr.f32.gmra.mrb[0].mxu0 %v6387
        %v6928 = vpop.f32.mrb[0].mxu0
        %v6929 = vadd.f32 0.0, %v6928
        %v6930 = vpop.f32.mrb[0].mxu0
        %v6931 = vadd.f32 0.0, %v6930
        %6932 = vmatprep.mubr.f32.mxu0 0.0
        %6933 = vmatmul.mubr.f32.gmra.mrb[0].mxu0 %v6390
        %v6934 = vpop.f32.mrb[0].mxu0
        %v6935 = vadd.f32 0.0, %v6934
        %v6936 = vpop.f32.mrb[0].mxu0
        %v6937 = vadd.f32 0.0, %v6936
        %6938 = vmatprep.mubr.f32.mxu0 0.0
        %6939 = vmatmul.mubr.f32.gmra.mrb[0].mxu0 %v6393
        %v6940 = vpop.f32.mrb[0].mxu0
        %v6941 = vadd.f32 0.0, %v6940
        %v6942 = vpop.f32.mrb[0].mxu0
        %v6943 = vadd.f32 0.0, %v6942
        %6944 = vmatprep.mubr.f32.mxu0 0.0
        %6945 = vmatmul.mubr.f32.gmra.mrb[0].mxu0 %v6396
        %v6946 = vpop.f32.mrb[0].mxu0
        %v6947 = vadd.f32 0.0, %v6946
        %v6948 = vpop.f32.mrb[0].mxu0
        %v6949 = vadd.f32 0.0, %v6948
        %6950 = vmatprep.mubr.f32.mxu0 0.0
        %6951 = vmatmul.mubr.f32.gmra.mrb[0].mxu0 %v6399
        %v6952 = vpop.f32.mrb[0].mxu0
        %v6953 = vadd.f32 0.0, %v6952
        %v6954 = vpop.f32.mrb[0].mxu0
        %v6955 = vadd.f32 0.0, %v6954
        %6956 = vmatprep.mubr.f32.mxu0 0.0
        %6957 = vmatmul.mubr.f32.gmra.mrb[0].mxu0 %v6402
        %v6958 = vpop.f32.mrb[0].mxu0
        %v6959 = vadd.f32 0.0, %v6958
        %v6960 = vpop.f32.mrb[0].mxu0
        %v6961 = vadd.f32 0.0, %v6960
        %6962 = vmatprep.mubr.f32.mxu0 0.0
        %6963 = vmatmul.mubr.f32.gmra.mrb[0].mxu0 %v6405
        %v6964 = vpop.f32.mrb[0].mxu0
        %v6965 = vadd.f32 0.0, %v6964
        %v6966 = vpop.f32.mrb[0].mxu0
        %v6967 = vadd.f32 0.0, %v6966
        %6968 = vdwg.mxu0
        %v6969 = vadd.f32 %v6102, %v6474
        %v6970 = vadd.f32 %v6103, %v6476
        %v6971 = vadd.f32 %v6104, %v6755
        %v6972 = vadd.f32 %v6105, %v6757
        %v6973 = vadd.f32 %v6106, %v6480
        %v6974 = vadd.f32 %v6107, %v6482
        %v6975 = vadd.f32 %v6108, %v6761
        %v6976 = vadd.f32 %v6109, %v6763
        %v6977 = vadd.f32 %v6110, %v6486
        %v6978 = vadd.f32 %v6111, %v6488
        %v6979 = vadd.f32 %v6112, %v6767
        %v6980 = vadd.f32 %v6113, %v6769
        %v6981 = vadd.f32 %v6114, %v6492
        %v6982 = vadd.f32 %v6115, %v6494
        %v6983 = vadd.f32 %v6116, %v6773
        %v6984 = vadd.f32 %v6117, %v6775
        %v6985 = vadd.f32 %v6118, %v6498
        %v6986 = vadd.f32 %v6119, %v6500
        %v6987 = vadd.f32 %v6120, %v6779
        %v6988 = vadd.f32 %v6121, %v6781
        %v6989 = vadd.f32 %v6122, %v6504
        %v6990 = vadd.f32 %v6123, %v6506
        %v6991 = vadd.f32 %v6124, %v6785
        %v6992 = vadd.f32 %v6125, %v6787
        %v6993 = vadd.f32 %v6126, %v6510
        %v6994 = vadd.f32 %v6127, %v6512
        %v6995 = vadd.f32 %v6128, %v6791
        %v6996 = vadd.f32 %v6129, %v6793
        %v6997 = vadd.f32 %v6130, %v6516
        %v6998 = vadd.f32 %v6131, %v6518
        %v6999 = vadd.f32 %v6132, %v6797
        %v7000 = vadd.f32 %v6133, %v6799
        %v7001 = vadd.f32 %v6134, %v6522
        %v7002 = vadd.f32 %v6135, %v6524
        %v7003 = vadd.f32 %v6136, %v6803
        %v7004 = vadd.f32 %v6137, %v6805
        %v7005 = vadd.f32 %v6138, %v6528
        %v7006 = vadd.f32 %v6139, %v6530
        %v7007 = vadd.f32 %v6140, %v6809
        %v7008 = vadd.f32 %v6141, %v6811
        %v7009 = vadd.f32 %v6142, %v6534
        %v7010 = vadd.f32 %v6143, %v6536
        %v7011 = vadd.f32 %v6144, %v6815
        %v7012 = vadd.f32 %v6145, %v6817
        %v7013 = vadd.f32 %v6146, %v6540
        %v7014 = vadd.f32 %v6147, %v6542
        %v7015 = vadd.f32 %v6148, %v6821
        %v7016 = vadd.f32 %v6149, %v6823
        %v7017 = vadd.f32 %v6150, %v6546
        %v7018 = vadd.f32 %v6151, %v6548
        %v7019 = vadd.f32 %v6152, %v6827
        %v7020 = vadd.f32 %v6153, %v6829
        %v7021 = vadd.f32 %v6154, %v6552
        %v7022 = vadd.f32 %v6155, %v6554
        %v7023 = vadd.f32 %v6156, %v6833
        %v7024 = vadd.f32 %v6157, %v6835
        %v7025 = vadd.f32 %v6158, %v6558
        %v7026 = vadd.f32 %v6159, %v6560
        %v7027 = vadd.f32 %v6160, %v6839
        %v7028 = vadd.f32 %v6161, %v6841
        %v7029 = vadd.f32 %v6162, %v6564
        %v7030 = vadd.f32 %v6163, %v6566
        %v7031 = vadd.f32 %v6164, %v6845
        %v7032 = vadd.f32 %v6165, %v6847
        %v7033 = vadd.f32 %v6166, %v6570
        %v7034 = vadd.f32 %v6167, %v6572
        %v7035 = vadd.f32 %v6168, %v6851
        %v7036 = vadd.f32 %v6169, %v6853
        %v7037 = vadd.f32 %v6170, %v6576
        %v7038 = vadd.f32 %v6171, %v6578
        %v7039 = vadd.f32 %v6172, %v6857
        %v7040 = vadd.f32 %v6173, %v6859
        %v7041 = vadd.f32 %v6174, %v6582
        %v7042 = vadd.f32 %v6175, %v6584
        %v7043 = vadd.f32 %v6176, %v6863
        %v7044 = vadd.f32 %v6177, %v6865
        %v7045 = vadd.f32 %v6178, %v6588
        %v7046 = vadd.f32 %v6179, %v6590
        %v7047 = vadd.f32 %v6180, %v6869
        %v7048 = vadd.f32 %v6181, %v6871
        %v7049 = vadd.f32 %v6182, %v6594
        %v7050 = vadd.f32 %v6183, %v6596
        %v7051 = vadd.f32 %v6184, %v6875
        %v7052 = vadd.f32 %v6185, %v6877
        %v7053 = vadd.f32 %v6186, %v6600
        %v7054 = vadd.f32 %v6187, %v6602
        %v7055 = vadd.f32 %v6188, %v6881
        %v7056 = vadd.f32 %v6189, %v6883
        %v7057 = vadd.f32 %v6190, %v6606
        %v7058 = vadd.f32 %v6191, %v6608
        %v7059 = vadd.f32 %v6192, %v6887
        %v7060 = vadd.f32 %v6193, %v6889
        %v7061 = vadd.f32 %v6194, %v6612
        %v7062 = vadd.f32 %v6195, %v6614
        %v7063 = vadd.f32 %v6196, %v6893
        %v7064 = vadd.f32 %v6197, %v6895
        %v7065 = vadd.f32 %v6198, %v6618
        %v7066 = vadd.f32 %v6199, %v6620
        %v7067 = vadd.f32 %v6200, %v6899
        %v7068 = vadd.f32 %v6201, %v6901
        %v7069 = vadd.f32 %v6202, %v6624
        %v7070 = vadd.f32 %v6203, %v6626
        %v7071 = vadd.f32 %v6204, %v6905
        %v7072 = vadd.f32 %v6205, %v6907
        %v7073 = vadd.f32 %v6206, %v6630
        %v7074 = vadd.f32 %v6207, %v6632
        %v7075 = vadd.f32 %v6208, %v6911
        %v7076 = vadd.f32 %v6209, %v6913
        %v7077 = vadd.f32 %v6210, %v6636
        %v7078 = vadd.f32 %v6211, %v6638
        %v7079 = vadd.f32 %v6212, %v6917
        %v7080 = vadd.f32 %v6213, %v6919
        %v7081 = vadd.f32 %v6214, %v6642
        %v7082 = vadd.f32 %v6215, %v6644
        %v7083 = vadd.f32 %v6216, %v6923
        %v7084 = vadd.f32 %v6217, %v6925
        %v7085 = vadd.f32 %v6218, %v6648
        %v7086 = vadd.f32 %v6219, %v6650
        %v7087 = vadd.f32 %v6220, %v6929
        %v7088 = vadd.f32 %v6221, %v6931
        %v7089 = vadd.f32 %v6222, %v6654
        %v7090 = vadd.f32 %v6223, %v6656
        %v7091 = vadd.f32 %v6224, %v6935
        %v7092 = vadd.f32 %v6225, %v6937
        %v7093 = vadd.f32 %v6226, %v6660
        %v7094 = vadd.f32 %v6227, %v6662
        %v7095 = vadd.f32 %v6228, %v6941
        %v7096 = vadd.f32 %v6229, %v6943
        %v7097 = vadd.f32 %v6230, %v6666
        %v7098 = vadd.f32 %v6231, %v6668
        %v7099 = vadd.f32 %v6232, %v6947
        %v7100 = vadd.f32 %v6233, %v6949
        %v7101 = vadd.f32 %v6234, %v6672
        %v7102 = vadd.f32 %v6235, %v6674
        %v7103 = vadd.f32 %v6236, %v6953
        %v7104 = vadd.f32 %v6237, %v6955
        %v7105 = vadd.f32 %v6238, %v6678
        %v7106 = vadd.f32 %v6239, %v6680
        %v7107 = vadd.f32 %v6240, %v6959
        %v7108 = vadd.f32 %v6241, %v6961
        %v7109 = vadd.f32 %v6242, %v6684
        %v7110 = vadd.f32 %v6243, %v6686
        %v7111 = vadd.f32 %v6244, %v6965
        %v7112 = vadd.f32 %v6245, %v6967
        %v7113 = vld [vmem:[%s454 + $0x26] sm:$0xff]
        %v7114 = vld [vmem:[%s454 + $0x2e] sm:$0xff]
        %v7115 = vld [vmem:[%s454 + $0x36] sm:$0xff]
        %v7116 = vld [vmem:[%s454 + $0x3e] sm:$0xff]
        %v7117 = vld [vmem:[%s454 + $0x46] sm:$0xff]
        %v7118 = vld [vmem:[%s454 + $0x4e] sm:$0xff]
        %v7119 = vld [vmem:[%s454 + $0x56] sm:$0xff]
        %v7120 = vld [vmem:[%s454 + $0x5e] sm:$0xff]
        %v7121 = vld [vmem:[%s454 + $0x66] sm:$0xff]
        %v7122 = vld [vmem:[%s454 + $0x6e] sm:$0xff]
        %v7123 = vld [vmem:[%s454 + $0x76] sm:$0xff]
        %v7124 = vld [vmem:[%s454 + $0x7e] sm:$0xff]
        %v7125 = vld [vmem:[%s454 + $0x86] sm:$0xff]
        %v7126 = vld [vmem:[%s454 + $0x8e] sm:$0xff]
        %v7127 = vld [vmem:[%s454 + $0x96] sm:$0xff]
        %v7128 = vld [vmem:[%s454 + $0x9e] sm:$0xff]
        %v7129 = vld [vmem:[%s454 + $0xa6] sm:$0xff]
        %v7130 = vld [vmem:[%s454 + $0xae] sm:$0xff]
        %v7131 = vld [vmem:[%s454 + $0xb6] sm:$0xff]
        %v7132 = vld [vmem:[%s454 + $0xbe] sm:$0xff]
        %v7133 = vld [vmem:[%s454 + $0xc6] sm:$0xff]
        %v7134 = vld [vmem:[%s454 + $0xce] sm:$0xff]
        %v7135 = vld [vmem:[%s454 + $0xd6] sm:$0xff]
        %v7136 = vld [vmem:[%s454 + $0xde] sm:$0xff]
        %v7137 = vld [vmem:[%s454 + $0xe6] sm:$0xff]
        %v7138 = vld [vmem:[%s454 + $0xee] sm:$0xff]
        %v7139 = vld [vmem:[%s454 + $0xf6] sm:$0xff]
        %v7140 = vld [vmem:[%s454 + $0xfe] sm:$0xff]
        %v7141 = vld [vmem:[%s454 + $0x106] sm:$0xff]
        %v7142 = vld [vmem:[%s454 + $0x10e] sm:$0xff]
        %v7143 = vld [vmem:[%s454 + $0x116] sm:$0xff]
        %v7144 = vld [vmem:[%s454 + $0x11e] sm:$0xff]
        %v7145 = vld [vmem:[%s454 + $0x126] sm:$0xff]
        %v7146 = vld [vmem:[%s454 + $0x12e] sm:$0xff]
        %v7147 = vld [vmem:[%s454 + $0x136] sm:$0xff]
        %v7148 = vld [vmem:[%s454 + $0x13e] sm:$0xff]
        %s7149 = scalar_lea.vmem %s1, 1024
        %v7150 = vld [vmem:[%s7149] sm:$0xff]
        %v7151 = vld [vmem:[%s7149 + $0x8] sm:$0xff]
        %v7152 = vld [vmem:[%s7149 + $0x10] sm:$0xff]
        %v7153 = vld [vmem:[%s7149 + $0x18] sm:$0xff]
        %v7154 = vld [vmem:[%s7149 + $0x20] sm:$0xff]
        %v7155 = vld [vmem:[%s7149 + $0x28] sm:$0xff]
        %v7156 = vld [vmem:[%s7149 + $0x30] sm:$0xff]
        %v7157 = vld [vmem:[%s7149 + $0x38] sm:$0xff]
        %v7158 = vld [vmem:[%s7149 + $0x40] sm:$0xff]
        %v7159 = vld [vmem:[%s7149 + $0x48] sm:$0xff]
        %v7160 = vld [vmem:[%s7149 + $0x50] sm:$0xff]
        %v7161 = vld [vmem:[%s7149 + $0x58] sm:$0xff]
        %v7162 = vld [vmem:[%s7149 + $0x60] sm:$0xff]
        %v7163 = vld [vmem:[%s7149 + $0x68] sm:$0xff]
        %v7164 = vld [vmem:[%s7149 + $0x70] sm:$0xff]
        %v7165 = vld [vmem:[%s7149 + $0x78] sm:$0xff]
        %v7167 = vsel %vm570, %v7113, 0
        %v7170 = vsel %vm570, %v7114, 0
        %v7173 = vsel %vm570, %v7115, 0
        %v7176 = vsel %vm570, %v7116, 0
        %v7179 = vsel %vm570, %v7117, 0
        %v7182 = vsel %vm570, %v7118, 0
        %v7185 = vsel %vm570, %v7119, 0
        %v7188 = vsel %vm570, %v7120, 0
        %v7191 = vsel %vm570, %v7121, 0
        %v7194 = vsel %vm570, %v7122, 0
        %v7197 = vsel %vm570, %v7123, 0
        %v7200 = vsel %vm570, %v7124, 0
        %v7203 = vsel %vm570, %v7125, 0
        %v7206 = vsel %vm570, %v7126, 0
        %v7209 = vsel %vm570, %v7127, 0
        %v7212 = vsel %vm570, %v7128, 0
        %v7215 = vsel %vm570, %v7129, 0
        %v7218 = vsel %vm570, %v7130, 0
        %v7221 = vsel %vm570, %v7131, 0
        %v7224 = vsel %vm570, %v7132, 0
        %v7227 = vsel %vm570, %v7133, 0
        %v7230 = vsel %vm570, %v7134, 0
        %v7233 = vsel %vm570, %v7135, 0
        %v7236 = vsel %vm570, %v7136, 0
        %v7239 = vsel %vm570, %v7137, 0
        %v7242 = vsel %vm570, %v7138, 0
        %v7245 = vsel %vm570, %v7139, 0
        %v7248 = vsel %vm570, %v7140, 0
        %v7251 = vsel %vm570, %v7141, 0
        %v7254 = vsel %vm570, %v7142, 0
        %v7257 = vsel %vm570, %v7143, 0
        %v7260 = vsel %vm570, %v7144, 0
        %v7263 = vsel %vm570, %v7145, 0
        %v7266 = vsel %vm570, %v7146, 0
        %v7269 = vsel %vm570, %v7147, 0
        %v7272 = vsel %vm570, %v7148, 0
        %7274 = vmatprep.subr.mxu0 %v7151
        %7275 = vmatpush1.msra.mxu0 %v7150
        %7276 = vmatprep.subr.mxu0 %v7155
        %7277 = vmatpush1.msra.mxu0 %v7154
        %7278 = vmatprep.subr.mxu0 %v7159
        %7279 = vmatpush1.msra.mxu0 %v7158
        %7280 = vmatprep.subr.mxu0 %v7163
        %7281 = vmatpush1.msra.mxu0 %v7162
        %7282 = vmatprep.subr.mxu0 0.0
        %7283 = vmatpush1.msra.mxu0 0.0
        %7284 = vmatprep.subr.mxu0 0.0
        %7285 = vmatpush1.msra.mxu0 0.0
        %7286 = vmatprep.subr.mxu0 0.0
        %7287 = vmatpush1.msra.mxu0 0.0
        %7288 = vmatprep.subr.mxu0 0.0
        %7289 = vmatpush1.msra.mxu0 0.0
        %7290 = vmatprep.subr.mxu0 0.0
        %7291 = vmatpush1.msra.mxu0 0.0
        %7292 = vmatprep.subr.mxu0 0.0
        %7293 = vmatpush1.msra.mxu0 0.0
        %7294 = vmatprep.subr.mxu0 0.0
        %7295 = vmatpush1.msra.mxu0 0.0
        %7296 = vmatprep.subr.mxu0 0.0
        %7297 = vmatpush1.msra.mxu0 0.0
        %7298 = vmatprep.subr.mxu0 0.0
        %7299 = vmatpush1.msra.mxu0 0.0
        %7300 = vmatprep.subr.mxu0 0.0
        %7301 = vmatpush1.msra.mxu0 0.0
        %7302 = vmatprep.subr.mxu0 0.0
        %7303 = vmatpush1.msra.mxu0 0.0
        %7304 = vmatprep.subr.mxu0 0.0
        %7305 = vmatpush1.msra.mxu0 0.0
        %7306 = vmatprep.subr.mxu0 0.0
        %7307 = vmatpush1.msra.mxu0 0.0
        %7308 = vmatprep.subr.mxu0 0.0
        %7309 = vmatpush1.msra.mxu0 0.0
        %7310 = vmatprep.subr.mxu0 0.0
        %7311 = vmatpush1.msra.mxu0 0.0
        %7312 = vmatprep.subr.mxu0 0.0
        %7313 = vmatpush1.msra.mxu0 0.0
        %7314 = vmatprep.subr.mxu0 0.0
        %7315 = vmatpush1.msra.mxu0 0.0
        %7316 = vmatprep.subr.mxu0 0.0
        %7317 = vmatpush1.msra.mxu0 0.0
        %7318 = vmatprep.subr.mxu0 0.0
        %7319 = vmatpush1.msra.mxu0 0.0
        %7320 = vmatprep.subr.mxu0 0.0
        %7321 = vmatpush1.msra.mxu0 0.0
        %7322 = vmatprep.subr.mxu0 0.0
        %7323 = vmatpush1.msra.mxu0 0.0
        %7324 = vmatprep.subr.mxu0 0.0
        %7325 = vmatpush1.msra.mxu0 0.0
        %7326 = vmatprep.subr.mxu0 0.0
        %7327 = vmatpush1.msra.mxu0 0.0
        %7328 = vmatprep.subr.mxu0 0.0
        %7329 = vmatpush1.msra.mxu0 0.0
        %7330 = vmatprep.subr.mxu0 0.0
        %7331 = vmatpush1.msra.mxu0 0.0
        %7332 = vmatprep.subr.mxu0 0.0
        %7333 = vmatpush1.msra.mxu0 0.0
        %7334 = vmatprep.subr.mxu0 0.0
        %7335 = vmatpush1.msra.mxu0 0.0
        %7336 = vmatprep.subr.mxu0 0.0
        %7337 = vmatpush1.msra.mxu0 0.0
        %7338 = vmatprep.mubr.f32.mxu0 0.0
        %7339 = vmatmul.mubr.f32.gmra.mrb[0].mxu0 %v7167
        %v7340 = vpop.f32.mrb[0].mxu0
        %v7341 = vadd.f32 0.0, %v7340
        %v7342 = vpop.f32.mrb[0].mxu0
        %v7343 = vadd.f32 0.0, %v7342
        %7344 = vmatprep.mubr.f32.mxu0 0.0
        %7345 = vmatmul.mubr.f32.gmra.mrb[0].mxu0 %v7170
        %v7346 = vpop.f32.mrb[0].mxu0
        %v7347 = vadd.f32 0.0, %v7346
        %v7348 = vpop.f32.mrb[0].mxu0
        %v7349 = vadd.f32 0.0, %v7348
        %7350 = vmatprep.mubr.f32.mxu0 0.0
        %7351 = vmatmul.mubr.f32.gmra.mrb[0].mxu0 %v7173
        %v7352 = vpop.f32.mrb[0].mxu0
        %v7353 = vadd.f32 0.0, %v7352
        %v7354 = vpop.f32.mrb[0].mxu0
        %v7355 = vadd.f32 0.0, %v7354
        %7356 = vmatprep.mubr.f32.mxu0 0.0
        %7357 = vmatmul.mubr.f32.gmra.mrb[0].mxu0 %v7176
        %v7358 = vpop.f32.mrb[0].mxu0
        %v7359 = vadd.f32 0.0, %v7358
        %v7360 = vpop.f32.mrb[0].mxu0
        %v7361 = vadd.f32 0.0, %v7360
        %7362 = vmatprep.mubr.f32.mxu0 0.0
        %7363 = vmatmul.mubr.f32.gmra.mrb[0].mxu0 %v7179
        %v7364 = vpop.f32.mrb[0].mxu0
        %v7365 = vadd.f32 0.0, %v7364
        %v7366 = vpop.f32.mrb[0].mxu0
        %v7367 = vadd.f32 0.0, %v7366
        %7368 = vmatprep.mubr.f32.mxu0 0.0
        %7369 = vmatmul.mubr.f32.gmra.mrb[0].mxu0 %v7182
        %v7370 = vpop.f32.mrb[0].mxu0
        %v7371 = vadd.f32 0.0, %v7370
        %v7372 = vpop.f32.mrb[0].mxu0
        %v7373 = vadd.f32 0.0, %v7372
        %7374 = vmatprep.mubr.f32.mxu0 0.0
        %7375 = vmatmul.mubr.f32.gmra.mrb[0].mxu0 %v7185
        %v7376 = vpop.f32.mrb[0].mxu0
        %v7377 = vadd.f32 0.0, %v7376
        %v7378 = vpop.f32.mrb[0].mxu0
        %v7379 = vadd.f32 0.0, %v7378
        %7380 = vmatprep.mubr.f32.mxu0 0.0
        %7381 = vmatmul.mubr.f32.gmra.mrb[0].mxu0 %v7188
        %v7382 = vpop.f32.mrb[0].mxu0
        %v7383 = vadd.f32 0.0, %v7382
        %v7384 = vpop.f32.mrb[0].mxu0
        %v7385 = vadd.f32 0.0, %v7384
        %7386 = vmatprep.mubr.f32.mxu0 0.0
        %7387 = vmatmul.mubr.f32.gmra.mrb[0].mxu0 %v7191
        %v7388 = vpop.f32.mrb[0].mxu0
        %v7389 = vadd.f32 0.0, %v7388
        %v7390 = vpop.f32.mrb[0].mxu0
        %v7391 = vadd.f32 0.0, %v7390
        %7392 = vmatprep.mubr.f32.mxu0 0.0
        %7393 = vmatmul.mubr.f32.gmra.mrb[0].mxu0 %v7194
        %v7394 = vpop.f32.mrb[0].mxu0
        %v7395 = vadd.f32 0.0, %v7394
        %v7396 = vpop.f32.mrb[0].mxu0
        %v7397 = vadd.f32 0.0, %v7396
        %7398 = vmatprep.mubr.f32.mxu0 0.0
        %7399 = vmatmul.mubr.f32.gmra.mrb[0].mxu0 %v7197
        %v7400 = vpop.f32.mrb[0].mxu0
        %v7401 = vadd.f32 0.0, %v7400
        %v7402 = vpop.f32.mrb[0].mxu0
        %v7403 = vadd.f32 0.0, %v7402
        %7404 = vmatprep.mubr.f32.mxu0 0.0
        %7405 = vmatmul.mubr.f32.gmra.mrb[0].mxu0 %v7200
        %v7406 = vpop.f32.mrb[0].mxu0
        %v7407 = vadd.f32 0.0, %v7406
        %v7408 = vpop.f32.mrb[0].mxu0
        %v7409 = vadd.f32 0.0, %v7408
        %7410 = vmatprep.mubr.f32.mxu0 0.0
        %7411 = vmatmul.mubr.f32.gmra.mrb[0].mxu0 %v7203
        %v7412 = vpop.f32.mrb[0].mxu0
        %v7413 = vadd.f32 0.0, %v7412
        %v7414 = vpop.f32.mrb[0].mxu0
        %v7415 = vadd.f32 0.0, %v7414
        %7416 = vmatprep.mubr.f32.mxu0 0.0
        %7417 = vmatmul.mubr.f32.gmra.mrb[0].mxu0 %v7206
        %v7418 = vpop.f32.mrb[0].mxu0
        %v7419 = vadd.f32 0.0, %v7418
        %v7420 = vpop.f32.mrb[0].mxu0
        %v7421 = vadd.f32 0.0, %v7420
        %7422 = vmatprep.mubr.f32.mxu0 0.0
        %7423 = vmatmul.mubr.f32.gmra.mrb[0].mxu0 %v7209
        %v7424 = vpop.f32.mrb[0].mxu0
        %v7425 = vadd.f32 0.0, %v7424
        %v7426 = vpop.f32.mrb[0].mxu0
        %v7427 = vadd.f32 0.0, %v7426
        %7428 = vmatprep.mubr.f32.mxu0 0.0
        %7429 = vmatmul.mubr.f32.gmra.mrb[0].mxu0 %v7212
        %v7430 = vpop.f32.mrb[0].mxu0
        %v7431 = vadd.f32 0.0, %v7430
        %v7432 = vpop.f32.mrb[0].mxu0
        %v7433 = vadd.f32 0.0, %v7432
        %7434 = vmatprep.mubr.f32.mxu0 0.0
        %7435 = vmatmul.mubr.f32.gmra.mrb[0].mxu0 %v7215
        %v7436 = vpop.f32.mrb[0].mxu0
        %v7437 = vadd.f32 0.0, %v7436
        %v7438 = vpop.f32.mrb[0].mxu0
        %v7439 = vadd.f32 0.0, %v7438
        %7440 = vmatprep.mubr.f32.mxu0 0.0
        %7441 = vmatmul.mubr.f32.gmra.mrb[0].mxu0 %v7218
        %v7442 = vpop.f32.mrb[0].mxu0
        %v7443 = vadd.f32 0.0, %v7442
        %v7444 = vpop.f32.mrb[0].mxu0
        %v7445 = vadd.f32 0.0, %v7444
        %7446 = vmatprep.mubr.f32.mxu0 0.0
        %7447 = vmatmul.mubr.f32.gmra.mrb[0].mxu0 %v7221
        %v7448 = vpop.f32.mrb[0].mxu0
        %v7449 = vadd.f32 0.0, %v7448
        %v7450 = vpop.f32.mrb[0].mxu0
        %v7451 = vadd.f32 0.0, %v7450
        %7452 = vmatprep.mubr.f32.mxu0 0.0
        %7453 = vmatmul.mubr.f32.gmra.mrb[0].mxu0 %v7224
        %v7454 = vpop.f32.mrb[0].mxu0
        %v7455 = vadd.f32 0.0, %v7454
        %v7456 = vpop.f32.mrb[0].mxu0
        %v7457 = vadd.f32 0.0, %v7456
        %7458 = vmatprep.mubr.f32.mxu0 0.0
        %7459 = vmatmul.mubr.f32.gmra.mrb[0].mxu0 %v7227
        %v7460 = vpop.f32.mrb[0].mxu0
        %v7461 = vadd.f32 0.0, %v7460
        %v7462 = vpop.f32.mrb[0].mxu0
        %v7463 = vadd.f32 0.0, %v7462
        %7464 = vmatprep.mubr.f32.mxu0 0.0
        %7465 = vmatmul.mubr.f32.gmra.mrb[0].mxu0 %v7230
        %v7466 = vpop.f32.mrb[0].mxu0
        %v7467 = vadd.f32 0.0, %v7466
        %v7468 = vpop.f32.mrb[0].mxu0
        %v7469 = vadd.f32 0.0, %v7468
        %7470 = vmatprep.mubr.f32.mxu0 0.0
        %7471 = vmatmul.mubr.f32.gmra.mrb[0].mxu0 %v7233
        %v7472 = vpop.f32.mrb[0].mxu0
        %v7473 = vadd.f32 0.0, %v7472
        %v7474 = vpop.f32.mrb[0].mxu0
        %v7475 = vadd.f32 0.0, %v7474
        %7476 = vmatprep.mubr.f32.mxu0 0.0
        %7477 = vmatmul.mubr.f32.gmra.mrb[0].mxu0 %v7236
        %v7478 = vpop.f32.mrb[0].mxu0
        %v7479 = vadd.f32 0.0, %v7478
        %v7480 = vpop.f32.mrb[0].mxu0
        %v7481 = vadd.f32 0.0, %v7480
        %7482 = vmatprep.mubr.f32.mxu0 0.0
        %7483 = vmatmul.mubr.f32.gmra.mrb[0].mxu0 %v7239
        %v7484 = vpop.f32.mrb[0].mxu0
        %v7485 = vadd.f32 0.0, %v7484
        %v7486 = vpop.f32.mrb[0].mxu0
        %v7487 = vadd.f32 0.0, %v7486
        %7488 = vmatprep.mubr.f32.mxu0 0.0
        %7489 = vmatmul.mubr.f32.gmra.mrb[0].mxu0 %v7242
        %v7490 = vpop.f32.mrb[0].mxu0
        %v7491 = vadd.f32 0.0, %v7490
        %v7492 = vpop.f32.mrb[0].mxu0
        %v7493 = vadd.f32 0.0, %v7492
        %7494 = vmatprep.mubr.f32.mxu0 0.0
        %7495 = vmatmul.mubr.f32.gmra.mrb[0].mxu0 %v7245
        %v7496 = vpop.f32.mrb[0].mxu0
        %v7497 = vadd.f32 0.0, %v7496
        %v7498 = vpop.f32.mrb[0].mxu0
        %v7499 = vadd.f32 0.0, %v7498
        %7500 = vmatprep.mubr.f32.mxu0 0.0
        %7501 = vmatmul.mubr.f32.gmra.mrb[0].mxu0 %v7248
        %v7502 = vpop.f32.mrb[0].mxu0
        %v7503 = vadd.f32 0.0, %v7502
        %v7504 = vpop.f32.mrb[0].mxu0
        %v7505 = vadd.f32 0.0, %v7504
        %7506 = vmatprep.mubr.f32.mxu0 0.0
        %7507 = vmatmul.mubr.f32.gmra.mrb[0].mxu0 %v7251
        %v7508 = vpop.f32.mrb[0].mxu0
        %v7509 = vadd.f32 0.0, %v7508
        %v7510 = vpop.f32.mrb[0].mxu0
        %v7511 = vadd.f32 0.0, %v7510
        %7512 = vmatprep.mubr.f32.mxu0 0.0
        %7513 = vmatmul.mubr.f32.gmra.mrb[0].mxu0 %v7254
        %v7514 = vpop.f32.mrb[0].mxu0
        %v7515 = vadd.f32 0.0, %v7514
        %v7516 = vpop.f32.mrb[0].mxu0
        %v7517 = vadd.f32 0.0, %v7516
        %7518 = vmatprep.mubr.f32.mxu0 0.0
        %7519 = vmatmul.mubr.f32.gmra.mrb[0].mxu0 %v7257
        %v7520 = vpop.f32.mrb[0].mxu0
        %v7521 = vadd.f32 0.0, %v7520
        %v7522 = vpop.f32.mrb[0].mxu0
        %v7523 = vadd.f32 0.0, %v7522
        %7524 = vmatprep.mubr.f32.mxu0 0.0
        %7525 = vmatmul.mubr.f32.gmra.mrb[0].mxu0 %v7260
        %v7526 = vpop.f32.mrb[0].mxu0
        %v7527 = vadd.f32 0.0, %v7526
        %v7528 = vpop.f32.mrb[0].mxu0
        %v7529 = vadd.f32 0.0, %v7528
        %7530 = vmatprep.mubr.f32.mxu0 0.0
        %7531 = vmatmul.mubr.f32.gmra.mrb[0].mxu0 %v7263
        %v7532 = vpop.f32.mrb[0].mxu0
        %v7533 = vadd.f32 0.0, %v7532
        %v7534 = vpop.f32.mrb[0].mxu0
        %v7535 = vadd.f32 0.0, %v7534
        %7536 = vmatprep.mubr.f32.mxu0 0.0
        %7537 = vmatmul.mubr.f32.gmra.mrb[0].mxu0 %v7266
        %v7538 = vpop.f32.mrb[0].mxu0
        %v7539 = vadd.f32 0.0, %v7538
        %v7540 = vpop.f32.mrb[0].mxu0
        %v7541 = vadd.f32 0.0, %v7540
        %7542 = vmatprep.mubr.f32.mxu0 0.0
        %7543 = vmatmul.mubr.f32.gmra.mrb[0].mxu0 %v7269
        %v7544 = vpop.f32.mrb[0].mxu0
        %v7545 = vadd.f32 0.0, %v7544
        %v7546 = vpop.f32.mrb[0].mxu0
        %v7547 = vadd.f32 0.0, %v7546
        %7548 = vmatprep.mubr.f32.mxu0 0.0
        %7549 = vmatmul.mubr.f32.gmra.mrb[0].mxu0 %v7272
        %v7550 = vpop.f32.mrb[0].mxu0
        %v7551 = vadd.f32 0.0, %v7550
        %v7552 = vpop.f32.mrb[0].mxu0
        %v7553 = vadd.f32 0.0, %v7552
        %7554 = vdwg.mxu0
        %7555 = vmatprep.subr.mxu0 %v7153
        %7556 = vmatpush1.msra.mxu0 %v7152
        %7557 = vmatprep.subr.mxu0 %v7157
        %7558 = vmatpush1.msra.mxu0 %v7156
        %7559 = vmatprep.subr.mxu0 %v7161
        %7560 = vmatpush1.msra.mxu0 %v7160
        %7561 = vmatprep.subr.mxu0 %v7165
        %7562 = vmatpush1.msra.mxu0 %v7164
        %7563 = vmatprep.subr.mxu0 0.0
        %7564 = vmatpush1.msra.mxu0 0.0
        %7565 = vmatprep.subr.mxu0 0.0
        %7566 = vmatpush1.msra.mxu0 0.0
        %7567 = vmatprep.subr.mxu0 0.0
        %7568 = vmatpush1.msra.mxu0 0.0
        %7569 = vmatprep.subr.mxu0 0.0
        %7570 = vmatpush1.msra.mxu0 0.0
        %7571 = vmatprep.subr.mxu0 0.0
        %7572 = vmatpush1.msra.mxu0 0.0
        %7573 = vmatprep.subr.mxu0 0.0
        %7574 = vmatpush1.msra.mxu0 0.0
        %7575 = vmatprep.subr.mxu0 0.0
        %7576 = vmatpush1.msra.mxu0 0.0
        %7577 = vmatprep.subr.mxu0 0.0
        %7578 = vmatpush1.msra.mxu0 0.0
        %7579 = vmatprep.subr.mxu0 0.0
        %7580 = vmatpush1.msra.mxu0 0.0
        %7581 = vmatprep.subr.mxu0 0.0
        %7582 = vmatpush1.msra.mxu0 0.0
        %7583 = vmatprep.subr.mxu0 0.0
        %7584 = vmatpush1.msra.mxu0 0.0
        %7585 = vmatprep.subr.mxu0 0.0
        %7586 = vmatpush1.msra.mxu0 0.0
        %7587 = vmatprep.subr.mxu0 0.0
        %7588 = vmatpush1.msra.mxu0 0.0
        %7589 = vmatprep.subr.mxu0 0.0
        %7590 = vmatpush1.msra.mxu0 0.0
        %7591 = vmatprep.subr.mxu0 0.0
        %7592 = vmatpush1.msra.mxu0 0.0
        %7593 = vmatprep.subr.mxu0 0.0
        %7594 = vmatpush1.msra.mxu0 0.0
        %7595 = vmatprep.subr.mxu0 0.0
        %7596 = vmatpush1.msra.mxu0 0.0
        %7597 = vmatprep.subr.mxu0 0.0
        %7598 = vmatpush1.msra.mxu0 0.0
        %7599 = vmatprep.subr.mxu0 0.0
        %7600 = vmatpush1.msra.mxu0 0.0
        %7601 = vmatprep.subr.mxu0 0.0
        %7602 = vmatpush1.msra.mxu0 0.0
        %7603 = vmatprep.subr.mxu0 0.0
        %7604 = vmatpush1.msra.mxu0 0.0
        %7605 = vmatprep.subr.mxu0 0.0
        %7606 = vmatpush1.msra.mxu0 0.0
        %7607 = vmatprep.subr.mxu0 0.0
        %7608 = vmatpush1.msra.mxu0 0.0
        %7609 = vmatprep.subr.mxu0 0.0
        %7610 = vmatpush1.msra.mxu0 0.0
        %7611 = vmatprep.subr.mxu0 0.0
        %7612 = vmatpush1.msra.mxu0 0.0
        %7613 = vmatprep.subr.mxu0 0.0
        %7614 = vmatpush1.msra.mxu0 0.0
        %7615 = vmatprep.subr.mxu0 0.0
        %7616 = vmatpush1.msra.mxu0 0.0
        %7617 = vmatprep.subr.mxu0 0.0
        %7618 = vmatpush1.msra.mxu0 0.0
        %7619 = vmatprep.mubr.f32.mxu0 0.0
        %7620 = vmatmul.mubr.f32.gmra.mrb[0].mxu0 %v7167
        %v7621 = vpop.f32.mrb[0].mxu0
        %v7622 = vadd.f32 0.0, %v7621
        %v7623 = vpop.f32.mrb[0].mxu0
        %v7624 = vadd.f32 0.0, %v7623
        %7625 = vmatprep.mubr.f32.mxu0 0.0
        %7626 = vmatmul.mubr.f32.gmra.mrb[0].mxu0 %v7170
        %v7627 = vpop.f32.mrb[0].mxu0
        %v7628 = vadd.f32 0.0, %v7627
        %v7629 = vpop.f32.mrb[0].mxu0
        %v7630 = vadd.f32 0.0, %v7629
        %7631 = vmatprep.mubr.f32.mxu0 0.0
        %7632 = vmatmul.mubr.f32.gmra.mrb[0].mxu0 %v7173
        %v7633 = vpop.f32.mrb[0].mxu0
        %v7634 = vadd.f32 0.0, %v7633
        %v7635 = vpop.f32.mrb[0].mxu0
        %v7636 = vadd.f32 0.0, %v7635
        %7637 = vmatprep.mubr.f32.mxu0 0.0
        %7638 = vmatmul.mubr.f32.gmra.mrb[0].mxu0 %v7176
        %v7639 = vpop.f32.mrb[0].mxu0
        %v7640 = vadd.f32 0.0, %v7639
        %v7641 = vpop.f32.mrb[0].mxu0
        %v7642 = vadd.f32 0.0, %v7641
        %7643 = vmatprep.mubr.f32.mxu0 0.0
        %7644 = vmatmul.mubr.f32.gmra.mrb[0].mxu0 %v7179
        %v7645 = vpop.f32.mrb[0].mxu0
        %v7646 = vadd.f32 0.0, %v7645
        %v7647 = vpop.f32.mrb[0].mxu0
        %v7648 = vadd.f32 0.0, %v7647
        %7649 = vmatprep.mubr.f32.mxu0 0.0
        %7650 = vmatmul.mubr.f32.gmra.mrb[0].mxu0 %v7182
        %v7651 = vpop.f32.mrb[0].mxu0
        %v7652 = vadd.f32 0.0, %v7651
        %v7653 = vpop.f32.mrb[0].mxu0
        %v7654 = vadd.f32 0.0, %v7653
        %7655 = vmatprep.mubr.f32.mxu0 0.0
        %7656 = vmatmul.mubr.f32.gmra.mrb[0].mxu0 %v7185
        %v7657 = vpop.f32.mrb[0].mxu0
        %v7658 = vadd.f32 0.0, %v7657
        %v7659 = vpop.f32.mrb[0].mxu0
        %v7660 = vadd.f32 0.0, %v7659
        %7661 = vmatprep.mubr.f32.mxu0 0.0
        %7662 = vmatmul.mubr.f32.gmra.mrb[0].mxu0 %v7188
        %v7663 = vpop.f32.mrb[0].mxu0
        %v7664 = vadd.f32 0.0, %v7663
        %v7665 = vpop.f32.mrb[0].mxu0
        %v7666 = vadd.f32 0.0, %v7665
        %7667 = vmatprep.mubr.f32.mxu0 0.0
        %7668 = vmatmul.mubr.f32.gmra.mrb[0].mxu0 %v7191
        %v7669 = vpop.f32.mrb[0].mxu0
        %v7670 = vadd.f32 0.0, %v7669
        %v7671 = vpop.f32.mrb[0].mxu0
        %v7672 = vadd.f32 0.0, %v7671
        %7673 = vmatprep.mubr.f32.mxu0 0.0
        %7674 = vmatmul.mubr.f32.gmra.mrb[0].mxu0 %v7194
        %v7675 = vpop.f32.mrb[0].mxu0
        %v7676 = vadd.f32 0.0, %v7675
        %v7677 = vpop.f32.mrb[0].mxu0
        %v7678 = vadd.f32 0.0, %v7677
        %7679 = vmatprep.mubr.f32.mxu0 0.0
        %7680 = vmatmul.mubr.f32.gmra.mrb[0].mxu0 %v7197
        %v7681 = vpop.f32.mrb[0].mxu0
        %v7682 = vadd.f32 0.0, %v7681
        %v7683 = vpop.f32.mrb[0].mxu0
        %v7684 = vadd.f32 0.0, %v7683
        %7685 = vmatprep.mubr.f32.mxu0 0.0
        %7686 = vmatmul.mubr.f32.gmra.mrb[0].mxu0 %v7200
        %v7687 = vpop.f32.mrb[0].mxu0
        %v7688 = vadd.f32 0.0, %v7687
        %v7689 = vpop.f32.mrb[0].mxu0
        %v7690 = vadd.f32 0.0, %v7689
        %7691 = vmatprep.mubr.f32.mxu0 0.0
        %7692 = vmatmul.mubr.f32.gmra.mrb[0].mxu0 %v7203
        %v7693 = vpop.f32.mrb[0].mxu0
        %v7694 = vadd.f32 0.0, %v7693
        %v7695 = vpop.f32.mrb[0].mxu0
        %v7696 = vadd.f32 0.0, %v7695
        %7697 = vmatprep.mubr.f32.mxu0 0.0
        %7698 = vmatmul.mubr.f32.gmra.mrb[0].mxu0 %v7206
        %v7699 = vpop.f32.mrb[0].mxu0
        %v7700 = vadd.f32 0.0, %v7699
        %v7701 = vpop.f32.mrb[0].mxu0
        %v7702 = vadd.f32 0.0, %v7701
        %7703 = vmatprep.mubr.f32.mxu0 0.0
        %7704 = vmatmul.mubr.f32.gmra.mrb[0].mxu0 %v7209
        %v7705 = vpop.f32.mrb[0].mxu0
        %v7706 = vadd.f32 0.0, %v7705
        %v7707 = vpop.f32.mrb[0].mxu0
        %v7708 = vadd.f32 0.0, %v7707
        %7709 = vmatprep.mubr.f32.mxu0 0.0
        %7710 = vmatmul.mubr.f32.gmra.mrb[0].mxu0 %v7212
        %v7711 = vpop.f32.mrb[0].mxu0
        %v7712 = vadd.f32 0.0, %v7711
        %v7713 = vpop.f32.mrb[0].mxu0
        %v7714 = vadd.f32 0.0, %v7713
        %7715 = vmatprep.mubr.f32.mxu0 0.0
        %7716 = vmatmul.mubr.f32.gmra.mrb[0].mxu0 %v7215
        %v7717 = vpop.f32.mrb[0].mxu0
        %v7718 = vadd.f32 0.0, %v7717
        %v7719 = vpop.f32.mrb[0].mxu0
        %v7720 = vadd.f32 0.0, %v7719
        %7721 = vmatprep.mubr.f32.mxu0 0.0
        %7722 = vmatmul.mubr.f32.gmra.mrb[0].mxu0 %v7218
        %v7723 = vpop.f32.mrb[0].mxu0
        %v7724 = vadd.f32 0.0, %v7723
        %v7725 = vpop.f32.mrb[0].mxu0
        %v7726 = vadd.f32 0.0, %v7725
        %7727 = vmatprep.mubr.f32.mxu0 0.0
        %7728 = vmatmul.mubr.f32.gmra.mrb[0].mxu0 %v7221
        %v7729 = vpop.f32.mrb[0].mxu0
        %v7730 = vadd.f32 0.0, %v7729
        %v7731 = vpop.f32.mrb[0].mxu0
        %v7732 = vadd.f32 0.0, %v7731
        %7733 = vmatprep.mubr.f32.mxu0 0.0
        %7734 = vmatmul.mubr.f32.gmra.mrb[0].mxu0 %v7224
        %v7735 = vpop.f32.mrb[0].mxu0
        %v7736 = vadd.f32 0.0, %v7735
        %v7737 = vpop.f32.mrb[0].mxu0
        %v7738 = vadd.f32 0.0, %v7737
        %7739 = vmatprep.mubr.f32.mxu0 0.0
        %7740 = vmatmul.mubr.f32.gmra.mrb[0].mxu0 %v7227
        %v7741 = vpop.f32.mrb[0].mxu0
        %v7742 = vadd.f32 0.0, %v7741
        %v7743 = vpop.f32.mrb[0].mxu0
        %v7744 = vadd.f32 0.0, %v7743
        %7745 = vmatprep.mubr.f32.mxu0 0.0
        %7746 = vmatmul.mubr.f32.gmra.mrb[0].mxu0 %v7230
        %v7747 = vpop.f32.mrb[0].mxu0
        %v7748 = vadd.f32 0.0, %v7747
        %v7749 = vpop.f32.mrb[0].mxu0
        %v7750 = vadd.f32 0.0, %v7749
        %7751 = vmatprep.mubr.f32.mxu0 0.0
        %7752 = vmatmul.mubr.f32.gmra.mrb[0].mxu0 %v7233
        %v7753 = vpop.f32.mrb[0].mxu0
        %v7754 = vadd.f32 0.0, %v7753
        %v7755 = vpop.f32.mrb[0].mxu0
        %v7756 = vadd.f32 0.0, %v7755
        %7757 = vmatprep.mubr.f32.mxu0 0.0
        %7758 = vmatmul.mubr.f32.gmra.mrb[0].mxu0 %v7236
        %v7759 = vpop.f32.mrb[0].mxu0
        %v7760 = vadd.f32 0.0, %v7759
        %v7761 = vpop.f32.mrb[0].mxu0
        %v7762 = vadd.f32 0.0, %v7761
        %7763 = vmatprep.mubr.f32.mxu0 0.0
        %7764 = vmatmul.mubr.f32.gmra.mrb[0].mxu0 %v7239
        %v7765 = vpop.f32.mrb[0].mxu0
        %v7766 = vadd.f32 0.0, %v7765
        %v7767 = vpop.f32.mrb[0].mxu0
        %v7768 = vadd.f32 0.0, %v7767
        %7769 = vmatprep.mubr.f32.mxu0 0.0
        %7770 = vmatmul.mubr.f32.gmra.mrb[0].mxu0 %v7242
        %v7771 = vpop.f32.mrb[0].mxu0
        %v7772 = vadd.f32 0.0, %v7771
        %v7773 = vpop.f32.mrb[0].mxu0
        %v7774 = vadd.f32 0.0, %v7773
        %7775 = vmatprep.mubr.f32.mxu0 0.0
        %7776 = vmatmul.mubr.f32.gmra.mrb[0].mxu0 %v7245
        %v7777 = vpop.f32.mrb[0].mxu0
        %v7778 = vadd.f32 0.0, %v7777
        %v7779 = vpop.f32.mrb[0].mxu0
        %v7780 = vadd.f32 0.0, %v7779
        %7781 = vmatprep.mubr.f32.mxu0 0.0
        %7782 = vmatmul.mubr.f32.gmra.mrb[0].mxu0 %v7248
        %v7783 = vpop.f32.mrb[0].mxu0
        %v7784 = vadd.f32 0.0, %v7783
        %v7785 = vpop.f32.mrb[0].mxu0
        %v7786 = vadd.f32 0.0, %v7785
        %7787 = vmatprep.mubr.f32.mxu0 0.0
        %7788 = vmatmul.mubr.f32.gmra.mrb[0].mxu0 %v7251
        %v7789 = vpop.f32.mrb[0].mxu0
        %v7790 = vadd.f32 0.0, %v7789
        %v7791 = vpop.f32.mrb[0].mxu0
        %v7792 = vadd.f32 0.0, %v7791
        %7793 = vmatprep.mubr.f32.mxu0 0.0
        %7794 = vmatmul.mubr.f32.gmra.mrb[0].mxu0 %v7254
        %v7795 = vpop.f32.mrb[0].mxu0
        %v7796 = vadd.f32 0.0, %v7795
        %v7797 = vpop.f32.mrb[0].mxu0
        %v7798 = vadd.f32 0.0, %v7797
        %7799 = vmatprep.mubr.f32.mxu0 0.0
        %7800 = vmatmul.mubr.f32.gmra.mrb[0].mxu0 %v7257
        %v7801 = vpop.f32.mrb[0].mxu0
        %v7802 = vadd.f32 0.0, %v7801
        %v7803 = vpop.f32.mrb[0].mxu0
        %v7804 = vadd.f32 0.0, %v7803
        %7805 = vmatprep.mubr.f32.mxu0 0.0
        %7806 = vmatmul.mubr.f32.gmra.mrb[0].mxu0 %v7260
        %v7807 = vpop.f32.mrb[0].mxu0
        %v7808 = vadd.f32 0.0, %v7807
        %v7809 = vpop.f32.mrb[0].mxu0
        %v7810 = vadd.f32 0.0, %v7809
        %7811 = vmatprep.mubr.f32.mxu0 0.0
        %7812 = vmatmul.mubr.f32.gmra.mrb[0].mxu0 %v7263
        %v7813 = vpop.f32.mrb[0].mxu0
        %v7814 = vadd.f32 0.0, %v7813
        %v7815 = vpop.f32.mrb[0].mxu0
        %v7816 = vadd.f32 0.0, %v7815
        %7817 = vmatprep.mubr.f32.mxu0 0.0
        %7818 = vmatmul.mubr.f32.gmra.mrb[0].mxu0 %v7266
        %v7819 = vpop.f32.mrb[0].mxu0
        %v7820 = vadd.f32 0.0, %v7819
        %v7821 = vpop.f32.mrb[0].mxu0
        %v7822 = vadd.f32 0.0, %v7821
        %7823 = vmatprep.mubr.f32.mxu0 0.0
        %7824 = vmatmul.mubr.f32.gmra.mrb[0].mxu0 %v7269
        %v7825 = vpop.f32.mrb[0].mxu0
        %v7826 = vadd.f32 0.0, %v7825
        %v7827 = vpop.f32.mrb[0].mxu0
        %v7828 = vadd.f32 0.0, %v7827
        %7829 = vmatprep.mubr.f32.mxu0 0.0
        %7830 = vmatmul.mubr.f32.gmra.mrb[0].mxu0 %v7272
        %v7831 = vpop.f32.mrb[0].mxu0
        %v7832 = vadd.f32 0.0, %v7831
        %v7833 = vpop.f32.mrb[0].mxu0
        %v7834 = vadd.f32 0.0, %v7833
        %7835 = vdwg.mxu0
        %v7836 = vadd.f32 %v6969, %v7341
        %v7837 = vadd.f32 %v6970, %v7343
        %v7838 = vadd.f32 %v6971, %v7622
        %v7839 = vadd.f32 %v6972, %v7624
        %v7840 = vadd.f32 %v6973, %v7347
        %v7841 = vadd.f32 %v6974, %v7349
        %v7842 = vadd.f32 %v6975, %v7628
        %v7843 = vadd.f32 %v6976, %v7630
        %v7844 = vadd.f32 %v6977, %v7353
        %v7845 = vadd.f32 %v6978, %v7355
        %v7846 = vadd.f32 %v6979, %v7634
        %v7847 = vadd.f32 %v6980, %v7636
        %v7848 = vadd.f32 %v6981, %v7359
        %v7849 = vadd.f32 %v6982, %v7361
        %v7850 = vadd.f32 %v6983, %v7640
        %v7851 = vadd.f32 %v6984, %v7642
        %v7852 = vadd.f32 %v6985, %v7365
        %v7853 = vadd.f32 %v6986, %v7367
        %v7854 = vadd.f32 %v6987, %v7646
        %v7855 = vadd.f32 %v6988, %v7648
        %v7856 = vadd.f32 %v6989, %v7371
        %v7857 = vadd.f32 %v6990, %v7373
        %v7858 = vadd.f32 %v6991, %v7652
        %v7859 = vadd.f32 %v6992, %v7654
        %v7860 = vadd.f32 %v6993, %v7377
        %v7861 = vadd.f32 %v6994, %v7379
        %v7862 = vadd.f32 %v6995, %v7658
        %v7863 = vadd.f32 %v6996, %v7660
        %v7864 = vadd.f32 %v6997, %v7383
        %v7865 = vadd.f32 %v6998, %v7385
        %v7866 = vadd.f32 %v6999, %v7664
        %v7867 = vadd.f32 %v7000, %v7666
        %v7868 = vadd.f32 %v7001, %v7389
        %v7869 = vadd.f32 %v7002, %v7391
        %v7870 = vadd.f32 %v7003, %v7670
        %v7871 = vadd.f32 %v7004, %v7672
        %v7872 = vadd.f32 %v7005, %v7395
        %v7873 = vadd.f32 %v7006, %v7397
        %v7874 = vadd.f32 %v7007, %v7676
        %v7875 = vadd.f32 %v7008, %v7678
        %v7876 = vadd.f32 %v7009, %v7401
        %v7877 = vadd.f32 %v7010, %v7403
        %v7878 = vadd.f32 %v7011, %v7682
        %v7879 = vadd.f32 %v7012, %v7684
        %v7880 = vadd.f32 %v7013, %v7407
        %v7881 = vadd.f32 %v7014, %v7409
        %v7882 = vadd.f32 %v7015, %v7688
        %v7883 = vadd.f32 %v7016, %v7690
        %v7884 = vadd.f32 %v7017, %v7413
        %v7885 = vadd.f32 %v7018, %v7415
        %v7886 = vadd.f32 %v7019, %v7694
        %v7887 = vadd.f32 %v7020, %v7696
        %v7888 = vadd.f32 %v7021, %v7419
        %v7889 = vadd.f32 %v7022, %v7421
        %v7890 = vadd.f32 %v7023, %v7700
        %v7891 = vadd.f32 %v7024, %v7702
        %v7892 = vadd.f32 %v7025, %v7425
        %v7893 = vadd.f32 %v7026, %v7427
        %v7894 = vadd.f32 %v7027, %v7706
        %v7895 = vadd.f32 %v7028, %v7708
        %v7896 = vadd.f32 %v7029, %v7431
        %v7897 = vadd.f32 %v7030, %v7433
        %v7898 = vadd.f32 %v7031, %v7712
        %v7899 = vadd.f32 %v7032, %v7714
        %v7900 = vadd.f32 %v7033, %v7437
        %v7901 = vadd.f32 %v7034, %v7439
        %v7902 = vadd.f32 %v7035, %v7718
        %v7903 = vadd.f32 %v7036, %v7720
        %v7904 = vadd.f32 %v7037, %v7443
        %v7905 = vadd.f32 %v7038, %v7445
        %v7906 = vadd.f32 %v7039, %v7724
        %v7907 = vadd.f32 %v7040, %v7726
        %v7908 = vadd.f32 %v7041, %v7449
        %v7909 = vadd.f32 %v7042, %v7451
        %v7910 = vadd.f32 %v7043, %v7730
        %v7911 = vadd.f32 %v7044, %v7732
        %v7912 = vadd.f32 %v7045, %v7455
        %v7913 = vadd.f32 %v7046, %v7457
        %v7914 = vadd.f32 %v7047, %v7736
        %v7915 = vadd.f32 %v7048, %v7738
        %v7916 = vadd.f32 %v7049, %v7461
        %v7917 = vadd.f32 %v7050, %v7463
        %v7918 = vadd.f32 %v7051, %v7742
        %v7919 = vadd.f32 %v7052, %v7744
        %v7920 = vadd.f32 %v7053, %v7467
        %v7921 = vadd.f32 %v7054, %v7469
        %v7922 = vadd.f32 %v7055, %v7748
        %v7923 = vadd.f32 %v7056, %v7750
        %v7924 = vadd.f32 %v7057, %v7473
        %v7925 = vadd.f32 %v7058, %v7475
        %v7926 = vadd.f32 %v7059, %v7754
        %v7927 = vadd.f32 %v7060, %v7756
        %v7928 = vadd.f32 %v7061, %v7479
        %v7929 = vadd.f32 %v7062, %v7481
        %v7930 = vadd.f32 %v7063, %v7760
        %v7931 = vadd.f32 %v7064, %v7762
        %v7932 = vadd.f32 %v7065, %v7485
        %v7933 = vadd.f32 %v7066, %v7487
        %v7934 = vadd.f32 %v7067, %v7766
        %v7935 = vadd.f32 %v7068, %v7768
        %v7936 = vadd.f32 %v7069, %v7491
        %v7937 = vadd.f32 %v7070, %v7493
        %v7938 = vadd.f32 %v7071, %v7772
        %v7939 = vadd.f32 %v7072, %v7774
        %v7940 = vadd.f32 %v7073, %v7497
        %v7941 = vadd.f32 %v7074, %v7499
        %v7942 = vadd.f32 %v7075, %v7778
        %v7943 = vadd.f32 %v7076, %v7780
        %v7944 = vadd.f32 %v7077, %v7503
        %v7945 = vadd.f32 %v7078, %v7505
        %v7946 = vadd.f32 %v7079, %v7784
        %v7947 = vadd.f32 %v7080, %v7786
        %v7948 = vadd.f32 %v7081, %v7509
        %v7949 = vadd.f32 %v7082, %v7511
        %v7950 = vadd.f32 %v7083, %v7790
        %v7951 = vadd.f32 %v7084, %v7792
        %v7952 = vadd.f32 %v7085, %v7515
        %v7953 = vadd.f32 %v7086, %v7517
        %v7954 = vadd.f32 %v7087, %v7796
        %v7955 = vadd.f32 %v7088, %v7798
        %v7956 = vadd.f32 %v7089, %v7521
        %v7957 = vadd.f32 %v7090, %v7523
        %v7958 = vadd.f32 %v7091, %v7802
        %v7959 = vadd.f32 %v7092, %v7804
        %v7960 = vadd.f32 %v7093, %v7527
        %v7961 = vadd.f32 %v7094, %v7529
        %v7962 = vadd.f32 %v7095, %v7808
        %v7963 = vadd.f32 %v7096, %v7810
        %v7964 = vadd.f32 %v7097, %v7533
        %v7965 = vadd.f32 %v7098, %v7535
        %v7966 = vadd.f32 %v7099, %v7814
        %v7967 = vadd.f32 %v7100, %v7816
        %v7968 = vadd.f32 %v7101, %v7539
        %v7969 = vadd.f32 %v7102, %v7541
        %v7970 = vadd.f32 %v7103, %v7820
        %v7971 = vadd.f32 %v7104, %v7822
        %v7972 = vadd.f32 %v7105, %v7545
        %v7973 = vadd.f32 %v7106, %v7547
        %v7974 = vadd.f32 %v7107, %v7826
        %v7975 = vadd.f32 %v7108, %v7828
        %v7976 = vadd.f32 %v7109, %v7551
        %v7977 = vadd.f32 %v7110, %v7553
        %v7978 = vadd.f32 %v7111, %v7832
        %v7979 = vadd.f32 %v7112, %v7834
        %v7980 = vld [vmem:[%s2] sm:$0xf]
        %v7982 = vlaneseq
        %v7983 = vshrl.u32 %v7982, 7
        %v7984 = vsub.s32 0, %v7983
        %v7985 = vrot.slane %v7980, %v7984
        %v7986 = vlaneseq
        %v7987 = vshrl.u32 %v7986, 7
        %v7988 = vsub.s32 1, %v7987
        %v7989 = vrot.slane %v7980, %v7988
        %v7990 = vlaneseq
        %v7991 = vshrl.u32 %v7990, 7
        %v7992 = vsub.s32 2, %v7991
        %v7993 = vrot.slane %v7980, %v7992
        %v7994 = vlaneseq
        %v7995 = vshrl.u32 %v7994, 7
        %v7996 = vsub.s32 3, %v7995
        %v7997 = vrot.slane %v7980, %v7996
        %v8002 = vadd.f32 %v7836, %v7985
        %v8003 = vadd.f32 %v7837, %v7989
        %v8004 = vadd.f32 %v7838, %v7993
        %v8005 = vadd.f32 %v7839, %v7997
        %v8006 = vadd.f32 %v7840, %v7985
        %v8007 = vadd.f32 %v7841, %v7989
        %v8008 = vadd.f32 %v7842, %v7993
        %v8009 = vadd.f32 %v7843, %v7997
        %v8010 = vadd.f32 %v7844, %v7985
        %v8011 = vadd.f32 %v7845, %v7989
        %v8012 = vadd.f32 %v7846, %v7993
        %v8013 = vadd.f32 %v7847, %v7997
        %v8014 = vadd.f32 %v7848, %v7985
        %v8015 = vadd.f32 %v7849, %v7989
        %v8016 = vadd.f32 %v7850, %v7993
        %v8017 = vadd.f32 %v7851, %v7997
        %v8018 = vadd.f32 %v7852, %v7985
        %v8019 = vadd.f32 %v7853, %v7989
        %v8020 = vadd.f32 %v7854, %v7993
        %v8021 = vadd.f32 %v7855, %v7997
        %v8022 = vadd.f32 %v7856, %v7985
        %v8023 = vadd.f32 %v7857, %v7989
        %v8024 = vadd.f32 %v7858, %v7993
        %v8025 = vadd.f32 %v7859, %v7997
        %v8026 = vadd.f32 %v7860, %v7985
        %v8027 = vadd.f32 %v7861, %v7989
        %v8028 = vadd.f32 %v7862, %v7993
        %v8029 = vadd.f32 %v7863, %v7997
        %v8030 = vadd.f32 %v7864, %v7985
        %v8031 = vadd.f32 %v7865, %v7989
        %v8032 = vadd.f32 %v7866, %v7993
        %v8033 = vadd.f32 %v7867, %v7997
        %v8034 = vadd.f32 %v7868, %v7985
        %v8035 = vadd.f32 %v7869, %v7989
        %v8036 = vadd.f32 %v7870, %v7993
        %v8037 = vadd.f32 %v7871, %v7997
        %v8038 = vadd.f32 %v7872, %v7985
        %v8039 = vadd.f32 %v7873, %v7989
        %v8040 = vadd.f32 %v7874, %v7993
        %v8041 = vadd.f32 %v7875, %v7997
        %v8042 = vadd.f32 %v7876, %v7985
        %v8043 = vadd.f32 %v7877, %v7989
        %v8044 = vadd.f32 %v7878, %v7993
        %v8045 = vadd.f32 %v7879, %v7997
        %v8046 = vadd.f32 %v7880, %v7985
        %v8047 = vadd.f32 %v7881, %v7989
        %v8048 = vadd.f32 %v7882, %v7993
        %v8049 = vadd.f32 %v7883, %v7997
        %v8050 = vadd.f32 %v7884, %v7985
        %v8051 = vadd.f32 %v7885, %v7989
        %v8052 = vadd.f32 %v7886, %v7993
        %v8053 = vadd.f32 %v7887, %v7997
        %v8054 = vadd.f32 %v7888, %v7985
        %v8055 = vadd.f32 %v7889, %v7989
        %v8056 = vadd.f32 %v7890, %v7993
        %v8057 = vadd.f32 %v7891, %v7997
        %v8058 = vadd.f32 %v7892, %v7985
        %v8059 = vadd.f32 %v7893, %v7989
        %v8060 = vadd.f32 %v7894, %v7993
        %v8061 = vadd.f32 %v7895, %v7997
        %v8062 = vadd.f32 %v7896, %v7985
        %v8063 = vadd.f32 %v7897, %v7989
        %v8064 = vadd.f32 %v7898, %v7993
        %v8065 = vadd.f32 %v7899, %v7997
        %v8066 = vadd.f32 %v7900, %v7985
        %v8067 = vadd.f32 %v7901, %v7989
        %v8068 = vadd.f32 %v7902, %v7993
        %v8069 = vadd.f32 %v7903, %v7997
        %v8070 = vadd.f32 %v7904, %v7985
        %v8071 = vadd.f32 %v7905, %v7989
        %v8072 = vadd.f32 %v7906, %v7993
        %v8073 = vadd.f32 %v7907, %v7997
        %v8074 = vadd.f32 %v7908, %v7985
        %v8075 = vadd.f32 %v7909, %v7989
        %v8076 = vadd.f32 %v7910, %v7993
        %v8077 = vadd.f32 %v7911, %v7997
        %v8078 = vadd.f32 %v7912, %v7985
        %v8079 = vadd.f32 %v7913, %v7989
        %v8080 = vadd.f32 %v7914, %v7993
        %v8081 = vadd.f32 %v7915, %v7997
        %v8082 = vadd.f32 %v7916, %v7985
        %v8083 = vadd.f32 %v7917, %v7989
        %v8084 = vadd.f32 %v7918, %v7993
        %v8085 = vadd.f32 %v7919, %v7997
        %v8086 = vadd.f32 %v7920, %v7985
        %v8087 = vadd.f32 %v7921, %v7989
        %v8088 = vadd.f32 %v7922, %v7993
        %v8089 = vadd.f32 %v7923, %v7997
        %v8090 = vadd.f32 %v7924, %v7985
        %v8091 = vadd.f32 %v7925, %v7989
        %v8092 = vadd.f32 %v7926, %v7993
        %v8093 = vadd.f32 %v7927, %v7997
        %v8094 = vadd.f32 %v7928, %v7985
        %v8095 = vadd.f32 %v7929, %v7989
        %v8096 = vadd.f32 %v7930, %v7993
        %v8097 = vadd.f32 %v7931, %v7997
        %v8098 = vadd.f32 %v7932, %v7985
        %v8099 = vadd.f32 %v7933, %v7989
        %v8100 = vadd.f32 %v7934, %v7993
        %v8101 = vadd.f32 %v7935, %v7997
        %v8102 = vadd.f32 %v7936, %v7985
        %v8103 = vadd.f32 %v7937, %v7989
        %v8104 = vadd.f32 %v7938, %v7993
        %v8105 = vadd.f32 %v7939, %v7997
        %v8106 = vadd.f32 %v7940, %v7985
        %v8107 = vadd.f32 %v7941, %v7989
        %v8108 = vadd.f32 %v7942, %v7993
        %v8109 = vadd.f32 %v7943, %v7997
        %v8110 = vadd.f32 %v7944, %v7985
        %v8111 = vadd.f32 %v7945, %v7989
        %v8112 = vadd.f32 %v7946, %v7993
        %v8113 = vadd.f32 %v7947, %v7997
        %v8114 = vadd.f32 %v7948, %v7985
        %v8115 = vadd.f32 %v7949, %v7989
        %v8116 = vadd.f32 %v7950, %v7993
        %v8117 = vadd.f32 %v7951, %v7997
        %v8118 = vadd.f32 %v7952, %v7985
        %v8119 = vadd.f32 %v7953, %v7989
        %v8120 = vadd.f32 %v7954, %v7993
        %v8121 = vadd.f32 %v7955, %v7997
        %v8122 = vadd.f32 %v7956, %v7985
        %v8123 = vadd.f32 %v7957, %v7989
        %v8124 = vadd.f32 %v7958, %v7993
        %v8125 = vadd.f32 %v7959, %v7997
        %v8126 = vadd.f32 %v7960, %v7985
        %v8127 = vadd.f32 %v7961, %v7989
        %v8128 = vadd.f32 %v7962, %v7993
        %v8129 = vadd.f32 %v7963, %v7997
        %v8130 = vadd.f32 %v7964, %v7985
        %v8131 = vadd.f32 %v7965, %v7989
        %v8132 = vadd.f32 %v7966, %v7993
        %v8133 = vadd.f32 %v7967, %v7997
        %v8134 = vadd.f32 %v7968, %v7985
        %v8135 = vadd.f32 %v7969, %v7989
        %v8136 = vadd.f32 %v7970, %v7993
        %v8137 = vadd.f32 %v7971, %v7997
        %v8138 = vadd.f32 %v7972, %v7985
        %v8139 = vadd.f32 %v7973, %v7989
        %v8140 = vadd.f32 %v7974, %v7993
        %v8141 = vadd.f32 %v7975, %v7997
        %v8142 = vadd.f32 %v7976, %v7985
        %v8143 = vadd.f32 %v7977, %v7989
        %v8144 = vadd.f32 %v7978, %v7993
        %v8145 = vadd.f32 %v7979, %v7997
        %v8146 = vmax.f32 %v8002, 0.0
        %v8147 = vmax.f32 %v8003, 0.0
        %v8148 = vmax.f32 %v8004, 0.0
        %v8149 = vmax.f32 %v8005, 0.0
        %v8150 = vmax.f32 %v8006, 0.0
        %v8151 = vmax.f32 %v8007, 0.0
        %v8152 = vmax.f32 %v8008, 0.0
        %v8153 = vmax.f32 %v8009, 0.0
        %v8154 = vmax.f32 %v8010, 0.0
        %v8155 = vmax.f32 %v8011, 0.0
        %v8156 = vmax.f32 %v8012, 0.0
        %v8157 = vmax.f32 %v8013, 0.0
        %v8158 = vmax.f32 %v8014, 0.0
        %v8159 = vmax.f32 %v8015, 0.0
        %v8160 = vmax.f32 %v8016, 0.0
        %v8161 = vmax.f32 %v8017, 0.0
        %v8162 = vmax.f32 %v8018, 0.0
        %v8163 = vmax.f32 %v8019, 0.0
        %v8164 = vmax.f32 %v8020, 0.0
        %v8165 = vmax.f32 %v8021, 0.0
        %v8166 = vmax.f32 %v8022, 0.0
        %v8167 = vmax.f32 %v8023, 0.0
        %v8168 = vmax.f32 %v8024, 0.0
        %v8169 = vmax.f32 %v8025, 0.0
        %v8170 = vmax.f32 %v8026, 0.0
        %v8171 = vmax.f32 %v8027, 0.0
        %v8172 = vmax.f32 %v8028, 0.0
        %v8173 = vmax.f32 %v8029, 0.0
        %v8174 = vmax.f32 %v8030, 0.0
        %v8175 = vmax.f32 %v8031, 0.0
        %v8176 = vmax.f32 %v8032, 0.0
        %v8177 = vmax.f32 %v8033, 0.0
        %v8178 = vmax.f32 %v8034, 0.0
        %v8179 = vmax.f32 %v8035, 0.0
        %v8180 = vmax.f32 %v8036, 0.0
        %v8181 = vmax.f32 %v8037, 0.0
        %v8182 = vmax.f32 %v8038, 0.0
        %v8183 = vmax.f32 %v8039, 0.0
        %v8184 = vmax.f32 %v8040, 0.0
        %v8185 = vmax.f32 %v8041, 0.0
        %v8186 = vmax.f32 %v8042, 0.0
        %v8187 = vmax.f32 %v8043, 0.0
        %v8188 = vmax.f32 %v8044, 0.0
        %v8189 = vmax.f32 %v8045, 0.0
        %v8190 = vmax.f32 %v8046, 0.0
        %v8191 = vmax.f32 %v8047, 0.0
        %v8192 = vmax.f32 %v8048, 0.0
        %v8193 = vmax.f32 %v8049, 0.0
        %v8194 = vmax.f32 %v8050, 0.0
        %v8195 = vmax.f32 %v8051, 0.0
        %v8196 = vmax.f32 %v8052, 0.0
        %v8197 = vmax.f32 %v8053, 0.0
        %v8198 = vmax.f32 %v8054, 0.0
        %v8199 = vmax.f32 %v8055, 0.0
        %v8200 = vmax.f32 %v8056, 0.0
        %v8201 = vmax.f32 %v8057, 0.0
        %v8202 = vmax.f32 %v8058, 0.0
        %v8203 = vmax.f32 %v8059, 0.0
        %v8204 = vmax.f32 %v8060, 0.0
        %v8205 = vmax.f32 %v8061, 0.0
        %v8206 = vmax.f32 %v8062, 0.0
        %v8207 = vmax.f32 %v8063, 0.0
        %v8208 = vmax.f32 %v8064, 0.0
        %v8209 = vmax.f32 %v8065, 0.0
        %v8210 = vmax.f32 %v8066, 0.0
        %v8211 = vmax.f32 %v8067, 0.0
        %v8212 = vmax.f32 %v8068, 0.0
        %v8213 = vmax.f32 %v8069, 0.0
        %v8214 = vmax.f32 %v8070, 0.0
        %v8215 = vmax.f32 %v8071, 0.0
        %v8216 = vmax.f32 %v8072, 0.0
        %v8217 = vmax.f32 %v8073, 0.0
        %v8218 = vmax.f32 %v8074, 0.0
        %v8219 = vmax.f32 %v8075, 0.0
        %v8220 = vmax.f32 %v8076, 0.0
        %v8221 = vmax.f32 %v8077, 0.0
        %v8222 = vmax.f32 %v8078, 0.0
        %v8223 = vmax.f32 %v8079, 0.0
        %v8224 = vmax.f32 %v8080, 0.0
        %v8225 = vmax.f32 %v8081, 0.0
        %v8226 = vmax.f32 %v8082, 0.0
        %v8227 = vmax.f32 %v8083, 0.0
        %v8228 = vmax.f32 %v8084, 0.0
        %v8229 = vmax.f32 %v8085, 0.0
        %v8230 = vmax.f32 %v8086, 0.0
        %v8231 = vmax.f32 %v8087, 0.0
        %v8232 = vmax.f32 %v8088, 0.0
        %v8233 = vmax.f32 %v8089, 0.0
        %v8234 = vmax.f32 %v8090, 0.0
        %v8235 = vmax.f32 %v8091, 0.0
        %v8236 = vmax.f32 %v8092, 0.0
        %v8237 = vmax.f32 %v8093, 0.0
        %v8238 = vmax.f32 %v8094, 0.0
        %v8239 = vmax.f32 %v8095, 0.0
        %v8240 = vmax.f32 %v8096, 0.0
        %v8241 = vmax.f32 %v8097, 0.0
        %v8242 = vmax.f32 %v8098, 0.0
        %v8243 = vmax.f32 %v8099, 0.0
        %v8244 = vmax.f32 %v8100, 0.0
        %v8245 = vmax.f32 %v8101, 0.0
        %v8246 = vmax.f32 %v8102, 0.0
        %v8247 = vmax.f32 %v8103, 0.0
        %v8248 = vmax.f32 %v8104, 0.0
        %v8249 = vmax.f32 %v8105, 0.0
        %v8250 = vmax.f32 %v8106, 0.0
        %v8251 = vmax.f32 %v8107, 0.0
        %v8252 = vmax.f32 %v8108, 0.0
        %v8253 = vmax.f32 %v8109, 0.0
        %v8254 = vmax.f32 %v8110, 0.0
        %v8255 = vmax.f32 %v8111, 0.0
        %v8256 = vmax.f32 %v8112, 0.0
        %v8257 = vmax.f32 %v8113, 0.0
        %v8258 = vmax.f32 %v8114, 0.0
        %v8259 = vmax.f32 %v8115, 0.0
        %v8260 = vmax.f32 %v8116, 0.0
        %v8261 = vmax.f32 %v8117, 0.0
        %v8262 = vmax.f32 %v8118, 0.0
        %v8263 = vmax.f32 %v8119, 0.0
        %v8264 = vmax.f32 %v8120, 0.0
        %v8265 = vmax.f32 %v8121, 0.0
        %v8266 = vmax.f32 %v8122, 0.0
        %v8267 = vmax.f32 %v8123, 0.0
        %v8268 = vmax.f32 %v8124, 0.0
        %v8269 = vmax.f32 %v8125, 0.0
        %v8270 = vmax.f32 %v8126, 0.0
        %v8271 = vmax.f32 %v8127, 0.0
        %v8272 = vmax.f32 %v8128, 0.0
        %v8273 = vmax.f32 %v8129, 0.0
        %v8274 = vmax.f32 %v8130, 0.0
        %v8275 = vmax.f32 %v8131, 0.0
        %v8276 = vmax.f32 %v8132, 0.0
        %v8277 = vmax.f32 %v8133, 0.0
        %v8278 = vmax.f32 %v8134, 0.0
        %v8279 = vmax.f32 %v8135, 0.0
        %v8280 = vmax.f32 %v8136, 0.0
        %v8281 = vmax.f32 %v8137, 0.0
        %v8282 = vmax.f32 %v8138, 0.0
        %v8283 = vmax.f32 %v8139, 0.0
        %v8284 = vmax.f32 %v8140, 0.0
        %v8285 = vmax.f32 %v8141, 0.0
        %v8286 = vmax.f32 %v8142, 0.0
        %v8287 = vmax.f32 %v8143, 0.0
        %v8288 = vmax.f32 %v8144, 0.0
        %v8289 = vmax.f32 %v8145, 0.0
        %v8290 = vld [vmem:[%s3] sm:$0xff]
        %v8291 = vld [vmem:[%s3 + $0x8] sm:$0xff]
        %v8292 = vld [vmem:[%s3 + $0x10] sm:$0xff]
        %v8293 = vld [vmem:[%s3 + $0x18] sm:$0xff]
        %v8294 = vld [vmem:[%s3 + $0x20] sm:$0xff]
        %v8295 = vld [vmem:[%s3 + $0x28] sm:$0xff]
        %v8296 = vld [vmem:[%s3 + $0x30] sm:$0xff]
        %v8297 = vld [vmem:[%s3 + $0x38] sm:$0xff]
        %v8298 = vld [vmem:[%s3 + $0x40] sm:$0xff]
        %v8299 = vld [vmem:[%s3 + $0x48] sm:$0xff]
        %v8300 = vld [vmem:[%s3 + $0x50] sm:$0xff]
        %v8301 = vld [vmem:[%s3 + $0x58] sm:$0xff]
        %v8302 = vld [vmem:[%s3 + $0x60] sm:$0xff]
        %v8303 = vld [vmem:[%s3 + $0x68] sm:$0xff]
        %v8304 = vld [vmem:[%s3 + $0x70] sm:$0xff]
        %v8305 = vld [vmem:[%s3 + $0x78] sm:$0xff]
        %v8306 = vld [vmem:[%s3 + $0x80] sm:$0xff]
        %v8307 = vld [vmem:[%s3 + $0x88] sm:$0xff]
        %v8308 = vld [vmem:[%s3 + $0x90] sm:$0xff]
        %v8309 = vld [vmem:[%s3 + $0x98] sm:$0xff]
        %v8310 = vld [vmem:[%s3 + $0xa0] sm:$0xff]
        %v8311 = vld [vmem:[%s3 + $0xa8] sm:$0xff]
        %v8312 = vld [vmem:[%s3 + $0xb0] sm:$0xff]
        %v8313 = vld [vmem:[%s3 + $0xb8] sm:$0xff]
        %v8314 = vld [vmem:[%s3 + $0xc0] sm:$0xff]
        %v8315 = vld [vmem:[%s3 + $0xc8] sm:$0xff]
        %v8316 = vld [vmem:[%s3 + $0xd0] sm:$0xff]
        %v8317 = vld [vmem:[%s3 + $0xd8] sm:$0xff]
        %v8318 = vld [vmem:[%s3 + $0xe0] sm:$0xff]
        %v8319 = vld [vmem:[%s3 + $0xe8] sm:$0xff]
        %v8320 = vld [vmem:[%s3 + $0xf0] sm:$0xff]
        %v8321 = vld [vmem:[%s3 + $0xf8] sm:$0xff]
        %v8322 = vld [vmem:[#allocation2] sm:$0x1]
        %v8324 = vlaneseq
        %v8325 = vshrl.u32 %v8324, 7
        %v8326 = vsub.s32 0, %v8325
        %v8327 = vrot.slane %v8322, %v8326
        %8329 = vmatprep.subr.mxu0 0.0
        %8330 = vmatpush1.msra.mxu0 %v8290
        %8331 = vmatprep.subr.mxu0 0.0
        %8332 = vmatpush1.msra.mxu0 %v8291
        %8333 = vmatprep.subr.mxu0 0.0
        %8334 = vmatpush1.msra.mxu0 %v8292
        %8335 = vmatprep.subr.mxu0 0.0
        %8336 = vmatpush1.msra.mxu0 %v8293
        %8337 = vmatprep.subr.mxu0 0.0
        %8338 = vmatpush1.msra.mxu0 %v8294
        %8339 = vmatprep.subr.mxu0 0.0
        %8340 = vmatpush1.msra.mxu0 %v8295
        %8341 = vmatprep.subr.mxu0 0.0
        %8342 = vmatpush1.msra.mxu0 %v8296
        %8343 = vmatprep.subr.mxu0 0.0
        %8344 = vmatpush1.msra.mxu0 %v8297
        %8345 = vmatprep.subr.mxu0 0.0
        %8346 = vmatpush1.msra.mxu0 %v8298
        %8347 = vmatprep.subr.mxu0 0.0
        %8348 = vmatpush1.msra.mxu0 %v8299
        %8349 = vmatprep.subr.mxu0 0.0
        %8350 = vmatpush1.msra.mxu0 %v8300
        %8351 = vmatprep.subr.mxu0 0.0
        %8352 = vmatpush1.msra.mxu0 %v8301
        %8353 = vmatprep.subr.mxu0 0.0
        %8354 = vmatpush1.msra.mxu0 %v8302
        %8355 = vmatprep.subr.mxu0 0.0
        %8356 = vmatpush1.msra.mxu0 %v8303
        %8357 = vmatprep.subr.mxu0 0.0
        %8358 = vmatpush1.msra.mxu0 %v8304
        %8359 = vmatprep.subr.mxu0 0.0
        %8360 = vmatpush1.msra.mxu0 %v8305
        %8361 = vmatprep.subr.mxu0 0.0
        %8362 = vmatpush1.msra.mxu0 %v8306
        %8363 = vmatprep.subr.mxu0 0.0
        %8364 = vmatpush1.msra.mxu0 %v8307
        %8365 = vmatprep.subr.mxu0 0.0
        %8366 = vmatpush1.msra.mxu0 %v8308
        %8367 = vmatprep.subr.mxu0 0.0
        %8368 = vmatpush1.msra.mxu0 %v8309
        %8369 = vmatprep.subr.mxu0 0.0
        %8370 = vmatpush1.msra.mxu0 %v8310
        %8371 = vmatprep.subr.mxu0 0.0
        %8372 = vmatpush1.msra.mxu0 %v8311
        %8373 = vmatprep.subr.mxu0 0.0
        %8374 = vmatpush1.msra.mxu0 %v8312
        %8375 = vmatprep.subr.mxu0 0.0
        %8376 = vmatpush1.msra.mxu0 %v8313
        %8377 = vmatprep.subr.mxu0 0.0
        %8378 = vmatpush1.msra.mxu0 %v8314
        %8379 = vmatprep.subr.mxu0 0.0
        %8380 = vmatpush1.msra.mxu0 %v8315
        %8381 = vmatprep.subr.mxu0 0.0
        %8382 = vmatpush1.msra.mxu0 %v8316
        %8383 = vmatprep.subr.mxu0 0.0
        %8384 = vmatpush1.msra.mxu0 %v8317
        %8385 = vmatprep.subr.mxu0 0.0
        %8386 = vmatpush1.msra.mxu0 %v8318
        %8387 = vmatprep.subr.mxu0 0.0
        %8388 = vmatpush1.msra.mxu0 %v8319
        %8389 = vmatprep.subr.mxu0 0.0
        %8390 = vmatpush1.msra.mxu0 %v8320
        %8391 = vmatprep.subr.mxu0 0.0
        %8392 = vmatpush1.msra.mxu0 %v8321
        %8393 = vmatprep.mubr.f32.mxu0 %v8147
        %8394 = vmatmul.mubr.f32.gmra.mrb[0].mxu0 %v8146
        %v8395 = vpop.f32.mrb[0].mxu0
        %v8396 = vadd.f32 %v8327, %v8395
        %v8397 = vpop.f32.mrb[0].mxu0
        %8398 = vmatprep.mubr.f32.mxu0 %v8151
        %8399 = vmatmul.mubr.f32.gmra.mrb[0].mxu0 %v8150
        %v8400 = vpop.f32.mrb[0].mxu0
        %v8401 = vadd.f32 %v8327, %v8400
        %v8402 = vpop.f32.mrb[0].mxu0
        %8403 = vmatprep.mubr.f32.mxu0 %v8155
        %8404 = vmatmul.mubr.f32.gmra.mrb[0].mxu0 %v8154
        %v8405 = vpop.f32.mrb[0].mxu0
        %v8406 = vadd.f32 %v8327, %v8405
        %v8407 = vpop.f32.mrb[0].mxu0
        %8408 = vmatprep.mubr.f32.mxu0 %v8159
        %8409 = vmatmul.mubr.f32.gmra.mrb[0].mxu0 %v8158
        %v8410 = vpop.f32.mrb[0].mxu0
        %v8411 = vadd.f32 %v8327, %v8410
        %v8412 = vpop.f32.mrb[0].mxu0
        %8413 = vmatprep.mubr.f32.mxu0 %v8163
        %8414 = vmatmul.mubr.f32.gmra.mrb[0].mxu0 %v8162
        %v8415 = vpop.f32.mrb[0].mxu0
        %v8416 = vadd.f32 %v8327, %v8415
        %v8417 = vpop.f32.mrb[0].mxu0
        %8418 = vmatprep.mubr.f32.mxu0 %v8167
        %8419 = vmatmul.mubr.f32.gmra.mrb[0].mxu0 %v8166
        %v8420 = vpop.f32.mrb[0].mxu0
        %v8421 = vadd.f32 %v8327, %v8420
        %v8422 = vpop.f32.mrb[0].mxu0
        %8423 = vmatprep.mubr.f32.mxu0 %v8171
        %8424 = vmatmul.mubr.f32.gmra.mrb[0].mxu0 %v8170
        %v8425 = vpop.f32.mrb[0].mxu0
        %v8426 = vadd.f32 %v8327, %v8425
        %v8427 = vpop.f32.mrb[0].mxu0
        %8428 = vmatprep.mubr.f32.mxu0 %v8175
        %8429 = vmatmul.mubr.f32.gmra.mrb[0].mxu0 %v8174
        %v8430 = vpop.f32.mrb[0].mxu0
        %v8431 = vadd.f32 %v8327, %v8430
        %v8432 = vpop.f32.mrb[0].mxu0
        %8433 = vmatprep.mubr.f32.mxu0 %v8179
        %8434 = vmatmul.mubr.f32.gmra.mrb[0].mxu0 %v8178
        %v8435 = vpop.f32.mrb[0].mxu0
        %v8436 = vadd.f32 %v8327, %v8435
        %v8437 = vpop.f32.mrb[0].mxu0
        %8438 = vmatprep.mubr.f32.mxu0 %v8183
        %8439 = vmatmul.mubr.f32.gmra.mrb[0].mxu0 %v8182
        %v8440 = vpop.f32.mrb[0].mxu0
        %v8441 = vadd.f32 %v8327, %v8440
        %v8442 = vpop.f32.mrb[0].mxu0
        %8443 = vmatprep.mubr.f32.mxu0 %v8187
        %8444 = vmatmul.mubr.f32.gmra.mrb[0].mxu0 %v8186
        %v8445 = vpop.f32.mrb[0].mxu0
        %v8446 = vadd.f32 %v8327, %v8445
        %v8447 = vpop.f32.mrb[0].mxu0
        %8448 = vmatprep.mubr.f32.mxu0 %v8191
        %8449 = vmatmul.mubr.f32.gmra.mrb[0].mxu0 %v8190
        %v8450 = vpop.f32.mrb[0].mxu0
        %v8451 = vadd.f32 %v8327, %v8450
        %v8452 = vpop.f32.mrb[0].mxu0
        %8453 = vmatprep.mubr.f32.mxu0 %v8195
        %8454 = vmatmul.mubr.f32.gmra.mrb[0].mxu0 %v8194
        %v8455 = vpop.f32.mrb[0].mxu0
        %v8456 = vadd.f32 %v8327, %v8455
        %v8457 = vpop.f32.mrb[0].mxu0
        %8458 = vmatprep.mubr.f32.mxu0 %v8199
        %8459 = vmatmul.mubr.f32.gmra.mrb[0].mxu0 %v8198
        %v8460 = vpop.f32.mrb[0].mxu0
        %v8461 = vadd.f32 %v8327, %v8460
        %v8462 = vpop.f32.mrb[0].mxu0
        %8463 = vmatprep.mubr.f32.mxu0 %v8203
        %8464 = vmatmul.mubr.f32.gmra.mrb[0].mxu0 %v8202
        %v8465 = vpop.f32.mrb[0].mxu0
        %v8466 = vadd.f32 %v8327, %v8465
        %v8467 = vpop.f32.mrb[0].mxu0
        %8468 = vmatprep.mubr.f32.mxu0 %v8207
        %8469 = vmatmul.mubr.f32.gmra.mrb[0].mxu0 %v8206
        %v8470 = vpop.f32.mrb[0].mxu0
        %v8471 = vadd.f32 %v8327, %v8470
        %v8472 = vpop.f32.mrb[0].mxu0
        %8473 = vmatprep.mubr.f32.mxu0 %v8211
        %8474 = vmatmul.mubr.f32.gmra.mrb[0].mxu0 %v8210
        %v8475 = vpop.f32.mrb[0].mxu0
        %v8476 = vadd.f32 %v8327, %v8475
        %v8477 = vpop.f32.mrb[0].mxu0
        %8478 = vmatprep.mubr.f32.mxu0 %v8215
        %8479 = vmatmul.mubr.f32.gmra.mrb[0].mxu0 %v8214
        %v8480 = vpop.f32.mrb[0].mxu0
        %v8481 = vadd.f32 %v8327, %v8480
        %v8482 = vpop.f32.mrb[0].mxu0
        %8483 = vmatprep.mubr.f32.mxu0 %v8219
        %8484 = vmatmul.mubr.f32.gmra.mrb[0].mxu0 %v8218
        %v8485 = vpop.f32.mrb[0].mxu0
        %v8486 = vadd.f32 %v8327, %v8485
        %v8487 = vpop.f32.mrb[0].mxu0
        %8488 = vmatprep.mubr.f32.mxu0 %v8223
        %8489 = vmatmul.mubr.f32.gmra.mrb[0].mxu0 %v8222
        %v8490 = vpop.f32.mrb[0].mxu0
        %v8491 = vadd.f32 %v8327, %v8490
        %v8492 = vpop.f32.mrb[0].mxu0
        %8493 = vmatprep.mubr.f32.mxu0 %v8227
        %8494 = vmatmul.mubr.f32.gmra.mrb[0].mxu0 %v8226
        %v8495 = vpop.f32.mrb[0].mxu0
        %v8496 = vadd.f32 %v8327, %v8495
        %v8497 = vpop.f32.mrb[0].mxu0
        %8498 = vmatprep.mubr.f32.mxu0 %v8231
        %8499 = vmatmul.mubr.f32.gmra.mrb[0].mxu0 %v8230
        %v8500 = vpop.f32.mrb[0].mxu0
        %v8501 = vadd.f32 %v8327, %v8500
        %v8502 = vpop.f32.mrb[0].mxu0
        %8503 = vmatprep.mubr.f32.mxu0 %v8235
        %8504 = vmatmul.mubr.f32.gmra.mrb[0].mxu0 %v8234
        %v8505 = vpop.f32.mrb[0].mxu0
        %v8506 = vadd.f32 %v8327, %v8505
        %v8507 = vpop.f32.mrb[0].mxu0
        %8508 = vmatprep.mubr.f32.mxu0 %v8239
        %8509 = vmatmul.mubr.f32.gmra.mrb[0].mxu0 %v8238
        %v8510 = vpop.f32.mrb[0].mxu0
        %v8511 = vadd.f32 %v8327, %v8510
        %v8512 = vpop.f32.mrb[0].mxu0
        %8513 = vmatprep.mubr.f32.mxu0 %v8243
        %8514 = vmatmul.mubr.f32.gmra.mrb[0].mxu0 %v8242
        %v8515 = vpop.f32.mrb[0].mxu0
        %v8516 = vadd.f32 %v8327, %v8515
        %v8517 = vpop.f32.mrb[0].mxu0
        %8518 = vmatprep.mubr.f32.mxu0 %v8247
        %8519 = vmatmul.mubr.f32.gmra.mrb[0].mxu0 %v8246
        %v8520 = vpop.f32.mrb[0].mxu0
        %v8521 = vadd.f32 %v8327, %v8520
        %v8522 = vpop.f32.mrb[0].mxu0
        %8523 = vmatprep.mubr.f32.mxu0 %v8251
        %8524 = vmatmul.mubr.f32.gmra.mrb[0].mxu0 %v8250
        %v8525 = vpop.f32.mrb[0].mxu0
        %v8526 = vadd.f32 %v8327, %v8525
        %v8527 = vpop.f32.mrb[0].mxu0
        %8528 = vmatprep.mubr.f32.mxu0 %v8255
        %8529 = vmatmul.mubr.f32.gmra.mrb[0].mxu0 %v8254
        %v8530 = vpop.f32.mrb[0].mxu0
        %v8531 = vadd.f32 %v8327, %v8530
        %v8532 = vpop.f32.mrb[0].mxu0
        %8533 = vmatprep.mubr.f32.mxu0 %v8259
        %8534 = vmatmul.mubr.f32.gmra.mrb[0].mxu0 %v8258
        %v8535 = vpop.f32.mrb[0].mxu0
        %v8536 = vadd.f32 %v8327, %v8535
        %v8537 = vpop.f32.mrb[0].mxu0
        %8538 = vmatprep.mubr.f32.mxu0 %v8263
        %8539 = vmatmul.mubr.f32.gmra.mrb[0].mxu0 %v8262
        %v8540 = vpop.f32.mrb[0].mxu0
        %v8541 = vadd.f32 %v8327, %v8540
        %v8542 = vpop.f32.mrb[0].mxu0
        %8543 = vmatprep.mubr.f32.mxu0 %v8267
        %8544 = vmatmul.mubr.f32.gmra.mrb[0].mxu0 %v8266
        %v8545 = vpop.f32.mrb[0].mxu0
        %v8546 = vadd.f32 %v8327, %v8545
        %v8547 = vpop.f32.mrb[0].mxu0
        %8548 = vmatprep.mubr.f32.mxu0 %v8271
        %8549 = vmatmul.mubr.f32.gmra.mrb[0].mxu0 %v8270
        %v8550 = vpop.f32.mrb[0].mxu0
        %v8551 = vadd.f32 %v8327, %v8550
        %v8552 = vpop.f32.mrb[0].mxu0
        %8553 = vmatprep.mubr.f32.mxu0 %v8275
        %8554 = vmatmul.mubr.f32.gmra.mrb[0].mxu0 %v8274
        %v8555 = vpop.f32.mrb[0].mxu0
        %v8556 = vadd.f32 %v8327, %v8555
        %v8557 = vpop.f32.mrb[0].mxu0
        %8558 = vmatprep.mubr.f32.mxu0 %v8279
        %8559 = vmatmul.mubr.f32.gmra.mrb[0].mxu0 %v8278
        %v8560 = vpop.f32.mrb[0].mxu0
        %v8561 = vadd.f32 %v8327, %v8560
        %v8562 = vpop.f32.mrb[0].mxu0
        %8563 = vmatprep.mubr.f32.mxu0 %v8283
        %8564 = vmatmul.mubr.f32.gmra.mrb[0].mxu0 %v8282
        %v8565 = vpop.f32.mrb[0].mxu0
        %v8566 = vadd.f32 %v8327, %v8565
        %v8567 = vpop.f32.mrb[0].mxu0
        %8568 = vmatprep.mubr.f32.mxu0 %v8287
        %8569 = vmatmul.mubr.f32.gmra.mrb[0].mxu0 %v8286
        %v8570 = vpop.f32.mrb[0].mxu0
        %v8571 = vadd.f32 %v8327, %v8570
        %v8572 = vpop.f32.mrb[0].mxu0
        %8573 = vdwg.mxu0
        %v8574 = vsub.f32 0.0, %v8396
        %v8575 = vsub.f32 0.0, %v8401
        %v8576 = vsub.f32 0.0, %v8406
        %v8577 = vsub.f32 0.0, %v8411
        %v8578 = vsub.f32 0.0, %v8416
        %v8579 = vsub.f32 0.0, %v8421
        %v8580 = vsub.f32 0.0, %v8426
        %v8581 = vsub.f32 0.0, %v8431
        %v8582 = vsub.f32 0.0, %v8436
        %v8583 = vsub.f32 0.0, %v8441
        %v8584 = vsub.f32 0.0, %v8446
        %v8585 = vsub.f32 0.0, %v8451
        %v8586 = vsub.f32 0.0, %v8456
        %v8587 = vsub.f32 0.0, %v8461
        %v8588 = vsub.f32 0.0, %v8466
        %v8589 = vsub.f32 0.0, %v8471
        %v8590 = vsub.f32 0.0, %v8476
        %v8591 = vsub.f32 0.0, %v8481
        %v8592 = vsub.f32 0.0, %v8486
        %v8593 = vsub.f32 0.0, %v8491
        %v8594 = vsub.f32 0.0, %v8496
        %v8595 = vsub.f32 0.0, %v8501
        %v8596 = vsub.f32 0.0, %v8506
        %v8597 = vsub.f32 0.0, %v8511
        %v8598 = vsub.f32 0.0, %v8516
        %v8599 = vsub.f32 0.0, %v8521
        %v8600 = vsub.f32 0.0, %v8526
        %v8601 = vsub.f32 0.0, %v8531
        %v8602 = vsub.f32 0.0, %v8536
        %v8603 = vsub.f32 0.0, %v8541
        %v8604 = vsub.f32 0.0, %v8546
        %v8605 = vsub.f32 0.0, %v8551
        %v8606 = vsub.f32 0.0, %v8556
        %v8607 = vsub.f32 0.0, %v8561
        %v8608 = vsub.f32 0.0, %v8566
        %v8609 = vsub.f32 0.0, %v8571
        %v8610 = vmul.f32 %v8574, 1.442695
        %v8611 = vpow.pop %v8610
        %v8612 = vmul.f32 %v8575, 1.442695
        %v8613 = vpow.pop %v8612
        %v8614 = vmul.f32 %v8576, 1.442695
        %v8615 = vpow.pop %v8614
        %v8616 = vmul.f32 %v8577, 1.442695
        %v8617 = vpow.pop %v8616
        %v8618 = vmul.f32 %v8578, 1.442695
        %v8619 = vpow.pop %v8618
        %v8620 = vmul.f32 %v8579, 1.442695
        %v8621 = vpow.pop %v8620
        %v8622 = vmul.f32 %v8580, 1.442695
        %v8623 = vpow.pop %v8622
        %v8624 = vmul.f32 %v8581, 1.442695
        %v8625 = vpow.pop %v8624
        %v8626 = vmul.f32 %v8582, 1.442695
        %v8627 = vpow.pop %v8626
        %v8628 = vmul.f32 %v8583, 1.442695
        %v8629 = vpow.pop %v8628
        %v8630 = vmul.f32 %v8584, 1.442695
        %v8631 = vpow.pop %v8630
        %v8632 = vmul.f32 %v8585, 1.442695
        %v8633 = vpow.pop %v8632
        %v8634 = vmul.f32 %v8586, 1.442695
        %v8635 = vpow.pop %v8634
        %v8636 = vmul.f32 %v8587, 1.442695
        %v8637 = vpow.pop %v8636
        %v8638 = vmul.f32 %v8588, 1.442695
        %v8639 = vpow.pop %v8638
        %v8640 = vmul.f32 %v8589, 1.442695
        %v8641 = vpow.pop %v8640
        %v8642 = vmul.f32 %v8590, 1.442695
        %v8643 = vpow.pop %v8642
        %v8644 = vmul.f32 %v8591, 1.442695
        %v8645 = vpow.pop %v8644
        %v8646 = vmul.f32 %v8592, 1.442695
        %v8647 = vpow.pop %v8646
        %v8648 = vmul.f32 %v8593, 1.442695
        %v8649 = vpow.pop %v8648
        %v8650 = vmul.f32 %v8594, 1.442695
        %v8651 = vpow.pop %v8650
        %v8652 = vmul.f32 %v8595, 1.442695
        %v8653 = vpow.pop %v8652
        %v8654 = vmul.f32 %v8596, 1.442695
        %v8655 = vpow.pop %v8654
        %v8656 = vmul.f32 %v8597, 1.442695
        %v8657 = vpow.pop %v8656
        %v8658 = vmul.f32 %v8598, 1.442695
        %v8659 = vpow.pop %v8658
        %v8660 = vmul.f32 %v8599, 1.442695
        %v8661 = vpow.pop %v8660
        %v8662 = vmul.f32 %v8600, 1.442695
        %v8663 = vpow.pop %v8662
        %v8664 = vmul.f32 %v8601, 1.442695
        %v8665 = vpow.pop %v8664
        %v8666 = vmul.f32 %v8602, 1.442695
        %v8667 = vpow.pop %v8666
        %v8668 = vmul.f32 %v8603, 1.442695
        %v8669 = vpow.pop %v8668
        %v8670 = vmul.f32 %v8604, 1.442695
        %v8671 = vpow.pop %v8670
        %v8672 = vmul.f32 %v8605, 1.442695
        %v8673 = vpow.pop %v8672
        %v8674 = vmul.f32 %v8606, 1.442695
        %v8675 = vpow.pop %v8674
        %v8676 = vmul.f32 %v8607, 1.442695
        %v8677 = vpow.pop %v8676
        %v8678 = vmul.f32 %v8608, 1.442695
        %v8679 = vpow.pop %v8678
        %v8680 = vmul.f32 %v8609, 1.442695
        %v8681 = vpow.pop %v8680
        %v8682 = vadd.f32 %v8611, 1.0
        %v8683 = vadd.f32 %v8613, 1.0
        %v8684 = vadd.f32 %v8615, 1.0
        %v8685 = vadd.f32 %v8617, 1.0
        %v8686 = vadd.f32 %v8619, 1.0
        %v8687 = vadd.f32 %v8621, 1.0
        %v8688 = vadd.f32 %v8623, 1.0
        %v8689 = vadd.f32 %v8625, 1.0
        %v8690 = vadd.f32 %v8627, 1.0
        %v8691 = vadd.f32 %v8629, 1.0
        %v8692 = vadd.f32 %v8631, 1.0
        %v8693 = vadd.f32 %v8633, 1.0
        %v8694 = vadd.f32 %v8635, 1.0
        %v8695 = vadd.f32 %v8637, 1.0
        %v8696 = vadd.f32 %v8639, 1.0
        %v8697 = vadd.f32 %v8641, 1.0
        %v8698 = vadd.f32 %v8643, 1.0
        %v8699 = vadd.f32 %v8645, 1.0
        %v8700 = vadd.f32 %v8647, 1.0
        %v8701 = vadd.f32 %v8649, 1.0
        %v8702 = vadd.f32 %v8651, 1.0
        %v8703 = vadd.f32 %v8653, 1.0
        %v8704 = vadd.f32 %v8655, 1.0
        %v8705 = vadd.f32 %v8657, 1.0
        %v8706 = vadd.f32 %v8659, 1.0
        %v8707 = vadd.f32 %v8661, 1.0
        %v8708 = vadd.f32 %v8663, 1.0
        %v8709 = vadd.f32 %v8665, 1.0
        %v8710 = vadd.f32 %v8667, 1.0
        %v8711 = vadd.f32 %v8669, 1.0
        %v8712 = vadd.f32 %v8671, 1.0
        %v8713 = vadd.f32 %v8673, 1.0
        %v8714 = vadd.f32 %v8675, 1.0
        %v8715 = vadd.f32 %v8677, 1.0
        %v8716 = vadd.f32 %v8679, 1.0
        %v8717 = vadd.f32 %v8681, 1.0
        %v8718 = vrcp.pop %v8682
        %v8719 = vmul.f32 1.0, %v8718
        %v8720 = vrcp.pop %v8683
        %v8721 = vmul.f32 1.0, %v8720
        %v8722 = vrcp.pop %v8684
        %v8723 = vmul.f32 1.0, %v8722
        %v8724 = vrcp.pop %v8685
        %v8725 = vmul.f32 1.0, %v8724
        %v8726 = vrcp.pop %v8686
        %v8727 = vmul.f32 1.0, %v8726
        %v8728 = vrcp.pop %v8687
        %v8729 = vmul.f32 1.0, %v8728
        %v8730 = vrcp.pop %v8688
        %v8731 = vmul.f32 1.0, %v8730
        %v8732 = vrcp.pop %v8689
        %v8733 = vmul.f32 1.0, %v8732
        %v8734 = vrcp.pop %v8690
        %v8735 = vmul.f32 1.0, %v8734
        %v8736 = vrcp.pop %v8691
        %v8737 = vmul.f32 1.0, %v8736
        %v8738 = vrcp.pop %v8692
        %v8739 = vmul.f32 1.0, %v8738
        %v8740 = vrcp.pop %v8693
        %v8741 = vmul.f32 1.0, %v8740
        %v8742 = vrcp.pop %v8694
        %v8743 = vmul.f32 1.0, %v8742
        %v8744 = vrcp.pop %v8695
        %v8745 = vmul.f32 1.0, %v8744
        %v8746 = vrcp.pop %v8696
        %v8747 = vmul.f32 1.0, %v8746
        %v8748 = vrcp.pop %v8697
        %v8749 = vmul.f32 1.0, %v8748
        %v8750 = vrcp.pop %v8698
        %v8751 = vmul.f32 1.0, %v8750
        %v8752 = vrcp.pop %v8699
        %v8753 = vmul.f32 1.0, %v8752
        %v8754 = vrcp.pop %v8700
        %v8755 = vmul.f32 1.0, %v8754
        %v8756 = vrcp.pop %v8701
        %v8757 = vmul.f32 1.0, %v8756
        %v8758 = vrcp.pop %v8702
        %v8759 = vmul.f32 1.0, %v8758
        %v8760 = vrcp.pop %v8703
        %v8761 = vmul.f32 1.0, %v8760
        %v8762 = vrcp.pop %v8704
        %v8763 = vmul.f32 1.0, %v8762
        %v8764 = vrcp.pop %v8705
        %v8765 = vmul.f32 1.0, %v8764
        %v8766 = vrcp.pop %v8706
        %v8767 = vmul.f32 1.0, %v8766
        %v8768 = vrcp.pop %v8707
        %v8769 = vmul.f32 1.0, %v8768
        %v8770 = vrcp.pop %v8708
        %v8771 = vmul.f32 1.0, %v8770
        %v8772 = vrcp.pop %v8709
        %v8773 = vmul.f32 1.0, %v8772
        %v8774 = vrcp.pop %v8710
        %v8775 = vmul.f32 1.0, %v8774
        %v8776 = vrcp.pop %v8711
        %v8777 = vmul.f32 1.0, %v8776
        %v8778 = vrcp.pop %v8712
        %v8779 = vmul.f32 1.0, %v8778
        %v8780 = vrcp.pop %v8713
        %v8781 = vmul.f32 1.0, %v8780
        %v8782 = vrcp.pop %v8714
        %v8783 = vmul.f32 1.0, %v8782
        %v8784 = vrcp.pop %v8715
        %v8785 = vmul.f32 1.0, %v8784
        %v8786 = vrcp.pop %v8716
        %v8787 = vmul.f32 1.0, %v8786
        %v8788 = vrcp.pop %v8717
        %v8789 = vmul.f32 1.0, %v8788
        %vm8790 = vcmask 7168
        %8791 = vst.msk [vmem:[%s459] sm:$0xff] %vm8790, %v8719
        %8792 = vst.msk [vmem:[%s459 + $0x8] sm:$0xff] %vm8790, %v8721
        %8793 = vst.msk [vmem:[%s459 + $0x10] sm:$0xff] %vm8790, %v8723
        %8794 = vst.msk [vmem:[%s459 + $0x18] sm:$0xff] %vm8790, %v8725
        %8795 = vst.msk [vmem:[%s459 + $0x20] sm:$0xff] %vm8790, %v8727
        %8796 = vst.msk [vmem:[%s459 + $0x28] sm:$0xff] %vm8790, %v8729
        %8797 = vst.msk [vmem:[%s459 + $0x30] sm:$0xff] %vm8790, %v8731
        %8798 = vst.msk [vmem:[%s459 + $0x38] sm:$0xff] %vm8790, %v8733
        %8799 = vst.msk [vmem:[%s459 + $0x40] sm:$0xff] %vm8790, %v8735
        %8800 = vst.msk [vmem:[%s459 + $0x48] sm:$0xff] %vm8790, %v8737
        %8801 = vst.msk [vmem:[%s459 + $0x50] sm:$0xff] %vm8790, %v8739
        %8802 = vst.msk [vmem:[%s459 + $0x58] sm:$0xff] %vm8790, %v8741
        %8803 = vst.msk [vmem:[%s459 + $0x60] sm:$0xff] %vm8790, %v8743
        %8804 = vst.msk [vmem:[%s459 + $0x68] sm:$0xff] %vm8790, %v8745
        %8805 = vst.msk [vmem:[%s459 + $0x70] sm:$0xff] %vm8790, %v8747
        %8806 = vst.msk [vmem:[%s459 + $0x78] sm:$0xff] %vm8790, %v8749
        %8807 = vst.msk [vmem:[%s459 + $0x80] sm:$0xff] %vm8790, %v8751
        %8808 = vst.msk [vmem:[%s459 + $0x88] sm:$0xff] %vm8790, %v8753
        %8809 = vst.msk [vmem:[%s459 + $0x90] sm:$0xff] %vm8790, %v8755
        %8810 = vst.msk [vmem:[%s459 + $0x98] sm:$0xff] %vm8790, %v8757
        %8811 = vst.msk [vmem:[%s459 + $0xa0] sm:$0xff] %vm8790, %v8759
        %8812 = vst.msk [vmem:[%s459 + $0xa8] sm:$0xff] %vm8790, %v8761
        %8813 = vst.msk [vmem:[%s459 + $0xb0] sm:$0xff] %vm8790, %v8763
        %8814 = vst.msk [vmem:[%s459 + $0xb8] sm:$0xff] %vm8790, %v8765
        %8815 = vst.msk [vmem:[%s459 + $0xc0] sm:$0xff] %vm8790, %v8767
        %8816 = vst.msk [vmem:[%s459 + $0xc8] sm:$0xff] %vm8790, %v8769
        %8817 = vst.msk [vmem:[%s459 + $0xd0] sm:$0xff] %vm8790, %v8771
        %8818 = vst.msk [vmem:[%s459 + $0xd8] sm:$0xff] %vm8790, %v8773
        %8819 = vst.msk [vmem:[%s459 + $0xe0] sm:$0xff] %vm8790, %v8775
        %8820 = vst.msk [vmem:[%s459 + $0xe8] sm:$0xff] %vm8790, %v8777
        %8821 = vst.msk [vmem:[%s459 + $0xf0] sm:$0xff] %vm8790, %v8779
        %8822 = vst.msk [vmem:[%s459 + $0xf8] sm:$0xff] %vm8790, %v8781
        %8823 = vst.msk [vmem:[%s459 + $0x100] sm:$0xff] %vm8790, %v8783
        %8824 = vst.msk [vmem:[%s459 + $0x108] sm:$0xff] %vm8790, %v8785
        %8825 = vst.msk [vmem:[%s459 + $0x110] sm:$0xff] %vm8790, %v8787
        %8826 = vst.msk [vmem:[%s459 + $0x118] sm:$0xff] %vm8790, %v8789
        %v8827 = vld [vmem:[%s5] sm:$0xff]
        %v8828 = vld [vmem:[%s5 + $0x8] sm:$0xff]
        %v8829 = vld [vmem:[%s5 + $0x10] sm:$0xff]
        %v8830 = vld [vmem:[%s5 + $0x18] sm:$0xff]
        %v8831 = vld [vmem:[%s5 + $0x20] sm:$0xff]
        %v8832 = vld [vmem:[%s5 + $0x28] sm:$0xff]
        %v8833 = vld [vmem:[%s5 + $0x30] sm:$0xff]
        %v8834 = vld [vmem:[%s5 + $0x38] sm:$0xff]
        %v8835 = vld [vmem:[%s5 + $0x40] sm:$0xff]
        %v8836 = vld [vmem:[%s5 + $0x48] sm:$0xff]
        %v8837 = vld [vmem:[%s5 + $0x50] sm:$0xff]
        %v8838 = vld [vmem:[%s5 + $0x58] sm:$0xff]
        %v8839 = vld [vmem:[%s5 + $0x60] sm:$0xff]
        %v8840 = vld [vmem:[%s5 + $0x68] sm:$0xff]
        %v8841 = vld [vmem:[%s5 + $0x70] sm:$0xff]
        %v8842 = vld [vmem:[%s5 + $0x78] sm:$0xff]
        %v8843 = vld [vmem:[%s5 + $0x80] sm:$0xff]
        %v8844 = vld [vmem:[%s5 + $0x88] sm:$0xff]
        %v8845 = vld [vmem:[%s5 + $0x90] sm:$0xff]
        %v8846 = vld [vmem:[%s5 + $0x98] sm:$0xff]
        %v8847 = vld [vmem:[%s5 + $0xa0] sm:$0xff]
        %v8848 = vld [vmem:[%s5 + $0xa8] sm:$0xff]
        %v8849 = vld [vmem:[%s5 + $0xb0] sm:$0xff]
        %v8850 = vld [vmem:[%s5 + $0xb8] sm:$0xff]
        %v8851 = vld [vmem:[%s5 + $0xc0] sm:$0xff]
        %v8852 = vld [vmem:[%s5 + $0xc8] sm:$0xff]
        %v8853 = vld [vmem:[%s5 + $0xd0] sm:$0xff]
        %v8854 = vld [vmem:[%s5 + $0xd8] sm:$0xff]
        %v8855 = vld [vmem:[%s5 + $0xe0] sm:$0xff]
        %v8856 = vld [vmem:[%s5 + $0xe8] sm:$0xff]
        %v8857 = vld [vmem:[%s5 + $0xf0] sm:$0xff]
        %v8858 = vld [vmem:[%s5 + $0xf8] sm:$0xff]
        %v8859 = vld [vmem:[%s6] sm:$0x1]
        %v8861 = vlaneseq
        %v8862 = vshrl.u32 %v8861, 7
        %v8863 = vsub.s32 0, %v8862
        %v8864 = vrot.slane %v8859, %v8863
        %8866 = vmatprep.subr.mxu0 0.0
        %8867 = vmatpush1.msra.mxu0 %v8827
        %8868 = vmatprep.subr.mxu0 0.0
        %8869 = vmatpush1.msra.mxu0 %v8828
        %8870 = vmatprep.subr.mxu0 0.0
        %8871 = vmatpush1.msra.mxu0 %v8829
        %8872 = vmatprep.subr.mxu0 0.0
        %8873 = vmatpush1.msra.mxu0 %v8830
        %8874 = vmatprep.subr.mxu0 0.0
        %8875 = vmatpush1.msra.mxu0 %v8831
        %8876 = vmatprep.subr.mxu0 0.0
        %8877 = vmatpush1.msra.mxu0 %v8832
        %8878 = vmatprep.subr.mxu0 0.0
        %8879 = vmatpush1.msra.mxu0 %v8833
        %8880 = vmatprep.subr.mxu0 0.0
        %8881 = vmatpush1.msra.mxu0 %v8834
        %8882 = vmatprep.subr.mxu0 0.0
        %8883 = vmatpush1.msra.mxu0 %v8835
        %8884 = vmatprep.subr.mxu0 0.0
        %8885 = vmatpush1.msra.mxu0 %v8836
        %8886 = vmatprep.subr.mxu0 0.0
        %8887 = vmatpush1.msra.mxu0 %v8837
        %8888 = vmatprep.subr.mxu0 0.0
        %8889 = vmatpush1.msra.mxu0 %v8838
        %8890 = vmatprep.subr.mxu0 0.0
        %8891 = vmatpush1.msra.mxu0 %v8839
        %8892 = vmatprep.subr.mxu0 0.0
        %8893 = vmatpush1.msra.mxu0 %v8840
        %8894 = vmatprep.subr.mxu0 0.0
        %8895 = vmatpush1.msra.mxu0 %v8841
        %8896 = vmatprep.subr.mxu0 0.0
        %8897 = vmatpush1.msra.mxu0 %v8842
        %8898 = vmatprep.subr.mxu0 0.0
        %8899 = vmatpush1.msra.mxu0 %v8843
        %8900 = vmatprep.subr.mxu0 0.0
        %8901 = vmatpush1.msra.mxu0 %v8844
        %8902 = vmatprep.subr.mxu0 0.0
        %8903 = vmatpush1.msra.mxu0 %v8845
        %8904 = vmatprep.subr.mxu0 0.0
        %8905 = vmatpush1.msra.mxu0 %v8846
        %8906 = vmatprep.subr.mxu0 0.0
        %8907 = vmatpush1.msra.mxu0 %v8847
        %8908 = vmatprep.subr.mxu0 0.0
        %8909 = vmatpush1.msra.mxu0 %v8848
        %8910 = vmatprep.subr.mxu0 0.0
        %8911 = vmatpush1.msra.mxu0 %v8849
        %8912 = vmatprep.subr.mxu0 0.0
        %8913 = vmatpush1.msra.mxu0 %v8850
        %8914 = vmatprep.subr.mxu0 0.0
        %8915 = vmatpush1.msra.mxu0 %v8851
        %8916 = vmatprep.subr.mxu0 0.0
        %8917 = vmatpush1.msra.mxu0 %v8852
        %8918 = vmatprep.subr.mxu0 0.0
        %8919 = vmatpush1.msra.mxu0 %v8853
        %8920 = vmatprep.subr.mxu0 0.0
        %8921 = vmatpush1.msra.mxu0 %v8854
        %8922 = vmatprep.subr.mxu0 0.0
        %8923 = vmatpush1.msra.mxu0 %v8855
        %8924 = vmatprep.subr.mxu0 0.0
        %8925 = vmatpush1.msra.mxu0 %v8856
        %8926 = vmatprep.subr.mxu0 0.0
        %8927 = vmatpush1.msra.mxu0 %v8857
        %8928 = vmatprep.subr.mxu0 0.0
        %8929 = vmatpush1.msra.mxu0 %v8858
        %8930 = vmatprep.mubr.f32.mxu0 %v8149
        %8931 = vmatmul.mubr.f32.gmra.mrb[0].mxu0 %v8148
        %v8932 = vpop.f32.mrb[0].mxu0
        %v8933 = vadd.f32 %v8864, %v8932
        %v8934 = vpop.f32.mrb[0].mxu0
        %8935 = vmatprep.mubr.f32.mxu0 %v8153
        %8936 = vmatmul.mubr.f32.gmra.mrb[0].mxu0 %v8152
        %v8937 = vpop.f32.mrb[0].mxu0
        %v8938 = vadd.f32 %v8864, %v8937
        %v8939 = vpop.f32.mrb[0].mxu0
        %8940 = vmatprep.mubr.f32.mxu0 %v8157
        %8941 = vmatmul.mubr.f32.gmra.mrb[0].mxu0 %v8156
        %v8942 = vpop.f32.mrb[0].mxu0
        %v8943 = vadd.f32 %v8864, %v8942
        %v8944 = vpop.f32.mrb[0].mxu0
        %8945 = vmatprep.mubr.f32.mxu0 %v8161
        %8946 = vmatmul.mubr.f32.gmra.mrb[0].mxu0 %v8160
        %v8947 = vpop.f32.mrb[0].mxu0
        %v8948 = vadd.f32 %v8864, %v8947
        %v8949 = vpop.f32.mrb[0].mxu0
        %8950 = vmatprep.mubr.f32.mxu0 %v8165
        %8951 = vmatmul.mubr.f32.gmra.mrb[0].mxu0 %v8164
        %v8952 = vpop.f32.mrb[0].mxu0
        %v8953 = vadd.f32 %v8864, %v8952
        %v8954 = vpop.f32.mrb[0].mxu0
        %8955 = vmatprep.mubr.f32.mxu0 %v8169
        %8956 = vmatmul.mubr.f32.gmra.mrb[0].mxu0 %v8168
        %v8957 = vpop.f32.mrb[0].mxu0
        %v8958 = vadd.f32 %v8864, %v8957
        %v8959 = vpop.f32.mrb[0].mxu0
        %8960 = vmatprep.mubr.f32.mxu0 %v8173
        %8961 = vmatmul.mubr.f32.gmra.mrb[0].mxu0 %v8172
        %v8962 = vpop.f32.mrb[0].mxu0
        %v8963 = vadd.f32 %v8864, %v8962
        %v8964 = vpop.f32.mrb[0].mxu0
        %8965 = vmatprep.mubr.f32.mxu0 %v8177
        %8966 = vmatmul.mubr.f32.gmra.mrb[0].mxu0 %v8176
        %v8967 = vpop.f32.mrb[0].mxu0
        %v8968 = vadd.f32 %v8864, %v8967
        %v8969 = vpop.f32.mrb[0].mxu0
        %8970 = vmatprep.mubr.f32.mxu0 %v8181
        %8971 = vmatmul.mubr.f32.gmra.mrb[0].mxu0 %v8180
        %v8972 = vpop.f32.mrb[0].mxu0
        %v8973 = vadd.f32 %v8864, %v8972
        %v8974 = vpop.f32.mrb[0].mxu0
        %8975 = vmatprep.mubr.f32.mxu0 %v8185
        %8976 = vmatmul.mubr.f32.gmra.mrb[0].mxu0 %v8184
        %v8977 = vpop.f32.mrb[0].mxu0
        %v8978 = vadd.f32 %v8864, %v8977
        %v8979 = vpop.f32.mrb[0].mxu0
        %8980 = vmatprep.mubr.f32.mxu0 %v8189
        %8981 = vmatmul.mubr.f32.gmra.mrb[0].mxu0 %v8188
        %v8982 = vpop.f32.mrb[0].mxu0
        %v8983 = vadd.f32 %v8864, %v8982
        %v8984 = vpop.f32.mrb[0].mxu0
        %8985 = vmatprep.mubr.f32.mxu0 %v8193
        %8986 = vmatmul.mubr.f32.gmra.mrb[0].mxu0 %v8192
        %v8987 = vpop.f32.mrb[0].mxu0
        %v8988 = vadd.f32 %v8864, %v8987
        %v8989 = vpop.f32.mrb[0].mxu0
        %8990 = vmatprep.mubr.f32.mxu0 %v8197
        %8991 = vmatmul.mubr.f32.gmra.mrb[0].mxu0 %v8196
        %v8992 = vpop.f32.mrb[0].mxu0
        %v8993 = vadd.f32 %v8864, %v8992
        %v8994 = vpop.f32.mrb[0].mxu0
        %8995 = vmatprep.mubr.f32.mxu0 %v8201
        %8996 = vmatmul.mubr.f32.gmra.mrb[0].mxu0 %v8200
        %v8997 = vpop.f32.mrb[0].mxu0
        %v8998 = vadd.f32 %v8864, %v8997
        %v8999 = vpop.f32.mrb[0].mxu0
        %9000 = vmatprep.mubr.f32.mxu0 %v8205
        %9001 = vmatmul.mubr.f32.gmra.mrb[0].mxu0 %v8204
        %v9002 = vpop.f32.mrb[0].mxu0
        %v9003 = vadd.f32 %v8864, %v9002
        %v9004 = vpop.f32.mrb[0].mxu0
        %9005 = vmatprep.mubr.f32.mxu0 %v8209
        %9006 = vmatmul.mubr.f32.gmra.mrb[0].mxu0 %v8208
        %v9007 = vpop.f32.mrb[0].mxu0
        %v9008 = vadd.f32 %v8864, %v9007
        %v9009 = vpop.f32.mrb[0].mxu0
        %9010 = vmatprep.mubr.f32.mxu0 %v8213
        %9011 = vmatmul.mubr.f32.gmra.mrb[0].mxu0 %v8212
        %v9012 = vpop.f32.mrb[0].mxu0
        %v9013 = vadd.f32 %v8864, %v9012
        %v9014 = vpop.f32.mrb[0].mxu0
        %9015 = vmatprep.mubr.f32.mxu0 %v8217
        %9016 = vmatmul.mubr.f32.gmra.mrb[0].mxu0 %v8216
        %v9017 = vpop.f32.mrb[0].mxu0
        %v9018 = vadd.f32 %v8864, %v9017
        %v9019 = vpop.f32.mrb[0].mxu0
        %9020 = vmatprep.mubr.f32.mxu0 %v8221
        %9021 = vmatmul.mubr.f32.gmra.mrb[0].mxu0 %v8220
        %v9022 = vpop.f32.mrb[0].mxu0
        %v9023 = vadd.f32 %v8864, %v9022
        %v9024 = vpop.f32.mrb[0].mxu0
        %9025 = vmatprep.mubr.f32.mxu0 %v8225
        %9026 = vmatmul.mubr.f32.gmra.mrb[0].mxu0 %v8224
        %v9027 = vpop.f32.mrb[0].mxu0
        %v9028 = vadd.f32 %v8864, %v9027
        %v9029 = vpop.f32.mrb[0].mxu0
        %9030 = vmatprep.mubr.f32.mxu0 %v8229
        %9031 = vmatmul.mubr.f32.gmra.mrb[0].mxu0 %v8228
        %v9032 = vpop.f32.mrb[0].mxu0
        %v9033 = vadd.f32 %v8864, %v9032
        %v9034 = vpop.f32.mrb[0].mxu0
        %9035 = vmatprep.mubr.f32.mxu0 %v8233
        %9036 = vmatmul.mubr.f32.gmra.mrb[0].mxu0 %v8232
        %v9037 = vpop.f32.mrb[0].mxu0
        %v9038 = vadd.f32 %v8864, %v9037
        %v9039 = vpop.f32.mrb[0].mxu0
        %9040 = vmatprep.mubr.f32.mxu0 %v8237
        %9041 = vmatmul.mubr.f32.gmra.mrb[0].mxu0 %v8236
        %v9042 = vpop.f32.mrb[0].mxu0
        %v9043 = vadd.f32 %v8864, %v9042
        %v9044 = vpop.f32.mrb[0].mxu0
        %9045 = vmatprep.mubr.f32.mxu0 %v8241
        %9046 = vmatmul.mubr.f32.gmra.mrb[0].mxu0 %v8240
        %v9047 = vpop.f32.mrb[0].mxu0
        %v9048 = vadd.f32 %v8864, %v9047
        %v9049 = vpop.f32.mrb[0].mxu0
        %9050 = vmatprep.mubr.f32.mxu0 %v8245
        %9051 = vmatmul.mubr.f32.gmra.mrb[0].mxu0 %v8244
        %v9052 = vpop.f32.mrb[0].mxu0
        %v9053 = vadd.f32 %v8864, %v9052
        %v9054 = vpop.f32.mrb[0].mxu0
        %9055 = vmatprep.mubr.f32.mxu0 %v8249
        %9056 = vmatmul.mubr.f32.gmra.mrb[0].mxu0 %v8248
        %v9057 = vpop.f32.mrb[0].mxu0
        %v9058 = vadd.f32 %v8864, %v9057
        %v9059 = vpop.f32.mrb[0].mxu0
        %9060 = vmatprep.mubr.f32.mxu0 %v8253
        %9061 = vmatmul.mubr.f32.gmra.mrb[0].mxu0 %v8252
        %v9062 = vpop.f32.mrb[0].mxu0
        %v9063 = vadd.f32 %v8864, %v9062
        %v9064 = vpop.f32.mrb[0].mxu0
        %9065 = vmatprep.mubr.f32.mxu0 %v8257
        %9066 = vmatmul.mubr.f32.gmra.mrb[0].mxu0 %v8256
        %v9067 = vpop.f32.mrb[0].mxu0
        %v9068 = vadd.f32 %v8864, %v9067
        %v9069 = vpop.f32.mrb[0].mxu0
        %9070 = vmatprep.mubr.f32.mxu0 %v8261
        %9071 = vmatmul.mubr.f32.gmra.mrb[0].mxu0 %v8260
        %v9072 = vpop.f32.mrb[0].mxu0
        %v9073 = vadd.f32 %v8864, %v9072
        %v9074 = vpop.f32.mrb[0].mxu0
        %9075 = vmatprep.mubr.f32.mxu0 %v8265
        %9076 = vmatmul.mubr.f32.gmra.mrb[0].mxu0 %v8264
        %v9077 = vpop.f32.mrb[0].mxu0
        %v9078 = vadd.f32 %v8864, %v9077
        %v9079 = vpop.f32.mrb[0].mxu0
        %9080 = vmatprep.mubr.f32.mxu0 %v8269
        %9081 = vmatmul.mubr.f32.gmra.mrb[0].mxu0 %v8268
        %v9082 = vpop.f32.mrb[0].mxu0
        %v9083 = vadd.f32 %v8864, %v9082
        %v9084 = vpop.f32.mrb[0].mxu0
        %9085 = vmatprep.mubr.f32.mxu0 %v8273
        %9086 = vmatmul.mubr.f32.gmra.mrb[0].mxu0 %v8272
        %v9087 = vpop.f32.mrb[0].mxu0
        %v9088 = vadd.f32 %v8864, %v9087
        %v9089 = vpop.f32.mrb[0].mxu0
        %9090 = vmatprep.mubr.f32.mxu0 %v8277
        %9091 = vmatmul.mubr.f32.gmra.mrb[0].mxu0 %v8276
        %v9092 = vpop.f32.mrb[0].mxu0
        %v9093 = vadd.f32 %v8864, %v9092
        %v9094 = vpop.f32.mrb[0].mxu0
        %9095 = vmatprep.mubr.f32.mxu0 %v8281
        %9096 = vmatmul.mubr.f32.gmra.mrb[0].mxu0 %v8280
        %v9097 = vpop.f32.mrb[0].mxu0
        %v9098 = vadd.f32 %v8864, %v9097
        %v9099 = vpop.f32.mrb[0].mxu0
        %9100 = vmatprep.mubr.f32.mxu0 %v8285
        %9101 = vmatmul.mubr.f32.gmra.mrb[0].mxu0 %v8284
        %v9102 = vpop.f32.mrb[0].mxu0
        %v9103 = vadd.f32 %v8864, %v9102
        %v9104 = vpop.f32.mrb[0].mxu0
        %9105 = vmatprep.mubr.f32.mxu0 %v8289
        %9106 = vmatmul.mubr.f32.gmra.mrb[0].mxu0 %v8288
        %v9107 = vpop.f32.mrb[0].mxu0
        %v9108 = vadd.f32 %v8864, %v9107
        %v9109 = vpop.f32.mrb[0].mxu0
        %9110 = vdwg.mxu0
        %vm9111 = vcmask 15360
        %9112 = vst.msk [vmem:[%s464] sm:$0xff] %vm9111, %v8933
        %9113 = vst.msk [vmem:[%s464 + $0x8] sm:$0xff] %vm9111, %v8938
        %9114 = vst.msk [vmem:[%s464 + $0x10] sm:$0xff] %vm9111, %v8943
        %9115 = vst.msk [vmem:[%s464 + $0x18] sm:$0xff] %vm9111, %v8948
        %9116 = vst.msk [vmem:[%s464 + $0x20] sm:$0xff] %vm9111, %v8953
        %9117 = vst.msk [vmem:[%s464 + $0x28] sm:$0xff] %vm9111, %v8958
        %9118 = vst.msk [vmem:[%s464 + $0x30] sm:$0xff] %vm9111, %v8963
        %9119 = vst.msk [vmem:[%s464 + $0x38] sm:$0xff] %vm9111, %v8968
        %9120 = vst.msk [vmem:[%s464 + $0x40] sm:$0xff] %vm9111, %v8973
        %9121 = vst.msk [vmem:[%s464 + $0x48] sm:$0xff] %vm9111, %v8978
        %9122 = vst.msk [vmem:[%s464 + $0x50] sm:$0xff] %vm9111, %v8983
        %9123 = vst.msk [vmem:[%s464 + $0x58] sm:$0xff] %vm9111, %v8988
        %9124 = vst.msk [vmem:[%s464 + $0x60] sm:$0xff] %vm9111, %v8993
        %9125 = vst.msk [vmem:[%s464 + $0x68] sm:$0xff] %vm9111, %v8998
        %9126 = vst.msk [vmem:[%s464 + $0x70] sm:$0xff] %vm9111, %v9003
        %9127 = vst.msk [vmem:[%s464 + $0x78] sm:$0xff] %vm9111, %v9008
        %9128 = vst.msk [vmem:[%s464 + $0x80] sm:$0xff] %vm9111, %v9013
        %9129 = vst.msk [vmem:[%s464 + $0x88] sm:$0xff] %vm9111, %v9018
        %9130 = vst.msk [vmem:[%s464 + $0x90] sm:$0xff] %vm9111, %v9023
        %9131 = vst.msk [vmem:[%s464 + $0x98] sm:$0xff] %vm9111, %v9028
        %9132 = vst.msk [vmem:[%s464 + $0xa0] sm:$0xff] %vm9111, %v9033
        %9133 = vst.msk [vmem:[%s464 + $0xa8] sm:$0xff] %vm9111, %v9038
        %9134 = vst.msk [vmem:[%s464 + $0xb0] sm:$0xff] %vm9111, %v9043
        %9135 = vst.msk [vmem:[%s464 + $0xb8] sm:$0xff] %vm9111, %v9048
        %9136 = vst.msk [vmem:[%s464 + $0xc0] sm:$0xff] %vm9111, %v9053
        %9137 = vst.msk [vmem:[%s464 + $0xc8] sm:$0xff] %vm9111, %v9058
        %9138 = vst.msk [vmem:[%s464 + $0xd0] sm:$0xff] %vm9111, %v9063
        %9139 = vst.msk [vmem:[%s464 + $0xd8] sm:$0xff] %vm9111, %v9068
        %9140 = vst.msk [vmem:[%s464 + $0xe0] sm:$0xff] %vm9111, %v9073
        %9141 = vst.msk [vmem:[%s464 + $0xe8] sm:$0xff] %vm9111, %v9078
        %9142 = vst.msk [vmem:[%s464 + $0xf0] sm:$0xff] %vm9111, %v9083
        %9143 = vst.msk [vmem:[%s464 + $0xf8] sm:$0xff] %vm9111, %v9088
        %9144 = vst.msk [vmem:[%s464 + $0x100] sm:$0xff] %vm9111, %v9093
        %9145 = vst.msk [vmem:[%s464 + $0x108] sm:$0xff] %vm9111, %v9098
        %9146 = vst.msk [vmem:[%s464 + $0x110] sm:$0xff] %vm9111, %v9103
        %9147 = vst.msk [vmem:[%s464 + $0x118] sm:$0xff] %vm9111, %v9108
        %v9148 = vld [vmem:[%s454] sm:$0xff]
        %v9149 = vld [vmem:[%s454 + $0x8] sm:$0xff]
        %v9150 = vld [vmem:[%s454 + $0x10] sm:$0xff]
        %v9151 = vld [vmem:[%s454 + $0x18] sm:$0xff]
        %v9152 = vld [vmem:[%s454 + $0x20] sm:$0xff]
        %v9153 = vld [vmem:[%s454 + $0x28] sm:$0xff]
        %v9154 = vld [vmem:[%s454 + $0x30] sm:$0xff]
        %v9155 = vld [vmem:[%s454 + $0x38] sm:$0xff]
        %v9156 = vld [vmem:[%s454 + $0x40] sm:$0xff]
        %v9157 = vld [vmem:[%s454 + $0x48] sm:$0xff]
        %v9158 = vld [vmem:[%s454 + $0x50] sm:$0xff]
        %v9159 = vld [vmem:[%s454 + $0x58] sm:$0xff]
        %v9160 = vld [vmem:[%s454 + $0x60] sm:$0xff]
        %v9161 = vld [vmem:[%s454 + $0x68] sm:$0xff]
        %v9162 = vld [vmem:[%s454 + $0x70] sm:$0xff]
        %v9163 = vld [vmem:[%s454 + $0x78] sm:$0xff]
        %v9164 = vld [vmem:[%s454 + $0x80] sm:$0xff]
        %v9165 = vld [vmem:[%s454 + $0x88] sm:$0xff]
        %v9166 = vld [vmem:[%s454 + $0x90] sm:$0xff]
        %v9167 = vld [vmem:[%s454 + $0x98] sm:$0xff]
        %v9168 = vld [vmem:[%s454 + $0xa0] sm:$0xff]
        %v9169 = vld [vmem:[%s454 + $0xa8] sm:$0xff]
        %v9170 = vld [vmem:[%s454 + $0xb0] sm:$0xff]
        %v9171 = vld [vmem:[%s454 + $0xb8] sm:$0xff]
        %v9172 = vld [vmem:[%s454 + $0xc0] sm:$0xff]
        %v9173 = vld [vmem:[%s454 + $0xc8] sm:$0xff]
        %v9174 = vld [vmem:[%s454 + $0xd0] sm:$0xff]
        %v9175 = vld [vmem:[%s454 + $0xd8] sm:$0xff]
        %v9176 = vld [vmem:[%s454 + $0xe0] sm:$0xff]
        %v9177 = vld [vmem:[%s454 + $0xe8] sm:$0xff]
        %v9178 = vld [vmem:[%s454 + $0xf0] sm:$0xff]
        %v9179 = vld [vmem:[%s454 + $0xf8] sm:$0xff]
        %v9180 = vld [vmem:[%s454 + $0x100] sm:$0xff]
        %v9181 = vld [vmem:[%s454 + $0x108] sm:$0xff]
        %v9182 = vld [vmem:[%s454 + $0x110] sm:$0xff]
        %v9183 = vld [vmem:[%s454 + $0x118] sm:$0xff]
        %v9184 = vld [vmem:[%s454 + $0x120] sm:$0xff]
        %v9185 = vld [vmem:[%s454 + $0x128] sm:$0xff]
        %v9186 = vld [vmem:[%s454 + $0x130] sm:$0xff]
        %v9187 = vld [vmem:[%s454 + $0x138] sm:$0xff]
        %v9188 = vld [vmem:[%s454 + $0x140] sm:$0x3f]
        %v9189 = vsel %vm570, %v9148, 0.0
        %v9190 = vsel %vm570, %v9149, 0.0
        %v9191 = vadd.f32 %v9189, %v9190
        %v9192 = vsel %vm570, %v9150, 0.0
        %v9193 = vadd.f32 %v9191, %v9192
        %v9194 = vsel %vm570, %v9151, 0.0
        %v9195 = vadd.f32 %v9193, %v9194
        %v9196 = vsel %vm570, %v9152, 0.0
        %v9197 = vadd.f32 %v9195, %v9196
        %v9198 = vsel %vm570, %v9153, 0.0
        %v9199 = vadd.f32 %v9197, %v9198
        %v9200 = vsel %vm570, %v9154, 0.0
        %v9201 = vadd.f32 %v9199, %v9200
        %v9202 = vsel %vm570, %v9155, 0.0
        %v9203 = vadd.f32 %v9201, %v9202
        %v9204 = vsel %vm570, %v9156, 0.0
        %v9205 = vadd.f32 %v9203, %v9204
        %v9206 = vsel %vm570, %v9157, 0.0
        %v9207 = vadd.f32 %v9205, %v9206
        %v9208 = vsel %vm570, %v9158, 0.0
        %v9209 = vadd.f32 %v9207, %v9208
        %v9210 = vsel %vm570, %v9159, 0.0
        %v9211 = vadd.f32 %v9209, %v9210
        %v9212 = vsel %vm570, %v9160, 0.0
        %v9213 = vadd.f32 %v9211, %v9212
        %v9214 = vsel %vm570, %v9161, 0.0
        %v9215 = vadd.f32 %v9213, %v9214
        %v9216 = vsel %vm570, %v9162, 0.0
        %v9217 = vadd.f32 %v9215, %v9216
        %v9218 = vsel %vm570, %v9163, 0.0
        %v9219 = vadd.f32 %v9217, %v9218
        %v9220 = vsel %vm570, %v9164, 0.0
        %v9221 = vadd.f32 %v9219, %v9220
        %v9222 = vsel %vm570, %v9165, 0.0
        %v9223 = vadd.f32 %v9221, %v9222
        %v9224 = vsel %vm570, %v9166, 0.0
        %v9225 = vadd.f32 %v9223, %v9224
        %v9226 = vsel %vm570, %v9167, 0.0
        %v9227 = vadd.f32 %v9225, %v9226
        %v9228 = vsel %vm570, %v9168, 0.0
        %v9229 = vadd.f32 %v9227, %v9228
        %v9230 = vsel %vm570, %v9169, 0.0
        %v9231 = vadd.f32 %v9229, %v9230
        %v9232 = vsel %vm570, %v9170, 0.0
        %v9233 = vadd.f32 %v9231, %v9232
        %v9234 = vsel %vm570, %v9171, 0.0
        %v9235 = vadd.f32 %v9233, %v9234
        %v9236 = vsel %vm570, %v9172, 0.0
        %v9237 = vadd.f32 %v9235, %v9236
        %v9238 = vsel %vm570, %v9173, 0.0
        %v9239 = vadd.f32 %v9237, %v9238
        %v9240 = vsel %vm570, %v9174, 0.0
        %v9241 = vadd.f32 %v9239, %v9240
        %v9242 = vsel %vm570, %v9175, 0.0
        %v9243 = vadd.f32 %v9241, %v9242
        %v9244 = vsel %vm570, %v9176, 0.0
        %v9245 = vadd.f32 %v9243, %v9244
        %v9246 = vsel %vm570, %v9177, 0.0
        %v9247 = vadd.f32 %v9245, %v9246
        %v9248 = vsel %vm570, %v9178, 0.0
        %v9249 = vadd.f32 %v9247, %v9248
        %v9250 = vsel %vm570, %v9179, 0.0
        %v9251 = vadd.f32 %v9249, %v9250
        %v9252 = vsel %vm570, %v9180, 0.0
        %v9253 = vadd.f32 %v9251, %v9252
        %v9254 = vsel %vm570, %v9181, 0.0
        %v9255 = vadd.f32 %v9253, %v9254
        %v9256 = vsel %vm570, %v9182, 0.0
        %v9257 = vadd.f32 %v9255, %v9256
        %v9258 = vsel %vm570, %v9183, 0.0
        %v9259 = vadd.f32 %v9257, %v9258
        %v9260 = vsel %vm570, %v9184, 0.0
        %v9261 = vadd.f32 %v9259, %v9260
        %v9262 = vsel %vm570, %v9185, 0.0
        %v9263 = vadd.f32 %v9261, %v9262
        %v9264 = vsel %vm570, %v9186, 0.0
        %v9265 = vadd.f32 %v9263, %v9264
        %v9266 = vsel %vm570, %v9187, 0.0
        %v9267 = vadd.f32 %v9265, %v9266
        %vm9268 = vcmask 259072
        %v9269 = vsel %vm9268, %v9188, 0.0
        %v9270 = vadd.f32 %v9267, %v9269
        %v9271 = vrot.slane %v9270, 4
        %v9272 = vadd.f32 %v9270, %v9271
        %v9273 = vrot.slane %v9272, 2
        %v9274 = vadd.f32 %v9272, %v9273
        %v9275 = vrot.slane %v9274, 1
        %v9276 = vadd.f32 %v9274, %v9275
        %v9277 = vld [vmem:[%s7] sm:$0xff]
        %v9278 = vld [vmem:[%s7 + $0x8] sm:$0xff]
        %v9279 = vld [vmem:[%s7 + $0x10] sm:$0xff]
        %v9280 = vld [vmem:[%s7 + $0x18] sm:$0xff]
        %v9281 = vld [vmem:[%s8] sm:$0x1]
        %v9283 = vsel %vm570, %v9276, 0
        %9285 = vmatprep.subr.mxu0 0.0
        %9286 = vmatpush1.msra.mxu0 %v9277
        %9287 = vmatprep.subr.mxu0 0.0
        %9288 = vmatpush1.msra.mxu0 %v9278
        %9289 = vmatprep.subr.mxu0 0.0
        %9290 = vmatpush1.msra.mxu0 %v9279
        %9291 = vmatprep.subr.mxu0 0.0
        %9292 = vmatpush1.msra.mxu0 %v9280
        %9293 = vmatprep.subr.mxu0 0.0
        %9294 = vmatpush1.msra.mxu0 0.0
        %9295 = vmatprep.subr.mxu0 0.0
        %9296 = vmatpush1.msra.mxu0 0.0
        %9297 = vmatprep.subr.mxu0 0.0
        %9298 = vmatpush1.msra.mxu0 0.0
        %9299 = vmatprep.subr.mxu0 0.0
        %9300 = vmatpush1.msra.mxu0 0.0
        %9301 = vmatprep.subr.mxu0 0.0
        %9302 = vmatpush1.msra.mxu0 0.0
        %9303 = vmatprep.subr.mxu0 0.0
        %9304 = vmatpush1.msra.mxu0 0.0
        %9305 = vmatprep.subr.mxu0 0.0
        %9306 = vmatpush1.msra.mxu0 0.0
        %9307 = vmatprep.subr.mxu0 0.0
        %9308 = vmatpush1.msra.mxu0 0.0
        %9309 = vmatprep.subr.mxu0 0.0
        %9310 = vmatpush1.msra.mxu0 0.0
        %9311 = vmatprep.subr.mxu0 0.0
        %9312 = vmatpush1.msra.mxu0 0.0
        %9313 = vmatprep.subr.mxu0 0.0
        %9314 = vmatpush1.msra.mxu0 0.0
        %9315 = vmatprep.subr.mxu0 0.0
        %9316 = vmatpush1.msra.mxu0 0.0
        %9317 = vmatprep.subr.mxu0 0.0
        %9318 = vmatpush1.msra.mxu0 0.0
        %9319 = vmatprep.subr.mxu0 0.0
        %9320 = vmatpush1.msra.mxu0 0.0
        %9321 = vmatprep.subr.mxu0 0.0
        %9322 = vmatpush1.msra.mxu0 0.0
        %9323 = vmatprep.subr.mxu0 0.0
        %9324 = vmatpush1.msra.mxu0 0.0
        %9325 = vmatprep.subr.mxu0 0.0
        %9326 = vmatpush1.msra.mxu0 0.0
        %9327 = vmatprep.subr.mxu0 0.0
        %9328 = vmatpush1.msra.mxu0 0.0
        %9329 = vmatprep.subr.mxu0 0.0
        %9330 = vmatpush1.msra.mxu0 0.0
        %9331 = vmatprep.subr.mxu0 0.0
        %9332 = vmatpush1.msra.mxu0 0.0
        %9333 = vmatprep.subr.mxu0 0.0
        %9334 = vmatpush1.msra.mxu0 0.0
        %9335 = vmatprep.subr.mxu0 0.0
        %9336 = vmatpush1.msra.mxu0 0.0
        %9337 = vmatprep.subr.mxu0 0.0
        %9338 = vmatpush1.msra.mxu0 0.0
        %9339 = vmatprep.subr.mxu0 0.0
        %9340 = vmatpush1.msra.mxu0 0.0
        %9341 = vmatprep.subr.mxu0 0.0
        %9342 = vmatpush1.msra.mxu0 0.0
        %9343 = vmatprep.subr.mxu0 0.0
        %9344 = vmatpush1.msra.mxu0 0.0
        %9345 = vmatprep.subr.mxu0 0.0
        %9346 = vmatpush1.msra.mxu0 0.0
        %9347 = vmatprep.subr.mxu0 0.0
        %9348 = vmatpush1.msra.mxu0 0.0
        %9349 = vmatprep.mubr.f32.mxu0 0.0
        %9350 = vmatmul.mubr.f32.gmra.mrb[0].mxu0 %v9283
        %v9351 = vpop.f32.mrb[0].mxu0
        %v9352 = vadd.f32 %v9281, %v9351
        %v9353 = vpop.f32.mrb[0].mxu0
        %9354 = vdwg.mxu0
        %v9355 = vmax.f32 %v9352, 0.0
        %v9356 = vld [vmem:[%s9] sm:$0xff]
        %v9357 = vld [vmem:[%s9 + $0x8] sm:$0xff]
        %v9358 = vld [vmem:[%s9 + $0x10] sm:$0xff]
        %v9359 = vld [vmem:[%s9 + $0x18] sm:$0xff]
        %v9360 = vld [vmem:[%s9 + $0x20] sm:$0xff]
        %v9361 = vld [vmem:[%s9 + $0x28] sm:$0xff]
        %v9362 = vld [vmem:[%s9 + $0x30] sm:$0xff]
        %v9363 = vld [vmem:[%s9 + $0x38] sm:$0xff]
        %v9364 = vld [vmem:[%s9 + $0x40] sm:$0xff]
        %v9365 = vld [vmem:[%s9 + $0x48] sm:$0xff]
        %v9366 = vld [vmem:[%s9 + $0x50] sm:$0xff]
        %v9367 = vld [vmem:[%s9 + $0x58] sm:$0xff]
        %v9368 = vld [vmem:[%s9 + $0x60] sm:$0xff]
        %v9369 = vld [vmem:[%s9 + $0x68] sm:$0xff]
        %v9370 = vld [vmem:[%s9 + $0x70] sm:$0xff]
        %v9371 = vld [vmem:[%s9 + $0x78] sm:$0xff]
        %v9372 = vld [vmem:[%s10] sm:$0x1]
        %9373 = vmatprep.subr.mxu0 0.0
        %9374 = vmatpush1.msra.mxu0 %v9356
        %9375 = vmatprep.subr.mxu0 0.0
        %9376 = vmatpush1.msra.mxu0 %v9357
        %9377 = vmatprep.subr.mxu0 0.0
        %9378 = vmatpush1.msra.mxu0 %v9358
        %9379 = vmatprep.subr.mxu0 0.0
        %9380 = vmatpush1.msra.mxu0 %v9359
        %9381 = vmatprep.subr.mxu0 0.0
        %9382 = vmatpush1.msra.mxu0 %v9360
        %9383 = vmatprep.subr.mxu0 0.0
        %9384 = vmatpush1.msra.mxu0 %v9361
        %9385 = vmatprep.subr.mxu0 0.0
        %9386 = vmatpush1.msra.mxu0 %v9362
        %9387 = vmatprep.subr.mxu0 0.0
        %9388 = vmatpush1.msra.mxu0 %v9363
        %9389 = vmatprep.subr.mxu0 0.0
        %9390 = vmatpush1.msra.mxu0 %v9364
        %9391 = vmatprep.subr.mxu0 0.0
        %9392 = vmatpush1.msra.mxu0 %v9365
        %9393 = vmatprep.subr.mxu0 0.0
        %9394 = vmatpush1.msra.mxu0 %v9366
        %9395 = vmatprep.subr.mxu0 0.0
        %9396 = vmatpush1.msra.mxu0 %v9367
        %9397 = vmatprep.subr.mxu0 0.0
        %9398 = vmatpush1.msra.mxu0 %v9368
        %9399 = vmatprep.subr.mxu0 0.0
        %9400 = vmatpush1.msra.mxu0 %v9369
        %9401 = vmatprep.subr.mxu0 0.0
        %9402 = vmatpush1.msra.mxu0 %v9370
        %9403 = vmatprep.subr.mxu0 0.0
        %9404 = vmatpush1.msra.mxu0 %v9371
        %9405 = vmatprep.subr.mxu0 0.0
        %9406 = vmatpush1.msra.mxu0 0.0
        %9407 = vmatprep.subr.mxu0 0.0
        %9408 = vmatpush1.msra.mxu0 0.0
        %9409 = vmatprep.subr.mxu0 0.0
        %9410 = vmatpush1.msra.mxu0 0.0
        %9411 = vmatprep.subr.mxu0 0.0
        %9412 = vmatpush1.msra.mxu0 0.0
        %9413 = vmatprep.subr.mxu0 0.0
        %9414 = vmatpush1.msra.mxu0 0.0
        %9415 = vmatprep.subr.mxu0 0.0
        %9416 = vmatpush1.msra.mxu0 0.0
        %9417 = vmatprep.subr.mxu0 0.0
        %9418 = vmatpush1.msra.mxu0 0.0
        %9419 = vmatprep.subr.mxu0 0.0
        %9420 = vmatpush1.msra.mxu0 0.0
        %9421 = vmatprep.subr.mxu0 0.0
        %9422 = vmatpush1.msra.mxu0 0.0
        %9423 = vmatprep.subr.mxu0 0.0
        %9424 = vmatpush1.msra.mxu0 0.0
        %9425 = vmatprep.subr.mxu0 0.0
        %9426 = vmatpush1.msra.mxu0 0.0
        %9427 = vmatprep.subr.mxu0 0.0
        %9428 = vmatpush1.msra.mxu0 0.0
        %9429 = vmatprep.subr.mxu0 0.0
        %9430 = vmatpush1.msra.mxu0 0.0
        %9431 = vmatprep.subr.mxu0 0.0
        %9432 = vmatpush1.msra.mxu0 0.0
        %9433 = vmatprep.subr.mxu0 0.0
        %9434 = vmatpush1.msra.mxu0 0.0
        %9435 = vmatprep.subr.mxu0 0.0
        %9436 = vmatpush1.msra.mxu0 0.0
        %9437 = vmatprep.mubr.f32.mxu0 0.0
        %9438 = vmatmul.mubr.f32.gmra.mrb[0].mxu0 %v9355
        %v9439 = vpop.f32.mrb[0].mxu0
        %v9440 = vadd.f32 %v9372, %v9439
        %v9441 = vpop.f32.mrb[0].mxu0
        %9442 = vdwg.mxu0
        %vm9443 = vcmask 8192
        %9444 = vst.msk [vmem:[%s449] sm:$0x1] %vm9443, %v9440
        %p9445 = scmp.lt.s32.totalorder %s30, 1
        %s9446 = scalar_select %p9445, %s30, 1
        %s9447 = smul.addr %s9446, 36
        %s9448 = smul.addr %s9447, 8
        %s9449 = scalar_lea.vmem %s11, %s9448
        %p9450 = scmp.lt.s32.totalorder %s30, 1
        %s9451 = scalar_select %p9450, %s30, 1
        %s9452 = smul.addr %s9451, 36
        %s9453 = smul.addr %s9452, 8
        %s9454 = scalar_lea.vmem %s12, %s9453
        %s9455 = sand.u32 %s326, 1
        %s9456 = scalar_lea.sflag [#allocation4], %s9455
        %s9457 = sand.u32 %s326, 1
        %s9458 = scalar_lea.vmem [#allocation3], %s9457
        // Predicated region
        $region65: #{tpu_custom_call.1} parent=63 // pred_check
          %p9459 = pneg %p284
        $region66: #{tpu_custom_call.1} parent=63 // pred_check_branch
          %9461 = sbr.rel (%p9459) target = $region68
        $region67: #{tpu_custom_call.1} parent=63 // pred_region
          _
        $region68: #{tpu_custom_call.1} parent=63 // pred_fallthru
          _
        // Predicated region
        $region69: #{tpu_custom_call.1} parent=63 // pred_check
          %p9462 = pneg %p310
        $region70: #{tpu_custom_call.1} parent=63 // pred_check_branch
          %9464 = sbr.rel (%p9462) target = $region72
        $region71: #{tpu_custom_call.1} parent=63 // pred_region
          _
        $region72: #{tpu_custom_call.1} parent=63 // pred_fallthru
          _
        // Predicated region
        $region73: #{tpu_custom_call.1} parent=63 // pred_check
          %p9465 = pneg %p336
        $region74: #{tpu_custom_call.1} parent=63 // pred_check_branch
          %9467 = sbr.rel (%p9465) target = $region76
        $region75: #{tpu_custom_call.1} parent=63 // pred_region
          %s9469 = ssub.s32 16, 16
          %9470 = vsyncadd %s9456, %s9469
          %s9471 = smul.addr %s30, 16
          %s9472 = scalar_lea.hbm %s13, %s9471
          %s9474 = sshll.u32 %s9458, 4
          %s9475 = int_to_ptr.vmem [resolvable:$true] %s9474
          %9477 = dma.vmem_to_hbm [thread:$0]  %s9475, 16, %s9472, %s9456
        $region76: #{tpu_custom_call.1} parent=63 // pred_fallthru
          _
      $region64: #{tpu_custom_call.1} parent=5 // pred_fallthru
        _
      %p9478 = scmp.le.s32.totalorder 2, %s25
      // Predicated region
      $region77: #{tpu_custom_call.1} parent=5 // pred_check
        %p9479 = pneg %p9478
      $region78: #{tpu_custom_call.1} parent=5 // pred_check_branch
        %9481 = sbr.rel (%p9479) target = $region80
      $region79: #{tpu_custom_call.1} parent=5 // pred_region
        %s9482 = ssub.s32 %s25, 2
        // Predicated region
        $region81: #{tpu_custom_call.1} parent=79 // pred_check
          %p9483 = pneg %p290
        $region82: #{tpu_custom_call.1} parent=79 // pred_check_branch
          %9485 = sbr.rel (%p9483) target = $region84
        $region83: #{tpu_custom_call.1} parent=79 // pred_region
          %p9486 = scmp.lt.s32.totalorder %s31, 1
          %s9487 = scalar_select %p9486, %s31, 1
          %s9488 = smul.addr %s9487, 36
          %s9489 = smul.addr %s9488, 8
          %s9490 = scalar_lea.vmem %s11, %s9489
        $region84: #{tpu_custom_call.1} parent=79 // pred_fallthru
          _
        // Predicated region
        $region85: #{tpu_custom_call.1} parent=79 // pred_check
          %p9491 = pneg %p316
        $region86: #{tpu_custom_call.1} parent=79 // pred_check_branch
          %9493 = sbr.rel (%p9491) target = $region88
        $region87: #{tpu_custom_call.1} parent=79 // pred_region
          %p9494 = scmp.lt.s32.totalorder %s31, 1
          %s9495 = scalar_select %p9494, %s31, 1
          %s9496 = smul.addr %s9495, 36
          %s9497 = smul.addr %s9496, 8
          %s9498 = scalar_lea.vmem %s12, %s9497
        $region88: #{tpu_custom_call.1} parent=79 // pred_fallthru
          _
        // Predicated region
        $region89: #{tpu_custom_call.1} parent=79 // pred_check
          %p9499 = pneg %p342
        $region90: #{tpu_custom_call.1} parent=79 // pred_check_branch
          %9501 = sbr.rel (%p9499) target = $region92
        $region91: #{tpu_custom_call.1} parent=79 // pred_region
          %s9502 = sand.u32 %s327, 1
          %s9503 = scalar_lea.sflag [#allocation4], %s9502
          %s9504 = sand.u32 %s327, 1
          %s9505 = scalar_lea.vmem [#allocation3], %s9504
          %9506 = dma.done %s9503, 16
        $region92: #{tpu_custom_call.1} parent=79 // pred_fallthru
          _
      $region80: #{tpu_custom_call.1} parent=5 // pred_fallthru
        _
    $region6: #{tpu_custom_call.1} parent=1 // loop_footer
      %s29 = sadd.s32 1, %s25
    $region7: #{tpu_custom_call.1} parent=1 // loop_footer_branch
      %24 = sbr.rel target = $region3
    $region8: #{tpu_custom_call.1} parent=1 // loop_exit
      _
    %9507 = vsyncpa [#allocation4], 1
    %s9508 = scalar_lea.sflag [#allocation4], 1
    %9509 = vsyncpa %s9508, 1

</llo_original>
